<compile_context>
chip_gen: v5e
topology: v5e:2x2
jax: 0.10.0
libtpu: 0.0.40
codegen_flags: <defaults>
</compile_context>

<pallas_src>
import jax
import jax.numpy as jnp
from jax.experimental import pallas as pl
from jax.experimental.pallas import tpu as pltpu

D = 8
W = 256
INPUT_CH = 3
INPUT_CH_VIEWS = 3
OUTPUT_CH = 4
SKIPS = (4,)
SKIP_LAYER = SKIPS[0] + 1  # layer whose input is the concat (layer 5)


def nerf_kernel(x_ref, wsmall_ref, wbig_ref, b_ref, wout_ref, bout_ref, o_ref):
    f32 = jnp.float32
    bf16 = jnp.bfloat16

    pts = x_ref[...]            # (tm, 3)   f32
    wsmall = wsmall_ref[...]    # (2, 3, W) f32  -- [w0, w5[:3]]
    biases = b_ref[...]         # (D, W)    f32

    def bias(i):
        return biases[i:i + 1, :]                       # (1, W)

    def small_matmul(w3xw):
        # (tm,3) @ (3,W) as three VPU broadcast-FMAs (K=3 on the MXU wastes a
        # full-depth pass).  Lowers to lane/sublane broadcasts + VALU, which
        # is free filler under the surrounding MXU work; if it ever
        # scalarizes, fall back to a single padded (tm,8)@(8,W) MXU dot.
        return (pts[:, 0:1] * w3xw[0:1, :]
                + pts[:, 1:2] * w3xw[1:2, :]
                + pts[:, 2:3] * w3xw[2:3, :])

    def lin_relu(h_bf16, layer_idx, big_idx):
        acc = jnp.dot(h_bf16, wbig_ref[big_idx], preferred_element_type=f32)
        # bias + ReLU in f32 for parity; carry the activation in bf16.
        return jnp.maximum(acc + bias(layer_idx), 0.0).astype(bf16)

    # layer 0: 3 -> 256 (VPU)
    h = jnp.maximum(small_matmul(wsmall[0]) + bias(0), 0.0).astype(bf16)
    # layers 1..4: 256 -> 256 (MXU, bf16 in / f32 accumulate)
    h = lin_relu(h, 1, 0)
    h = lin_relu(h, 2, 1)
    h = lin_relu(h, 3, 2)
    h = lin_relu(h, 4, 3)
    # layer 5 (input = cat([pts, h])): pts branch on VPU + h branch on MXU
    acc5 = (jnp.dot(h, wbig_ref[4], preferred_element_type=f32)
            + small_matmul(wsmall[1]) + bias(5))
    h = jnp.maximum(acc5, 0.0).astype(bf16)
    # layers 6, 7
    h = lin_relu(h, 6, 5)
    h = lin_relu(h, 7, 6)
    # output_linear: 256 -> 4, no ReLU (lane-sparse output kept on purpose)
    o_ref[...] = (jnp.dot(h, wout_ref[...], preferred_element_type=f32)
                  + bout_ref[...]).astype(o_ref.dtype)


def nerf_forward(x, params, *, tm=2048):
    """x: (N, input_ch + input_ch_views) float32.  Returns (N, 4) float32."""
    assert x.ndim == 2 and x.shape[-1] == INPUT_CH + INPUT_CH_VIEWS, (
        "kernel is specialized to use_viewdirs=False with "
        f"input_ch={INPUT_CH}, input_ch_views={INPUT_CH_VIEWS}")
    wsmall, wbig, biases, wout, bout = params["kernel_args"]
    assert wsmall.shape == (2, INPUT_CH, W)
    assert wbig.shape == (D - 1, W, W) and wbig.dtype == jnp.bfloat16
    assert biases.shape == (D, W)
    assert wout.shape == (W, OUTPUT_CH) and bout.shape == (1, OUTPUT_CH)

    n = x.shape[0]
    pts = x[:, :INPUT_CH].astype(jnp.float32)   # view dirs unused (use_viewdirs=False)

    # Row-tile selection: as large as possible (amortize per-grid-step
    # overhead), but keep >= 2 grid blocks when the batch allows so the
    # "parallel" axis shards across v7x's two TensorCores.
    assert tm >= 256 and tm % 256 == 0, "tm must be a multiple of 256"
    tm_eff = tm
    while tm_eff > 256 and pl.cdiv(n, tm_eff) < 2:
        tm_eff //= 2

    n_pad = pl.cdiv(n, tm_eff) * tm_eff
    if n_pad != n:
        pts = jnp.pad(pts, ((0, n_pad - n), (0, 0)))

    in_specs = [
        pl.BlockSpec((tm_eff, INPUT_CH), lambda i: (i, 0)),    # pts tile (f32)
        pl.BlockSpec((2, INPUT_CH, W), lambda i: (0, 0, 0)),   # small weights (f32)
        pl.BlockSpec((D - 1, W, W), lambda i: (0, 0, 0)),      # big weights (bf16)
        pl.BlockSpec((D, W), lambda i: (0, 0)),                # biases (f32)
        pl.BlockSpec((W, OUTPUT_CH), lambda i: (0, 0)),        # output weight (bf16)
        pl.BlockSpec((1, OUTPUT_CH), lambda i: (0, 0)),        # output bias (f32)
    ]
    out_spec = pl.BlockSpec((tm_eff, OUTPUT_CH), lambda i: (i, 0))

    weight_bytes = sum(int(a.size) * a.dtype.itemsize
                       for a in (wsmall, wbig, biases, wout, bout))
    flops_per_row = 2 * (2 * INPUT_CH * W + (D - 1) * W * W + W * OUTPUT_CH)
    cost = pl.CostEstimate(   # advisory only (not a roofline number)
        flops=int(n_pad) * flops_per_row,
        transcendentals=0,
        bytes_accessed=int(n_pad) * (INPUT_CH + OUTPUT_CH) * 4 + weight_bytes,
    )

    out = pl.pallas_call(
        nerf_kernel,
        out_shape=jax.ShapeDtypeStruct((n_pad, OUTPUT_CH), jnp.float32),
        grid_spec=pltpu.PrefetchScalarGridSpec(
            num_scalar_prefetch=0,
            grid=(n_pad // tm_eff,),
            in_specs=in_specs,
            out_specs=out_spec,
        ),
        compiler_params=pltpu.CompilerParams(
            dimension_semantics=("parallel",),
            # Explicit budget: raises v5e's 16 MiB scoped default so tm=2048
            # fits, no-op on v6e, and leaves headroom under v7x's 64 MiB
            # physical VMEM.  Live set at tm=2048 is ~8-12 MiB.
            vmem_limit_bytes=32 * 1024 * 1024,
        ),
        cost_estimate=cost,
    )(pts, wsmall, wbig, biases, wout, bout)

    return out[:n]


def init_params(key):
    """Deterministic init (PyTorch-Linear-like uniform in +-1/sqrt(fan_in))."""
    def linear(key, fan_in, fan_out):
        k1, k2 = jax.random.split(key)
        bound = 1.0 / jnp.sqrt(jnp.float32(fan_in))
        wt = jax.random.uniform(k1, (fan_in, fan_out), jnp.float32,
                                -bound, bound)      # stored as (in, out)
        b = jax.random.uniform(k2, (1, fan_out), jnp.float32, -bound, bound)
        return wt, b

    keys = jax.random.split(key, D + 1)
    pts_layers = []
    for i in range(D):
        if i == 0:
            fan_in = INPUT_CH
        elif (i - 1) in SKIPS:                 # layer right after a skip concat
            fan_in = W + INPUT_CH
        else:
            fan_in = W
        pts_layers.append(linear(keys[i], fan_in, W))
    wout, bout = linear(keys[D], W, OUTPUT_CH)

    # Kernel argument packing.
    w0t = pts_layers[0][0]                              # (3, W)
    w5t = pts_layers[SKIP_LAYER][0]                     # (W + 3, W)
    wsmall = jnp.stack([w0t, w5t[:INPUT_CH]], axis=0)   # (2, 3, W) f32 (VPU path)

    big = []
    for i in range(1, D):
        wt = pts_layers[i][0]
        if (i - 1) in SKIPS:
            wt = wt[INPUT_CH:]                          # h-branch of the skip layer
        big.append(wt)
    wbig = jnp.stack(big, axis=0).astype(jnp.bfloat16)  # (D-1, W, W) bf16

    biases = jnp.concatenate([pts_layers[i][1] for i in range(D)], axis=0)  # (D, W)

    kernel_args = (wsmall, wbig, biases, wout.astype(jnp.bfloat16), bout)
    return {"kernel_args": kernel_args}


def nerf_reference(x, params):
    """Pure-JAX mirror with identical bf16-carry / f32-accumulate numerics."""
    f32, bf16 = jnp.float32, jnp.bfloat16
    pts = x[:, :INPUT_CH].astype(f32)
    wsmall, wbig, biases, wout, bout = params["kernel_args"]

    def bias(i):
        return biases[i:i + 1, :]

    h = jnp.maximum(pts @ wsmall[0] + bias(0), 0.0).astype(bf16)
    big_idx = 0
    for layer in range(1, D):
        acc = jnp.dot(h, wbig[big_idx], preferred_element_type=f32)
        if layer == SKIP_LAYER:
            acc = acc + pts @ wsmall[1]
        h = jnp.maximum(acc + bias(layer), 0.0).astype(bf16)
        big_idx += 1
    return jnp.dot(h, wout, preferred_element_type=f32) + bout


if __name__ == "__main__":
    key = jax.random.PRNGKey(0)
    kp, kx = jax.random.split(key)
    params = init_params(kp)

    N = 1024  # auto tile selection -> tm_eff=512, grid=2 (both v7x TCs busy)
    x = jax.random.normal(kx, (N, INPUT_CH + INPUT_CH_VIEWS), jnp.float32)

    out = nerf_forward(x, params)
    out = jax.block_until_ready(out)

    ref = nerf_reference(x, params)
    assert out.shape == (N, OUTPUT_CH)
    assert jnp.allclose(out, ref, atol=1e-2, rtol=1e-2), "mismatch vs reference"

    print("KERNEL_OK")
</pallas_src>

<mosaic_0001>
module attributes {stable_mosaic.version = 11 : i64} {
  func.func @nerf_kernel(%arg0: i32, %arg1: memref<512x3xf32, #tpu.memory_space<vmem>>, %arg2: memref<2x3x256xf32, #tpu.memory_space<vmem>>, %arg3: memref<7x256x256xbf16, #tpu.memory_space<vmem>>, %arg4: memref<8x256xf32, #tpu.memory_space<vmem>>, %arg5: memref<256x4xbf16, #tpu.memory_space<vmem>>, %arg6: memref<1x4xf32, #tpu.memory_space<vmem>>, %arg7: memref<512x4xf32, #tpu.memory_space<vmem>>) attributes {dimension_semantics = [#tpu.dimension_semantics<parallel>], iteration_bounds = array<i64: 2>, scalar_prefetch = 0 : i64, scratch_operands = 0 : i64, tpu.core_type = #tpu.core_type<tc>, window_params = [{transform_indices = @transform_0, window_bounds = array<i64: 512, 3>}, {pipeline_mode = #tpu.pipeline_mode<synchronous>, transform_indices = @transform_1, window_bounds = array<i64: 2, 3, 256>}, {pipeline_mode = #tpu.pipeline_mode<synchronous>, transform_indices = @transform_2, window_bounds = array<i64: 7, 256, 256>}, {pipeline_mode = #tpu.pipeline_mode<synchronous>, transform_indices = @transform_3, window_bounds = array<i64: 8, 256>}, {pipeline_mode = #tpu.pipeline_mode<synchronous>, transform_indices = @transform_4, window_bounds = array<i64: 256, 4>}, {pipeline_mode = #tpu.pipeline_mode<synchronous>, transform_indices = @transform_5, window_bounds = array<i64: 1, 4>}, {transform_indices = @transform_6, window_bounds = array<i64: 512, 4>}]} {
    %c0 = arith.constant 0 : index
    %c0_0 = arith.constant 0 : index
    %0 = vector.load %arg1[%c0, %c0_0] : memref<512x3xf32, #tpu.memory_space<vmem>>, vector<512x3xf32>
    %c0_1 = arith.constant 0 : index
    %c0_2 = arith.constant 0 : index
    %c0_3 = arith.constant 0 : index
    %1 = vector.load %arg2[%c0_1, %c0_2, %c0_3] : memref<2x3x256xf32, #tpu.memory_space<vmem>>, vector<2x3x256xf32>
    %c0_4 = arith.constant 0 : index
    %c0_5 = arith.constant 0 : index
    %2 = vector.load %arg4[%c0_4, %c0_5] : memref<8x256xf32, #tpu.memory_space<vmem>>, vector<8x256xf32>
    %3 = vector.extract_strided_slice %1 {offsets = [0, 0, 0], sizes = [1, 3, 256], strides = [1, 1, 1]} : vector<2x3x256xf32> to vector<1x3x256xf32>
    %4 = vector.shape_cast %3 : vector<1x3x256xf32> to vector<3x256xf32>
    %5 = vector.extract_strided_slice %0 {offsets = [0, 0], sizes = [512, 1], strides = [1, 1]} : vector<512x3xf32> to vector<512x1xf32>
    %6 = vector.extract_strided_slice %4 {offsets = [0, 0], sizes = [1, 256], strides = [1, 1]} : vector<3x256xf32> to vector<1x256xf32>
    %7 = vector.broadcast %5 : vector<512x1xf32> to vector<512x256xf32>
    %8 = vector.broadcast %6 : vector<1x256xf32> to vector<512x256xf32>
    %9 = arith.mulf %7, %8 : vector<512x256xf32>
    %10 = vector.extract_strided_slice %0 {offsets = [0, 1], sizes = [512, 1], strides = [1, 1]} : vector<512x3xf32> to vector<512x1xf32>
    %11 = vector.extract_strided_slice %4 {offsets = [1, 0], sizes = [1, 256], strides = [1, 1]} : vector<3x256xf32> to vector<1x256xf32>
    %12 = vector.broadcast %10 : vector<512x1xf32> to vector<512x256xf32>
    %13 = vector.broadcast %11 : vector<1x256xf32> to vector<512x256xf32>
    %14 = arith.mulf %12, %13 : vector<512x256xf32>
    %15 = arith.addf %9, %14 : vector<512x256xf32>
    %16 = vector.extract_strided_slice %0 {offsets = [0, 2], sizes = [512, 1], strides = [1, 1]} : vector<512x3xf32> to vector<512x1xf32>
    %17 = vector.extract_strided_slice %4 {offsets = [2, 0], sizes = [1, 256], strides = [1, 1]} : vector<3x256xf32> to vector<1x256xf32>
    %18 = vector.broadcast %16 : vector<512x1xf32> to vector<512x256xf32>
    %19 = vector.broadcast %17 : vector<1x256xf32> to vector<512x256xf32>
    %20 = arith.mulf %18, %19 : vector<512x256xf32>
    %21 = arith.addf %15, %20 : vector<512x256xf32>
    %22 = vector.extract_strided_slice %2 {offsets = [0, 0], sizes = [1, 256], strides = [1, 1]} : vector<8x256xf32> to vector<1x256xf32>
    %23 = vector.broadcast %22 : vector<1x256xf32> to vector<512x256xf32>
    %24 = arith.addf %21, %23 : vector<512x256xf32>
    %cst = arith.constant 0.000000e+00 : f32
    %25 = vector.broadcast %cst : f32 to vector<512x256xf32>
    %26 = arith.maximumf %24, %25 : vector<512x256xf32>
    %27 = arith.truncf %26 : vector<512x256xf32> to vector<512x256xbf16>
    %c0_6 = arith.constant 0 : index
    %c0_7 = arith.constant 0 : index
    %c0_8 = arith.constant 0 : index
    %28 = vector.load %arg3[%c0_6, %c0_7, %c0_8] : memref<7x256x256xbf16, #tpu.memory_space<vmem>>, vector<1x256x256xbf16>
    %29 = vector.shape_cast %28 : vector<1x256x256xbf16> to vector<256x256xbf16>
    %cst_9 = arith.constant dense<0.000000e+00> : vector<512x256xf32>
    %30 = tpu.matmul %27, %29, %cst_9 {dimension_numbers = #tpu.dot_dimension_numbers<[1], [0], [0], [1], [0, 0, 1, 1], [], []>} : vector<512x256xbf16>, vector<256x256xbf16>, vector<512x256xf32> -> vector<512x256xf32>
    %31 = vector.extract_strided_slice %2 {offsets = [1, 0], sizes = [1, 256], strides = [1, 1]} : vector<8x256xf32> to vector<1x256xf32>
    %32 = vector.broadcast %31 : vector<1x256xf32> to vector<512x256xf32>
    %33 = arith.addf %30, %32 : vector<512x256xf32>
    %cst_10 = arith.constant 0.000000e+00 : f32
    %34 = vector.broadcast %cst_10 : f32 to vector<512x256xf32>
    %35 = arith.maximumf %33, %34 : vector<512x256xf32>
    %36 = arith.truncf %35 : vector<512x256xf32> to vector<512x256xbf16>
    %c1 = arith.constant 1 : index
    %c0_11 = arith.constant 0 : index
    %c0_12 = arith.constant 0 : index
    %37 = vector.load %arg3[%c1, %c0_11, %c0_12] : memref<7x256x256xbf16, #tpu.memory_space<vmem>>, vector<1x256x256xbf16>
    %38 = vector.shape_cast %37 : vector<1x256x256xbf16> to vector<256x256xbf16>
    %cst_13 = arith.constant dense<0.000000e+00> : vector<512x256xf32>
    %39 = tpu.matmul %36, %38, %cst_13 {dimension_numbers = #tpu.dot_dimension_numbers<[1], [0], [0], [1], [0, 0, 1, 1], [], []>} : vector<512x256xbf16>, vector<256x256xbf16>, vector<512x256xf32> -> vector<512x256xf32>
    %40 = vector.extract_strided_slice %2 {offsets = [2, 0], sizes = [1, 256], strides = [1, 1]} : vector<8x256xf32> to vector<1x256xf32>
    %41 = vector.broadcast %40 : vector<1x256xf32> to vector<512x256xf32>
    %42 = arith.addf %39, %41 : vector<512x256xf32>
    %cst_14 = arith.constant 0.000000e+00 : f32
    %43 = vector.broadcast %cst_14 : f32 to vector<512x256xf32>
    %44 = arith.maximumf %42, %43 : vector<512x256xf32>
    %45 = arith.truncf %44 : vector<512x256xf32> to vector<512x256xbf16>
    %c2 = arith.constant 2 : index
    %c0_15 = arith.constant 0 : index
    %c0_16 = arith.constant 0 : index
    %46 = vector.load %arg3[%c2, %c0_15, %c0_16] : memref<7x256x256xbf16, #tpu.memory_space<vmem>>, vector<1x256x256xbf16>
    %47 = vector.shape_cast %46 : vector<1x256x256xbf16> to vector<256x256xbf16>
    %cst_17 = arith.constant dense<0.000000e+00> : vector<512x256xf32>
    %48 = tpu.matmul %45, %47, %cst_17 {dimension_numbers = #tpu.dot_dimension_numbers<[1], [0], [0], [1], [0, 0, 1, 1], [], []>} : vector<512x256xbf16>, vector<256x256xbf16>, vector<512x256xf32> -> vector<512x256xf32>
    %49 = vector.extract_strided_slice %2 {offsets = [3, 0], sizes = [1, 256], strides = [1, 1]} : vector<8x256xf32> to vector<1x256xf32>
    %50 = vector.broadcast %49 : vector<1x256xf32> to vector<512x256xf32>
    %51 = arith.addf %48, %50 : vector<512x256xf32>
    %cst_18 = arith.constant 0.000000e+00 : f32
    %52 = vector.broadcast %cst_18 : f32 to vector<512x256xf32>
    %53 = arith.maximumf %51, %52 : vector<512x256xf32>
    %54 = arith.truncf %53 : vector<512x256xf32> to vector<512x256xbf16>
    %c3 = arith.constant 3 : index
    %c0_19 = arith.constant 0 : index
    %c0_20 = arith.constant 0 : index
    %55 = vector.load %arg3[%c3, %c0_19, %c0_20] : memref<7x256x256xbf16, #tpu.memory_space<vmem>>, vector<1x256x256xbf16>
    %56 = vector.shape_cast %55 : vector<1x256x256xbf16> to vector<256x256xbf16>
    %cst_21 = arith.constant dense<0.000000e+00> : vector<512x256xf32>
    %57 = tpu.matmul %54, %56, %cst_21 {dimension_numbers = #tpu.dot_dimension_numbers<[1], [0], [0], [1], [0, 0, 1, 1], [], []>} : vector<512x256xbf16>, vector<256x256xbf16>, vector<512x256xf32> -> vector<512x256xf32>
    %58 = vector.extract_strided_slice %2 {offsets = [4, 0], sizes = [1, 256], strides = [1, 1]} : vector<8x256xf32> to vector<1x256xf32>
    %59 = vector.broadcast %58 : vector<1x256xf32> to vector<512x256xf32>
    %60 = arith.addf %57, %59 : vector<512x256xf32>
    %cst_22 = arith.constant 0.000000e+00 : f32
    %61 = vector.broadcast %cst_22 : f32 to vector<512x256xf32>
    %62 = arith.maximumf %60, %61 : vector<512x256xf32>
    %63 = arith.truncf %62 : vector<512x256xf32> to vector<512x256xbf16>
    %c4 = arith.constant 4 : index
    %c0_23 = arith.constant 0 : index
    %c0_24 = arith.constant 0 : index
    %64 = vector.load %arg3[%c4, %c0_23, %c0_24] : memref<7x256x256xbf16, #tpu.memory_space<vmem>>, vector<1x256x256xbf16>
    %65 = vector.shape_cast %64 : vector<1x256x256xbf16> to vector<256x256xbf16>
    %cst_25 = arith.constant dense<0.000000e+00> : vector<512x256xf32>
    %66 = tpu.matmul %63, %65, %cst_25 {dimension_numbers = #tpu.dot_dimension_numbers<[1], [0], [0], [1], [0, 0, 1, 1], [], []>} : vector<512x256xbf16>, vector<256x256xbf16>, vector<512x256xf32> -> vector<512x256xf32>
    %67 = vector.extract_strided_slice %1 {offsets = [1, 0, 0], sizes = [1, 3, 256], strides = [1, 1, 1]} : vector<2x3x256xf32> to vector<1x3x256xf32>
    %68 = vector.shape_cast %67 : vector<1x3x256xf32> to vector<3x256xf32>
    %69 = vector.extract_strided_slice %0 {offsets = [0, 0], sizes = [512, 1], strides = [1, 1]} : vector<512x3xf32> to vector<512x1xf32>
    %70 = vector.extract_strided_slice %68 {offsets = [0, 0], sizes = [1, 256], strides = [1, 1]} : vector<3x256xf32> to vector<1x256xf32>
    %71 = vector.broadcast %69 : vector<512x1xf32> to vector<512x256xf32>
    %72 = vector.broadcast %70 : vector<1x256xf32> to vector<512x256xf32>
    %73 = arith.mulf %71, %72 : vector<512x256xf32>
    %74 = vector.extract_strided_slice %0 {offsets = [0, 1], sizes = [512, 1], strides = [1, 1]} : vector<512x3xf32> to vector<512x1xf32>
    %75 = vector.extract_strided_slice %68 {offsets = [1, 0], sizes = [1, 256], strides = [1, 1]} : vector<3x256xf32> to vector<1x256xf32>
    %76 = vector.broadcast %74 : vector<512x1xf32> to vector<512x256xf32>
    %77 = vector.broadcast %75 : vector<1x256xf32> to vector<512x256xf32>
    %78 = arith.mulf %76, %77 : vector<512x256xf32>
    %79 = arith.addf %73, %78 : vector<512x256xf32>
    %80 = vector.extract_strided_slice %0 {offsets = [0, 2], sizes = [512, 1], strides = [1, 1]} : vector<512x3xf32> to vector<512x1xf32>
    %81 = vector.extract_strided_slice %68 {offsets = [2, 0], sizes = [1, 256], strides = [1, 1]} : vector<3x256xf32> to vector<1x256xf32>
    %82 = vector.broadcast %80 : vector<512x1xf32> to vector<512x256xf32>
    %83 = vector.broadcast %81 : vector<1x256xf32> to vector<512x256xf32>
    %84 = arith.mulf %82, %83 : vector<512x256xf32>
    %85 = arith.addf %79, %84 : vector<512x256xf32>
    %86 = arith.addf %66, %85 : vector<512x256xf32>
    %87 = vector.extract_strided_slice %2 {offsets = [5, 0], sizes = [1, 256], strides = [1, 1]} : vector<8x256xf32> to vector<1x256xf32>
    %88 = vector.broadcast %87 : vector<1x256xf32> to vector<512x256xf32>
    %89 = arith.addf %86, %88 : vector<512x256xf32>
    %cst_26 = arith.constant 0.000000e+00 : f32
    %90 = vector.broadcast %cst_26 : f32 to vector<512x256xf32>
    %91 = arith.maximumf %89, %90 : vector<512x256xf32>
    %92 = arith.truncf %91 : vector<512x256xf32> to vector<512x256xbf16>
    %c5 = arith.constant 5 : index
    %c0_27 = arith.constant 0 : index
    %c0_28 = arith.constant 0 : index
    %93 = vector.load %arg3[%c5, %c0_27, %c0_28] : memref<7x256x256xbf16, #tpu.memory_space<vmem>>, vector<1x256x256xbf16>
    %94 = vector.shape_cast %93 : vector<1x256x256xbf16> to vector<256x256xbf16>
    %cst_29 = arith.constant dense<0.000000e+00> : vector<512x256xf32>
    %95 = tpu.matmul %92, %94, %cst_29 {dimension_numbers = #tpu.dot_dimension_numbers<[1], [0], [0], [1], [0, 0, 1, 1], [], []>} : vector<512x256xbf16>, vector<256x256xbf16>, vector<512x256xf32> -> vector<512x256xf32>
    %96 = vector.extract_strided_slice %2 {offsets = [6, 0], sizes = [1, 256], strides = [1, 1]} : vector<8x256xf32> to vector<1x256xf32>
    %97 = vector.broadcast %96 : vector<1x256xf32> to vector<512x256xf32>
    %98 = arith.addf %95, %97 : vector<512x256xf32>
    %cst_30 = arith.constant 0.000000e+00 : f32
    %99 = vector.broadcast %cst_30 : f32 to vector<512x256xf32>
    %100 = arith.maximumf %98, %99 : vector<512x256xf32>
    %101 = arith.truncf %100 : vector<512x256xf32> to vector<512x256xbf16>
    %c6 = arith.constant 6 : index
    %c0_31 = arith.constant 0 : index
    %c0_32 = arith.constant 0 : index
    %102 = vector.load %arg3[%c6, %c0_31, %c0_32] : memref<7x256x256xbf16, #tpu.memory_space<vmem>>, vector<1x256x256xbf16>
    %103 = vector.shape_cast %102 : vector<1x256x256xbf16> to vector<256x256xbf16>
    %cst_33 = arith.constant dense<0.000000e+00> : vector<512x256xf32>
    %104 = tpu.matmul %101, %103, %cst_33 {dimension_numbers = #tpu.dot_dimension_numbers<[1], [0], [0], [1], [0, 0, 1, 1], [], []>} : vector<512x256xbf16>, vector<256x256xbf16>, vector<512x256xf32> -> vector<512x256xf32>
    %105 = vector.extract_strided_slice %2 {offsets = [7, 0], sizes = [1, 256], strides = [1, 1]} : vector<8x256xf32> to vector<1x256xf32>
    %106 = vector.broadcast %105 : vector<1x256xf32> to vector<512x256xf32>
    %107 = arith.addf %104, %106 : vector<512x256xf32>
    %cst_34 = arith.constant 0.000000e+00 : f32
    %108 = vector.broadcast %cst_34 : f32 to vector<512x256xf32>
    %109 = arith.maximumf %107, %108 : vector<512x256xf32>
    %110 = arith.truncf %109 : vector<512x256xf32> to vector<512x256xbf16>
    %c0_35 = arith.constant 0 : index
    %c0_36 = arith.constant 0 : index
    %111 = vector.load %arg5[%c0_35, %c0_36] : memref<256x4xbf16, #tpu.memory_space<vmem>>, vector<256x4xbf16>
    %cst_37 = arith.constant dense<0.000000e+00> : vector<512x4xf32>
    %112 = tpu.matmul %110, %111, %cst_37 {dimension_numbers = #tpu.dot_dimension_numbers<[1], [0], [0], [1], [0, 0, 1, 1], [], []>} : vector<512x256xbf16>, vector<256x4xbf16>, vector<512x4xf32> -> vector<512x4xf32>
    %c0_38 = arith.constant 0 : index
    %c0_39 = arith.constant 0 : index
    %113 = vector.load %arg6[%c0_38, %c0_39] : memref<1x4xf32, #tpu.memory_space<vmem>>, vector<1x4xf32>
    %114 = vector.broadcast %113 : vector<1x4xf32> to vector<512x4xf32>
    %115 = arith.addf %112, %114 : vector<512x4xf32>
    %c0_40 = arith.constant 0 : index
    %c0_41 = arith.constant 0 : index
    %116 = vector.load %arg7[%c0_40, %c0_41] : memref<512x4xf32, #tpu.memory_space<vmem>>, vector<512x4xf32>
    tpu.vector_store %arg7[%c0_40, %c0_41], %115 {strides = array<i32>} : memref<512x4xf32, #tpu.memory_space<vmem>>, vector<512x4xf32>,
    return
  }
  func.func @transform_0(%arg0: i32) -> (i32, i32) {
    %c0_i32 = arith.constant 0 : i32
    %c0_i32_0 = arith.constant 0 : i32
    return %arg0, %c0_i32 : i32, i32
  }
  func.func @transform_1(%arg0: i32) -> (i32, i32, i32) {
    %c0_i32 = arith.constant 0 : i32
    %c0_i32_0 = arith.constant 0 : i32
    %c0_i32_1 = arith.constant 0 : i32
    %c0_i32_2 = arith.constant 0 : i32
    return %c0_i32, %c0_i32_0, %c0_i32_1 : i32, i32, i32
  }
  func.func @transform_2(%arg0: i32) -> (i32, i32, i32) {
    %c0_i32 = arith.constant 0 : i32
    %c0_i32_0 = arith.constant 0 : i32
    %c0_i32_1 = arith.constant 0 : i32
    %c0_i32_2 = arith.constant 0 : i32
    return %c0_i32, %c0_i32_0, %c0_i32_1 : i32, i32, i32
  }
  func.func @transform_3(%arg0: i32) -> (i32, i32) {
    %c0_i32 = arith.constant 0 : i32
    %c0_i32_0 = arith.constant 0 : i32
    %c0_i32_1 = arith.constant 0 : i32
    return %c0_i32, %c0_i32_0 : i32, i32
  }
  func.func @transform_4(%arg0: i32) -> (i32, i32) {
    %c0_i32 = arith.constant 0 : i32
    %c0_i32_0 = arith.constant 0 : i32
    %c0_i32_1 = arith.constant 0 : i32
    return %c0_i32, %c0_i32_0 : i32, i32
  }
  func.func @transform_5(%arg0: i32) -> (i32, i32) {
    %c0_i32 = arith.constant 0 : i32
    %c0_i32_0 = arith.constant 0 : i32
    %c0_i32_1 = arith.constant 0 : i32
    return %c0_i32, %c0_i32_0 : i32, i32
  }
  func.func @transform_6(%arg0: i32) -> (i32, i32) {
    %c0_i32 = arith.constant 0 : i32
    %c0_i32_0 = arith.constant 0 : i32
    return %arg0, %c0_i32 : i32, i32
  }
}

</mosaic_0001>

<llo_original>
// kernel: tpu_custom_call.1
$region0: #{tpu_custom_call.1}
  #allocation0 [shape = 'u32[]', space=smem, size = 0x4, offset = 0x4, fixed_abs, tag = 'smem constant byte address 0x4 - core index']
  #allocation1 [shape = 'u32[72,128]{1,0:T(1,128)}', space=vmem, size = 0x9000, scoped, tag = 'internal scratch']
  %s0 = inlined_call_operand.vmem [shape: f32[1024,3], index: 0, kind: input, shape index: {}]
  %s1 = inlined_call_operand.vmem [shape: f32[2,3,256], index: 1, kind: input, shape index: {}]
  %s2 = inlined_call_operand.hbm [shape: bf16[7,256,256], index: 2, kind: input, shape index: {}]
  %s3 = inlined_call_operand.vmem [shape: f32[8,256], index: 3, kind: input, shape index: {}]
  %s4 = inlined_call_operand.vmem [shape: bf16[256,4], index: 4, kind: input, shape index: {}]
  %s5 = inlined_call_operand.vmem [shape: f32[1,4], index: 5, kind: input, shape index: {}]
  %s6 = inlined_call_operand.vmem [shape: f32[1024,4], index: 6, kind: output, shape index: {}]
  %s7 = sld [smem:[#allocation0]]
  $region61: #{tpu_custom_call.1} parent=0
    _
  %s9 = ssub.s32 1, %s7
  %s10 = scalar_select 0, %s9, %s7
  $region1: #{tpu_custom_call.1} parent=0
    #allocation2 [shape = 'u8[917504]{0}', space=vmem, size = 0xe0000, scoped, tag = 'input window, operand 2, single buffered']
    #allocation3 [shape = 's32[2]{0}', space=sflag, size = 0x8, scoped, tag = 'scoped memory for tpu_custom_call.1']
    %11 = vsyncpa [#allocation3], 0
    loop: start=0, step=1, limit=4
    $region2: #{tpu_custom_call.1} parent=1 // loop_pre_header
      _
    $region3: #{tpu_custom_call.1} parent=1 // loop_header
      %s13 = sphi 0, %s17
      %p14 = scmp.ge.s32.totalorder %s13, 4
      %s23 = sphi 0, %s25
      %s26 = sphi 0, %s23
      %s27 = sphi 0, %s26
      %s43 = sphi 0, %s27
      %s47 = sphi 0, %s47
      %s49 = sphi 0, %s47
      %s50 = sphi 0, %s49
      %s64 = sphi 0, %s50
      %s68 = sphi 0, %s68
      %s70 = sphi 0, %s68
      %s71 = sphi 0, %s70
      %s85 = sphi 0, %s71
      %s89 = sphi 0, %s89
      %s91 = sphi 0, %s89
      %s92 = sphi 0, %s91
      %s106 = sphi 0, %s92
      %s110 = sphi 0, %s110
      %s112 = sphi 0, %s110
      %s113 = sphi 0, %s112
      %s127 = sphi 0, %s113
      %s131 = sphi 0, %s131
      %s133 = sphi 0, %s131
      %s134 = sphi 0, %s133
      %s148 = sphi 0, %s134
      %s154 = sphi 0, %s156
      %s157 = sphi 0, %s154
      %s158 = sphi 0, %s157
      %s174 = sphi 0, %s158
    $region4: #{tpu_custom_call.1} parent=1 // loop_header_branch
      %16 = sbr.rel (%p14) target = $region8
    $region5: #{tpu_custom_call.1} parent=1 // loop_body
      %s18 = ssub.s32 %s13, 1
      %s19 = ssub.s32 %s13, 2
      %s20 = sadd.s32 %s13, 1
      %s21 = ssub.s32 %s13, %s20
      %p22 = scmp.eq.s32.totalorder %s21, 0
      %s24 = sadd.s32 %s23, 1
      %s25 = scalar_select %p22, %s23, %s24
      %p28 = pneg %p22
      %p29 = scmp.eq.s32.totalorder %s13, 1
      %p30 = por %p28, %p29
      %p31 = scmp.ne.s32.totalorder %s23, %s26
      %p32 = scmp.eq.s32.totalorder %s13, 0
      %p33 = por %p31, %p32
      %p34 = scmp.ne.s32.totalorder %s23, %s26
      %p35 = scmp.eq.s32.totalorder %s18, 1
      %p36 = por %p34, %p35
      %p37 = scmp.ne.s32.totalorder %s26, %s27
      %p38 = scmp.eq.s32.totalorder %s18, 0
      %p39 = por %p37, %p38
      %p40 = scmp.ne.s32.totalorder %s26, %s27
      %p41 = scmp.eq.s32.totalorder %s19, 1
      %p42 = por %p40, %p41
      %p44 = scmp.ne.s32.totalorder %s27, %s43
      %p45 = scmp.eq.s32.totalorder %s19, 0
      %p46 = por %p44, %p45
      %s48 = sadd.s32 %s47, 1
      %p51 = scmp.eq.s32.totalorder %s13, 1
      %p52 = scmp.ne.s32.totalorder %s47, %s49
      %p53 = scmp.eq.s32.totalorder %s13, 0
      %p54 = por %p52, %p53
      %p55 = scmp.ne.s32.totalorder %s47, %s49
      %p56 = scmp.eq.s32.totalorder %s18, 1
      %p57 = por %p55, %p56
      %p58 = scmp.ne.s32.totalorder %s49, %s50
      %p59 = scmp.eq.s32.totalorder %s18, 0
      %p60 = por %p58, %p59
      %p61 = scmp.ne.s32.totalorder %s49, %s50
      %p62 = scmp.eq.s32.totalorder %s19, 1
      %p63 = por %p61, %p62
      %p65 = scmp.ne.s32.totalorder %s50, %s64
      %p66 = scmp.eq.s32.totalorder %s19, 0
      %p67 = por %p65, %p66
      %s69 = sadd.s32 %s68, 1
      %p72 = scmp.eq.s32.totalorder %s13, 1
      %p73 = scmp.ne.s32.totalorder %s68, %s70
      %p74 = scmp.eq.s32.totalorder %s13, 0
      %p75 = por %p73, %p74
      %p76 = scmp.ne.s32.totalorder %s68, %s70
      %p77 = scmp.eq.s32.totalorder %s18, 1
      %p78 = por %p76, %p77
      %p79 = scmp.ne.s32.totalorder %s70, %s71
      %p80 = scmp.eq.s32.totalorder %s18, 0
      %p81 = por %p79, %p80
      %p82 = scmp.ne.s32.totalorder %s70, %s71
      %p83 = scmp.eq.s32.totalorder %s19, 1
      %p84 = por %p82, %p83
      %p86 = scmp.ne.s32.totalorder %s71, %s85
      %p87 = scmp.eq.s32.totalorder %s19, 0
      %p88 = por %p86, %p87
      %s90 = sadd.s32 %s89, 1
      %p93 = scmp.eq.s32.totalorder %s13, 1
      %p94 = scmp.ne.s32.totalorder %s89, %s91
      %p95 = scmp.eq.s32.totalorder %s13, 0
      %p96 = por %p94, %p95
      %p97 = scmp.ne.s32.totalorder %s89, %s91
      %p98 = scmp.eq.s32.totalorder %s18, 1
      %p99 = por %p97, %p98
      %p100 = scmp.ne.s32.totalorder %s91, %s92
      %p101 = scmp.eq.s32.totalorder %s18, 0
      %p102 = por %p100, %p101
      %p103 = scmp.ne.s32.totalorder %s91, %s92
      %p104 = scmp.eq.s32.totalorder %s19, 1
      %p105 = por %p103, %p104
      %p107 = scmp.ne.s32.totalorder %s92, %s106
      %p108 = scmp.eq.s32.totalorder %s19, 0
      %p109 = por %p107, %p108
      %s111 = sadd.s32 %s110, 1
      %p114 = scmp.eq.s32.totalorder %s13, 1
      %p115 = scmp.ne.s32.totalorder %s110, %s112
      %p116 = scmp.eq.s32.totalorder %s13, 0
      %p117 = por %p115, %p116
      %p118 = scmp.ne.s32.totalorder %s110, %s112
      %p119 = scmp.eq.s32.totalorder %s18, 1
      %p120 = por %p118, %p119
      %p121 = scmp.ne.s32.totalorder %s112, %s113
      %p122 = scmp.eq.s32.totalorder %s18, 0
      %p123 = por %p121, %p122
      %p124 = scmp.ne.s32.totalorder %s112, %s113
      %p125 = scmp.eq.s32.totalorder %s19, 1
      %p126 = por %p124, %p125
      %p128 = scmp.ne.s32.totalorder %s113, %s127
      %p129 = scmp.eq.s32.totalorder %s19, 0
      %p130 = por %p128, %p129
      %s132 = sadd.s32 %s131, 1
      %p135 = scmp.eq.s32.totalorder %s13, 1
      %p136 = scmp.ne.s32.totalorder %s131, %s133
      %p137 = scmp.eq.s32.totalorder %s13, 0
      %p138 = por %p136, %p137
      %p139 = scmp.ne.s32.totalorder %s131, %s133
      %p140 = scmp.eq.s32.totalorder %s18, 1
      %p141 = por %p139, %p140
      %p142 = scmp.ne.s32.totalorder %s133, %s134
      %p143 = scmp.eq.s32.totalorder %s18, 0
      %p144 = por %p142, %p143
      %p145 = scmp.ne.s32.totalorder %s133, %s134
      %p146 = scmp.eq.s32.totalorder %s19, 1
      %p147 = por %p145, %p146
      %p149 = scmp.ne.s32.totalorder %s134, %s148
      %p150 = scmp.eq.s32.totalorder %s19, 0
      %p151 = por %p149, %p150
      %s152 = ssub.s32 %s13, %s20
      %p153 = scmp.eq.s32.totalorder %s152, 0
      %s155 = sadd.s32 %s154, 1
      %s156 = scalar_select %p153, %s154, %s155
      %p159 = pneg %p153
      %p160 = scmp.eq.s32.totalorder %s13, 1
      %p161 = por %p159, %p160
      %p162 = scmp.ne.s32.totalorder %s154, %s157
      %p163 = scmp.eq.s32.totalorder %s13, 0
      %p164 = por %p162, %p163
      %p165 = scmp.ne.s32.totalorder %s154, %s157
      %p166 = scmp.eq.s32.totalorder %s18, 1
      %p167 = por %p165, %p166
      %p168 = scmp.ne.s32.totalorder %s157, %s158
      %p169 = scmp.eq.s32.totalorder %s18, 0
      %p170 = por %p168, %p169
      %p171 = scmp.ne.s32.totalorder %s157, %s158
      %p172 = scmp.eq.s32.totalorder %s19, 1
      %p173 = por %p171, %p172
      %p175 = scmp.ne.s32.totalorder %s158, %s174
      %p176 = scmp.eq.s32.totalorder %s19, 0
      %p177 = por %p175, %p176
      %p178 = scmp.le.s32.totalorder 1, %s13
      %p179 = scmp.lt.s32.totalorder %s13, 3
      %p180 = pnand %p178, %p179
      %p181 = pneg %p180
      // Predicated region
      $region9: #{tpu_custom_call.1} parent=5 // pred_check
        _
      $region10: #{tpu_custom_call.1} parent=5 // pred_check_branch
        %183 = sbr.rel (%p180) target = $region12
      $region11: #{tpu_custom_call.1} parent=5 // pred_region
        %s184 = ssub.s32 %s13, 1
        // Predicated region
        $region13: #{tpu_custom_call.1} parent=11 // pred_check
          %p185 = pneg %p60
        $region14: #{tpu_custom_call.1} parent=11 // pred_check_branch
          %187 = sbr.rel (%p185) target = $region16
        $region15: #{tpu_custom_call.1} parent=11 // pred_region
          _
        $region16: #{tpu_custom_call.1} parent=11 // pred_fallthru
          _
        // Predicated region
        $region17: #{tpu_custom_call.1} parent=11 // pred_check
          %p188 = pneg %p81
        $region18: #{tpu_custom_call.1} parent=11 // pred_check_branch
          %190 = sbr.rel (%p188) target = $region20
        $region19: #{tpu_custom_call.1} parent=11 // pred_region
          %192 = vsyncadd [#allocation3], 0
          %s193 = sshll.u32 %s2, 4
          %s194 = int_to_ptr.hbm [resolvable:$true] %s193
          %s195 = sshll.u32 [#allocation2], 4
          %s196 = int_to_ptr.vmem [resolvable:$true] %s195
          %201 = dma.hbm_to_vmem [thread:$0]  %s194, 28672, %s196, [#allocation3], 128, 128, 8
        $region20: #{tpu_custom_call.1} parent=11 // pred_fallthru
          _
        // Predicated region
        $region21: #{tpu_custom_call.1} parent=11 // pred_check
          %p202 = pneg %p102
        $region22: #{tpu_custom_call.1} parent=11 // pred_check_branch
          %204 = sbr.rel (%p202) target = $region24
        $region23: #{tpu_custom_call.1} parent=11 // pred_region
          _
        $region24: #{tpu_custom_call.1} parent=11 // pred_fallthru
          _
        // Predicated region
        $region25: #{tpu_custom_call.1} parent=11 // pred_check
          %p205 = pneg %p123
        $region26: #{tpu_custom_call.1} parent=11 // pred_check_branch
          %207 = sbr.rel (%p205) target = $region28
        $region27: #{tpu_custom_call.1} parent=11 // pred_region
          _
        $region28: #{tpu_custom_call.1} parent=11 // pred_fallthru
          _
        // Predicated region
        $region29: #{tpu_custom_call.1} parent=11 // pred_check
          %p208 = pneg %p144
        $region30: #{tpu_custom_call.1} parent=11 // pred_check_branch
          %210 = sbr.rel (%p208) target = $region32
        $region31: #{tpu_custom_call.1} parent=11 // pred_region
          _
        $region32: #{tpu_custom_call.1} parent=11 // pred_fallthru
          _
      $region12: #{tpu_custom_call.1} parent=5 // pred_fallthru
        _
      %p211 = scmp.lt.s32.totalorder %s13, 2
      // Predicated region
      $region33: #{tpu_custom_call.1} parent=5 // pred_check
        %p212 = pneg %p211
      $region34: #{tpu_custom_call.1} parent=5 // pred_check_branch
        %214 = sbr.rel (%p212) target = $region36
      $region35: #{tpu_custom_call.1} parent=5 // pred_region
        // Predicated region
        $region37: #{tpu_custom_call.1} parent=35 // pred_check
          %p215 = pneg %p33
        $region38: #{tpu_custom_call.1} parent=35 // pred_check_branch
          %217 = sbr.rel (%p215) target = $region40
        $region39: #{tpu_custom_call.1} parent=35 // pred_region
          %s218 = smul.u32 64, %s13
          %p219 = scmp.lt.s32.totalorder %s218, 127
          %s220 = scalar_select %p219, %s218, 127
          %s221 = smul.addr %s220, 8
          %s222 = scalar_lea.vmem %s0, %s221
          %s223 = smul.u32 64, %s13
        $region40: #{tpu_custom_call.1} parent=35 // pred_fallthru
          _
      $region36: #{tpu_custom_call.1} parent=5 // pred_fallthru
        _
      %p224 = scmp.le.s32.totalorder 1, %s13
      %p225 = scmp.lt.s32.totalorder %s13, 3
      %p226 = pnand %p224, %p225
      %p227 = pneg %p226
      // Predicated region
      $region41: #{tpu_custom_call.1} parent=5 // pred_check
        _
      $region42: #{tpu_custom_call.1} parent=5 // pred_check_branch
        %229 = sbr.rel (%p226) target = $region44
      $region43: #{tpu_custom_call.1} parent=5 // pred_region
        %s230 = ssub.s32 %s13, 1
        // Predicated region
        $region45: #{tpu_custom_call.1} parent=43 // pred_check
          %p231 = pneg %p81
        $region46: #{tpu_custom_call.1} parent=43 // pred_check_branch
          %233 = sbr.rel (%p231) target = $region48
        $region47: #{tpu_custom_call.1} parent=43 // pred_region
          %235 = dma.done [#allocation3], 28672
        $region48: #{tpu_custom_call.1} parent=43 // pred_fallthru
          _
        %s236 = smul.u32 64, %s18
        %p237 = scmp.lt.s32.totalorder %s236, 127
        %s238 = scalar_select %p237, %s236, 127
        %s239 = smul.addr %s238, 8
        %s240 = scalar_lea.vmem %s0, %s239
        %p241 = pneg %p39
        %p242 = pneg %p36
        %p243 = pneg %p60
        %p244 = pneg %p57
        %p245 = pneg %p81
        %p246 = pneg %p78
        %p247 = pneg %p102
        %p248 = pneg %p99
        %p249 = pneg %p123
        %p250 = pneg %p120
        %p251 = pneg %p144
        %p252 = pneg %p141
        %p253 = pneg %p170
        %p254 = pneg %p167
        %s255 = smul.u32 64, %s18
        %p256 = scmp.lt.s32.totalorder %s255, 127
        %s257 = scalar_select %p256, %s255, 127
        %s258 = smul.addr %s257, 8
        %s259 = scalar_lea.vmem %s6, %s258
        %s260 = smul.u32 64, %s18
        %p261 = scmp.lt.s32.totalorder %s260, 127
        %s262 = scalar_select %p261, %s260, 127
        %s263 = smul.addr %s262, 8
        %s264 = scalar_lea.vmem %s0, %s263
        %s265 = smul.u32 64, %s18
        %s266 = smul.u32 64, %s18
        %p267 = scmp.lt.s32.totalorder %s266, 127
        %s268 = scalar_select %p267, %s266, 127
        %s269 = smul.addr %s268, 8
        %s270 = scalar_lea.vmem %s6, %s269
        %s271 = smul.u32 64, %s18
        %v272 = vld [vmem:[%s264] sm:$0xff]
        %v273 = vld [vmem:[%s264 + $0x8] sm:$0xff]
        %v274 = vld [vmem:[%s264 + $0x10] sm:$0xff]
        %v275 = vld [vmem:[%s264 + $0x18] sm:$0xff]
        %v276 = vld [vmem:[%s264 + $0x20] sm:$0xff]
        %v277 = vld [vmem:[%s264 + $0x28] sm:$0xff]
        %v278 = vld [vmem:[%s264 + $0x30] sm:$0xff]
        %v279 = vld [vmem:[%s264 + $0x38] sm:$0xff]
        %v280 = vld [vmem:[%s264 + $0x40] sm:$0xff]
        %v281 = vld [vmem:[%s264 + $0x48] sm:$0xff]
        %v282 = vld [vmem:[%s264 + $0x50] sm:$0xff]
        %v283 = vld [vmem:[%s264 + $0x58] sm:$0xff]
        %v284 = vld [vmem:[%s264 + $0x60] sm:$0xff]
        %v285 = vld [vmem:[%s264 + $0x68] sm:$0xff]
        %v286 = vld [vmem:[%s264 + $0x70] sm:$0xff]
        %v287 = vld [vmem:[%s264 + $0x78] sm:$0xff]
        %v288 = vld [vmem:[%s264 + $0x80] sm:$0xff]
        %v289 = vld [vmem:[%s264 + $0x88] sm:$0xff]
        %v290 = vld [vmem:[%s264 + $0x90] sm:$0xff]
        %v291 = vld [vmem:[%s264 + $0x98] sm:$0xff]
        %v292 = vld [vmem:[%s264 + $0xa0] sm:$0xff]
        %v293 = vld [vmem:[%s264 + $0xa8] sm:$0xff]
        %v294 = vld [vmem:[%s264 + $0xb0] sm:$0xff]
        %v295 = vld [vmem:[%s264 + $0xb8] sm:$0xff]
        %v296 = vld [vmem:[%s264 + $0xc0] sm:$0xff]
        %v297 = vld [vmem:[%s264 + $0xc8] sm:$0xff]
        %v298 = vld [vmem:[%s264 + $0xd0] sm:$0xff]
        %v299 = vld [vmem:[%s264 + $0xd8] sm:$0xff]
        %v300 = vld [vmem:[%s264 + $0xe0] sm:$0xff]
        %v301 = vld [vmem:[%s264 + $0xe8] sm:$0xff]
        %v302 = vld [vmem:[%s264 + $0xf0] sm:$0xff]
        %v303 = vld [vmem:[%s264 + $0xf8] sm:$0xff]
        %v304 = vld [vmem:[%s264 + $0x100] sm:$0xff]
        %v305 = vld [vmem:[%s264 + $0x108] sm:$0xff]
        %v306 = vld [vmem:[%s264 + $0x110] sm:$0xff]
        %v307 = vld [vmem:[%s264 + $0x118] sm:$0xff]
        %v308 = vld [vmem:[%s264 + $0x120] sm:$0xff]
        %v309 = vld [vmem:[%s264 + $0x128] sm:$0xff]
        %v310 = vld [vmem:[%s264 + $0x130] sm:$0xff]
        %v311 = vld [vmem:[%s264 + $0x138] sm:$0xff]
        %v312 = vld [vmem:[%s264 + $0x140] sm:$0xff]
        %v313 = vld [vmem:[%s264 + $0x148] sm:$0xff]
        %v314 = vld [vmem:[%s264 + $0x150] sm:$0xff]
        %v315 = vld [vmem:[%s264 + $0x158] sm:$0xff]
        %v316 = vld [vmem:[%s264 + $0x160] sm:$0xff]
        %v317 = vld [vmem:[%s264 + $0x168] sm:$0xff]
        %v318 = vld [vmem:[%s264 + $0x170] sm:$0xff]
        %v319 = vld [vmem:[%s264 + $0x178] sm:$0xff]
        %v320 = vld [vmem:[%s264 + $0x180] sm:$0xff]
        %v321 = vld [vmem:[%s264 + $0x188] sm:$0xff]
        %v322 = vld [vmem:[%s264 + $0x190] sm:$0xff]
        %v323 = vld [vmem:[%s264 + $0x198] sm:$0xff]
        %v324 = vld [vmem:[%s264 + $0x1a0] sm:$0xff]
        %v325 = vld [vmem:[%s264 + $0x1a8] sm:$0xff]
        %v326 = vld [vmem:[%s264 + $0x1b0] sm:$0xff]
        %v327 = vld [vmem:[%s264 + $0x1b8] sm:$0xff]
        %v328 = vld [vmem:[%s264 + $0x1c0] sm:$0xff]
        %v329 = vld [vmem:[%s264 + $0x1c8] sm:$0xff]
        %v330 = vld [vmem:[%s264 + $0x1d0] sm:$0xff]
        %v331 = vld [vmem:[%s264 + $0x1d8] sm:$0xff]
        %v332 = vld [vmem:[%s264 + $0x1e0] sm:$0xff]
        %v333 = vld [vmem:[%s264 + $0x1e8] sm:$0xff]
        %v334 = vld [vmem:[%s264 + $0x1f0] sm:$0xff]
        %v335 = vld [vmem:[%s264 + $0x1f8] sm:$0xff]
        %v336 = vld [vmem:[%s1] sm:$0x77]
        %v337 = vld [vmem:[%s1 + $0x8] sm:$0x77]
        %v338 = vld [vmem:[%s3] sm:$0xff]
        %v339 = vld [vmem:[%s3 + $0x8] sm:$0xff]
        %341 = vset.pattern.permute.xlu0 0
        %342 = vperm.xlu0 %341, %v272
        %v343 = vpop.permute.xlu0 %342
        %346 = vset.pattern.permute.xlu0 0
        %347 = vperm.xlu0 %346, %v273
        %v348 = vpop.permute.xlu0 %347
        %351 = vset.pattern.permute.xlu0 0
        %352 = vperm.xlu0 %351, %v274
        %v353 = vpop.permute.xlu0 %352
        %356 = vset.pattern.permute.xlu0 0
        %357 = vperm.xlu0 %356, %v275
        %v358 = vpop.permute.xlu0 %357
        %361 = vset.pattern.permute.xlu0 0
        %362 = vperm.xlu0 %361, %v276
        %v363 = vpop.permute.xlu0 %362
        %366 = vset.pattern.permute.xlu0 0
        %367 = vperm.xlu0 %366, %v277
        %v368 = vpop.permute.xlu0 %367
        %371 = vset.pattern.permute.xlu0 0
        %372 = vperm.xlu0 %371, %v278
        %v373 = vpop.permute.xlu0 %372
        %376 = vset.pattern.permute.xlu0 0
        %377 = vperm.xlu0 %376, %v279
        %v378 = vpop.permute.xlu0 %377
        %381 = vset.pattern.permute.xlu0 0
        %382 = vperm.xlu0 %381, %v280
        %v383 = vpop.permute.xlu0 %382
        %386 = vset.pattern.permute.xlu0 0
        %387 = vperm.xlu0 %386, %v281
        %v388 = vpop.permute.xlu0 %387
        %391 = vset.pattern.permute.xlu0 0
        %392 = vperm.xlu0 %391, %v282
        %v393 = vpop.permute.xlu0 %392
        %396 = vset.pattern.permute.xlu0 0
        %397 = vperm.xlu0 %396, %v283
        %v398 = vpop.permute.xlu0 %397
        %401 = vset.pattern.permute.xlu0 0
        %402 = vperm.xlu0 %401, %v284
        %v403 = vpop.permute.xlu0 %402
        %406 = vset.pattern.permute.xlu0 0
        %407 = vperm.xlu0 %406, %v285
        %v408 = vpop.permute.xlu0 %407
        %411 = vset.pattern.permute.xlu0 0
        %412 = vperm.xlu0 %411, %v286
        %v413 = vpop.permute.xlu0 %412
        %416 = vset.pattern.permute.xlu0 0
        %417 = vperm.xlu0 %416, %v287
        %v418 = vpop.permute.xlu0 %417
        %421 = vset.pattern.permute.xlu0 0
        %422 = vperm.xlu0 %421, %v288
        %v423 = vpop.permute.xlu0 %422
        %426 = vset.pattern.permute.xlu0 0
        %427 = vperm.xlu0 %426, %v289
        %v428 = vpop.permute.xlu0 %427
        %431 = vset.pattern.permute.xlu0 0
        %432 = vperm.xlu0 %431, %v290
        %v433 = vpop.permute.xlu0 %432
        %436 = vset.pattern.permute.xlu0 0
        %437 = vperm.xlu0 %436, %v291
        %v438 = vpop.permute.xlu0 %437
        %441 = vset.pattern.permute.xlu0 0
        %442 = vperm.xlu0 %441, %v292
        %v443 = vpop.permute.xlu0 %442
        %446 = vset.pattern.permute.xlu0 0
        %447 = vperm.xlu0 %446, %v293
        %v448 = vpop.permute.xlu0 %447
        %451 = vset.pattern.permute.xlu0 0
        %452 = vperm.xlu0 %451, %v294
        %v453 = vpop.permute.xlu0 %452
        %456 = vset.pattern.permute.xlu0 0
        %457 = vperm.xlu0 %456, %v295
        %v458 = vpop.permute.xlu0 %457
        %461 = vset.pattern.permute.xlu0 0
        %462 = vperm.xlu0 %461, %v296
        %v463 = vpop.permute.xlu0 %462
        %466 = vset.pattern.permute.xlu0 0
        %467 = vperm.xlu0 %466, %v297
        %v468 = vpop.permute.xlu0 %467
        %471 = vset.pattern.permute.xlu0 0
        %472 = vperm.xlu0 %471, %v298
        %v473 = vpop.permute.xlu0 %472
        %476 = vset.pattern.permute.xlu0 0
        %477 = vperm.xlu0 %476, %v299
        %v478 = vpop.permute.xlu0 %477
        %481 = vset.pattern.permute.xlu0 0
        %482 = vperm.xlu0 %481, %v300
        %v483 = vpop.permute.xlu0 %482
        %486 = vset.pattern.permute.xlu0 0
        %487 = vperm.xlu0 %486, %v301
        %v488 = vpop.permute.xlu0 %487
        %491 = vset.pattern.permute.xlu0 0
        %492 = vperm.xlu0 %491, %v302
        %v493 = vpop.permute.xlu0 %492
        %496 = vset.pattern.permute.xlu0 0
        %497 = vperm.xlu0 %496, %v303
        %v498 = vpop.permute.xlu0 %497
        %501 = vset.pattern.permute.xlu0 0
        %502 = vperm.xlu0 %501, %v304
        %v503 = vpop.permute.xlu0 %502
        %506 = vset.pattern.permute.xlu0 0
        %507 = vperm.xlu0 %506, %v305
        %v508 = vpop.permute.xlu0 %507
        %511 = vset.pattern.permute.xlu0 0
        %512 = vperm.xlu0 %511, %v306
        %v513 = vpop.permute.xlu0 %512
        %516 = vset.pattern.permute.xlu0 0
        %517 = vperm.xlu0 %516, %v307
        %v518 = vpop.permute.xlu0 %517
        %521 = vset.pattern.permute.xlu0 0
        %522 = vperm.xlu0 %521, %v308
        %v523 = vpop.permute.xlu0 %522
        %526 = vset.pattern.permute.xlu0 0
        %527 = vperm.xlu0 %526, %v309
        %v528 = vpop.permute.xlu0 %527
        %531 = vset.pattern.permute.xlu0 0
        %532 = vperm.xlu0 %531, %v310
        %v533 = vpop.permute.xlu0 %532
        %536 = vset.pattern.permute.xlu0 0
        %537 = vperm.xlu0 %536, %v311
        %v538 = vpop.permute.xlu0 %537
        %541 = vset.pattern.permute.xlu0 0
        %542 = vperm.xlu0 %541, %v312
        %v543 = vpop.permute.xlu0 %542
        %546 = vset.pattern.permute.xlu0 0
        %547 = vperm.xlu0 %546, %v313
        %v548 = vpop.permute.xlu0 %547
        %551 = vset.pattern.permute.xlu0 0
        %552 = vperm.xlu0 %551, %v314
        %v553 = vpop.permute.xlu0 %552
        %556 = vset.pattern.permute.xlu0 0
        %557 = vperm.xlu0 %556, %v315
        %v558 = vpop.permute.xlu0 %557
        %561 = vset.pattern.permute.xlu0 0
        %562 = vperm.xlu0 %561, %v316
        %v563 = vpop.permute.xlu0 %562
        %566 = vset.pattern.permute.xlu0 0
        %567 = vperm.xlu0 %566, %v317
        %v568 = vpop.permute.xlu0 %567
        %571 = vset.pattern.permute.xlu0 0
        %572 = vperm.xlu0 %571, %v318
        %v573 = vpop.permute.xlu0 %572
        %576 = vset.pattern.permute.xlu0 0
        %577 = vperm.xlu0 %576, %v319
        %v578 = vpop.permute.xlu0 %577
        %581 = vset.pattern.permute.xlu0 0
        %582 = vperm.xlu0 %581, %v320
        %v583 = vpop.permute.xlu0 %582
        %586 = vset.pattern.permute.xlu0 0
        %587 = vperm.xlu0 %586, %v321
        %v588 = vpop.permute.xlu0 %587
        %591 = vset.pattern.permute.xlu0 0
        %592 = vperm.xlu0 %591, %v322
        %v593 = vpop.permute.xlu0 %592
        %596 = vset.pattern.permute.xlu0 0
        %597 = vperm.xlu0 %596, %v323
        %v598 = vpop.permute.xlu0 %597
        %601 = vset.pattern.permute.xlu0 0
        %602 = vperm.xlu0 %601, %v324
        %v603 = vpop.permute.xlu0 %602
        %606 = vset.pattern.permute.xlu0 0
        %607 = vperm.xlu0 %606, %v325
        %v608 = vpop.permute.xlu0 %607
        %611 = vset.pattern.permute.xlu0 0
        %612 = vperm.xlu0 %611, %v326
        %v613 = vpop.permute.xlu0 %612
        %616 = vset.pattern.permute.xlu0 0
        %617 = vperm.xlu0 %616, %v327
        %v618 = vpop.permute.xlu0 %617
        %621 = vset.pattern.permute.xlu0 0
        %622 = vperm.xlu0 %621, %v328
        %v623 = vpop.permute.xlu0 %622
        %626 = vset.pattern.permute.xlu0 0
        %627 = vperm.xlu0 %626, %v329
        %v628 = vpop.permute.xlu0 %627
        %631 = vset.pattern.permute.xlu0 0
        %632 = vperm.xlu0 %631, %v330
        %v633 = vpop.permute.xlu0 %632
        %636 = vset.pattern.permute.xlu0 0
        %637 = vperm.xlu0 %636, %v331
        %v638 = vpop.permute.xlu0 %637
        %641 = vset.pattern.permute.xlu0 0
        %642 = vperm.xlu0 %641, %v332
        %v643 = vpop.permute.xlu0 %642
        %646 = vset.pattern.permute.xlu0 0
        %647 = vperm.xlu0 %646, %v333
        %v648 = vpop.permute.xlu0 %647
        %651 = vset.pattern.permute.xlu0 0
        %652 = vperm.xlu0 %651, %v334
        %v653 = vpop.permute.xlu0 %652
        %656 = vset.pattern.permute.xlu0 0
        %657 = vperm.xlu0 %656, %v335
        %v658 = vpop.permute.xlu0 %657
        %v661 = vperm.slane %v336, 0
        %v662 = vperm.slane %v336, 4
        %v665 = vperm.slane %v661, 0
        %v666 = vperm.slane %v662, 0
        %v667 = vmul.f32 %v343, %v665
        %v668 = vmul.f32 %v343, %v666
        %v669 = vmul.f32 %v348, %v665
        %v670 = vmul.f32 %v348, %v666
        %v671 = vmul.f32 %v353, %v665
        %v672 = vmul.f32 %v353, %v666
        %v673 = vmul.f32 %v358, %v665
        %v674 = vmul.f32 %v358, %v666
        %v675 = vmul.f32 %v363, %v665
        %v676 = vmul.f32 %v363, %v666
        %v677 = vmul.f32 %v368, %v665
        %v678 = vmul.f32 %v368, %v666
        %v679 = vmul.f32 %v373, %v665
        %v680 = vmul.f32 %v373, %v666
        %v681 = vmul.f32 %v378, %v665
        %v682 = vmul.f32 %v378, %v666
        %v683 = vmul.f32 %v383, %v665
        %v684 = vmul.f32 %v383, %v666
        %v685 = vmul.f32 %v388, %v665
        %v686 = vmul.f32 %v388, %v666
        %v687 = vmul.f32 %v393, %v665
        %v688 = vmul.f32 %v393, %v666
        %v689 = vmul.f32 %v398, %v665
        %v690 = vmul.f32 %v398, %v666
        %v691 = vmul.f32 %v403, %v665
        %v692 = vmul.f32 %v403, %v666
        %v693 = vmul.f32 %v408, %v665
        %v694 = vmul.f32 %v408, %v666
        %v695 = vmul.f32 %v413, %v665
        %v696 = vmul.f32 %v413, %v666
        %v697 = vmul.f32 %v418, %v665
        %v698 = vmul.f32 %v418, %v666
        %v699 = vmul.f32 %v423, %v665
        %v700 = vmul.f32 %v423, %v666
        %v701 = vmul.f32 %v428, %v665
        %v702 = vmul.f32 %v428, %v666
        %v703 = vmul.f32 %v433, %v665
        %v704 = vmul.f32 %v433, %v666
        %v705 = vmul.f32 %v438, %v665
        %v706 = vmul.f32 %v438, %v666
        %v707 = vmul.f32 %v443, %v665
        %v708 = vmul.f32 %v443, %v666
        %v709 = vmul.f32 %v448, %v665
        %v710 = vmul.f32 %v448, %v666
        %v711 = vmul.f32 %v453, %v665
        %v712 = vmul.f32 %v453, %v666
        %v713 = vmul.f32 %v458, %v665
        %v714 = vmul.f32 %v458, %v666
        %v715 = vmul.f32 %v463, %v665
        %v716 = vmul.f32 %v463, %v666
        %v717 = vmul.f32 %v468, %v665
        %v718 = vmul.f32 %v468, %v666
        %v719 = vmul.f32 %v473, %v665
        %v720 = vmul.f32 %v473, %v666
        %v721 = vmul.f32 %v478, %v665
        %v722 = vmul.f32 %v478, %v666
        %v723 = vmul.f32 %v483, %v665
        %v724 = vmul.f32 %v483, %v666
        %v725 = vmul.f32 %v488, %v665
        %v726 = vmul.f32 %v488, %v666
        %v727 = vmul.f32 %v493, %v665
        %v728 = vmul.f32 %v493, %v666
        %v729 = vmul.f32 %v498, %v665
        %v730 = vmul.f32 %v498, %v666
        %v731 = vmul.f32 %v503, %v665
        %v732 = vmul.f32 %v503, %v666
        %v733 = vmul.f32 %v508, %v665
        %v734 = vmul.f32 %v508, %v666
        %v735 = vmul.f32 %v513, %v665
        %v736 = vmul.f32 %v513, %v666
        %v737 = vmul.f32 %v518, %v665
        %v738 = vmul.f32 %v518, %v666
        %v739 = vmul.f32 %v523, %v665
        %v740 = vmul.f32 %v523, %v666
        %v741 = vmul.f32 %v528, %v665
        %v742 = vmul.f32 %v528, %v666
        %v743 = vmul.f32 %v533, %v665
        %v744 = vmul.f32 %v533, %v666
        %v745 = vmul.f32 %v538, %v665
        %v746 = vmul.f32 %v538, %v666
        %v747 = vmul.f32 %v543, %v665
        %v748 = vmul.f32 %v543, %v666
        %v749 = vmul.f32 %v548, %v665
        %v750 = vmul.f32 %v548, %v666
        %v751 = vmul.f32 %v553, %v665
        %v752 = vmul.f32 %v553, %v666
        %v753 = vmul.f32 %v558, %v665
        %v754 = vmul.f32 %v558, %v666
        %v755 = vmul.f32 %v563, %v665
        %v756 = vmul.f32 %v563, %v666
        %v757 = vmul.f32 %v568, %v665
        %v758 = vmul.f32 %v568, %v666
        %v759 = vmul.f32 %v573, %v665
        %v760 = vmul.f32 %v573, %v666
        %v761 = vmul.f32 %v578, %v665
        %v762 = vmul.f32 %v578, %v666
        %v763 = vmul.f32 %v583, %v665
        %v764 = vmul.f32 %v583, %v666
        %v765 = vmul.f32 %v588, %v665
        %v766 = vmul.f32 %v588, %v666
        %v767 = vmul.f32 %v593, %v665
        %v768 = vmul.f32 %v593, %v666
        %v769 = vmul.f32 %v598, %v665
        %v770 = vmul.f32 %v598, %v666
        %v771 = vmul.f32 %v603, %v665
        %v772 = vmul.f32 %v603, %v666
        %v773 = vmul.f32 %v608, %v665
        %v774 = vmul.f32 %v608, %v666
        %v775 = vmul.f32 %v613, %v665
        %v776 = vmul.f32 %v613, %v666
        %v777 = vmul.f32 %v618, %v665
        %v778 = vmul.f32 %v618, %v666
        %v779 = vmul.f32 %v623, %v665
        %v780 = vmul.f32 %v623, %v666
        %v781 = vmul.f32 %v628, %v665
        %v782 = vmul.f32 %v628, %v666
        %v783 = vmul.f32 %v633, %v665
        %v784 = vmul.f32 %v633, %v666
        %v785 = vmul.f32 %v638, %v665
        %v786 = vmul.f32 %v638, %v666
        %v787 = vmul.f32 %v643, %v665
        %v788 = vmul.f32 %v643, %v666
        %v789 = vmul.f32 %v648, %v665
        %v790 = vmul.f32 %v648, %v666
        %v791 = vmul.f32 %v653, %v665
        %v792 = vmul.f32 %v653, %v666
        %v793 = vmul.f32 %v658, %v665
        %v794 = vmul.f32 %v658, %v666
        %795 = vset.pattern.permute.xlu0 1
        %796 = vperm.xlu0 %795, %v272
        %v797 = vpop.permute.xlu0 %796
        %799 = vset.pattern.permute.xlu0 1
        %800 = vperm.xlu0 %799, %v273
        %v801 = vpop.permute.xlu0 %800
        %803 = vset.pattern.permute.xlu0 1
        %804 = vperm.xlu0 %803, %v274
        %v805 = vpop.permute.xlu0 %804
        %807 = vset.pattern.permute.xlu0 1
        %808 = vperm.xlu0 %807, %v275
        %v809 = vpop.permute.xlu0 %808
        %811 = vset.pattern.permute.xlu0 1
        %812 = vperm.xlu0 %811, %v276
        %v813 = vpop.permute.xlu0 %812
        %815 = vset.pattern.permute.xlu0 1
        %816 = vperm.xlu0 %815, %v277
        %v817 = vpop.permute.xlu0 %816
        %819 = vset.pattern.permute.xlu0 1
        %820 = vperm.xlu0 %819, %v278
        %v821 = vpop.permute.xlu0 %820
        %823 = vset.pattern.permute.xlu0 1
        %824 = vperm.xlu0 %823, %v279
        %v825 = vpop.permute.xlu0 %824
        %827 = vset.pattern.permute.xlu0 1
        %828 = vperm.xlu0 %827, %v280
        %v829 = vpop.permute.xlu0 %828
        %831 = vset.pattern.permute.xlu0 1
        %832 = vperm.xlu0 %831, %v281
        %v833 = vpop.permute.xlu0 %832
        %835 = vset.pattern.permute.xlu0 1
        %836 = vperm.xlu0 %835, %v282
        %v837 = vpop.permute.xlu0 %836
        %839 = vset.pattern.permute.xlu0 1
        %840 = vperm.xlu0 %839, %v283
        %v841 = vpop.permute.xlu0 %840
        %843 = vset.pattern.permute.xlu0 1
        %844 = vperm.xlu0 %843, %v284
        %v845 = vpop.permute.xlu0 %844
        %847 = vset.pattern.permute.xlu0 1
        %848 = vperm.xlu0 %847, %v285
        %v849 = vpop.permute.xlu0 %848
        %851 = vset.pattern.permute.xlu0 1
        %852 = vperm.xlu0 %851, %v286
        %v853 = vpop.permute.xlu0 %852
        %855 = vset.pattern.permute.xlu0 1
        %856 = vperm.xlu0 %855, %v287
        %v857 = vpop.permute.xlu0 %856
        %859 = vset.pattern.permute.xlu0 1
        %860 = vperm.xlu0 %859, %v288
        %v861 = vpop.permute.xlu0 %860
        %863 = vset.pattern.permute.xlu0 1
        %864 = vperm.xlu0 %863, %v289
        %v865 = vpop.permute.xlu0 %864
        %867 = vset.pattern.permute.xlu0 1
        %868 = vperm.xlu0 %867, %v290
        %v869 = vpop.permute.xlu0 %868
        %871 = vset.pattern.permute.xlu0 1
        %872 = vperm.xlu0 %871, %v291
        %v873 = vpop.permute.xlu0 %872
        %875 = vset.pattern.permute.xlu0 1
        %876 = vperm.xlu0 %875, %v292
        %v877 = vpop.permute.xlu0 %876
        %879 = vset.pattern.permute.xlu0 1
        %880 = vperm.xlu0 %879, %v293
        %v881 = vpop.permute.xlu0 %880
        %883 = vset.pattern.permute.xlu0 1
        %884 = vperm.xlu0 %883, %v294
        %v885 = vpop.permute.xlu0 %884
        %887 = vset.pattern.permute.xlu0 1
        %888 = vperm.xlu0 %887, %v295
        %v889 = vpop.permute.xlu0 %888
        %891 = vset.pattern.permute.xlu0 1
        %892 = vperm.xlu0 %891, %v296
        %v893 = vpop.permute.xlu0 %892
        %895 = vset.pattern.permute.xlu0 1
        %896 = vperm.xlu0 %895, %v297
        %v897 = vpop.permute.xlu0 %896
        %899 = vset.pattern.permute.xlu0 1
        %900 = vperm.xlu0 %899, %v298
        %v901 = vpop.permute.xlu0 %900
        %903 = vset.pattern.permute.xlu0 1
        %904 = vperm.xlu0 %903, %v299
        %v905 = vpop.permute.xlu0 %904
        %907 = vset.pattern.permute.xlu0 1
        %908 = vperm.xlu0 %907, %v300
        %v909 = vpop.permute.xlu0 %908
        %911 = vset.pattern.permute.xlu0 1
        %912 = vperm.xlu0 %911, %v301
        %v913 = vpop.permute.xlu0 %912
        %915 = vset.pattern.permute.xlu0 1
        %916 = vperm.xlu0 %915, %v302
        %v917 = vpop.permute.xlu0 %916
        %919 = vset.pattern.permute.xlu0 1
        %920 = vperm.xlu0 %919, %v303
        %v921 = vpop.permute.xlu0 %920
        %923 = vset.pattern.permute.xlu0 1
        %924 = vperm.xlu0 %923, %v304
        %v925 = vpop.permute.xlu0 %924
        %927 = vset.pattern.permute.xlu0 1
        %928 = vperm.xlu0 %927, %v305
        %v929 = vpop.permute.xlu0 %928
        %931 = vset.pattern.permute.xlu0 1
        %932 = vperm.xlu0 %931, %v306
        %v933 = vpop.permute.xlu0 %932
        %935 = vset.pattern.permute.xlu0 1
        %936 = vperm.xlu0 %935, %v307
        %v937 = vpop.permute.xlu0 %936
        %939 = vset.pattern.permute.xlu0 1
        %940 = vperm.xlu0 %939, %v308
        %v941 = vpop.permute.xlu0 %940
        %943 = vset.pattern.permute.xlu0 1
        %944 = vperm.xlu0 %943, %v309
        %v945 = vpop.permute.xlu0 %944
        %947 = vset.pattern.permute.xlu0 1
        %948 = vperm.xlu0 %947, %v310
        %v949 = vpop.permute.xlu0 %948
        %951 = vset.pattern.permute.xlu0 1
        %952 = vperm.xlu0 %951, %v311
        %v953 = vpop.permute.xlu0 %952
        %955 = vset.pattern.permute.xlu0 1
        %956 = vperm.xlu0 %955, %v312
        %v957 = vpop.permute.xlu0 %956
        %959 = vset.pattern.permute.xlu0 1
        %960 = vperm.xlu0 %959, %v313
        %v961 = vpop.permute.xlu0 %960
        %963 = vset.pattern.permute.xlu0 1
        %964 = vperm.xlu0 %963, %v314
        %v965 = vpop.permute.xlu0 %964
        %967 = vset.pattern.permute.xlu0 1
        %968 = vperm.xlu0 %967, %v315
        %v969 = vpop.permute.xlu0 %968
        %971 = vset.pattern.permute.xlu0 1
        %972 = vperm.xlu0 %971, %v316
        %v973 = vpop.permute.xlu0 %972
        %975 = vset.pattern.permute.xlu0 1
        %976 = vperm.xlu0 %975, %v317
        %v977 = vpop.permute.xlu0 %976
        %979 = vset.pattern.permute.xlu0 1
        %980 = vperm.xlu0 %979, %v318
        %v981 = vpop.permute.xlu0 %980
        %983 = vset.pattern.permute.xlu0 1
        %984 = vperm.xlu0 %983, %v319
        %v985 = vpop.permute.xlu0 %984
        %987 = vset.pattern.permute.xlu0 1
        %988 = vperm.xlu0 %987, %v320
        %v989 = vpop.permute.xlu0 %988
        %991 = vset.pattern.permute.xlu0 1
        %992 = vperm.xlu0 %991, %v321
        %v993 = vpop.permute.xlu0 %992
        %995 = vset.pattern.permute.xlu0 1
        %996 = vperm.xlu0 %995, %v322
        %v997 = vpop.permute.xlu0 %996
        %999 = vset.pattern.permute.xlu0 1
        %1000 = vperm.xlu0 %999, %v323
        %v1001 = vpop.permute.xlu0 %1000
        %1003 = vset.pattern.permute.xlu0 1
        %1004 = vperm.xlu0 %1003, %v324
        %v1005 = vpop.permute.xlu0 %1004
        %1007 = vset.pattern.permute.xlu0 1
        %1008 = vperm.xlu0 %1007, %v325
        %v1009 = vpop.permute.xlu0 %1008
        %1011 = vset.pattern.permute.xlu0 1
        %1012 = vperm.xlu0 %1011, %v326
        %v1013 = vpop.permute.xlu0 %1012
        %1015 = vset.pattern.permute.xlu0 1
        %1016 = vperm.xlu0 %1015, %v327
        %v1017 = vpop.permute.xlu0 %1016
        %1019 = vset.pattern.permute.xlu0 1
        %1020 = vperm.xlu0 %1019, %v328
        %v1021 = vpop.permute.xlu0 %1020
        %1023 = vset.pattern.permute.xlu0 1
        %1024 = vperm.xlu0 %1023, %v329
        %v1025 = vpop.permute.xlu0 %1024
        %1027 = vset.pattern.permute.xlu0 1
        %1028 = vperm.xlu0 %1027, %v330
        %v1029 = vpop.permute.xlu0 %1028
        %1031 = vset.pattern.permute.xlu0 1
        %1032 = vperm.xlu0 %1031, %v331
        %v1033 = vpop.permute.xlu0 %1032
        %1035 = vset.pattern.permute.xlu0 1
        %1036 = vperm.xlu0 %1035, %v332
        %v1037 = vpop.permute.xlu0 %1036
        %1039 = vset.pattern.permute.xlu0 1
        %1040 = vperm.xlu0 %1039, %v333
        %v1041 = vpop.permute.xlu0 %1040
        %1043 = vset.pattern.permute.xlu0 1
        %1044 = vperm.xlu0 %1043, %v334
        %v1045 = vpop.permute.xlu0 %1044
        %1047 = vset.pattern.permute.xlu0 1
        %1048 = vperm.xlu0 %1047, %v335
        %v1049 = vpop.permute.xlu0 %1048
        %v1051 = vperm.slane %v336, 1
        %v1052 = vperm.slane %v336, 5
        %v1055 = vperm.slane %v1051, 1
        %v1056 = vperm.slane %v1052, 1
        %v1057 = vmul.f32 %v797, %v1055
        %v1058 = vmul.f32 %v797, %v1056
        %v1059 = vmul.f32 %v801, %v1055
        %v1060 = vmul.f32 %v801, %v1056
        %v1061 = vmul.f32 %v805, %v1055
        %v1062 = vmul.f32 %v805, %v1056
        %v1063 = vmul.f32 %v809, %v1055
        %v1064 = vmul.f32 %v809, %v1056
        %v1065 = vmul.f32 %v813, %v1055
        %v1066 = vmul.f32 %v813, %v1056
        %v1067 = vmul.f32 %v817, %v1055
        %v1068 = vmul.f32 %v817, %v1056
        %v1069 = vmul.f32 %v821, %v1055
        %v1070 = vmul.f32 %v821, %v1056
        %v1071 = vmul.f32 %v825, %v1055
        %v1072 = vmul.f32 %v825, %v1056
        %v1073 = vmul.f32 %v829, %v1055
        %v1074 = vmul.f32 %v829, %v1056
        %v1075 = vmul.f32 %v833, %v1055
        %v1076 = vmul.f32 %v833, %v1056
        %v1077 = vmul.f32 %v837, %v1055
        %v1078 = vmul.f32 %v837, %v1056
        %v1079 = vmul.f32 %v841, %v1055
        %v1080 = vmul.f32 %v841, %v1056
        %v1081 = vmul.f32 %v845, %v1055
        %v1082 = vmul.f32 %v845, %v1056
        %v1083 = vmul.f32 %v849, %v1055
        %v1084 = vmul.f32 %v849, %v1056
        %v1085 = vmul.f32 %v853, %v1055
        %v1086 = vmul.f32 %v853, %v1056
        %v1087 = vmul.f32 %v857, %v1055
        %v1088 = vmul.f32 %v857, %v1056
        %v1089 = vmul.f32 %v861, %v1055
        %v1090 = vmul.f32 %v861, %v1056
        %v1091 = vmul.f32 %v865, %v1055
        %v1092 = vmul.f32 %v865, %v1056
        %v1093 = vmul.f32 %v869, %v1055
        %v1094 = vmul.f32 %v869, %v1056
        %v1095 = vmul.f32 %v873, %v1055
        %v1096 = vmul.f32 %v873, %v1056
        %v1097 = vmul.f32 %v877, %v1055
        %v1098 = vmul.f32 %v877, %v1056
        %v1099 = vmul.f32 %v881, %v1055
        %v1100 = vmul.f32 %v881, %v1056
        %v1101 = vmul.f32 %v885, %v1055
        %v1102 = vmul.f32 %v885, %v1056
        %v1103 = vmul.f32 %v889, %v1055
        %v1104 = vmul.f32 %v889, %v1056
        %v1105 = vmul.f32 %v893, %v1055
        %v1106 = vmul.f32 %v893, %v1056
        %v1107 = vmul.f32 %v897, %v1055
        %v1108 = vmul.f32 %v897, %v1056
        %v1109 = vmul.f32 %v901, %v1055
        %v1110 = vmul.f32 %v901, %v1056
        %v1111 = vmul.f32 %v905, %v1055
        %v1112 = vmul.f32 %v905, %v1056
        %v1113 = vmul.f32 %v909, %v1055
        %v1114 = vmul.f32 %v909, %v1056
        %v1115 = vmul.f32 %v913, %v1055
        %v1116 = vmul.f32 %v913, %v1056
        %v1117 = vmul.f32 %v917, %v1055
        %v1118 = vmul.f32 %v917, %v1056
        %v1119 = vmul.f32 %v921, %v1055
        %v1120 = vmul.f32 %v921, %v1056
        %v1121 = vmul.f32 %v925, %v1055
        %v1122 = vmul.f32 %v925, %v1056
        %v1123 = vmul.f32 %v929, %v1055
        %v1124 = vmul.f32 %v929, %v1056
        %v1125 = vmul.f32 %v933, %v1055
        %v1126 = vmul.f32 %v933, %v1056
        %v1127 = vmul.f32 %v937, %v1055
        %v1128 = vmul.f32 %v937, %v1056
        %v1129 = vmul.f32 %v941, %v1055
        %v1130 = vmul.f32 %v941, %v1056
        %v1131 = vmul.f32 %v945, %v1055
        %v1132 = vmul.f32 %v945, %v1056
        %v1133 = vmul.f32 %v949, %v1055
        %v1134 = vmul.f32 %v949, %v1056
        %v1135 = vmul.f32 %v953, %v1055
        %v1136 = vmul.f32 %v953, %v1056
        %v1137 = vmul.f32 %v957, %v1055
        %v1138 = vmul.f32 %v957, %v1056
        %v1139 = vmul.f32 %v961, %v1055
        %v1140 = vmul.f32 %v961, %v1056
        %v1141 = vmul.f32 %v965, %v1055
        %v1142 = vmul.f32 %v965, %v1056
        %v1143 = vmul.f32 %v969, %v1055
        %v1144 = vmul.f32 %v969, %v1056
        %v1145 = vmul.f32 %v973, %v1055
        %v1146 = vmul.f32 %v973, %v1056
        %v1147 = vmul.f32 %v977, %v1055
        %v1148 = vmul.f32 %v977, %v1056
        %v1149 = vmul.f32 %v981, %v1055
        %v1150 = vmul.f32 %v981, %v1056
        %v1151 = vmul.f32 %v985, %v1055
        %v1152 = vmul.f32 %v985, %v1056
        %v1153 = vmul.f32 %v989, %v1055
        %v1154 = vmul.f32 %v989, %v1056
        %v1155 = vmul.f32 %v993, %v1055
        %v1156 = vmul.f32 %v993, %v1056
        %v1157 = vmul.f32 %v997, %v1055
        %v1158 = vmul.f32 %v997, %v1056
        %v1159 = vmul.f32 %v1001, %v1055
        %v1160 = vmul.f32 %v1001, %v1056
        %v1161 = vmul.f32 %v1005, %v1055
        %v1162 = vmul.f32 %v1005, %v1056
        %v1163 = vmul.f32 %v1009, %v1055
        %v1164 = vmul.f32 %v1009, %v1056
        %v1165 = vmul.f32 %v1013, %v1055
        %v1166 = vmul.f32 %v1013, %v1056
        %v1167 = vmul.f32 %v1017, %v1055
        %v1168 = vmul.f32 %v1017, %v1056
        %v1169 = vmul.f32 %v1021, %v1055
        %v1170 = vmul.f32 %v1021, %v1056
        %v1171 = vmul.f32 %v1025, %v1055
        %v1172 = vmul.f32 %v1025, %v1056
        %v1173 = vmul.f32 %v1029, %v1055
        %v1174 = vmul.f32 %v1029, %v1056
        %v1175 = vmul.f32 %v1033, %v1055
        %v1176 = vmul.f32 %v1033, %v1056
        %v1177 = vmul.f32 %v1037, %v1055
        %v1178 = vmul.f32 %v1037, %v1056
        %v1179 = vmul.f32 %v1041, %v1055
        %v1180 = vmul.f32 %v1041, %v1056
        %v1181 = vmul.f32 %v1045, %v1055
        %v1182 = vmul.f32 %v1045, %v1056
        %v1183 = vmul.f32 %v1049, %v1055
        %v1184 = vmul.f32 %v1049, %v1056
        %v1185 = vadd.f32 %v667, %v1057
        %v1186 = vadd.f32 %v668, %v1058
        %v1187 = vadd.f32 %v669, %v1059
        %v1188 = vadd.f32 %v670, %v1060
        %v1189 = vadd.f32 %v671, %v1061
        %v1190 = vadd.f32 %v672, %v1062
        %v1191 = vadd.f32 %v673, %v1063
        %v1192 = vadd.f32 %v674, %v1064
        %v1193 = vadd.f32 %v675, %v1065
        %v1194 = vadd.f32 %v676, %v1066
        %v1195 = vadd.f32 %v677, %v1067
        %v1196 = vadd.f32 %v678, %v1068
        %v1197 = vadd.f32 %v679, %v1069
        %v1198 = vadd.f32 %v680, %v1070
        %v1199 = vadd.f32 %v681, %v1071
        %v1200 = vadd.f32 %v682, %v1072
        %v1201 = vadd.f32 %v683, %v1073
        %v1202 = vadd.f32 %v684, %v1074
        %v1203 = vadd.f32 %v685, %v1075
        %v1204 = vadd.f32 %v686, %v1076
        %v1205 = vadd.f32 %v687, %v1077
        %v1206 = vadd.f32 %v688, %v1078
        %v1207 = vadd.f32 %v689, %v1079
        %v1208 = vadd.f32 %v690, %v1080
        %v1209 = vadd.f32 %v691, %v1081
        %v1210 = vadd.f32 %v692, %v1082
        %v1211 = vadd.f32 %v693, %v1083
        %v1212 = vadd.f32 %v694, %v1084
        %v1213 = vadd.f32 %v695, %v1085
        %v1214 = vadd.f32 %v696, %v1086
        %v1215 = vadd.f32 %v697, %v1087
        %v1216 = vadd.f32 %v698, %v1088
        %v1217 = vadd.f32 %v699, %v1089
        %v1218 = vadd.f32 %v700, %v1090
        %v1219 = vadd.f32 %v701, %v1091
        %v1220 = vadd.f32 %v702, %v1092
        %v1221 = vadd.f32 %v703, %v1093
        %v1222 = vadd.f32 %v704, %v1094
        %v1223 = vadd.f32 %v705, %v1095
        %v1224 = vadd.f32 %v706, %v1096
        %v1225 = vadd.f32 %v707, %v1097
        %v1226 = vadd.f32 %v708, %v1098
        %v1227 = vadd.f32 %v709, %v1099
        %v1228 = vadd.f32 %v710, %v1100
        %v1229 = vadd.f32 %v711, %v1101
        %v1230 = vadd.f32 %v712, %v1102
        %v1231 = vadd.f32 %v713, %v1103
        %v1232 = vadd.f32 %v714, %v1104
        %v1233 = vadd.f32 %v715, %v1105
        %v1234 = vadd.f32 %v716, %v1106
        %v1235 = vadd.f32 %v717, %v1107
        %v1236 = vadd.f32 %v718, %v1108
        %v1237 = vadd.f32 %v719, %v1109
        %v1238 = vadd.f32 %v720, %v1110
        %v1239 = vadd.f32 %v721, %v1111
        %v1240 = vadd.f32 %v722, %v1112
        %v1241 = vadd.f32 %v723, %v1113
        %v1242 = vadd.f32 %v724, %v1114
        %v1243 = vadd.f32 %v725, %v1115
        %v1244 = vadd.f32 %v726, %v1116
        %v1245 = vadd.f32 %v727, %v1117
        %v1246 = vadd.f32 %v728, %v1118
        %v1247 = vadd.f32 %v729, %v1119
        %v1248 = vadd.f32 %v730, %v1120
        %v1249 = vadd.f32 %v731, %v1121
        %v1250 = vadd.f32 %v732, %v1122
        %v1251 = vadd.f32 %v733, %v1123
        %v1252 = vadd.f32 %v734, %v1124
        %v1253 = vadd.f32 %v735, %v1125
        %v1254 = vadd.f32 %v736, %v1126
        %v1255 = vadd.f32 %v737, %v1127
        %v1256 = vadd.f32 %v738, %v1128
        %v1257 = vadd.f32 %v739, %v1129
        %v1258 = vadd.f32 %v740, %v1130
        %v1259 = vadd.f32 %v741, %v1131
        %v1260 = vadd.f32 %v742, %v1132
        %v1261 = vadd.f32 %v743, %v1133
        %v1262 = vadd.f32 %v744, %v1134
        %v1263 = vadd.f32 %v745, %v1135
        %v1264 = vadd.f32 %v746, %v1136
        %v1265 = vadd.f32 %v747, %v1137
        %v1266 = vadd.f32 %v748, %v1138
        %v1267 = vadd.f32 %v749, %v1139
        %v1268 = vadd.f32 %v750, %v1140
        %v1269 = vadd.f32 %v751, %v1141
        %v1270 = vadd.f32 %v752, %v1142
        %v1271 = vadd.f32 %v753, %v1143
        %v1272 = vadd.f32 %v754, %v1144
        %v1273 = vadd.f32 %v755, %v1145
        %v1274 = vadd.f32 %v756, %v1146
        %v1275 = vadd.f32 %v757, %v1147
        %v1276 = vadd.f32 %v758, %v1148
        %v1277 = vadd.f32 %v759, %v1149
        %v1278 = vadd.f32 %v760, %v1150
        %v1279 = vadd.f32 %v761, %v1151
        %v1280 = vadd.f32 %v762, %v1152
        %v1281 = vadd.f32 %v763, %v1153
        %v1282 = vadd.f32 %v764, %v1154
        %v1283 = vadd.f32 %v765, %v1155
        %v1284 = vadd.f32 %v766, %v1156
        %v1285 = vadd.f32 %v767, %v1157
        %v1286 = vadd.f32 %v768, %v1158
        %v1287 = vadd.f32 %v769, %v1159
        %v1288 = vadd.f32 %v770, %v1160
        %v1289 = vadd.f32 %v771, %v1161
        %v1290 = vadd.f32 %v772, %v1162
        %v1291 = vadd.f32 %v773, %v1163
        %v1292 = vadd.f32 %v774, %v1164
        %v1293 = vadd.f32 %v775, %v1165
        %v1294 = vadd.f32 %v776, %v1166
        %v1295 = vadd.f32 %v777, %v1167
        %v1296 = vadd.f32 %v778, %v1168
        %v1297 = vadd.f32 %v779, %v1169
        %v1298 = vadd.f32 %v780, %v1170
        %v1299 = vadd.f32 %v781, %v1171
        %v1300 = vadd.f32 %v782, %v1172
        %v1301 = vadd.f32 %v783, %v1173
        %v1302 = vadd.f32 %v784, %v1174
        %v1303 = vadd.f32 %v785, %v1175
        %v1304 = vadd.f32 %v786, %v1176
        %v1305 = vadd.f32 %v787, %v1177
        %v1306 = vadd.f32 %v788, %v1178
        %v1307 = vadd.f32 %v789, %v1179
        %v1308 = vadd.f32 %v790, %v1180
        %v1309 = vadd.f32 %v791, %v1181
        %v1310 = vadd.f32 %v792, %v1182
        %v1311 = vadd.f32 %v793, %v1183
        %v1312 = vadd.f32 %v794, %v1184
        %1313 = vset.pattern.permute.xlu0 2
        %1314 = vperm.xlu0 %1313, %v272
        %v1315 = vpop.permute.xlu0 %1314
        %1317 = vset.pattern.permute.xlu0 2
        %1318 = vperm.xlu0 %1317, %v273
        %v1319 = vpop.permute.xlu0 %1318
        %1321 = vset.pattern.permute.xlu0 2
        %1322 = vperm.xlu0 %1321, %v274
        %v1323 = vpop.permute.xlu0 %1322
        %1325 = vset.pattern.permute.xlu0 2
        %1326 = vperm.xlu0 %1325, %v275
        %v1327 = vpop.permute.xlu0 %1326
        %1329 = vset.pattern.permute.xlu0 2
        %1330 = vperm.xlu0 %1329, %v276
        %v1331 = vpop.permute.xlu0 %1330
        %1333 = vset.pattern.permute.xlu0 2
        %1334 = vperm.xlu0 %1333, %v277
        %v1335 = vpop.permute.xlu0 %1334
        %1337 = vset.pattern.permute.xlu0 2
        %1338 = vperm.xlu0 %1337, %v278
        %v1339 = vpop.permute.xlu0 %1338
        %1341 = vset.pattern.permute.xlu0 2
        %1342 = vperm.xlu0 %1341, %v279
        %v1343 = vpop.permute.xlu0 %1342
        %1345 = vset.pattern.permute.xlu0 2
        %1346 = vperm.xlu0 %1345, %v280
        %v1347 = vpop.permute.xlu0 %1346
        %1349 = vset.pattern.permute.xlu0 2
        %1350 = vperm.xlu0 %1349, %v281
        %v1351 = vpop.permute.xlu0 %1350
        %1353 = vset.pattern.permute.xlu0 2
        %1354 = vperm.xlu0 %1353, %v282
        %v1355 = vpop.permute.xlu0 %1354
        %1357 = vset.pattern.permute.xlu0 2
        %1358 = vperm.xlu0 %1357, %v283
        %v1359 = vpop.permute.xlu0 %1358
        %1361 = vset.pattern.permute.xlu0 2
        %1362 = vperm.xlu0 %1361, %v284
        %v1363 = vpop.permute.xlu0 %1362
        %1365 = vset.pattern.permute.xlu0 2
        %1366 = vperm.xlu0 %1365, %v285
        %v1367 = vpop.permute.xlu0 %1366
        %1369 = vset.pattern.permute.xlu0 2
        %1370 = vperm.xlu0 %1369, %v286
        %v1371 = vpop.permute.xlu0 %1370
        %1373 = vset.pattern.permute.xlu0 2
        %1374 = vperm.xlu0 %1373, %v287
        %v1375 = vpop.permute.xlu0 %1374
        %1377 = vset.pattern.permute.xlu0 2
        %1378 = vperm.xlu0 %1377, %v288
        %v1379 = vpop.permute.xlu0 %1378
        %1381 = vset.pattern.permute.xlu0 2
        %1382 = vperm.xlu0 %1381, %v289
        %v1383 = vpop.permute.xlu0 %1382
        %1385 = vset.pattern.permute.xlu0 2
        %1386 = vperm.xlu0 %1385, %v290
        %v1387 = vpop.permute.xlu0 %1386
        %1389 = vset.pattern.permute.xlu0 2
        %1390 = vperm.xlu0 %1389, %v291
        %v1391 = vpop.permute.xlu0 %1390
        %1393 = vset.pattern.permute.xlu0 2
        %1394 = vperm.xlu0 %1393, %v292
        %v1395 = vpop.permute.xlu0 %1394
        %1397 = vset.pattern.permute.xlu0 2
        %1398 = vperm.xlu0 %1397, %v293
        %v1399 = vpop.permute.xlu0 %1398
        %1401 = vset.pattern.permute.xlu0 2
        %1402 = vperm.xlu0 %1401, %v294
        %v1403 = vpop.permute.xlu0 %1402
        %1405 = vset.pattern.permute.xlu0 2
        %1406 = vperm.xlu0 %1405, %v295
        %v1407 = vpop.permute.xlu0 %1406
        %1409 = vset.pattern.permute.xlu0 2
        %1410 = vperm.xlu0 %1409, %v296
        %v1411 = vpop.permute.xlu0 %1410
        %1413 = vset.pattern.permute.xlu0 2
        %1414 = vperm.xlu0 %1413, %v297
        %v1415 = vpop.permute.xlu0 %1414
        %1417 = vset.pattern.permute.xlu0 2
        %1418 = vperm.xlu0 %1417, %v298
        %v1419 = vpop.permute.xlu0 %1418
        %1421 = vset.pattern.permute.xlu0 2
        %1422 = vperm.xlu0 %1421, %v299
        %v1423 = vpop.permute.xlu0 %1422
        %1425 = vset.pattern.permute.xlu0 2
        %1426 = vperm.xlu0 %1425, %v300
        %v1427 = vpop.permute.xlu0 %1426
        %1429 = vset.pattern.permute.xlu0 2
        %1430 = vperm.xlu0 %1429, %v301
        %v1431 = vpop.permute.xlu0 %1430
        %1433 = vset.pattern.permute.xlu0 2
        %1434 = vperm.xlu0 %1433, %v302
        %v1435 = vpop.permute.xlu0 %1434
        %1437 = vset.pattern.permute.xlu0 2
        %1438 = vperm.xlu0 %1437, %v303
        %v1439 = vpop.permute.xlu0 %1438
        %1441 = vset.pattern.permute.xlu0 2
        %1442 = vperm.xlu0 %1441, %v304
        %v1443 = vpop.permute.xlu0 %1442
        %1445 = vset.pattern.permute.xlu0 2
        %1446 = vperm.xlu0 %1445, %v305
        %v1447 = vpop.permute.xlu0 %1446
        %1449 = vset.pattern.permute.xlu0 2
        %1450 = vperm.xlu0 %1449, %v306
        %v1451 = vpop.permute.xlu0 %1450
        %1453 = vset.pattern.permute.xlu0 2
        %1454 = vperm.xlu0 %1453, %v307
        %v1455 = vpop.permute.xlu0 %1454
        %1457 = vset.pattern.permute.xlu0 2
        %1458 = vperm.xlu0 %1457, %v308
        %v1459 = vpop.permute.xlu0 %1458
        %1461 = vset.pattern.permute.xlu0 2
        %1462 = vperm.xlu0 %1461, %v309
        %v1463 = vpop.permute.xlu0 %1462
        %1465 = vset.pattern.permute.xlu0 2
        %1466 = vperm.xlu0 %1465, %v310
        %v1467 = vpop.permute.xlu0 %1466
        %1469 = vset.pattern.permute.xlu0 2
        %1470 = vperm.xlu0 %1469, %v311
        %v1471 = vpop.permute.xlu0 %1470
        %1473 = vset.pattern.permute.xlu0 2
        %1474 = vperm.xlu0 %1473, %v312
        %v1475 = vpop.permute.xlu0 %1474
        %1477 = vset.pattern.permute.xlu0 2
        %1478 = vperm.xlu0 %1477, %v313
        %v1479 = vpop.permute.xlu0 %1478
        %1481 = vset.pattern.permute.xlu0 2
        %1482 = vperm.xlu0 %1481, %v314
        %v1483 = vpop.permute.xlu0 %1482
        %1485 = vset.pattern.permute.xlu0 2
        %1486 = vperm.xlu0 %1485, %v315
        %v1487 = vpop.permute.xlu0 %1486
        %1489 = vset.pattern.permute.xlu0 2
        %1490 = vperm.xlu0 %1489, %v316
        %v1491 = vpop.permute.xlu0 %1490
        %1493 = vset.pattern.permute.xlu0 2
        %1494 = vperm.xlu0 %1493, %v317
        %v1495 = vpop.permute.xlu0 %1494
        %1497 = vset.pattern.permute.xlu0 2
        %1498 = vperm.xlu0 %1497, %v318
        %v1499 = vpop.permute.xlu0 %1498
        %1501 = vset.pattern.permute.xlu0 2
        %1502 = vperm.xlu0 %1501, %v319
        %v1503 = vpop.permute.xlu0 %1502
        %1505 = vset.pattern.permute.xlu0 2
        %1506 = vperm.xlu0 %1505, %v320
        %v1507 = vpop.permute.xlu0 %1506
        %1509 = vset.pattern.permute.xlu0 2
        %1510 = vperm.xlu0 %1509, %v321
        %v1511 = vpop.permute.xlu0 %1510
        %1513 = vset.pattern.permute.xlu0 2
        %1514 = vperm.xlu0 %1513, %v322
        %v1515 = vpop.permute.xlu0 %1514
        %1517 = vset.pattern.permute.xlu0 2
        %1518 = vperm.xlu0 %1517, %v323
        %v1519 = vpop.permute.xlu0 %1518
        %1521 = vset.pattern.permute.xlu0 2
        %1522 = vperm.xlu0 %1521, %v324
        %v1523 = vpop.permute.xlu0 %1522
        %1525 = vset.pattern.permute.xlu0 2
        %1526 = vperm.xlu0 %1525, %v325
        %v1527 = vpop.permute.xlu0 %1526
        %1529 = vset.pattern.permute.xlu0 2
        %1530 = vperm.xlu0 %1529, %v326
        %v1531 = vpop.permute.xlu0 %1530
        %1533 = vset.pattern.permute.xlu0 2
        %1534 = vperm.xlu0 %1533, %v327
        %v1535 = vpop.permute.xlu0 %1534
        %1537 = vset.pattern.permute.xlu0 2
        %1538 = vperm.xlu0 %1537, %v328
        %v1539 = vpop.permute.xlu0 %1538
        %1541 = vset.pattern.permute.xlu0 2
        %1542 = vperm.xlu0 %1541, %v329
        %v1543 = vpop.permute.xlu0 %1542
        %1545 = vset.pattern.permute.xlu0 2
        %1546 = vperm.xlu0 %1545, %v330
        %v1547 = vpop.permute.xlu0 %1546
        %1549 = vset.pattern.permute.xlu0 2
        %1550 = vperm.xlu0 %1549, %v331
        %v1551 = vpop.permute.xlu0 %1550
        %1553 = vset.pattern.permute.xlu0 2
        %1554 = vperm.xlu0 %1553, %v332
        %v1555 = vpop.permute.xlu0 %1554
        %1557 = vset.pattern.permute.xlu0 2
        %1558 = vperm.xlu0 %1557, %v333
        %v1559 = vpop.permute.xlu0 %1558
        %1561 = vset.pattern.permute.xlu0 2
        %1562 = vperm.xlu0 %1561, %v334
        %v1563 = vpop.permute.xlu0 %1562
        %1565 = vset.pattern.permute.xlu0 2
        %1566 = vperm.xlu0 %1565, %v335
        %v1567 = vpop.permute.xlu0 %1566
        %v1569 = vperm.slane %v336, 2
        %v1570 = vperm.slane %v336, 6
        %v1573 = vperm.slane %v1569, 2
        %v1574 = vperm.slane %v1570, 2
        %v1575 = vmul.f32 %v1315, %v1573
        %v1576 = vmul.f32 %v1315, %v1574
        %v1577 = vmul.f32 %v1319, %v1573
        %v1578 = vmul.f32 %v1319, %v1574
        %v1579 = vmul.f32 %v1323, %v1573
        %v1580 = vmul.f32 %v1323, %v1574
        %v1581 = vmul.f32 %v1327, %v1573
        %v1582 = vmul.f32 %v1327, %v1574
        %v1583 = vmul.f32 %v1331, %v1573
        %v1584 = vmul.f32 %v1331, %v1574
        %v1585 = vmul.f32 %v1335, %v1573
        %v1586 = vmul.f32 %v1335, %v1574
        %v1587 = vmul.f32 %v1339, %v1573
        %v1588 = vmul.f32 %v1339, %v1574
        %v1589 = vmul.f32 %v1343, %v1573
        %v1590 = vmul.f32 %v1343, %v1574
        %v1591 = vmul.f32 %v1347, %v1573
        %v1592 = vmul.f32 %v1347, %v1574
        %v1593 = vmul.f32 %v1351, %v1573
        %v1594 = vmul.f32 %v1351, %v1574
        %v1595 = vmul.f32 %v1355, %v1573
        %v1596 = vmul.f32 %v1355, %v1574
        %v1597 = vmul.f32 %v1359, %v1573
        %v1598 = vmul.f32 %v1359, %v1574
        %v1599 = vmul.f32 %v1363, %v1573
        %v1600 = vmul.f32 %v1363, %v1574
        %v1601 = vmul.f32 %v1367, %v1573
        %v1602 = vmul.f32 %v1367, %v1574
        %v1603 = vmul.f32 %v1371, %v1573
        %v1604 = vmul.f32 %v1371, %v1574
        %v1605 = vmul.f32 %v1375, %v1573
        %v1606 = vmul.f32 %v1375, %v1574
        %v1607 = vmul.f32 %v1379, %v1573
        %v1608 = vmul.f32 %v1379, %v1574
        %v1609 = vmul.f32 %v1383, %v1573
        %v1610 = vmul.f32 %v1383, %v1574
        %v1611 = vmul.f32 %v1387, %v1573
        %v1612 = vmul.f32 %v1387, %v1574
        %v1613 = vmul.f32 %v1391, %v1573
        %v1614 = vmul.f32 %v1391, %v1574
        %v1615 = vmul.f32 %v1395, %v1573
        %v1616 = vmul.f32 %v1395, %v1574
        %v1617 = vmul.f32 %v1399, %v1573
        %v1618 = vmul.f32 %v1399, %v1574
        %v1619 = vmul.f32 %v1403, %v1573
        %v1620 = vmul.f32 %v1403, %v1574
        %v1621 = vmul.f32 %v1407, %v1573
        %v1622 = vmul.f32 %v1407, %v1574
        %v1623 = vmul.f32 %v1411, %v1573
        %v1624 = vmul.f32 %v1411, %v1574
        %v1625 = vmul.f32 %v1415, %v1573
        %v1626 = vmul.f32 %v1415, %v1574
        %v1627 = vmul.f32 %v1419, %v1573
        %v1628 = vmul.f32 %v1419, %v1574
        %v1629 = vmul.f32 %v1423, %v1573
        %v1630 = vmul.f32 %v1423, %v1574
        %v1631 = vmul.f32 %v1427, %v1573
        %v1632 = vmul.f32 %v1427, %v1574
        %v1633 = vmul.f32 %v1431, %v1573
        %v1634 = vmul.f32 %v1431, %v1574
        %v1635 = vmul.f32 %v1435, %v1573
        %v1636 = vmul.f32 %v1435, %v1574
        %v1637 = vmul.f32 %v1439, %v1573
        %v1638 = vmul.f32 %v1439, %v1574
        %v1639 = vmul.f32 %v1443, %v1573
        %v1640 = vmul.f32 %v1443, %v1574
        %v1641 = vmul.f32 %v1447, %v1573
        %v1642 = vmul.f32 %v1447, %v1574
        %v1643 = vmul.f32 %v1451, %v1573
        %v1644 = vmul.f32 %v1451, %v1574
        %v1645 = vmul.f32 %v1455, %v1573
        %v1646 = vmul.f32 %v1455, %v1574
        %v1647 = vmul.f32 %v1459, %v1573
        %v1648 = vmul.f32 %v1459, %v1574
        %v1649 = vmul.f32 %v1463, %v1573
        %v1650 = vmul.f32 %v1463, %v1574
        %v1651 = vmul.f32 %v1467, %v1573
        %v1652 = vmul.f32 %v1467, %v1574
        %v1653 = vmul.f32 %v1471, %v1573
        %v1654 = vmul.f32 %v1471, %v1574
        %v1655 = vmul.f32 %v1475, %v1573
        %v1656 = vmul.f32 %v1475, %v1574
        %v1657 = vmul.f32 %v1479, %v1573
        %v1658 = vmul.f32 %v1479, %v1574
        %v1659 = vmul.f32 %v1483, %v1573
        %v1660 = vmul.f32 %v1483, %v1574
        %v1661 = vmul.f32 %v1487, %v1573
        %v1662 = vmul.f32 %v1487, %v1574
        %v1663 = vmul.f32 %v1491, %v1573
        %v1664 = vmul.f32 %v1491, %v1574
        %v1665 = vmul.f32 %v1495, %v1573
        %v1666 = vmul.f32 %v1495, %v1574
        %v1667 = vmul.f32 %v1499, %v1573
        %v1668 = vmul.f32 %v1499, %v1574
        %v1669 = vmul.f32 %v1503, %v1573
        %v1670 = vmul.f32 %v1503, %v1574
        %v1671 = vmul.f32 %v1507, %v1573
        %v1672 = vmul.f32 %v1507, %v1574
        %v1673 = vmul.f32 %v1511, %v1573
        %v1674 = vmul.f32 %v1511, %v1574
        %v1675 = vmul.f32 %v1515, %v1573
        %v1676 = vmul.f32 %v1515, %v1574
        %v1677 = vmul.f32 %v1519, %v1573
        %v1678 = vmul.f32 %v1519, %v1574
        %v1679 = vmul.f32 %v1523, %v1573
        %v1680 = vmul.f32 %v1523, %v1574
        %v1681 = vmul.f32 %v1527, %v1573
        %v1682 = vmul.f32 %v1527, %v1574
        %v1683 = vmul.f32 %v1531, %v1573
        %v1684 = vmul.f32 %v1531, %v1574
        %v1685 = vmul.f32 %v1535, %v1573
        %v1686 = vmul.f32 %v1535, %v1574
        %v1687 = vmul.f32 %v1539, %v1573
        %v1688 = vmul.f32 %v1539, %v1574
        %v1689 = vmul.f32 %v1543, %v1573
        %v1690 = vmul.f32 %v1543, %v1574
        %v1691 = vmul.f32 %v1547, %v1573
        %v1692 = vmul.f32 %v1547, %v1574
        %v1693 = vmul.f32 %v1551, %v1573
        %v1694 = vmul.f32 %v1551, %v1574
        %v1695 = vmul.f32 %v1555, %v1573
        %v1696 = vmul.f32 %v1555, %v1574
        %v1697 = vmul.f32 %v1559, %v1573
        %v1698 = vmul.f32 %v1559, %v1574
        %v1699 = vmul.f32 %v1563, %v1573
        %v1700 = vmul.f32 %v1563, %v1574
        %v1701 = vmul.f32 %v1567, %v1573
        %v1702 = vmul.f32 %v1567, %v1574
        %v1703 = vadd.f32 %v1185, %v1575
        %v1704 = vadd.f32 %v1186, %v1576
        %v1705 = vadd.f32 %v1187, %v1577
        %v1706 = vadd.f32 %v1188, %v1578
        %v1707 = vadd.f32 %v1189, %v1579
        %v1708 = vadd.f32 %v1190, %v1580
        %v1709 = vadd.f32 %v1191, %v1581
        %v1710 = vadd.f32 %v1192, %v1582
        %v1711 = vadd.f32 %v1193, %v1583
        %v1712 = vadd.f32 %v1194, %v1584
        %v1713 = vadd.f32 %v1195, %v1585
        %v1714 = vadd.f32 %v1196, %v1586
        %v1715 = vadd.f32 %v1197, %v1587
        %v1716 = vadd.f32 %v1198, %v1588
        %v1717 = vadd.f32 %v1199, %v1589
        %v1718 = vadd.f32 %v1200, %v1590
        %v1719 = vadd.f32 %v1201, %v1591
        %v1720 = vadd.f32 %v1202, %v1592
        %v1721 = vadd.f32 %v1203, %v1593
        %v1722 = vadd.f32 %v1204, %v1594
        %v1723 = vadd.f32 %v1205, %v1595
        %v1724 = vadd.f32 %v1206, %v1596
        %v1725 = vadd.f32 %v1207, %v1597
        %v1726 = vadd.f32 %v1208, %v1598
        %v1727 = vadd.f32 %v1209, %v1599
        %v1728 = vadd.f32 %v1210, %v1600
        %v1729 = vadd.f32 %v1211, %v1601
        %v1730 = vadd.f32 %v1212, %v1602
        %v1731 = vadd.f32 %v1213, %v1603
        %v1732 = vadd.f32 %v1214, %v1604
        %v1733 = vadd.f32 %v1215, %v1605
        %v1734 = vadd.f32 %v1216, %v1606
        %v1735 = vadd.f32 %v1217, %v1607
        %v1736 = vadd.f32 %v1218, %v1608
        %v1737 = vadd.f32 %v1219, %v1609
        %v1738 = vadd.f32 %v1220, %v1610
        %v1739 = vadd.f32 %v1221, %v1611
        %v1740 = vadd.f32 %v1222, %v1612
        %v1741 = vadd.f32 %v1223, %v1613
        %v1742 = vadd.f32 %v1224, %v1614
        %v1743 = vadd.f32 %v1225, %v1615
        %v1744 = vadd.f32 %v1226, %v1616
        %v1745 = vadd.f32 %v1227, %v1617
        %v1746 = vadd.f32 %v1228, %v1618
        %v1747 = vadd.f32 %v1229, %v1619
        %v1748 = vadd.f32 %v1230, %v1620
        %v1749 = vadd.f32 %v1231, %v1621
        %v1750 = vadd.f32 %v1232, %v1622
        %v1751 = vadd.f32 %v1233, %v1623
        %v1752 = vadd.f32 %v1234, %v1624
        %v1753 = vadd.f32 %v1235, %v1625
        %v1754 = vadd.f32 %v1236, %v1626
        %v1755 = vadd.f32 %v1237, %v1627
        %v1756 = vadd.f32 %v1238, %v1628
        %v1757 = vadd.f32 %v1239, %v1629
        %v1758 = vadd.f32 %v1240, %v1630
        %v1759 = vadd.f32 %v1241, %v1631
        %v1760 = vadd.f32 %v1242, %v1632
        %v1761 = vadd.f32 %v1243, %v1633
        %v1762 = vadd.f32 %v1244, %v1634
        %v1763 = vadd.f32 %v1245, %v1635
        %v1764 = vadd.f32 %v1246, %v1636
        %v1765 = vadd.f32 %v1247, %v1637
        %v1766 = vadd.f32 %v1248, %v1638
        %v1767 = vadd.f32 %v1249, %v1639
        %v1768 = vadd.f32 %v1250, %v1640
        %v1769 = vadd.f32 %v1251, %v1641
        %v1770 = vadd.f32 %v1252, %v1642
        %v1771 = vadd.f32 %v1253, %v1643
        %v1772 = vadd.f32 %v1254, %v1644
        %v1773 = vadd.f32 %v1255, %v1645
        %v1774 = vadd.f32 %v1256, %v1646
        %v1775 = vadd.f32 %v1257, %v1647
        %v1776 = vadd.f32 %v1258, %v1648
        %v1777 = vadd.f32 %v1259, %v1649
        %v1778 = vadd.f32 %v1260, %v1650
        %v1779 = vadd.f32 %v1261, %v1651
        %v1780 = vadd.f32 %v1262, %v1652
        %v1781 = vadd.f32 %v1263, %v1653
        %v1782 = vadd.f32 %v1264, %v1654
        %v1783 = vadd.f32 %v1265, %v1655
        %v1784 = vadd.f32 %v1266, %v1656
        %v1785 = vadd.f32 %v1267, %v1657
        %v1786 = vadd.f32 %v1268, %v1658
        %v1787 = vadd.f32 %v1269, %v1659
        %v1788 = vadd.f32 %v1270, %v1660
        %v1789 = vadd.f32 %v1271, %v1661
        %v1790 = vadd.f32 %v1272, %v1662
        %v1791 = vadd.f32 %v1273, %v1663
        %v1792 = vadd.f32 %v1274, %v1664
        %v1793 = vadd.f32 %v1275, %v1665
        %v1794 = vadd.f32 %v1276, %v1666
        %v1795 = vadd.f32 %v1277, %v1667
        %v1796 = vadd.f32 %v1278, %v1668
        %v1797 = vadd.f32 %v1279, %v1669
        %v1798 = vadd.f32 %v1280, %v1670
        %v1799 = vadd.f32 %v1281, %v1671
        %v1800 = vadd.f32 %v1282, %v1672
        %v1801 = vadd.f32 %v1283, %v1673
        %v1802 = vadd.f32 %v1284, %v1674
        %v1803 = vadd.f32 %v1285, %v1675
        %v1804 = vadd.f32 %v1286, %v1676
        %v1805 = vadd.f32 %v1287, %v1677
        %v1806 = vadd.f32 %v1288, %v1678
        %v1807 = vadd.f32 %v1289, %v1679
        %v1808 = vadd.f32 %v1290, %v1680
        %v1809 = vadd.f32 %v1291, %v1681
        %v1810 = vadd.f32 %v1292, %v1682
        %v1811 = vadd.f32 %v1293, %v1683
        %v1812 = vadd.f32 %v1294, %v1684
        %v1813 = vadd.f32 %v1295, %v1685
        %v1814 = vadd.f32 %v1296, %v1686
        %v1815 = vadd.f32 %v1297, %v1687
        %v1816 = vadd.f32 %v1298, %v1688
        %v1817 = vadd.f32 %v1299, %v1689
        %v1818 = vadd.f32 %v1300, %v1690
        %v1819 = vadd.f32 %v1301, %v1691
        %v1820 = vadd.f32 %v1302, %v1692
        %v1821 = vadd.f32 %v1303, %v1693
        %v1822 = vadd.f32 %v1304, %v1694
        %v1823 = vadd.f32 %v1305, %v1695
        %v1824 = vadd.f32 %v1306, %v1696
        %v1825 = vadd.f32 %v1307, %v1697
        %v1826 = vadd.f32 %v1308, %v1698
        %v1827 = vadd.f32 %v1309, %v1699
        %v1828 = vadd.f32 %v1310, %v1700
        %v1829 = vadd.f32 %v1311, %v1701
        %v1830 = vadd.f32 %v1312, %v1702
        %v1831 = vperm.slane %v338, 0
        %v1832 = vperm.slane %v339, 0
        %v1833 = vadd.f32 %v1703, %v1831
        %v1834 = vadd.f32 %v1704, %v1832
        %v1835 = vadd.f32 %v1705, %v1831
        %v1836 = vadd.f32 %v1706, %v1832
        %v1837 = vadd.f32 %v1707, %v1831
        %v1838 = vadd.f32 %v1708, %v1832
        %v1839 = vadd.f32 %v1709, %v1831
        %v1840 = vadd.f32 %v1710, %v1832
        %v1841 = vadd.f32 %v1711, %v1831
        %v1842 = vadd.f32 %v1712, %v1832
        %v1843 = vadd.f32 %v1713, %v1831
        %v1844 = vadd.f32 %v1714, %v1832
        %v1845 = vadd.f32 %v1715, %v1831
        %v1846 = vadd.f32 %v1716, %v1832
        %v1847 = vadd.f32 %v1717, %v1831
        %v1848 = vadd.f32 %v1718, %v1832
        %v1849 = vadd.f32 %v1719, %v1831
        %v1850 = vadd.f32 %v1720, %v1832
        %v1851 = vadd.f32 %v1721, %v1831
        %v1852 = vadd.f32 %v1722, %v1832
        %v1853 = vadd.f32 %v1723, %v1831
        %v1854 = vadd.f32 %v1724, %v1832
        %v1855 = vadd.f32 %v1725, %v1831
        %v1856 = vadd.f32 %v1726, %v1832
        %v1857 = vadd.f32 %v1727, %v1831
        %v1858 = vadd.f32 %v1728, %v1832
        %v1859 = vadd.f32 %v1729, %v1831
        %v1860 = vadd.f32 %v1730, %v1832
        %v1861 = vadd.f32 %v1731, %v1831
        %v1862 = vadd.f32 %v1732, %v1832
        %v1863 = vadd.f32 %v1733, %v1831
        %v1864 = vadd.f32 %v1734, %v1832
        %v1865 = vadd.f32 %v1735, %v1831
        %v1866 = vadd.f32 %v1736, %v1832
        %v1867 = vadd.f32 %v1737, %v1831
        %v1868 = vadd.f32 %v1738, %v1832
        %v1869 = vadd.f32 %v1739, %v1831
        %v1870 = vadd.f32 %v1740, %v1832
        %v1871 = vadd.f32 %v1741, %v1831
        %v1872 = vadd.f32 %v1742, %v1832
        %v1873 = vadd.f32 %v1743, %v1831
        %v1874 = vadd.f32 %v1744, %v1832
        %v1875 = vadd.f32 %v1745, %v1831
        %v1876 = vadd.f32 %v1746, %v1832
        %v1877 = vadd.f32 %v1747, %v1831
        %v1878 = vadd.f32 %v1748, %v1832
        %v1879 = vadd.f32 %v1749, %v1831
        %v1880 = vadd.f32 %v1750, %v1832
        %v1881 = vadd.f32 %v1751, %v1831
        %v1882 = vadd.f32 %v1752, %v1832
        %v1883 = vadd.f32 %v1753, %v1831
        %v1884 = vadd.f32 %v1754, %v1832
        %v1885 = vadd.f32 %v1755, %v1831
        %v1886 = vadd.f32 %v1756, %v1832
        %v1887 = vadd.f32 %v1757, %v1831
        %v1888 = vadd.f32 %v1758, %v1832
        %v1889 = vadd.f32 %v1759, %v1831
        %v1890 = vadd.f32 %v1760, %v1832
        %v1891 = vadd.f32 %v1761, %v1831
        %v1892 = vadd.f32 %v1762, %v1832
        %v1893 = vadd.f32 %v1763, %v1831
        %v1894 = vadd.f32 %v1764, %v1832
        %v1895 = vadd.f32 %v1765, %v1831
        %v1896 = vadd.f32 %v1766, %v1832
        %v1897 = vadd.f32 %v1767, %v1831
        %v1898 = vadd.f32 %v1768, %v1832
        %v1899 = vadd.f32 %v1769, %v1831
        %v1900 = vadd.f32 %v1770, %v1832
        %v1901 = vadd.f32 %v1771, %v1831
        %v1902 = vadd.f32 %v1772, %v1832
        %v1903 = vadd.f32 %v1773, %v1831
        %v1904 = vadd.f32 %v1774, %v1832
        %v1905 = vadd.f32 %v1775, %v1831
        %v1906 = vadd.f32 %v1776, %v1832
        %v1907 = vadd.f32 %v1777, %v1831
        %v1908 = vadd.f32 %v1778, %v1832
        %v1909 = vadd.f32 %v1779, %v1831
        %v1910 = vadd.f32 %v1780, %v1832
        %v1911 = vadd.f32 %v1781, %v1831
        %v1912 = vadd.f32 %v1782, %v1832
        %v1913 = vadd.f32 %v1783, %v1831
        %v1914 = vadd.f32 %v1784, %v1832
        %v1915 = vadd.f32 %v1785, %v1831
        %v1916 = vadd.f32 %v1786, %v1832
        %v1917 = vadd.f32 %v1787, %v1831
        %v1918 = vadd.f32 %v1788, %v1832
        %v1919 = vadd.f32 %v1789, %v1831
        %v1920 = vadd.f32 %v1790, %v1832
        %v1921 = vadd.f32 %v1791, %v1831
        %v1922 = vadd.f32 %v1792, %v1832
        %v1923 = vadd.f32 %v1793, %v1831
        %v1924 = vadd.f32 %v1794, %v1832
        %v1925 = vadd.f32 %v1795, %v1831
        %v1926 = vadd.f32 %v1796, %v1832
        %v1927 = vadd.f32 %v1797, %v1831
        %v1928 = vadd.f32 %v1798, %v1832
        %v1929 = vadd.f32 %v1799, %v1831
        %v1930 = vadd.f32 %v1800, %v1832
        %v1931 = vadd.f32 %v1801, %v1831
        %v1932 = vadd.f32 %v1802, %v1832
        %v1933 = vadd.f32 %v1803, %v1831
        %v1934 = vadd.f32 %v1804, %v1832
        %v1935 = vadd.f32 %v1805, %v1831
        %v1936 = vadd.f32 %v1806, %v1832
        %v1937 = vadd.f32 %v1807, %v1831
        %v1938 = vadd.f32 %v1808, %v1832
        %v1939 = vadd.f32 %v1809, %v1831
        %v1940 = vadd.f32 %v1810, %v1832
        %v1941 = vadd.f32 %v1811, %v1831
        %v1942 = vadd.f32 %v1812, %v1832
        %v1943 = vadd.f32 %v1813, %v1831
        %v1944 = vadd.f32 %v1814, %v1832
        %v1945 = vadd.f32 %v1815, %v1831
        %v1946 = vadd.f32 %v1816, %v1832
        %v1947 = vadd.f32 %v1817, %v1831
        %v1948 = vadd.f32 %v1818, %v1832
        %v1949 = vadd.f32 %v1819, %v1831
        %v1950 = vadd.f32 %v1820, %v1832
        %v1951 = vadd.f32 %v1821, %v1831
        %v1952 = vadd.f32 %v1822, %v1832
        %v1953 = vadd.f32 %v1823, %v1831
        %v1954 = vadd.f32 %v1824, %v1832
        %v1955 = vadd.f32 %v1825, %v1831
        %v1956 = vadd.f32 %v1826, %v1832
        %v1957 = vadd.f32 %v1827, %v1831
        %v1958 = vadd.f32 %v1828, %v1832
        %v1959 = vadd.f32 %v1829, %v1831
        %v1960 = vadd.f32 %v1830, %v1832
        %v1961 = vmax.f32 %v1833, 0.0
        %v1962 = vmax.f32 %v1834, 0.0
        %v1963 = vmax.f32 %v1835, 0.0
        %v1964 = vmax.f32 %v1836, 0.0
        %v1965 = vmax.f32 %v1837, 0.0
        %v1966 = vmax.f32 %v1838, 0.0
        %v1967 = vmax.f32 %v1839, 0.0
        %v1968 = vmax.f32 %v1840, 0.0
        %v1969 = vmax.f32 %v1841, 0.0
        %v1970 = vmax.f32 %v1842, 0.0
        %v1971 = vmax.f32 %v1843, 0.0
        %v1972 = vmax.f32 %v1844, 0.0
        %v1973 = vmax.f32 %v1845, 0.0
        %v1974 = vmax.f32 %v1846, 0.0
        %v1975 = vmax.f32 %v1847, 0.0
        %v1976 = vmax.f32 %v1848, 0.0
        %v1977 = vmax.f32 %v1849, 0.0
        %v1978 = vmax.f32 %v1850, 0.0
        %v1979 = vmax.f32 %v1851, 0.0
        %v1980 = vmax.f32 %v1852, 0.0
        %v1981 = vmax.f32 %v1853, 0.0
        %v1982 = vmax.f32 %v1854, 0.0
        %v1983 = vmax.f32 %v1855, 0.0
        %v1984 = vmax.f32 %v1856, 0.0
        %v1985 = vmax.f32 %v1857, 0.0
        %v1986 = vmax.f32 %v1858, 0.0
        %v1987 = vmax.f32 %v1859, 0.0
        %v1988 = vmax.f32 %v1860, 0.0
        %v1989 = vmax.f32 %v1861, 0.0
        %v1990 = vmax.f32 %v1862, 0.0
        %v1991 = vmax.f32 %v1863, 0.0
        %v1992 = vmax.f32 %v1864, 0.0
        %v1993 = vmax.f32 %v1865, 0.0
        %v1994 = vmax.f32 %v1866, 0.0
        %v1995 = vmax.f32 %v1867, 0.0
        %v1996 = vmax.f32 %v1868, 0.0
        %v1997 = vmax.f32 %v1869, 0.0
        %v1998 = vmax.f32 %v1870, 0.0
        %v1999 = vmax.f32 %v1871, 0.0
        %v2000 = vmax.f32 %v1872, 0.0
        %v2001 = vmax.f32 %v1873, 0.0
        %v2002 = vmax.f32 %v1874, 0.0
        %v2003 = vmax.f32 %v1875, 0.0
        %v2004 = vmax.f32 %v1876, 0.0
        %v2005 = vmax.f32 %v1877, 0.0
        %v2006 = vmax.f32 %v1878, 0.0
        %v2007 = vmax.f32 %v1879, 0.0
        %v2008 = vmax.f32 %v1880, 0.0
        %v2009 = vmax.f32 %v1881, 0.0
        %v2010 = vmax.f32 %v1882, 0.0
        %v2011 = vmax.f32 %v1883, 0.0
        %v2012 = vmax.f32 %v1884, 0.0
        %v2013 = vmax.f32 %v1885, 0.0
        %v2014 = vmax.f32 %v1886, 0.0
        %v2015 = vmax.f32 %v1887, 0.0
        %v2016 = vmax.f32 %v1888, 0.0
        %v2017 = vmax.f32 %v1889, 0.0
        %v2018 = vmax.f32 %v1890, 0.0
        %v2019 = vmax.f32 %v1891, 0.0
        %v2020 = vmax.f32 %v1892, 0.0
        %v2021 = vmax.f32 %v1893, 0.0
        %v2022 = vmax.f32 %v1894, 0.0
        %v2023 = vmax.f32 %v1895, 0.0
        %v2024 = vmax.f32 %v1896, 0.0
        %v2025 = vmax.f32 %v1897, 0.0
        %v2026 = vmax.f32 %v1898, 0.0
        %v2027 = vmax.f32 %v1899, 0.0
        %v2028 = vmax.f32 %v1900, 0.0
        %v2029 = vmax.f32 %v1901, 0.0
        %v2030 = vmax.f32 %v1902, 0.0
        %v2031 = vmax.f32 %v1903, 0.0
        %v2032 = vmax.f32 %v1904, 0.0
        %v2033 = vmax.f32 %v1905, 0.0
        %v2034 = vmax.f32 %v1906, 0.0
        %v2035 = vmax.f32 %v1907, 0.0
        %v2036 = vmax.f32 %v1908, 0.0
        %v2037 = vmax.f32 %v1909, 0.0
        %v2038 = vmax.f32 %v1910, 0.0
        %v2039 = vmax.f32 %v1911, 0.0
        %v2040 = vmax.f32 %v1912, 0.0
        %v2041 = vmax.f32 %v1913, 0.0
        %v2042 = vmax.f32 %v1914, 0.0
        %v2043 = vmax.f32 %v1915, 0.0
        %v2044 = vmax.f32 %v1916, 0.0
        %v2045 = vmax.f32 %v1917, 0.0
        %v2046 = vmax.f32 %v1918, 0.0
        %v2047 = vmax.f32 %v1919, 0.0
        %v2048 = vmax.f32 %v1920, 0.0
        %v2049 = vmax.f32 %v1921, 0.0
        %v2050 = vmax.f32 %v1922, 0.0
        %v2051 = vmax.f32 %v1923, 0.0
        %v2052 = vmax.f32 %v1924, 0.0
        %v2053 = vmax.f32 %v1925, 0.0
        %v2054 = vmax.f32 %v1926, 0.0
        %v2055 = vmax.f32 %v1927, 0.0
        %v2056 = vmax.f32 %v1928, 0.0
        %v2057 = vmax.f32 %v1929, 0.0
        %v2058 = vmax.f32 %v1930, 0.0
        %v2059 = vmax.f32 %v1931, 0.0
        %v2060 = vmax.f32 %v1932, 0.0
        %v2061 = vmax.f32 %v1933, 0.0
        %v2062 = vmax.f32 %v1934, 0.0
        %v2063 = vmax.f32 %v1935, 0.0
        %v2064 = vmax.f32 %v1936, 0.0
        %v2065 = vmax.f32 %v1937, 0.0
        %v2066 = vmax.f32 %v1938, 0.0
        %v2067 = vmax.f32 %v1939, 0.0
        %v2068 = vmax.f32 %v1940, 0.0
        %v2069 = vmax.f32 %v1941, 0.0
        %v2070 = vmax.f32 %v1942, 0.0
        %v2071 = vmax.f32 %v1943, 0.0
        %v2072 = vmax.f32 %v1944, 0.0
        %v2073 = vmax.f32 %v1945, 0.0
        %v2074 = vmax.f32 %v1946, 0.0
        %v2075 = vmax.f32 %v1947, 0.0
        %v2076 = vmax.f32 %v1948, 0.0
        %v2077 = vmax.f32 %v1949, 0.0
        %v2078 = vmax.f32 %v1950, 0.0
        %v2079 = vmax.f32 %v1951, 0.0
        %v2080 = vmax.f32 %v1952, 0.0
        %v2081 = vmax.f32 %v1953, 0.0
        %v2082 = vmax.f32 %v1954, 0.0
        %v2083 = vmax.f32 %v1955, 0.0
        %v2084 = vmax.f32 %v1956, 0.0
        %v2085 = vmax.f32 %v1957, 0.0
        %v2086 = vmax.f32 %v1958, 0.0
        %v2087 = vmax.f32 %v1959, 0.0
        %v2088 = vmax.f32 %v1960, 0.0
        %v2089 = vpack.c.bf16 %v1963, %v1961
        %v2090 = vpack.c.bf16 %v1964, %v1962
        %v2091 = vpack.c.bf16 %v1967, %v1965
        %v2092 = vpack.c.bf16 %v1968, %v1966
        %v2093 = vpack.c.bf16 %v1971, %v1969
        %v2094 = vpack.c.bf16 %v1972, %v1970
        %v2095 = vpack.c.bf16 %v1975, %v1973
        %v2096 = vpack.c.bf16 %v1976, %v1974
        %v2097 = vpack.c.bf16 %v1979, %v1977
        %v2098 = vpack.c.bf16 %v1980, %v1978
        %v2099 = vpack.c.bf16 %v1983, %v1981
        %v2100 = vpack.c.bf16 %v1984, %v1982
        %v2101 = vpack.c.bf16 %v1987, %v1985
        %v2102 = vpack.c.bf16 %v1988, %v1986
        %v2103 = vpack.c.bf16 %v1991, %v1989
        %v2104 = vpack.c.bf16 %v1992, %v1990
        %v2105 = vpack.c.bf16 %v1995, %v1993
        %v2106 = vpack.c.bf16 %v1996, %v1994
        %v2107 = vpack.c.bf16 %v1999, %v1997
        %v2108 = vpack.c.bf16 %v2000, %v1998
        %v2109 = vpack.c.bf16 %v2003, %v2001
        %v2110 = vpack.c.bf16 %v2004, %v2002
        %v2111 = vpack.c.bf16 %v2007, %v2005
        %v2112 = vpack.c.bf16 %v2008, %v2006
        %v2113 = vpack.c.bf16 %v2011, %v2009
        %v2114 = vpack.c.bf16 %v2012, %v2010
        %v2115 = vpack.c.bf16 %v2015, %v2013
        %v2116 = vpack.c.bf16 %v2016, %v2014
        %v2117 = vpack.c.bf16 %v2019, %v2017
        %v2118 = vpack.c.bf16 %v2020, %v2018
        %v2119 = vpack.c.bf16 %v2023, %v2021
        %v2120 = vpack.c.bf16 %v2024, %v2022
        %v2121 = vpack.c.bf16 %v2027, %v2025
        %v2122 = vpack.c.bf16 %v2028, %v2026
        %v2123 = vpack.c.bf16 %v2031, %v2029
        %v2124 = vpack.c.bf16 %v2032, %v2030
        %v2125 = vpack.c.bf16 %v2035, %v2033
        %v2126 = vpack.c.bf16 %v2036, %v2034
        %v2127 = vpack.c.bf16 %v2039, %v2037
        %v2128 = vpack.c.bf16 %v2040, %v2038
        %v2129 = vpack.c.bf16 %v2043, %v2041
        %v2130 = vpack.c.bf16 %v2044, %v2042
        %v2131 = vpack.c.bf16 %v2047, %v2045
        %v2132 = vpack.c.bf16 %v2048, %v2046
        %v2133 = vpack.c.bf16 %v2051, %v2049
        %v2134 = vpack.c.bf16 %v2052, %v2050
        %v2135 = vpack.c.bf16 %v2055, %v2053
        %v2136 = vpack.c.bf16 %v2056, %v2054
        %v2137 = vpack.c.bf16 %v2059, %v2057
        %v2138 = vpack.c.bf16 %v2060, %v2058
        %v2139 = vpack.c.bf16 %v2063, %v2061
        %v2140 = vpack.c.bf16 %v2064, %v2062
        %v2141 = vpack.c.bf16 %v2067, %v2065
        %v2142 = vpack.c.bf16 %v2068, %v2066
        %v2143 = vpack.c.bf16 %v2071, %v2069
        %v2144 = vpack.c.bf16 %v2072, %v2070
        %v2145 = vpack.c.bf16 %v2075, %v2073
        %v2146 = vpack.c.bf16 %v2076, %v2074
        %v2147 = vpack.c.bf16 %v2079, %v2077
        %v2148 = vpack.c.bf16 %v2080, %v2078
        %v2149 = vpack.c.bf16 %v2083, %v2081
        %v2150 = vpack.c.bf16 %v2084, %v2082
        %v2151 = vpack.c.bf16 %v2087, %v2085
        %v2152 = vpack.c.bf16 %v2088, %v2086
        %v2153 = vld [vmem:[#allocation2] sm:$0xff]
        %v2154 = vld [vmem:[#allocation2 + $0x8] sm:$0xff]
        %v2155 = vld [vmem:[#allocation2 + $0x10] sm:$0xff]
        %v2156 = vld [vmem:[#allocation2 + $0x18] sm:$0xff]
        %v2157 = vld [vmem:[#allocation2 + $0x20] sm:$0xff]
        %v2158 = vld [vmem:[#allocation2 + $0x28] sm:$0xff]
        %v2159 = vld [vmem:[#allocation2 + $0x30] sm:$0xff]
        %v2160 = vld [vmem:[#allocation2 + $0x38] sm:$0xff]
        %v2161 = vld [vmem:[#allocation2 + $0x40] sm:$0xff]
        %v2162 = vld [vmem:[#allocation2 + $0x48] sm:$0xff]
        %v2163 = vld [vmem:[#allocation2 + $0x50] sm:$0xff]
        %v2164 = vld [vmem:[#allocation2 + $0x58] sm:$0xff]
        %v2165 = vld [vmem:[#allocation2 + $0x60] sm:$0xff]
        %v2166 = vld [vmem:[#allocation2 + $0x68] sm:$0xff]
        %v2167 = vld [vmem:[#allocation2 + $0x70] sm:$0xff]
        %v2168 = vld [vmem:[#allocation2 + $0x78] sm:$0xff]
        %v2169 = vld [vmem:[#allocation2 + $0x80] sm:$0xff]
        %v2170 = vld [vmem:[#allocation2 + $0x88] sm:$0xff]
        %v2171 = vld [vmem:[#allocation2 + $0x90] sm:$0xff]
        %v2172 = vld [vmem:[#allocation2 + $0x98] sm:$0xff]
        %v2173 = vld [vmem:[#allocation2 + $0xa0] sm:$0xff]
        %v2174 = vld [vmem:[#allocation2 + $0xa8] sm:$0xff]
        %v2175 = vld [vmem:[#allocation2 + $0xb0] sm:$0xff]
        %v2176 = vld [vmem:[#allocation2 + $0xb8] sm:$0xff]
        %v2177 = vld [vmem:[#allocation2 + $0xc0] sm:$0xff]
        %v2178 = vld [vmem:[#allocation2 + $0xc8] sm:$0xff]
        %v2179 = vld [vmem:[#allocation2 + $0xd0] sm:$0xff]
        %v2180 = vld [vmem:[#allocation2 + $0xd8] sm:$0xff]
        %v2181 = vld [vmem:[#allocation2 + $0xe0] sm:$0xff]
        %v2182 = vld [vmem:[#allocation2 + $0xe8] sm:$0xff]
        %v2183 = vld [vmem:[#allocation2 + $0xf0] sm:$0xff]
        %v2184 = vld [vmem:[#allocation2 + $0xf8] sm:$0xff]
        %v2185 = vperm.slane %v338, 1
        %v2186 = vperm.slane %v339, 1
        %v2219 = vunpack.c.l.b16 %v2153
        %v2220 = vunpack.c.h.b16 %v2153
        %v2221 = vunpack.c.l.b16 %v2154
        %v2222 = vunpack.c.h.b16 %v2154
        %v2223 = vunpack.c.l.b16 %v2155
        %v2224 = vunpack.c.h.b16 %v2155
        %v2225 = vunpack.c.l.b16 %v2156
        %v2226 = vunpack.c.h.b16 %v2156
        %v2227 = vunpack.c.l.b16 %v2157
        %v2228 = vunpack.c.h.b16 %v2157
        %v2229 = vunpack.c.l.b16 %v2158
        %v2230 = vunpack.c.h.b16 %v2158
        %v2231 = vunpack.c.l.b16 %v2159
        %v2232 = vunpack.c.h.b16 %v2159
        %v2233 = vunpack.c.l.b16 %v2160
        %v2234 = vunpack.c.h.b16 %v2160
        %v2235 = vunpack.c.l.b16 %v2161
        %v2236 = vunpack.c.h.b16 %v2161
        %v2237 = vunpack.c.l.b16 %v2162
        %v2238 = vunpack.c.h.b16 %v2162
        %v2239 = vunpack.c.l.b16 %v2163
        %v2240 = vunpack.c.h.b16 %v2163
        %v2241 = vunpack.c.l.b16 %v2164
        %v2242 = vunpack.c.h.b16 %v2164
        %v2243 = vunpack.c.l.b16 %v2165
        %v2244 = vunpack.c.h.b16 %v2165
        %v2245 = vunpack.c.l.b16 %v2166
        %v2246 = vunpack.c.h.b16 %v2166
        %v2247 = vunpack.c.l.b16 %v2167
        %v2248 = vunpack.c.h.b16 %v2167
        %v2249 = vunpack.c.l.b16 %v2168
        %v2250 = vunpack.c.h.b16 %v2168
        %v2251 = vunpack.c.l.b16 %v2169
        %v2252 = vunpack.c.h.b16 %v2169
        %v2253 = vunpack.c.l.b16 %v2170
        %v2254 = vunpack.c.h.b16 %v2170
        %v2255 = vunpack.c.l.b16 %v2171
        %v2256 = vunpack.c.h.b16 %v2171
        %v2257 = vunpack.c.l.b16 %v2172
        %v2258 = vunpack.c.h.b16 %v2172
        %v2259 = vunpack.c.l.b16 %v2173
        %v2260 = vunpack.c.h.b16 %v2173
        %v2261 = vunpack.c.l.b16 %v2174
        %v2262 = vunpack.c.h.b16 %v2174
        %v2263 = vunpack.c.l.b16 %v2175
        %v2264 = vunpack.c.h.b16 %v2175
        %v2265 = vunpack.c.l.b16 %v2176
        %v2266 = vunpack.c.h.b16 %v2176
        %v2267 = vunpack.c.l.b16 %v2177
        %v2268 = vunpack.c.h.b16 %v2177
        %v2269 = vunpack.c.l.b16 %v2178
        %v2270 = vunpack.c.h.b16 %v2178
        %v2271 = vunpack.c.l.b16 %v2179
        %v2272 = vunpack.c.h.b16 %v2179
        %v2273 = vunpack.c.l.b16 %v2180
        %v2274 = vunpack.c.h.b16 %v2180
        %v2275 = vunpack.c.l.b16 %v2181
        %v2276 = vunpack.c.h.b16 %v2181
        %v2277 = vunpack.c.l.b16 %v2182
        %v2278 = vunpack.c.h.b16 %v2182
        %v2279 = vunpack.c.l.b16 %v2183
        %v2280 = vunpack.c.h.b16 %v2183
        %v2281 = vunpack.c.l.b16 %v2184
        %v2282 = vunpack.c.h.b16 %v2184
        %v2283 = vpack.c.b16 %v2221, %v2219
        %v2284 = vpack.c.b16 %v2222, %v2220
        %v2285 = vpack.c.b16 %v2225, %v2223
        %v2286 = vpack.c.b16 %v2226, %v2224
        %v2287 = vpack.c.b16 %v2229, %v2227
        %v2288 = vpack.c.b16 %v2230, %v2228
        %v2289 = vpack.c.b16 %v2233, %v2231
        %v2290 = vpack.c.b16 %v2234, %v2232
        %v2291 = vpack.c.b16 %v2237, %v2235
        %v2292 = vpack.c.b16 %v2238, %v2236
        %v2293 = vpack.c.b16 %v2241, %v2239
        %v2294 = vpack.c.b16 %v2242, %v2240
        %v2295 = vpack.c.b16 %v2245, %v2243
        %v2296 = vpack.c.b16 %v2246, %v2244
        %v2297 = vpack.c.b16 %v2249, %v2247
        %v2298 = vpack.c.b16 %v2250, %v2248
        %v2299 = vpack.c.b16 %v2253, %v2251
        %v2300 = vpack.c.b16 %v2254, %v2252
        %v2301 = vpack.c.b16 %v2257, %v2255
        %v2302 = vpack.c.b16 %v2258, %v2256
        %v2303 = vpack.c.b16 %v2261, %v2259
        %v2304 = vpack.c.b16 %v2262, %v2260
        %v2305 = vpack.c.b16 %v2265, %v2263
        %v2306 = vpack.c.b16 %v2266, %v2264
        %v2307 = vpack.c.b16 %v2269, %v2267
        %v2308 = vpack.c.b16 %v2270, %v2268
        %v2309 = vpack.c.b16 %v2273, %v2271
        %v2310 = vpack.c.b16 %v2274, %v2272
        %v2311 = vpack.c.b16 %v2277, %v2275
        %v2312 = vpack.c.b16 %v2278, %v2276
        %v2313 = vpack.c.b16 %v2281, %v2279
        %v2314 = vpack.c.b16 %v2282, %v2280
        %2347 = vmatpush.bf16.msra.mxu0 %v2297
        %2348 = vmatpush.bf16.msra.mxu0 %v2295
        %2349 = vmatpush.bf16.msra.mxu0 %v2293
        %2350 = vmatpush.bf16.msra.mxu0 %v2291
        %2351 = vmatpush.bf16.msra.mxu0 %v2289
        %2352 = vmatpush.bf16.msra.mxu0 %v2287
        %2353 = vmatpush.bf16.msra.mxu0 %v2285
        %2354 = vmatpush.bf16.msra.mxu0 %v2283
        %2355 = vmatmul.bf16.gmra.mxu0 %v2089
        %v2356 = vpop.f32.mrf.mxu0
        %v2357 = vadd.f32 %v2185, %v2356
        %v2358 = vpop.f32.mrf.mxu0
        %v2359 = vadd.f32 %v2185, %v2358
        %2360 = vmatmul.bf16.gmra.mxu0 %v2091
        %v2361 = vpop.f32.mrf.mxu0
        %v2362 = vadd.f32 %v2185, %v2361
        %v2363 = vpop.f32.mrf.mxu0
        %v2364 = vadd.f32 %v2185, %v2363
        %2365 = vmatmul.bf16.gmra.mxu0 %v2093
        %v2366 = vpop.f32.mrf.mxu0
        %v2367 = vadd.f32 %v2185, %v2366
        %v2368 = vpop.f32.mrf.mxu0
        %v2369 = vadd.f32 %v2185, %v2368
        %2370 = vmatmul.bf16.gmra.mxu0 %v2095
        %v2371 = vpop.f32.mrf.mxu0
        %v2372 = vadd.f32 %v2185, %v2371
        %v2373 = vpop.f32.mrf.mxu0
        %v2374 = vadd.f32 %v2185, %v2373
        %2375 = vmatmul.bf16.gmra.mxu0 %v2097
        %v2376 = vpop.f32.mrf.mxu0
        %v2377 = vadd.f32 %v2185, %v2376
        %v2378 = vpop.f32.mrf.mxu0
        %v2379 = vadd.f32 %v2185, %v2378
        %2380 = vmatmul.bf16.gmra.mxu0 %v2099
        %v2381 = vpop.f32.mrf.mxu0
        %v2382 = vadd.f32 %v2185, %v2381
        %v2383 = vpop.f32.mrf.mxu0
        %v2384 = vadd.f32 %v2185, %v2383
        %2385 = vmatmul.bf16.gmra.mxu0 %v2101
        %v2386 = vpop.f32.mrf.mxu0
        %v2387 = vadd.f32 %v2185, %v2386
        %v2388 = vpop.f32.mrf.mxu0
        %v2389 = vadd.f32 %v2185, %v2388
        %2390 = vmatmul.bf16.gmra.mxu0 %v2103
        %v2391 = vpop.f32.mrf.mxu0
        %v2392 = vadd.f32 %v2185, %v2391
        %v2393 = vpop.f32.mrf.mxu0
        %v2394 = vadd.f32 %v2185, %v2393
        %2395 = vmatmul.bf16.gmra.mxu0 %v2105
        %v2396 = vpop.f32.mrf.mxu0
        %v2397 = vadd.f32 %v2185, %v2396
        %v2398 = vpop.f32.mrf.mxu0
        %v2399 = vadd.f32 %v2185, %v2398
        %2400 = vmatmul.bf16.gmra.mxu0 %v2107
        %v2401 = vpop.f32.mrf.mxu0
        %v2402 = vadd.f32 %v2185, %v2401
        %v2403 = vpop.f32.mrf.mxu0
        %v2404 = vadd.f32 %v2185, %v2403
        %2405 = vmatmul.bf16.gmra.mxu0 %v2109
        %v2406 = vpop.f32.mrf.mxu0
        %v2407 = vadd.f32 %v2185, %v2406
        %v2408 = vpop.f32.mrf.mxu0
        %v2409 = vadd.f32 %v2185, %v2408
        %2410 = vmatmul.bf16.gmra.mxu0 %v2111
        %v2411 = vpop.f32.mrf.mxu0
        %v2412 = vadd.f32 %v2185, %v2411
        %v2413 = vpop.f32.mrf.mxu0
        %v2414 = vadd.f32 %v2185, %v2413
        %2415 = vmatmul.bf16.gmra.mxu0 %v2113
        %v2416 = vpop.f32.mrf.mxu0
        %v2417 = vadd.f32 %v2185, %v2416
        %v2418 = vpop.f32.mrf.mxu0
        %v2419 = vadd.f32 %v2185, %v2418
        %2420 = vmatmul.bf16.gmra.mxu0 %v2115
        %v2421 = vpop.f32.mrf.mxu0
        %v2422 = vadd.f32 %v2185, %v2421
        %v2423 = vpop.f32.mrf.mxu0
        %v2424 = vadd.f32 %v2185, %v2423
        %2425 = vmatmul.bf16.gmra.mxu0 %v2117
        %v2426 = vpop.f32.mrf.mxu0
        %v2427 = vadd.f32 %v2185, %v2426
        %v2428 = vpop.f32.mrf.mxu0
        %v2429 = vadd.f32 %v2185, %v2428
        %2430 = vmatmul.bf16.gmra.mxu0 %v2119
        %v2431 = vpop.f32.mrf.mxu0
        %v2432 = vadd.f32 %v2185, %v2431
        %v2433 = vpop.f32.mrf.mxu0
        %v2434 = vadd.f32 %v2185, %v2433
        %2435 = vmatmul.bf16.gmra.mxu0 %v2121
        %v2436 = vpop.f32.mrf.mxu0
        %v2437 = vadd.f32 %v2185, %v2436
        %v2438 = vpop.f32.mrf.mxu0
        %v2439 = vadd.f32 %v2185, %v2438
        %2440 = vmatmul.bf16.gmra.mxu0 %v2123
        %v2441 = vpop.f32.mrf.mxu0
        %v2442 = vadd.f32 %v2185, %v2441
        %v2443 = vpop.f32.mrf.mxu0
        %v2444 = vadd.f32 %v2185, %v2443
        %2445 = vmatmul.bf16.gmra.mxu0 %v2125
        %v2446 = vpop.f32.mrf.mxu0
        %v2447 = vadd.f32 %v2185, %v2446
        %v2448 = vpop.f32.mrf.mxu0
        %v2449 = vadd.f32 %v2185, %v2448
        %2450 = vmatmul.bf16.gmra.mxu0 %v2127
        %v2451 = vpop.f32.mrf.mxu0
        %v2452 = vadd.f32 %v2185, %v2451
        %v2453 = vpop.f32.mrf.mxu0
        %v2454 = vadd.f32 %v2185, %v2453
        %2455 = vmatmul.bf16.gmra.mxu0 %v2129
        %v2456 = vpop.f32.mrf.mxu0
        %v2457 = vadd.f32 %v2185, %v2456
        %v2458 = vpop.f32.mrf.mxu0
        %v2459 = vadd.f32 %v2185, %v2458
        %2460 = vmatmul.bf16.gmra.mxu0 %v2131
        %v2461 = vpop.f32.mrf.mxu0
        %v2462 = vadd.f32 %v2185, %v2461
        %v2463 = vpop.f32.mrf.mxu0
        %v2464 = vadd.f32 %v2185, %v2463
        %2465 = vmatmul.bf16.gmra.mxu0 %v2133
        %v2466 = vpop.f32.mrf.mxu0
        %v2467 = vadd.f32 %v2185, %v2466
        %v2468 = vpop.f32.mrf.mxu0
        %v2469 = vadd.f32 %v2185, %v2468
        %2470 = vmatmul.bf16.gmra.mxu0 %v2135
        %v2471 = vpop.f32.mrf.mxu0
        %v2472 = vadd.f32 %v2185, %v2471
        %v2473 = vpop.f32.mrf.mxu0
        %v2474 = vadd.f32 %v2185, %v2473
        %2475 = vmatmul.bf16.gmra.mxu0 %v2137
        %v2476 = vpop.f32.mrf.mxu0
        %v2477 = vadd.f32 %v2185, %v2476
        %v2478 = vpop.f32.mrf.mxu0
        %v2479 = vadd.f32 %v2185, %v2478
        %2480 = vmatmul.bf16.gmra.mxu0 %v2139
        %v2481 = vpop.f32.mrf.mxu0
        %v2482 = vadd.f32 %v2185, %v2481
        %v2483 = vpop.f32.mrf.mxu0
        %v2484 = vadd.f32 %v2185, %v2483
        %2485 = vmatmul.bf16.gmra.mxu0 %v2141
        %v2486 = vpop.f32.mrf.mxu0
        %v2487 = vadd.f32 %v2185, %v2486
        %v2488 = vpop.f32.mrf.mxu0
        %v2489 = vadd.f32 %v2185, %v2488
        %2490 = vmatmul.bf16.gmra.mxu0 %v2143
        %v2491 = vpop.f32.mrf.mxu0
        %v2492 = vadd.f32 %v2185, %v2491
        %v2493 = vpop.f32.mrf.mxu0
        %v2494 = vadd.f32 %v2185, %v2493
        %2495 = vmatmul.bf16.gmra.mxu0 %v2145
        %v2496 = vpop.f32.mrf.mxu0
        %v2497 = vadd.f32 %v2185, %v2496
        %v2498 = vpop.f32.mrf.mxu0
        %v2499 = vadd.f32 %v2185, %v2498
        %2500 = vmatmul.bf16.gmra.mxu0 %v2147
        %v2501 = vpop.f32.mrf.mxu0
        %v2502 = vadd.f32 %v2185, %v2501
        %v2503 = vpop.f32.mrf.mxu0
        %v2504 = vadd.f32 %v2185, %v2503
        %2505 = vmatmul.bf16.gmra.mxu0 %v2149
        %v2506 = vpop.f32.mrf.mxu0
        %v2507 = vadd.f32 %v2185, %v2506
        %v2508 = vpop.f32.mrf.mxu0
        %v2509 = vadd.f32 %v2185, %v2508
        %2510 = vmatmul.bf16.gmra.mxu0 %v2151
        %v2511 = vpop.f32.mrf.mxu0
        %v2512 = vadd.f32 %v2185, %v2511
        %v2513 = vpop.f32.mrf.mxu0
        %v2514 = vadd.f32 %v2185, %v2513
        %2515 = vdwg.mxu0
        %2516 = vmatpush.bf16.msra.mxu0 %v2313
        %2517 = vmatpush.bf16.msra.mxu0 %v2311
        %2518 = vmatpush.bf16.msra.mxu0 %v2309
        %2519 = vmatpush.bf16.msra.mxu0 %v2307
        %2520 = vmatpush.bf16.msra.mxu0 %v2305
        %2521 = vmatpush.bf16.msra.mxu0 %v2303
        %2522 = vmatpush.bf16.msra.mxu0 %v2301
        %2523 = vmatpush.bf16.msra.mxu0 %v2299
        %2524 = vmatmul.bf16.gmra.mxu0 %v2090
        %v2525 = vpop.f32.mrf.mxu0
        %v2526 = vadd.f32 %v2357, %v2525
        %v2527 = vpop.f32.mrf.mxu0
        %v2528 = vadd.f32 %v2359, %v2527
        %2529 = vmatmul.bf16.gmra.mxu0 %v2092
        %v2530 = vpop.f32.mrf.mxu0
        %v2531 = vadd.f32 %v2362, %v2530
        %v2532 = vpop.f32.mrf.mxu0
        %v2533 = vadd.f32 %v2364, %v2532
        %2534 = vmatmul.bf16.gmra.mxu0 %v2094
        %v2535 = vpop.f32.mrf.mxu0
        %v2536 = vadd.f32 %v2367, %v2535
        %v2537 = vpop.f32.mrf.mxu0
        %v2538 = vadd.f32 %v2369, %v2537
        %2539 = vmatmul.bf16.gmra.mxu0 %v2096
        %v2540 = vpop.f32.mrf.mxu0
        %v2541 = vadd.f32 %v2372, %v2540
        %v2542 = vpop.f32.mrf.mxu0
        %v2543 = vadd.f32 %v2374, %v2542
        %2544 = vmatmul.bf16.gmra.mxu0 %v2098
        %v2545 = vpop.f32.mrf.mxu0
        %v2546 = vadd.f32 %v2377, %v2545
        %v2547 = vpop.f32.mrf.mxu0
        %v2548 = vadd.f32 %v2379, %v2547
        %2549 = vmatmul.bf16.gmra.mxu0 %v2100
        %v2550 = vpop.f32.mrf.mxu0
        %v2551 = vadd.f32 %v2382, %v2550
        %v2552 = vpop.f32.mrf.mxu0
        %v2553 = vadd.f32 %v2384, %v2552
        %2554 = vmatmul.bf16.gmra.mxu0 %v2102
        %v2555 = vpop.f32.mrf.mxu0
        %v2556 = vadd.f32 %v2387, %v2555
        %v2557 = vpop.f32.mrf.mxu0
        %v2558 = vadd.f32 %v2389, %v2557
        %2559 = vmatmul.bf16.gmra.mxu0 %v2104
        %v2560 = vpop.f32.mrf.mxu0
        %v2561 = vadd.f32 %v2392, %v2560
        %v2562 = vpop.f32.mrf.mxu0
        %v2563 = vadd.f32 %v2394, %v2562
        %2564 = vmatmul.bf16.gmra.mxu0 %v2106
        %v2565 = vpop.f32.mrf.mxu0
        %v2566 = vadd.f32 %v2397, %v2565
        %v2567 = vpop.f32.mrf.mxu0
        %v2568 = vadd.f32 %v2399, %v2567
        %2569 = vmatmul.bf16.gmra.mxu0 %v2108
        %v2570 = vpop.f32.mrf.mxu0
        %v2571 = vadd.f32 %v2402, %v2570
        %v2572 = vpop.f32.mrf.mxu0
        %v2573 = vadd.f32 %v2404, %v2572
        %2574 = vmatmul.bf16.gmra.mxu0 %v2110
        %v2575 = vpop.f32.mrf.mxu0
        %v2576 = vadd.f32 %v2407, %v2575
        %v2577 = vpop.f32.mrf.mxu0
        %v2578 = vadd.f32 %v2409, %v2577
        %2579 = vmatmul.bf16.gmra.mxu0 %v2112
        %v2580 = vpop.f32.mrf.mxu0
        %v2581 = vadd.f32 %v2412, %v2580
        %v2582 = vpop.f32.mrf.mxu0
        %v2583 = vadd.f32 %v2414, %v2582
        %2584 = vmatmul.bf16.gmra.mxu0 %v2114
        %v2585 = vpop.f32.mrf.mxu0
        %v2586 = vadd.f32 %v2417, %v2585
        %v2587 = vpop.f32.mrf.mxu0
        %v2588 = vadd.f32 %v2419, %v2587
        %2589 = vmatmul.bf16.gmra.mxu0 %v2116
        %v2590 = vpop.f32.mrf.mxu0
        %v2591 = vadd.f32 %v2422, %v2590
        %v2592 = vpop.f32.mrf.mxu0
        %v2593 = vadd.f32 %v2424, %v2592
        %2594 = vmatmul.bf16.gmra.mxu0 %v2118
        %v2595 = vpop.f32.mrf.mxu0
        %v2596 = vadd.f32 %v2427, %v2595
        %v2597 = vpop.f32.mrf.mxu0
        %v2598 = vadd.f32 %v2429, %v2597
        %2599 = vmatmul.bf16.gmra.mxu0 %v2120
        %v2600 = vpop.f32.mrf.mxu0
        %v2601 = vadd.f32 %v2432, %v2600
        %v2602 = vpop.f32.mrf.mxu0
        %v2603 = vadd.f32 %v2434, %v2602
        %2604 = vmatmul.bf16.gmra.mxu0 %v2122
        %v2605 = vpop.f32.mrf.mxu0
        %v2606 = vadd.f32 %v2437, %v2605
        %v2607 = vpop.f32.mrf.mxu0
        %v2608 = vadd.f32 %v2439, %v2607
        %2609 = vmatmul.bf16.gmra.mxu0 %v2124
        %v2610 = vpop.f32.mrf.mxu0
        %v2611 = vadd.f32 %v2442, %v2610
        %v2612 = vpop.f32.mrf.mxu0
        %v2613 = vadd.f32 %v2444, %v2612
        %2614 = vmatmul.bf16.gmra.mxu0 %v2126
        %v2615 = vpop.f32.mrf.mxu0
        %v2616 = vadd.f32 %v2447, %v2615
        %v2617 = vpop.f32.mrf.mxu0
        %v2618 = vadd.f32 %v2449, %v2617
        %2619 = vmatmul.bf16.gmra.mxu0 %v2128
        %v2620 = vpop.f32.mrf.mxu0
        %v2621 = vadd.f32 %v2452, %v2620
        %v2622 = vpop.f32.mrf.mxu0
        %v2623 = vadd.f32 %v2454, %v2622
        %2624 = vmatmul.bf16.gmra.mxu0 %v2130
        %v2625 = vpop.f32.mrf.mxu0
        %v2626 = vadd.f32 %v2457, %v2625
        %v2627 = vpop.f32.mrf.mxu0
        %v2628 = vadd.f32 %v2459, %v2627
        %2629 = vmatmul.bf16.gmra.mxu0 %v2132
        %v2630 = vpop.f32.mrf.mxu0
        %v2631 = vadd.f32 %v2462, %v2630
        %v2632 = vpop.f32.mrf.mxu0
        %v2633 = vadd.f32 %v2464, %v2632
        %2634 = vmatmul.bf16.gmra.mxu0 %v2134
        %v2635 = vpop.f32.mrf.mxu0
        %v2636 = vadd.f32 %v2467, %v2635
        %v2637 = vpop.f32.mrf.mxu0
        %v2638 = vadd.f32 %v2469, %v2637
        %2639 = vmatmul.bf16.gmra.mxu0 %v2136
        %v2640 = vpop.f32.mrf.mxu0
        %v2641 = vadd.f32 %v2472, %v2640
        %v2642 = vpop.f32.mrf.mxu0
        %v2643 = vadd.f32 %v2474, %v2642
        %2644 = vmatmul.bf16.gmra.mxu0 %v2138
        %v2645 = vpop.f32.mrf.mxu0
        %v2646 = vadd.f32 %v2477, %v2645
        %v2647 = vpop.f32.mrf.mxu0
        %v2648 = vadd.f32 %v2479, %v2647
        %2649 = vmatmul.bf16.gmra.mxu0 %v2140
        %v2650 = vpop.f32.mrf.mxu0
        %v2651 = vadd.f32 %v2482, %v2650
        %v2652 = vpop.f32.mrf.mxu0
        %v2653 = vadd.f32 %v2484, %v2652
        %2654 = vmatmul.bf16.gmra.mxu0 %v2142
        %v2655 = vpop.f32.mrf.mxu0
        %v2656 = vadd.f32 %v2487, %v2655
        %v2657 = vpop.f32.mrf.mxu0
        %v2658 = vadd.f32 %v2489, %v2657
        %2659 = vmatmul.bf16.gmra.mxu0 %v2144
        %v2660 = vpop.f32.mrf.mxu0
        %v2661 = vadd.f32 %v2492, %v2660
        %v2662 = vpop.f32.mrf.mxu0
        %v2663 = vadd.f32 %v2494, %v2662
        %2664 = vmatmul.bf16.gmra.mxu0 %v2146
        %v2665 = vpop.f32.mrf.mxu0
        %v2666 = vadd.f32 %v2497, %v2665
        %v2667 = vpop.f32.mrf.mxu0
        %v2668 = vadd.f32 %v2499, %v2667
        %2669 = vmatmul.bf16.gmra.mxu0 %v2148
        %v2670 = vpop.f32.mrf.mxu0
        %v2671 = vadd.f32 %v2502, %v2670
        %v2672 = vpop.f32.mrf.mxu0
        %v2673 = vadd.f32 %v2504, %v2672
        %2674 = vmatmul.bf16.gmra.mxu0 %v2150
        %v2675 = vpop.f32.mrf.mxu0
        %v2676 = vadd.f32 %v2507, %v2675
        %v2677 = vpop.f32.mrf.mxu0
        %v2678 = vadd.f32 %v2509, %v2677
        %2679 = vmatmul.bf16.gmra.mxu0 %v2152
        %v2680 = vpop.f32.mrf.mxu0
        %v2681 = vadd.f32 %v2512, %v2680
        %v2682 = vpop.f32.mrf.mxu0
        %v2683 = vadd.f32 %v2514, %v2682
        %2684 = vdwg.mxu0
        %2685 = vmatpush.bf16.msra.mxu0 %v2298
        %2686 = vmatpush.bf16.msra.mxu0 %v2296
        %2687 = vmatpush.bf16.msra.mxu0 %v2294
        %2688 = vmatpush.bf16.msra.mxu0 %v2292
        %2689 = vmatpush.bf16.msra.mxu0 %v2290
        %2690 = vmatpush.bf16.msra.mxu0 %v2288
        %2691 = vmatpush.bf16.msra.mxu0 %v2286
        %2692 = vmatpush.bf16.msra.mxu0 %v2284
        %2693 = vmatmul.bf16.gmra.mxu0 %v2089
        %v2694 = vpop.f32.mrf.mxu0
        %v2695 = vadd.f32 %v2186, %v2694
        %v2696 = vpop.f32.mrf.mxu0
        %v2697 = vadd.f32 %v2186, %v2696
        %2698 = vmatmul.bf16.gmra.mxu0 %v2091
        %v2699 = vpop.f32.mrf.mxu0
        %v2700 = vadd.f32 %v2186, %v2699
        %v2701 = vpop.f32.mrf.mxu0
        %v2702 = vadd.f32 %v2186, %v2701
        %2703 = vmatmul.bf16.gmra.mxu0 %v2093
        %v2704 = vpop.f32.mrf.mxu0
        %v2705 = vadd.f32 %v2186, %v2704
        %v2706 = vpop.f32.mrf.mxu0
        %v2707 = vadd.f32 %v2186, %v2706
        %2708 = vmatmul.bf16.gmra.mxu0 %v2095
        %v2709 = vpop.f32.mrf.mxu0
        %v2710 = vadd.f32 %v2186, %v2709
        %v2711 = vpop.f32.mrf.mxu0
        %v2712 = vadd.f32 %v2186, %v2711
        %2713 = vmatmul.bf16.gmra.mxu0 %v2097
        %v2714 = vpop.f32.mrf.mxu0
        %v2715 = vadd.f32 %v2186, %v2714
        %v2716 = vpop.f32.mrf.mxu0
        %v2717 = vadd.f32 %v2186, %v2716
        %2718 = vmatmul.bf16.gmra.mxu0 %v2099
        %v2719 = vpop.f32.mrf.mxu0
        %v2720 = vadd.f32 %v2186, %v2719
        %v2721 = vpop.f32.mrf.mxu0
        %v2722 = vadd.f32 %v2186, %v2721
        %2723 = vmatmul.bf16.gmra.mxu0 %v2101
        %v2724 = vpop.f32.mrf.mxu0
        %v2725 = vadd.f32 %v2186, %v2724
        %v2726 = vpop.f32.mrf.mxu0
        %v2727 = vadd.f32 %v2186, %v2726
        %2728 = vmatmul.bf16.gmra.mxu0 %v2103
        %v2729 = vpop.f32.mrf.mxu0
        %v2730 = vadd.f32 %v2186, %v2729
        %v2731 = vpop.f32.mrf.mxu0
        %v2732 = vadd.f32 %v2186, %v2731
        %2733 = vmatmul.bf16.gmra.mxu0 %v2105
        %v2734 = vpop.f32.mrf.mxu0
        %v2735 = vadd.f32 %v2186, %v2734
        %v2736 = vpop.f32.mrf.mxu0
        %v2737 = vadd.f32 %v2186, %v2736
        %2738 = vmatmul.bf16.gmra.mxu0 %v2107
        %v2739 = vpop.f32.mrf.mxu0
        %v2740 = vadd.f32 %v2186, %v2739
        %v2741 = vpop.f32.mrf.mxu0
        %v2742 = vadd.f32 %v2186, %v2741
        %2743 = vmatmul.bf16.gmra.mxu0 %v2109
        %v2744 = vpop.f32.mrf.mxu0
        %v2745 = vadd.f32 %v2186, %v2744
        %v2746 = vpop.f32.mrf.mxu0
        %v2747 = vadd.f32 %v2186, %v2746
        %2748 = vmatmul.bf16.gmra.mxu0 %v2111
        %v2749 = vpop.f32.mrf.mxu0
        %v2750 = vadd.f32 %v2186, %v2749
        %v2751 = vpop.f32.mrf.mxu0
        %v2752 = vadd.f32 %v2186, %v2751
        %2753 = vmatmul.bf16.gmra.mxu0 %v2113
        %v2754 = vpop.f32.mrf.mxu0
        %v2755 = vadd.f32 %v2186, %v2754
        %v2756 = vpop.f32.mrf.mxu0
        %v2757 = vadd.f32 %v2186, %v2756
        %2758 = vmatmul.bf16.gmra.mxu0 %v2115
        %v2759 = vpop.f32.mrf.mxu0
        %v2760 = vadd.f32 %v2186, %v2759
        %v2761 = vpop.f32.mrf.mxu0
        %v2762 = vadd.f32 %v2186, %v2761
        %2763 = vmatmul.bf16.gmra.mxu0 %v2117
        %v2764 = vpop.f32.mrf.mxu0
        %v2765 = vadd.f32 %v2186, %v2764
        %v2766 = vpop.f32.mrf.mxu0
        %v2767 = vadd.f32 %v2186, %v2766
        %2768 = vmatmul.bf16.gmra.mxu0 %v2119
        %v2769 = vpop.f32.mrf.mxu0
        %v2770 = vadd.f32 %v2186, %v2769
        %v2771 = vpop.f32.mrf.mxu0
        %v2772 = vadd.f32 %v2186, %v2771
        %2773 = vmatmul.bf16.gmra.mxu0 %v2121
        %v2774 = vpop.f32.mrf.mxu0
        %v2775 = vadd.f32 %v2186, %v2774
        %v2776 = vpop.f32.mrf.mxu0
        %v2777 = vadd.f32 %v2186, %v2776
        %2778 = vmatmul.bf16.gmra.mxu0 %v2123
        %v2779 = vpop.f32.mrf.mxu0
        %v2780 = vadd.f32 %v2186, %v2779
        %v2781 = vpop.f32.mrf.mxu0
        %v2782 = vadd.f32 %v2186, %v2781
        %2783 = vmatmul.bf16.gmra.mxu0 %v2125
        %v2784 = vpop.f32.mrf.mxu0
        %v2785 = vadd.f32 %v2186, %v2784
        %v2786 = vpop.f32.mrf.mxu0
        %v2787 = vadd.f32 %v2186, %v2786
        %2788 = vmatmul.bf16.gmra.mxu0 %v2127
        %v2789 = vpop.f32.mrf.mxu0
        %v2790 = vadd.f32 %v2186, %v2789
        %v2791 = vpop.f32.mrf.mxu0
        %v2792 = vadd.f32 %v2186, %v2791
        %2793 = vmatmul.bf16.gmra.mxu0 %v2129
        %v2794 = vpop.f32.mrf.mxu0
        %v2795 = vadd.f32 %v2186, %v2794
        %v2796 = vpop.f32.mrf.mxu0
        %v2797 = vadd.f32 %v2186, %v2796
        %2798 = vmatmul.bf16.gmra.mxu0 %v2131
        %v2799 = vpop.f32.mrf.mxu0
        %v2800 = vadd.f32 %v2186, %v2799
        %v2801 = vpop.f32.mrf.mxu0
        %v2802 = vadd.f32 %v2186, %v2801
        %2803 = vmatmul.bf16.gmra.mxu0 %v2133
        %v2804 = vpop.f32.mrf.mxu0
        %v2805 = vadd.f32 %v2186, %v2804
        %v2806 = vpop.f32.mrf.mxu0
        %v2807 = vadd.f32 %v2186, %v2806
        %2808 = vmatmul.bf16.gmra.mxu0 %v2135
        %v2809 = vpop.f32.mrf.mxu0
        %v2810 = vadd.f32 %v2186, %v2809
        %v2811 = vpop.f32.mrf.mxu0
        %v2812 = vadd.f32 %v2186, %v2811
        %2813 = vmatmul.bf16.gmra.mxu0 %v2137
        %v2814 = vpop.f32.mrf.mxu0
        %v2815 = vadd.f32 %v2186, %v2814
        %v2816 = vpop.f32.mrf.mxu0
        %v2817 = vadd.f32 %v2186, %v2816
        %2818 = vmatmul.bf16.gmra.mxu0 %v2139
        %v2819 = vpop.f32.mrf.mxu0
        %v2820 = vadd.f32 %v2186, %v2819
        %v2821 = vpop.f32.mrf.mxu0
        %v2822 = vadd.f32 %v2186, %v2821
        %2823 = vmatmul.bf16.gmra.mxu0 %v2141
        %v2824 = vpop.f32.mrf.mxu0
        %v2825 = vadd.f32 %v2186, %v2824
        %v2826 = vpop.f32.mrf.mxu0
        %v2827 = vadd.f32 %v2186, %v2826
        %2828 = vmatmul.bf16.gmra.mxu0 %v2143
        %v2829 = vpop.f32.mrf.mxu0
        %v2830 = vadd.f32 %v2186, %v2829
        %v2831 = vpop.f32.mrf.mxu0
        %v2832 = vadd.f32 %v2186, %v2831
        %2833 = vmatmul.bf16.gmra.mxu0 %v2145
        %v2834 = vpop.f32.mrf.mxu0
        %v2835 = vadd.f32 %v2186, %v2834
        %v2836 = vpop.f32.mrf.mxu0
        %v2837 = vadd.f32 %v2186, %v2836
        %2838 = vmatmul.bf16.gmra.mxu0 %v2147
        %v2839 = vpop.f32.mrf.mxu0
        %v2840 = vadd.f32 %v2186, %v2839
        %v2841 = vpop.f32.mrf.mxu0
        %v2842 = vadd.f32 %v2186, %v2841
        %2843 = vmatmul.bf16.gmra.mxu0 %v2149
        %v2844 = vpop.f32.mrf.mxu0
        %v2845 = vadd.f32 %v2186, %v2844
        %v2846 = vpop.f32.mrf.mxu0
        %v2847 = vadd.f32 %v2186, %v2846
        %2848 = vmatmul.bf16.gmra.mxu0 %v2151
        %v2849 = vpop.f32.mrf.mxu0
        %v2850 = vadd.f32 %v2186, %v2849
        %v2851 = vpop.f32.mrf.mxu0
        %v2852 = vadd.f32 %v2186, %v2851
        %2853 = vdwg.mxu0
        %2854 = vmatpush.bf16.msra.mxu0 %v2314
        %2855 = vmatpush.bf16.msra.mxu0 %v2312
        %2856 = vmatpush.bf16.msra.mxu0 %v2310
        %2857 = vmatpush.bf16.msra.mxu0 %v2308
        %2858 = vmatpush.bf16.msra.mxu0 %v2306
        %2859 = vmatpush.bf16.msra.mxu0 %v2304
        %2860 = vmatpush.bf16.msra.mxu0 %v2302
        %2861 = vmatpush.bf16.msra.mxu0 %v2300
        %2862 = vmatmul.bf16.gmra.mxu0 %v2090
        %v2863 = vpop.f32.mrf.mxu0
        %v2864 = vadd.f32 %v2695, %v2863
        %v2865 = vpop.f32.mrf.mxu0
        %v2866 = vadd.f32 %v2697, %v2865
        %2867 = vmatmul.bf16.gmra.mxu0 %v2092
        %v2868 = vpop.f32.mrf.mxu0
        %v2869 = vadd.f32 %v2700, %v2868
        %v2870 = vpop.f32.mrf.mxu0
        %v2871 = vadd.f32 %v2702, %v2870
        %2872 = vmatmul.bf16.gmra.mxu0 %v2094
        %v2873 = vpop.f32.mrf.mxu0
        %v2874 = vadd.f32 %v2705, %v2873
        %v2875 = vpop.f32.mrf.mxu0
        %v2876 = vadd.f32 %v2707, %v2875
        %2877 = vmatmul.bf16.gmra.mxu0 %v2096
        %v2878 = vpop.f32.mrf.mxu0
        %v2879 = vadd.f32 %v2710, %v2878
        %v2880 = vpop.f32.mrf.mxu0
        %v2881 = vadd.f32 %v2712, %v2880
        %2882 = vmatmul.bf16.gmra.mxu0 %v2098
        %v2883 = vpop.f32.mrf.mxu0
        %v2884 = vadd.f32 %v2715, %v2883
        %v2885 = vpop.f32.mrf.mxu0
        %v2886 = vadd.f32 %v2717, %v2885
        %2887 = vmatmul.bf16.gmra.mxu0 %v2100
        %v2888 = vpop.f32.mrf.mxu0
        %v2889 = vadd.f32 %v2720, %v2888
        %v2890 = vpop.f32.mrf.mxu0
        %v2891 = vadd.f32 %v2722, %v2890
        %2892 = vmatmul.bf16.gmra.mxu0 %v2102
        %v2893 = vpop.f32.mrf.mxu0
        %v2894 = vadd.f32 %v2725, %v2893
        %v2895 = vpop.f32.mrf.mxu0
        %v2896 = vadd.f32 %v2727, %v2895
        %2897 = vmatmul.bf16.gmra.mxu0 %v2104
        %v2898 = vpop.f32.mrf.mxu0
        %v2899 = vadd.f32 %v2730, %v2898
        %v2900 = vpop.f32.mrf.mxu0
        %v2901 = vadd.f32 %v2732, %v2900
        %2902 = vmatmul.bf16.gmra.mxu0 %v2106
        %v2903 = vpop.f32.mrf.mxu0
        %v2904 = vadd.f32 %v2735, %v2903
        %v2905 = vpop.f32.mrf.mxu0
        %v2906 = vadd.f32 %v2737, %v2905
        %2907 = vmatmul.bf16.gmra.mxu0 %v2108
        %v2908 = vpop.f32.mrf.mxu0
        %v2909 = vadd.f32 %v2740, %v2908
        %v2910 = vpop.f32.mrf.mxu0
        %v2911 = vadd.f32 %v2742, %v2910
        %2912 = vmatmul.bf16.gmra.mxu0 %v2110
        %v2913 = vpop.f32.mrf.mxu0
        %v2914 = vadd.f32 %v2745, %v2913
        %v2915 = vpop.f32.mrf.mxu0
        %v2916 = vadd.f32 %v2747, %v2915
        %2917 = vmatmul.bf16.gmra.mxu0 %v2112
        %v2918 = vpop.f32.mrf.mxu0
        %v2919 = vadd.f32 %v2750, %v2918
        %v2920 = vpop.f32.mrf.mxu0
        %v2921 = vadd.f32 %v2752, %v2920
        %2922 = vmatmul.bf16.gmra.mxu0 %v2114
        %v2923 = vpop.f32.mrf.mxu0
        %v2924 = vadd.f32 %v2755, %v2923
        %v2925 = vpop.f32.mrf.mxu0
        %v2926 = vadd.f32 %v2757, %v2925
        %2927 = vmatmul.bf16.gmra.mxu0 %v2116
        %v2928 = vpop.f32.mrf.mxu0
        %v2929 = vadd.f32 %v2760, %v2928
        %v2930 = vpop.f32.mrf.mxu0
        %v2931 = vadd.f32 %v2762, %v2930
        %2932 = vmatmul.bf16.gmra.mxu0 %v2118
        %v2933 = vpop.f32.mrf.mxu0
        %v2934 = vadd.f32 %v2765, %v2933
        %v2935 = vpop.f32.mrf.mxu0
        %v2936 = vadd.f32 %v2767, %v2935
        %2937 = vmatmul.bf16.gmra.mxu0 %v2120
        %v2938 = vpop.f32.mrf.mxu0
        %v2939 = vadd.f32 %v2770, %v2938
        %v2940 = vpop.f32.mrf.mxu0
        %v2941 = vadd.f32 %v2772, %v2940
        %2942 = vmatmul.bf16.gmra.mxu0 %v2122
        %v2943 = vpop.f32.mrf.mxu0
        %v2944 = vadd.f32 %v2775, %v2943
        %v2945 = vpop.f32.mrf.mxu0
        %v2946 = vadd.f32 %v2777, %v2945
        %2947 = vmatmul.bf16.gmra.mxu0 %v2124
        %v2948 = vpop.f32.mrf.mxu0
        %v2949 = vadd.f32 %v2780, %v2948
        %v2950 = vpop.f32.mrf.mxu0
        %v2951 = vadd.f32 %v2782, %v2950
        %2952 = vmatmul.bf16.gmra.mxu0 %v2126
        %v2953 = vpop.f32.mrf.mxu0
        %v2954 = vadd.f32 %v2785, %v2953
        %v2955 = vpop.f32.mrf.mxu0
        %v2956 = vadd.f32 %v2787, %v2955
        %2957 = vmatmul.bf16.gmra.mxu0 %v2128
        %v2958 = vpop.f32.mrf.mxu0
        %v2959 = vadd.f32 %v2790, %v2958
        %v2960 = vpop.f32.mrf.mxu0
        %v2961 = vadd.f32 %v2792, %v2960
        %2962 = vmatmul.bf16.gmra.mxu0 %v2130
        %v2963 = vpop.f32.mrf.mxu0
        %v2964 = vadd.f32 %v2795, %v2963
        %v2965 = vpop.f32.mrf.mxu0
        %v2966 = vadd.f32 %v2797, %v2965
        %2967 = vmatmul.bf16.gmra.mxu0 %v2132
        %v2968 = vpop.f32.mrf.mxu0
        %v2969 = vadd.f32 %v2800, %v2968
        %v2970 = vpop.f32.mrf.mxu0
        %v2971 = vadd.f32 %v2802, %v2970
        %2972 = vmatmul.bf16.gmra.mxu0 %v2134
        %v2973 = vpop.f32.mrf.mxu0
        %v2974 = vadd.f32 %v2805, %v2973
        %v2975 = vpop.f32.mrf.mxu0
        %v2976 = vadd.f32 %v2807, %v2975
        %2977 = vmatmul.bf16.gmra.mxu0 %v2136
        %v2978 = vpop.f32.mrf.mxu0
        %v2979 = vadd.f32 %v2810, %v2978
        %v2980 = vpop.f32.mrf.mxu0
        %v2981 = vadd.f32 %v2812, %v2980
        %2982 = vmatmul.bf16.gmra.mxu0 %v2138
        %v2983 = vpop.f32.mrf.mxu0
        %v2984 = vadd.f32 %v2815, %v2983
        %v2985 = vpop.f32.mrf.mxu0
        %v2986 = vadd.f32 %v2817, %v2985
        %2987 = vmatmul.bf16.gmra.mxu0 %v2140
        %v2988 = vpop.f32.mrf.mxu0
        %v2989 = vadd.f32 %v2820, %v2988
        %v2990 = vpop.f32.mrf.mxu0
        %v2991 = vadd.f32 %v2822, %v2990
        %2992 = vmatmul.bf16.gmra.mxu0 %v2142
        %v2993 = vpop.f32.mrf.mxu0
        %v2994 = vadd.f32 %v2825, %v2993
        %v2995 = vpop.f32.mrf.mxu0
        %v2996 = vadd.f32 %v2827, %v2995
        %2997 = vmatmul.bf16.gmra.mxu0 %v2144
        %v2998 = vpop.f32.mrf.mxu0
        %v2999 = vadd.f32 %v2830, %v2998
        %v3000 = vpop.f32.mrf.mxu0
        %v3001 = vadd.f32 %v2832, %v3000
        %3002 = vmatmul.bf16.gmra.mxu0 %v2146
        %v3003 = vpop.f32.mrf.mxu0
        %v3004 = vadd.f32 %v2835, %v3003
        %v3005 = vpop.f32.mrf.mxu0
        %v3006 = vadd.f32 %v2837, %v3005
        %3007 = vmatmul.bf16.gmra.mxu0 %v2148
        %v3008 = vpop.f32.mrf.mxu0
        %v3009 = vadd.f32 %v2840, %v3008
        %v3010 = vpop.f32.mrf.mxu0
        %v3011 = vadd.f32 %v2842, %v3010
        %3012 = vmatmul.bf16.gmra.mxu0 %v2150
        %v3013 = vpop.f32.mrf.mxu0
        %v3014 = vadd.f32 %v2845, %v3013
        %v3015 = vpop.f32.mrf.mxu0
        %v3016 = vadd.f32 %v2847, %v3015
        %3017 = vmatmul.bf16.gmra.mxu0 %v2152
        %v3018 = vpop.f32.mrf.mxu0
        %v3019 = vadd.f32 %v2850, %v3018
        %v3020 = vpop.f32.mrf.mxu0
        %v3021 = vadd.f32 %v2852, %v3020
        %3022 = vdwg.mxu0
        %v3023 = vmax.f32 %v2526, 0.0
        %v3024 = vmax.f32 %v2864, 0.0
        %v3025 = vmax.f32 %v2528, 0.0
        %v3026 = vmax.f32 %v2866, 0.0
        %v3027 = vmax.f32 %v2531, 0.0
        %v3028 = vmax.f32 %v2869, 0.0
        %v3029 = vmax.f32 %v2533, 0.0
        %v3030 = vmax.f32 %v2871, 0.0
        %v3031 = vmax.f32 %v2536, 0.0
        %v3032 = vmax.f32 %v2874, 0.0
        %v3033 = vmax.f32 %v2538, 0.0
        %v3034 = vmax.f32 %v2876, 0.0
        %v3035 = vmax.f32 %v2541, 0.0
        %v3036 = vmax.f32 %v2879, 0.0
        %v3037 = vmax.f32 %v2543, 0.0
        %v3038 = vmax.f32 %v2881, 0.0
        %v3039 = vmax.f32 %v2546, 0.0
        %v3040 = vmax.f32 %v2884, 0.0
        %v3041 = vmax.f32 %v2548, 0.0
        %v3042 = vmax.f32 %v2886, 0.0
        %v3043 = vmax.f32 %v2551, 0.0
        %v3044 = vmax.f32 %v2889, 0.0
        %v3045 = vmax.f32 %v2553, 0.0
        %v3046 = vmax.f32 %v2891, 0.0
        %v3047 = vmax.f32 %v2556, 0.0
        %v3048 = vmax.f32 %v2894, 0.0
        %v3049 = vmax.f32 %v2558, 0.0
        %v3050 = vmax.f32 %v2896, 0.0
        %v3051 = vmax.f32 %v2561, 0.0
        %v3052 = vmax.f32 %v2899, 0.0
        %v3053 = vmax.f32 %v2563, 0.0
        %v3054 = vmax.f32 %v2901, 0.0
        %v3055 = vmax.f32 %v2566, 0.0
        %v3056 = vmax.f32 %v2904, 0.0
        %v3057 = vmax.f32 %v2568, 0.0
        %v3058 = vmax.f32 %v2906, 0.0
        %v3059 = vmax.f32 %v2571, 0.0
        %v3060 = vmax.f32 %v2909, 0.0
        %v3061 = vmax.f32 %v2573, 0.0
        %v3062 = vmax.f32 %v2911, 0.0
        %v3063 = vmax.f32 %v2576, 0.0
        %v3064 = vmax.f32 %v2914, 0.0
        %v3065 = vmax.f32 %v2578, 0.0
        %v3066 = vmax.f32 %v2916, 0.0
        %v3067 = vmax.f32 %v2581, 0.0
        %v3068 = vmax.f32 %v2919, 0.0
        %v3069 = vmax.f32 %v2583, 0.0
        %v3070 = vmax.f32 %v2921, 0.0
        %v3071 = vmax.f32 %v2586, 0.0
        %v3072 = vmax.f32 %v2924, 0.0
        %v3073 = vmax.f32 %v2588, 0.0
        %v3074 = vmax.f32 %v2926, 0.0
        %v3075 = vmax.f32 %v2591, 0.0
        %v3076 = vmax.f32 %v2929, 0.0
        %v3077 = vmax.f32 %v2593, 0.0
        %v3078 = vmax.f32 %v2931, 0.0
        %v3079 = vmax.f32 %v2596, 0.0
        %v3080 = vmax.f32 %v2934, 0.0
        %v3081 = vmax.f32 %v2598, 0.0
        %v3082 = vmax.f32 %v2936, 0.0
        %v3083 = vmax.f32 %v2601, 0.0
        %v3084 = vmax.f32 %v2939, 0.0
        %v3085 = vmax.f32 %v2603, 0.0
        %v3086 = vmax.f32 %v2941, 0.0
        %v3087 = vmax.f32 %v2606, 0.0
        %v3088 = vmax.f32 %v2944, 0.0
        %v3089 = vmax.f32 %v2608, 0.0
        %v3090 = vmax.f32 %v2946, 0.0
        %v3091 = vmax.f32 %v2611, 0.0
        %v3092 = vmax.f32 %v2949, 0.0
        %v3093 = vmax.f32 %v2613, 0.0
        %v3094 = vmax.f32 %v2951, 0.0
        %v3095 = vmax.f32 %v2616, 0.0
        %v3096 = vmax.f32 %v2954, 0.0
        %v3097 = vmax.f32 %v2618, 0.0
        %v3098 = vmax.f32 %v2956, 0.0
        %v3099 = vmax.f32 %v2621, 0.0
        %v3100 = vmax.f32 %v2959, 0.0
        %v3101 = vmax.f32 %v2623, 0.0
        %v3102 = vmax.f32 %v2961, 0.0
        %v3103 = vmax.f32 %v2626, 0.0
        %v3104 = vmax.f32 %v2964, 0.0
        %v3105 = vmax.f32 %v2628, 0.0
        %v3106 = vmax.f32 %v2966, 0.0
        %v3107 = vmax.f32 %v2631, 0.0
        %v3108 = vmax.f32 %v2969, 0.0
        %v3109 = vmax.f32 %v2633, 0.0
        %v3110 = vmax.f32 %v2971, 0.0
        %v3111 = vmax.f32 %v2636, 0.0
        %v3112 = vmax.f32 %v2974, 0.0
        %v3113 = vmax.f32 %v2638, 0.0
        %v3114 = vmax.f32 %v2976, 0.0
        %v3115 = vmax.f32 %v2641, 0.0
        %v3116 = vmax.f32 %v2979, 0.0
        %v3117 = vmax.f32 %v2643, 0.0
        %v3118 = vmax.f32 %v2981, 0.0
        %v3119 = vmax.f32 %v2646, 0.0
        %v3120 = vmax.f32 %v2984, 0.0
        %v3121 = vmax.f32 %v2648, 0.0
        %v3122 = vmax.f32 %v2986, 0.0
        %v3123 = vmax.f32 %v2651, 0.0
        %v3124 = vmax.f32 %v2989, 0.0
        %v3125 = vmax.f32 %v2653, 0.0
        %v3126 = vmax.f32 %v2991, 0.0
        %v3127 = vmax.f32 %v2656, 0.0
        %v3128 = vmax.f32 %v2994, 0.0
        %v3129 = vmax.f32 %v2658, 0.0
        %v3130 = vmax.f32 %v2996, 0.0
        %v3131 = vmax.f32 %v2661, 0.0
        %v3132 = vmax.f32 %v2999, 0.0
        %v3133 = vmax.f32 %v2663, 0.0
        %v3134 = vmax.f32 %v3001, 0.0
        %v3135 = vmax.f32 %v2666, 0.0
        %v3136 = vmax.f32 %v3004, 0.0
        %v3137 = vmax.f32 %v2668, 0.0
        %v3138 = vmax.f32 %v3006, 0.0
        %v3139 = vmax.f32 %v2671, 0.0
        %v3140 = vmax.f32 %v3009, 0.0
        %v3141 = vmax.f32 %v2673, 0.0
        %v3142 = vmax.f32 %v3011, 0.0
        %v3143 = vmax.f32 %v2676, 0.0
        %v3144 = vmax.f32 %v3014, 0.0
        %v3145 = vmax.f32 %v2678, 0.0
        %v3146 = vmax.f32 %v3016, 0.0
        %v3147 = vmax.f32 %v2681, 0.0
        %v3148 = vmax.f32 %v3019, 0.0
        %v3149 = vmax.f32 %v2683, 0.0
        %v3150 = vmax.f32 %v3021, 0.0
        %v3151 = vpack.c.bf16 %v3025, %v3023
        %v3152 = vpack.c.bf16 %v3026, %v3024
        %v3153 = vpack.c.bf16 %v3029, %v3027
        %v3154 = vpack.c.bf16 %v3030, %v3028
        %v3155 = vpack.c.bf16 %v3033, %v3031
        %v3156 = vpack.c.bf16 %v3034, %v3032
        %v3157 = vpack.c.bf16 %v3037, %v3035
        %v3158 = vpack.c.bf16 %v3038, %v3036
        %v3159 = vpack.c.bf16 %v3041, %v3039
        %v3160 = vpack.c.bf16 %v3042, %v3040
        %v3161 = vpack.c.bf16 %v3045, %v3043
        %v3162 = vpack.c.bf16 %v3046, %v3044
        %v3163 = vpack.c.bf16 %v3049, %v3047
        %v3164 = vpack.c.bf16 %v3050, %v3048
        %v3165 = vpack.c.bf16 %v3053, %v3051
        %v3166 = vpack.c.bf16 %v3054, %v3052
        %v3167 = vpack.c.bf16 %v3057, %v3055
        %v3168 = vpack.c.bf16 %v3058, %v3056
        %v3169 = vpack.c.bf16 %v3061, %v3059
        %v3170 = vpack.c.bf16 %v3062, %v3060
        %v3171 = vpack.c.bf16 %v3065, %v3063
        %v3172 = vpack.c.bf16 %v3066, %v3064
        %v3173 = vpack.c.bf16 %v3069, %v3067
        %v3174 = vpack.c.bf16 %v3070, %v3068
        %v3175 = vpack.c.bf16 %v3073, %v3071
        %v3176 = vpack.c.bf16 %v3074, %v3072
        %v3177 = vpack.c.bf16 %v3077, %v3075
        %v3178 = vpack.c.bf16 %v3078, %v3076
        %v3179 = vpack.c.bf16 %v3081, %v3079
        %v3180 = vpack.c.bf16 %v3082, %v3080
        %v3181 = vpack.c.bf16 %v3085, %v3083
        %v3182 = vpack.c.bf16 %v3086, %v3084
        %v3183 = vpack.c.bf16 %v3089, %v3087
        %v3184 = vpack.c.bf16 %v3090, %v3088
        %v3185 = vpack.c.bf16 %v3093, %v3091
        %v3186 = vpack.c.bf16 %v3094, %v3092
        %v3187 = vpack.c.bf16 %v3097, %v3095
        %v3188 = vpack.c.bf16 %v3098, %v3096
        %v3189 = vpack.c.bf16 %v3101, %v3099
        %v3190 = vpack.c.bf16 %v3102, %v3100
        %v3191 = vpack.c.bf16 %v3105, %v3103
        %v3192 = vpack.c.bf16 %v3106, %v3104
        %v3193 = vpack.c.bf16 %v3109, %v3107
        %v3194 = vpack.c.bf16 %v3110, %v3108
        %v3195 = vpack.c.bf16 %v3113, %v3111
        %v3196 = vpack.c.bf16 %v3114, %v3112
        %v3197 = vpack.c.bf16 %v3117, %v3115
        %v3198 = vpack.c.bf16 %v3118, %v3116
        %v3199 = vpack.c.bf16 %v3121, %v3119
        %v3200 = vpack.c.bf16 %v3122, %v3120
        %v3201 = vpack.c.bf16 %v3125, %v3123
        %v3202 = vpack.c.bf16 %v3126, %v3124
        %v3203 = vpack.c.bf16 %v3129, %v3127
        %v3204 = vpack.c.bf16 %v3130, %v3128
        %v3205 = vpack.c.bf16 %v3133, %v3131
        %v3206 = vpack.c.bf16 %v3134, %v3132
        %v3207 = vpack.c.bf16 %v3137, %v3135
        %v3208 = vpack.c.bf16 %v3138, %v3136
        %v3209 = vpack.c.bf16 %v3141, %v3139
        %v3210 = vpack.c.bf16 %v3142, %v3140
        %v3211 = vpack.c.bf16 %v3145, %v3143
        %v3212 = vpack.c.bf16 %v3146, %v3144
        %v3213 = vpack.c.bf16 %v3149, %v3147
        %v3214 = vpack.c.bf16 %v3150, %v3148
        %s3215 = scalar_lea.vmem [#allocation2], 256
        %v3216 = vld [vmem:[%s3215] sm:$0xff]
        %v3217 = vld [vmem:[%s3215 + $0x8] sm:$0xff]
        %v3218 = vld [vmem:[%s3215 + $0x10] sm:$0xff]
        %v3219 = vld [vmem:[%s3215 + $0x18] sm:$0xff]
        %v3220 = vld [vmem:[%s3215 + $0x20] sm:$0xff]
        %v3221 = vld [vmem:[%s3215 + $0x28] sm:$0xff]
        %v3222 = vld [vmem:[%s3215 + $0x30] sm:$0xff]
        %v3223 = vld [vmem:[%s3215 + $0x38] sm:$0xff]
        %v3224 = vld [vmem:[%s3215 + $0x40] sm:$0xff]
        %v3225 = vld [vmem:[%s3215 + $0x48] sm:$0xff]
        %v3226 = vld [vmem:[%s3215 + $0x50] sm:$0xff]
        %v3227 = vld [vmem:[%s3215 + $0x58] sm:$0xff]
        %v3228 = vld [vmem:[%s3215 + $0x60] sm:$0xff]
        %v3229 = vld [vmem:[%s3215 + $0x68] sm:$0xff]
        %v3230 = vld [vmem:[%s3215 + $0x70] sm:$0xff]
        %v3231 = vld [vmem:[%s3215 + $0x78] sm:$0xff]
        %v3232 = vld [vmem:[%s3215 + $0x80] sm:$0xff]
        %v3233 = vld [vmem:[%s3215 + $0x88] sm:$0xff]
        %v3234 = vld [vmem:[%s3215 + $0x90] sm:$0xff]
        %v3235 = vld [vmem:[%s3215 + $0x98] sm:$0xff]
        %v3236 = vld [vmem:[%s3215 + $0xa0] sm:$0xff]
        %v3237 = vld [vmem:[%s3215 + $0xa8] sm:$0xff]
        %v3238 = vld [vmem:[%s3215 + $0xb0] sm:$0xff]
        %v3239 = vld [vmem:[%s3215 + $0xb8] sm:$0xff]
        %v3240 = vld [vmem:[%s3215 + $0xc0] sm:$0xff]
        %v3241 = vld [vmem:[%s3215 + $0xc8] sm:$0xff]
        %v3242 = vld [vmem:[%s3215 + $0xd0] sm:$0xff]
        %v3243 = vld [vmem:[%s3215 + $0xd8] sm:$0xff]
        %v3244 = vld [vmem:[%s3215 + $0xe0] sm:$0xff]
        %v3245 = vld [vmem:[%s3215 + $0xe8] sm:$0xff]
        %v3246 = vld [vmem:[%s3215 + $0xf0] sm:$0xff]
        %v3247 = vld [vmem:[%s3215 + $0xf8] sm:$0xff]
        %v3248 = vperm.slane %v338, 2
        %v3249 = vperm.slane %v339, 2
        %v3282 = vunpack.c.l.b16 %v3216
        %v3283 = vunpack.c.h.b16 %v3216
        %v3284 = vunpack.c.l.b16 %v3217
        %v3285 = vunpack.c.h.b16 %v3217
        %v3286 = vunpack.c.l.b16 %v3218
        %v3287 = vunpack.c.h.b16 %v3218
        %v3288 = vunpack.c.l.b16 %v3219
        %v3289 = vunpack.c.h.b16 %v3219
        %v3290 = vunpack.c.l.b16 %v3220
        %v3291 = vunpack.c.h.b16 %v3220
        %v3292 = vunpack.c.l.b16 %v3221
        %v3293 = vunpack.c.h.b16 %v3221
        %v3294 = vunpack.c.l.b16 %v3222
        %v3295 = vunpack.c.h.b16 %v3222
        %v3296 = vunpack.c.l.b16 %v3223
        %v3297 = vunpack.c.h.b16 %v3223
        %v3298 = vunpack.c.l.b16 %v3224
        %v3299 = vunpack.c.h.b16 %v3224
        %v3300 = vunpack.c.l.b16 %v3225
        %v3301 = vunpack.c.h.b16 %v3225
        %v3302 = vunpack.c.l.b16 %v3226
        %v3303 = vunpack.c.h.b16 %v3226
        %v3304 = vunpack.c.l.b16 %v3227
        %v3305 = vunpack.c.h.b16 %v3227
        %v3306 = vunpack.c.l.b16 %v3228
        %v3307 = vunpack.c.h.b16 %v3228
        %v3308 = vunpack.c.l.b16 %v3229
        %v3309 = vunpack.c.h.b16 %v3229
        %v3310 = vunpack.c.l.b16 %v3230
        %v3311 = vunpack.c.h.b16 %v3230
        %v3312 = vunpack.c.l.b16 %v3231
        %v3313 = vunpack.c.h.b16 %v3231
        %v3314 = vunpack.c.l.b16 %v3232
        %v3315 = vunpack.c.h.b16 %v3232
        %v3316 = vunpack.c.l.b16 %v3233
        %v3317 = vunpack.c.h.b16 %v3233
        %v3318 = vunpack.c.l.b16 %v3234
        %v3319 = vunpack.c.h.b16 %v3234
        %v3320 = vunpack.c.l.b16 %v3235
        %v3321 = vunpack.c.h.b16 %v3235
        %v3322 = vunpack.c.l.b16 %v3236
        %v3323 = vunpack.c.h.b16 %v3236
        %v3324 = vunpack.c.l.b16 %v3237
        %v3325 = vunpack.c.h.b16 %v3237
        %v3326 = vunpack.c.l.b16 %v3238
        %v3327 = vunpack.c.h.b16 %v3238
        %v3328 = vunpack.c.l.b16 %v3239
        %v3329 = vunpack.c.h.b16 %v3239
        %v3330 = vunpack.c.l.b16 %v3240
        %v3331 = vunpack.c.h.b16 %v3240
        %v3332 = vunpack.c.l.b16 %v3241
        %v3333 = vunpack.c.h.b16 %v3241
        %v3334 = vunpack.c.l.b16 %v3242
        %v3335 = vunpack.c.h.b16 %v3242
        %v3336 = vunpack.c.l.b16 %v3243
        %v3337 = vunpack.c.h.b16 %v3243
        %v3338 = vunpack.c.l.b16 %v3244
        %v3339 = vunpack.c.h.b16 %v3244
        %v3340 = vunpack.c.l.b16 %v3245
        %v3341 = vunpack.c.h.b16 %v3245
        %v3342 = vunpack.c.l.b16 %v3246
        %v3343 = vunpack.c.h.b16 %v3246
        %v3344 = vunpack.c.l.b16 %v3247
        %v3345 = vunpack.c.h.b16 %v3247
        %v3346 = vpack.c.b16 %v3284, %v3282
        %v3347 = vpack.c.b16 %v3285, %v3283
        %v3348 = vpack.c.b16 %v3288, %v3286
        %v3349 = vpack.c.b16 %v3289, %v3287
        %v3350 = vpack.c.b16 %v3292, %v3290
        %v3351 = vpack.c.b16 %v3293, %v3291
        %v3352 = vpack.c.b16 %v3296, %v3294
        %v3353 = vpack.c.b16 %v3297, %v3295
        %v3354 = vpack.c.b16 %v3300, %v3298
        %v3355 = vpack.c.b16 %v3301, %v3299
        %v3356 = vpack.c.b16 %v3304, %v3302
        %v3357 = vpack.c.b16 %v3305, %v3303
        %v3358 = vpack.c.b16 %v3308, %v3306
        %v3359 = vpack.c.b16 %v3309, %v3307
        %v3360 = vpack.c.b16 %v3312, %v3310
        %v3361 = vpack.c.b16 %v3313, %v3311
        %v3362 = vpack.c.b16 %v3316, %v3314
        %v3363 = vpack.c.b16 %v3317, %v3315
        %v3364 = vpack.c.b16 %v3320, %v3318
        %v3365 = vpack.c.b16 %v3321, %v3319
        %v3366 = vpack.c.b16 %v3324, %v3322
        %v3367 = vpack.c.b16 %v3325, %v3323
        %v3368 = vpack.c.b16 %v3328, %v3326
        %v3369 = vpack.c.b16 %v3329, %v3327
        %v3370 = vpack.c.b16 %v3332, %v3330
        %v3371 = vpack.c.b16 %v3333, %v3331
        %v3372 = vpack.c.b16 %v3336, %v3334
        %v3373 = vpack.c.b16 %v3337, %v3335
        %v3374 = vpack.c.b16 %v3340, %v3338
        %v3375 = vpack.c.b16 %v3341, %v3339
        %v3376 = vpack.c.b16 %v3344, %v3342
        %v3377 = vpack.c.b16 %v3345, %v3343
        %3410 = vmatpush.bf16.msra.mxu0 %v3360
        %3411 = vmatpush.bf16.msra.mxu0 %v3358
        %3412 = vmatpush.bf16.msra.mxu0 %v3356
        %3413 = vmatpush.bf16.msra.mxu0 %v3354
        %3414 = vmatpush.bf16.msra.mxu0 %v3352
        %3415 = vmatpush.bf16.msra.mxu0 %v3350
        %3416 = vmatpush.bf16.msra.mxu0 %v3348
        %3417 = vmatpush.bf16.msra.mxu0 %v3346
        %3418 = vmatmul.bf16.gmra.mxu0 %v3151
        %v3419 = vpop.f32.mrf.mxu0
        %v3420 = vadd.f32 %v3248, %v3419
        %v3421 = vpop.f32.mrf.mxu0
        %v3422 = vadd.f32 %v3248, %v3421
        %3423 = vmatmul.bf16.gmra.mxu0 %v3153
        %v3424 = vpop.f32.mrf.mxu0
        %v3425 = vadd.f32 %v3248, %v3424
        %v3426 = vpop.f32.mrf.mxu0
        %v3427 = vadd.f32 %v3248, %v3426
        %3428 = vmatmul.bf16.gmra.mxu0 %v3155
        %v3429 = vpop.f32.mrf.mxu0
        %v3430 = vadd.f32 %v3248, %v3429
        %v3431 = vpop.f32.mrf.mxu0
        %v3432 = vadd.f32 %v3248, %v3431
        %3433 = vmatmul.bf16.gmra.mxu0 %v3157
        %v3434 = vpop.f32.mrf.mxu0
        %v3435 = vadd.f32 %v3248, %v3434
        %v3436 = vpop.f32.mrf.mxu0
        %v3437 = vadd.f32 %v3248, %v3436
        %3438 = vmatmul.bf16.gmra.mxu0 %v3159
        %v3439 = vpop.f32.mrf.mxu0
        %v3440 = vadd.f32 %v3248, %v3439
        %v3441 = vpop.f32.mrf.mxu0
        %v3442 = vadd.f32 %v3248, %v3441
        %3443 = vmatmul.bf16.gmra.mxu0 %v3161
        %v3444 = vpop.f32.mrf.mxu0
        %v3445 = vadd.f32 %v3248, %v3444
        %v3446 = vpop.f32.mrf.mxu0
        %v3447 = vadd.f32 %v3248, %v3446
        %3448 = vmatmul.bf16.gmra.mxu0 %v3163
        %v3449 = vpop.f32.mrf.mxu0
        %v3450 = vadd.f32 %v3248, %v3449
        %v3451 = vpop.f32.mrf.mxu0
        %v3452 = vadd.f32 %v3248, %v3451
        %3453 = vmatmul.bf16.gmra.mxu0 %v3165
        %v3454 = vpop.f32.mrf.mxu0
        %v3455 = vadd.f32 %v3248, %v3454
        %v3456 = vpop.f32.mrf.mxu0
        %v3457 = vadd.f32 %v3248, %v3456
        %3458 = vmatmul.bf16.gmra.mxu0 %v3167
        %v3459 = vpop.f32.mrf.mxu0
        %v3460 = vadd.f32 %v3248, %v3459
        %v3461 = vpop.f32.mrf.mxu0
        %v3462 = vadd.f32 %v3248, %v3461
        %3463 = vmatmul.bf16.gmra.mxu0 %v3169
        %v3464 = vpop.f32.mrf.mxu0
        %v3465 = vadd.f32 %v3248, %v3464
        %v3466 = vpop.f32.mrf.mxu0
        %v3467 = vadd.f32 %v3248, %v3466
        %3468 = vmatmul.bf16.gmra.mxu0 %v3171
        %v3469 = vpop.f32.mrf.mxu0
        %v3470 = vadd.f32 %v3248, %v3469
        %v3471 = vpop.f32.mrf.mxu0
        %v3472 = vadd.f32 %v3248, %v3471
        %3473 = vmatmul.bf16.gmra.mxu0 %v3173
        %v3474 = vpop.f32.mrf.mxu0
        %v3475 = vadd.f32 %v3248, %v3474
        %v3476 = vpop.f32.mrf.mxu0
        %v3477 = vadd.f32 %v3248, %v3476
        %3478 = vmatmul.bf16.gmra.mxu0 %v3175
        %v3479 = vpop.f32.mrf.mxu0
        %v3480 = vadd.f32 %v3248, %v3479
        %v3481 = vpop.f32.mrf.mxu0
        %v3482 = vadd.f32 %v3248, %v3481
        %3483 = vmatmul.bf16.gmra.mxu0 %v3177
        %v3484 = vpop.f32.mrf.mxu0
        %v3485 = vadd.f32 %v3248, %v3484
        %v3486 = vpop.f32.mrf.mxu0
        %v3487 = vadd.f32 %v3248, %v3486
        %3488 = vmatmul.bf16.gmra.mxu0 %v3179
        %v3489 = vpop.f32.mrf.mxu0
        %v3490 = vadd.f32 %v3248, %v3489
        %v3491 = vpop.f32.mrf.mxu0
        %v3492 = vadd.f32 %v3248, %v3491
        %3493 = vmatmul.bf16.gmra.mxu0 %v3181
        %v3494 = vpop.f32.mrf.mxu0
        %v3495 = vadd.f32 %v3248, %v3494
        %v3496 = vpop.f32.mrf.mxu0
        %v3497 = vadd.f32 %v3248, %v3496
        %3498 = vmatmul.bf16.gmra.mxu0 %v3183
        %v3499 = vpop.f32.mrf.mxu0
        %v3500 = vadd.f32 %v3248, %v3499
        %v3501 = vpop.f32.mrf.mxu0
        %v3502 = vadd.f32 %v3248, %v3501
        %3503 = vmatmul.bf16.gmra.mxu0 %v3185
        %v3504 = vpop.f32.mrf.mxu0
        %v3505 = vadd.f32 %v3248, %v3504
        %v3506 = vpop.f32.mrf.mxu0
        %v3507 = vadd.f32 %v3248, %v3506
        %3508 = vmatmul.bf16.gmra.mxu0 %v3187
        %v3509 = vpop.f32.mrf.mxu0
        %v3510 = vadd.f32 %v3248, %v3509
        %v3511 = vpop.f32.mrf.mxu0
        %v3512 = vadd.f32 %v3248, %v3511
        %3513 = vmatmul.bf16.gmra.mxu0 %v3189
        %v3514 = vpop.f32.mrf.mxu0
        %v3515 = vadd.f32 %v3248, %v3514
        %v3516 = vpop.f32.mrf.mxu0
        %v3517 = vadd.f32 %v3248, %v3516
        %3518 = vmatmul.bf16.gmra.mxu0 %v3191
        %v3519 = vpop.f32.mrf.mxu0
        %v3520 = vadd.f32 %v3248, %v3519
        %v3521 = vpop.f32.mrf.mxu0
        %v3522 = vadd.f32 %v3248, %v3521
        %3523 = vmatmul.bf16.gmra.mxu0 %v3193
        %v3524 = vpop.f32.mrf.mxu0
        %v3525 = vadd.f32 %v3248, %v3524
        %v3526 = vpop.f32.mrf.mxu0
        %v3527 = vadd.f32 %v3248, %v3526
        %3528 = vmatmul.bf16.gmra.mxu0 %v3195
        %v3529 = vpop.f32.mrf.mxu0
        %v3530 = vadd.f32 %v3248, %v3529
        %v3531 = vpop.f32.mrf.mxu0
        %v3532 = vadd.f32 %v3248, %v3531
        %3533 = vmatmul.bf16.gmra.mxu0 %v3197
        %v3534 = vpop.f32.mrf.mxu0
        %v3535 = vadd.f32 %v3248, %v3534
        %v3536 = vpop.f32.mrf.mxu0
        %v3537 = vadd.f32 %v3248, %v3536
        %3538 = vmatmul.bf16.gmra.mxu0 %v3199
        %v3539 = vpop.f32.mrf.mxu0
        %v3540 = vadd.f32 %v3248, %v3539
        %v3541 = vpop.f32.mrf.mxu0
        %v3542 = vadd.f32 %v3248, %v3541
        %3543 = vmatmul.bf16.gmra.mxu0 %v3201
        %v3544 = vpop.f32.mrf.mxu0
        %v3545 = vadd.f32 %v3248, %v3544
        %v3546 = vpop.f32.mrf.mxu0
        %v3547 = vadd.f32 %v3248, %v3546
        %3548 = vmatmul.bf16.gmra.mxu0 %v3203
        %v3549 = vpop.f32.mrf.mxu0
        %v3550 = vadd.f32 %v3248, %v3549
        %v3551 = vpop.f32.mrf.mxu0
        %v3552 = vadd.f32 %v3248, %v3551
        %3553 = vmatmul.bf16.gmra.mxu0 %v3205
        %v3554 = vpop.f32.mrf.mxu0
        %v3555 = vadd.f32 %v3248, %v3554
        %v3556 = vpop.f32.mrf.mxu0
        %v3557 = vadd.f32 %v3248, %v3556
        %3558 = vmatmul.bf16.gmra.mxu0 %v3207
        %v3559 = vpop.f32.mrf.mxu0
        %v3560 = vadd.f32 %v3248, %v3559
        %v3561 = vpop.f32.mrf.mxu0
        %v3562 = vadd.f32 %v3248, %v3561
        %3563 = vmatmul.bf16.gmra.mxu0 %v3209
        %v3564 = vpop.f32.mrf.mxu0
        %v3565 = vadd.f32 %v3248, %v3564
        %v3566 = vpop.f32.mrf.mxu0
        %v3567 = vadd.f32 %v3248, %v3566
        %3568 = vmatmul.bf16.gmra.mxu0 %v3211
        %v3569 = vpop.f32.mrf.mxu0
        %v3570 = vadd.f32 %v3248, %v3569
        %v3571 = vpop.f32.mrf.mxu0
        %v3572 = vadd.f32 %v3248, %v3571
        %3573 = vmatmul.bf16.gmra.mxu0 %v3213
        %v3574 = vpop.f32.mrf.mxu0
        %v3575 = vadd.f32 %v3248, %v3574
        %v3576 = vpop.f32.mrf.mxu0
        %v3577 = vadd.f32 %v3248, %v3576
        %3578 = vdwg.mxu0
        %3579 = vmatpush.bf16.msra.mxu0 %v3376
        %3580 = vmatpush.bf16.msra.mxu0 %v3374
        %3581 = vmatpush.bf16.msra.mxu0 %v3372
        %3582 = vmatpush.bf16.msra.mxu0 %v3370
        %3583 = vmatpush.bf16.msra.mxu0 %v3368
        %3584 = vmatpush.bf16.msra.mxu0 %v3366
        %3585 = vmatpush.bf16.msra.mxu0 %v3364
        %3586 = vmatpush.bf16.msra.mxu0 %v3362
        %3587 = vmatmul.bf16.gmra.mxu0 %v3152
        %v3588 = vpop.f32.mrf.mxu0
        %v3589 = vadd.f32 %v3420, %v3588
        %v3590 = vpop.f32.mrf.mxu0
        %v3591 = vadd.f32 %v3422, %v3590
        %3592 = vmatmul.bf16.gmra.mxu0 %v3154
        %v3593 = vpop.f32.mrf.mxu0
        %v3594 = vadd.f32 %v3425, %v3593
        %v3595 = vpop.f32.mrf.mxu0
        %v3596 = vadd.f32 %v3427, %v3595
        %3597 = vmatmul.bf16.gmra.mxu0 %v3156
        %v3598 = vpop.f32.mrf.mxu0
        %v3599 = vadd.f32 %v3430, %v3598
        %v3600 = vpop.f32.mrf.mxu0
        %v3601 = vadd.f32 %v3432, %v3600
        %3602 = vmatmul.bf16.gmra.mxu0 %v3158
        %v3603 = vpop.f32.mrf.mxu0
        %v3604 = vadd.f32 %v3435, %v3603
        %v3605 = vpop.f32.mrf.mxu0
        %v3606 = vadd.f32 %v3437, %v3605
        %3607 = vmatmul.bf16.gmra.mxu0 %v3160
        %v3608 = vpop.f32.mrf.mxu0
        %v3609 = vadd.f32 %v3440, %v3608
        %v3610 = vpop.f32.mrf.mxu0
        %v3611 = vadd.f32 %v3442, %v3610
        %3612 = vmatmul.bf16.gmra.mxu0 %v3162
        %v3613 = vpop.f32.mrf.mxu0
        %v3614 = vadd.f32 %v3445, %v3613
        %v3615 = vpop.f32.mrf.mxu0
        %v3616 = vadd.f32 %v3447, %v3615
        %3617 = vmatmul.bf16.gmra.mxu0 %v3164
        %v3618 = vpop.f32.mrf.mxu0
        %v3619 = vadd.f32 %v3450, %v3618
        %v3620 = vpop.f32.mrf.mxu0
        %v3621 = vadd.f32 %v3452, %v3620
        %3622 = vmatmul.bf16.gmra.mxu0 %v3166
        %v3623 = vpop.f32.mrf.mxu0
        %v3624 = vadd.f32 %v3455, %v3623
        %v3625 = vpop.f32.mrf.mxu0
        %v3626 = vadd.f32 %v3457, %v3625
        %3627 = vmatmul.bf16.gmra.mxu0 %v3168
        %v3628 = vpop.f32.mrf.mxu0
        %v3629 = vadd.f32 %v3460, %v3628
        %v3630 = vpop.f32.mrf.mxu0
        %v3631 = vadd.f32 %v3462, %v3630
        %3632 = vmatmul.bf16.gmra.mxu0 %v3170
        %v3633 = vpop.f32.mrf.mxu0
        %v3634 = vadd.f32 %v3465, %v3633
        %v3635 = vpop.f32.mrf.mxu0
        %v3636 = vadd.f32 %v3467, %v3635
        %3637 = vmatmul.bf16.gmra.mxu0 %v3172
        %v3638 = vpop.f32.mrf.mxu0
        %v3639 = vadd.f32 %v3470, %v3638
        %v3640 = vpop.f32.mrf.mxu0
        %v3641 = vadd.f32 %v3472, %v3640
        %3642 = vmatmul.bf16.gmra.mxu0 %v3174
        %v3643 = vpop.f32.mrf.mxu0
        %v3644 = vadd.f32 %v3475, %v3643
        %v3645 = vpop.f32.mrf.mxu0
        %v3646 = vadd.f32 %v3477, %v3645
        %3647 = vmatmul.bf16.gmra.mxu0 %v3176
        %v3648 = vpop.f32.mrf.mxu0
        %v3649 = vadd.f32 %v3480, %v3648
        %v3650 = vpop.f32.mrf.mxu0
        %v3651 = vadd.f32 %v3482, %v3650
        %3652 = vmatmul.bf16.gmra.mxu0 %v3178
        %v3653 = vpop.f32.mrf.mxu0
        %v3654 = vadd.f32 %v3485, %v3653
        %v3655 = vpop.f32.mrf.mxu0
        %v3656 = vadd.f32 %v3487, %v3655
        %3657 = vmatmul.bf16.gmra.mxu0 %v3180
        %v3658 = vpop.f32.mrf.mxu0
        %v3659 = vadd.f32 %v3490, %v3658
        %v3660 = vpop.f32.mrf.mxu0
        %v3661 = vadd.f32 %v3492, %v3660
        %3662 = vmatmul.bf16.gmra.mxu0 %v3182
        %v3663 = vpop.f32.mrf.mxu0
        %v3664 = vadd.f32 %v3495, %v3663
        %v3665 = vpop.f32.mrf.mxu0
        %v3666 = vadd.f32 %v3497, %v3665
        %3667 = vmatmul.bf16.gmra.mxu0 %v3184
        %v3668 = vpop.f32.mrf.mxu0
        %v3669 = vadd.f32 %v3500, %v3668
        %v3670 = vpop.f32.mrf.mxu0
        %v3671 = vadd.f32 %v3502, %v3670
        %3672 = vmatmul.bf16.gmra.mxu0 %v3186
        %v3673 = vpop.f32.mrf.mxu0
        %v3674 = vadd.f32 %v3505, %v3673
        %v3675 = vpop.f32.mrf.mxu0
        %v3676 = vadd.f32 %v3507, %v3675
        %3677 = vmatmul.bf16.gmra.mxu0 %v3188
        %v3678 = vpop.f32.mrf.mxu0
        %v3679 = vadd.f32 %v3510, %v3678
        %v3680 = vpop.f32.mrf.mxu0
        %v3681 = vadd.f32 %v3512, %v3680
        %3682 = vmatmul.bf16.gmra.mxu0 %v3190
        %v3683 = vpop.f32.mrf.mxu0
        %v3684 = vadd.f32 %v3515, %v3683
        %v3685 = vpop.f32.mrf.mxu0
        %v3686 = vadd.f32 %v3517, %v3685
        %3687 = vmatmul.bf16.gmra.mxu0 %v3192
        %v3688 = vpop.f32.mrf.mxu0
        %v3689 = vadd.f32 %v3520, %v3688
        %v3690 = vpop.f32.mrf.mxu0
        %v3691 = vadd.f32 %v3522, %v3690
        %3692 = vmatmul.bf16.gmra.mxu0 %v3194
        %v3693 = vpop.f32.mrf.mxu0
        %v3694 = vadd.f32 %v3525, %v3693
        %v3695 = vpop.f32.mrf.mxu0
        %v3696 = vadd.f32 %v3527, %v3695
        %3697 = vmatmul.bf16.gmra.mxu0 %v3196
        %v3698 = vpop.f32.mrf.mxu0
        %v3699 = vadd.f32 %v3530, %v3698
        %v3700 = vpop.f32.mrf.mxu0
        %v3701 = vadd.f32 %v3532, %v3700
        %3702 = vmatmul.bf16.gmra.mxu0 %v3198
        %v3703 = vpop.f32.mrf.mxu0
        %v3704 = vadd.f32 %v3535, %v3703
        %v3705 = vpop.f32.mrf.mxu0
        %v3706 = vadd.f32 %v3537, %v3705
        %3707 = vmatmul.bf16.gmra.mxu0 %v3200
        %v3708 = vpop.f32.mrf.mxu0
        %v3709 = vadd.f32 %v3540, %v3708
        %v3710 = vpop.f32.mrf.mxu0
        %v3711 = vadd.f32 %v3542, %v3710
        %3712 = vmatmul.bf16.gmra.mxu0 %v3202
        %v3713 = vpop.f32.mrf.mxu0
        %v3714 = vadd.f32 %v3545, %v3713
        %v3715 = vpop.f32.mrf.mxu0
        %v3716 = vadd.f32 %v3547, %v3715
        %3717 = vmatmul.bf16.gmra.mxu0 %v3204
        %v3718 = vpop.f32.mrf.mxu0
        %v3719 = vadd.f32 %v3550, %v3718
        %v3720 = vpop.f32.mrf.mxu0
        %v3721 = vadd.f32 %v3552, %v3720
        %3722 = vmatmul.bf16.gmra.mxu0 %v3206
        %v3723 = vpop.f32.mrf.mxu0
        %v3724 = vadd.f32 %v3555, %v3723
        %v3725 = vpop.f32.mrf.mxu0
        %v3726 = vadd.f32 %v3557, %v3725
        %3727 = vmatmul.bf16.gmra.mxu0 %v3208
        %v3728 = vpop.f32.mrf.mxu0
        %v3729 = vadd.f32 %v3560, %v3728
        %v3730 = vpop.f32.mrf.mxu0
        %v3731 = vadd.f32 %v3562, %v3730
        %3732 = vmatmul.bf16.gmra.mxu0 %v3210
        %v3733 = vpop.f32.mrf.mxu0
        %v3734 = vadd.f32 %v3565, %v3733
        %v3735 = vpop.f32.mrf.mxu0
        %v3736 = vadd.f32 %v3567, %v3735
        %3737 = vmatmul.bf16.gmra.mxu0 %v3212
        %v3738 = vpop.f32.mrf.mxu0
        %v3739 = vadd.f32 %v3570, %v3738
        %v3740 = vpop.f32.mrf.mxu0
        %v3741 = vadd.f32 %v3572, %v3740
        %3742 = vmatmul.bf16.gmra.mxu0 %v3214
        %v3743 = vpop.f32.mrf.mxu0
        %v3744 = vadd.f32 %v3575, %v3743
        %v3745 = vpop.f32.mrf.mxu0
        %v3746 = vadd.f32 %v3577, %v3745
        %3747 = vdwg.mxu0
        %3748 = vmatpush.bf16.msra.mxu0 %v3361
        %3749 = vmatpush.bf16.msra.mxu0 %v3359
        %3750 = vmatpush.bf16.msra.mxu0 %v3357
        %3751 = vmatpush.bf16.msra.mxu0 %v3355
        %3752 = vmatpush.bf16.msra.mxu0 %v3353
        %3753 = vmatpush.bf16.msra.mxu0 %v3351
        %3754 = vmatpush.bf16.msra.mxu0 %v3349
        %3755 = vmatpush.bf16.msra.mxu0 %v3347
        %3756 = vmatmul.bf16.gmra.mxu0 %v3151
        %v3757 = vpop.f32.mrf.mxu0
        %v3758 = vadd.f32 %v3249, %v3757
        %v3759 = vpop.f32.mrf.mxu0
        %v3760 = vadd.f32 %v3249, %v3759
        %3761 = vmatmul.bf16.gmra.mxu0 %v3153
        %v3762 = vpop.f32.mrf.mxu0
        %v3763 = vadd.f32 %v3249, %v3762
        %v3764 = vpop.f32.mrf.mxu0
        %v3765 = vadd.f32 %v3249, %v3764
        %3766 = vmatmul.bf16.gmra.mxu0 %v3155
        %v3767 = vpop.f32.mrf.mxu0
        %v3768 = vadd.f32 %v3249, %v3767
        %v3769 = vpop.f32.mrf.mxu0
        %v3770 = vadd.f32 %v3249, %v3769
        %3771 = vmatmul.bf16.gmra.mxu0 %v3157
        %v3772 = vpop.f32.mrf.mxu0
        %v3773 = vadd.f32 %v3249, %v3772
        %v3774 = vpop.f32.mrf.mxu0
        %v3775 = vadd.f32 %v3249, %v3774
        %3776 = vmatmul.bf16.gmra.mxu0 %v3159
        %v3777 = vpop.f32.mrf.mxu0
        %v3778 = vadd.f32 %v3249, %v3777
        %v3779 = vpop.f32.mrf.mxu0
        %v3780 = vadd.f32 %v3249, %v3779
        %3781 = vmatmul.bf16.gmra.mxu0 %v3161
        %v3782 = vpop.f32.mrf.mxu0
        %v3783 = vadd.f32 %v3249, %v3782
        %v3784 = vpop.f32.mrf.mxu0
        %v3785 = vadd.f32 %v3249, %v3784
        %3786 = vmatmul.bf16.gmra.mxu0 %v3163
        %v3787 = vpop.f32.mrf.mxu0
        %v3788 = vadd.f32 %v3249, %v3787
        %v3789 = vpop.f32.mrf.mxu0
        %v3790 = vadd.f32 %v3249, %v3789
        %3791 = vmatmul.bf16.gmra.mxu0 %v3165
        %v3792 = vpop.f32.mrf.mxu0
        %v3793 = vadd.f32 %v3249, %v3792
        %v3794 = vpop.f32.mrf.mxu0
        %v3795 = vadd.f32 %v3249, %v3794
        %3796 = vmatmul.bf16.gmra.mxu0 %v3167
        %v3797 = vpop.f32.mrf.mxu0
        %v3798 = vadd.f32 %v3249, %v3797
        %v3799 = vpop.f32.mrf.mxu0
        %v3800 = vadd.f32 %v3249, %v3799
        %3801 = vmatmul.bf16.gmra.mxu0 %v3169
        %v3802 = vpop.f32.mrf.mxu0
        %v3803 = vadd.f32 %v3249, %v3802
        %v3804 = vpop.f32.mrf.mxu0
        %v3805 = vadd.f32 %v3249, %v3804
        %3806 = vmatmul.bf16.gmra.mxu0 %v3171
        %v3807 = vpop.f32.mrf.mxu0
        %v3808 = vadd.f32 %v3249, %v3807
        %v3809 = vpop.f32.mrf.mxu0
        %v3810 = vadd.f32 %v3249, %v3809
        %3811 = vmatmul.bf16.gmra.mxu0 %v3173
        %v3812 = vpop.f32.mrf.mxu0
        %v3813 = vadd.f32 %v3249, %v3812
        %v3814 = vpop.f32.mrf.mxu0
        %v3815 = vadd.f32 %v3249, %v3814
        %3816 = vmatmul.bf16.gmra.mxu0 %v3175
        %v3817 = vpop.f32.mrf.mxu0
        %v3818 = vadd.f32 %v3249, %v3817
        %v3819 = vpop.f32.mrf.mxu0
        %v3820 = vadd.f32 %v3249, %v3819
        %3821 = vmatmul.bf16.gmra.mxu0 %v3177
        %v3822 = vpop.f32.mrf.mxu0
        %v3823 = vadd.f32 %v3249, %v3822
        %v3824 = vpop.f32.mrf.mxu0
        %v3825 = vadd.f32 %v3249, %v3824
        %3826 = vmatmul.bf16.gmra.mxu0 %v3179
        %v3827 = vpop.f32.mrf.mxu0
        %v3828 = vadd.f32 %v3249, %v3827
        %v3829 = vpop.f32.mrf.mxu0
        %v3830 = vadd.f32 %v3249, %v3829
        %3831 = vmatmul.bf16.gmra.mxu0 %v3181
        %v3832 = vpop.f32.mrf.mxu0
        %v3833 = vadd.f32 %v3249, %v3832
        %v3834 = vpop.f32.mrf.mxu0
        %v3835 = vadd.f32 %v3249, %v3834
        %3836 = vmatmul.bf16.gmra.mxu0 %v3183
        %v3837 = vpop.f32.mrf.mxu0
        %v3838 = vadd.f32 %v3249, %v3837
        %v3839 = vpop.f32.mrf.mxu0
        %v3840 = vadd.f32 %v3249, %v3839
        %3841 = vmatmul.bf16.gmra.mxu0 %v3185
        %v3842 = vpop.f32.mrf.mxu0
        %v3843 = vadd.f32 %v3249, %v3842
        %v3844 = vpop.f32.mrf.mxu0
        %v3845 = vadd.f32 %v3249, %v3844
        %3846 = vmatmul.bf16.gmra.mxu0 %v3187
        %v3847 = vpop.f32.mrf.mxu0
        %v3848 = vadd.f32 %v3249, %v3847
        %v3849 = vpop.f32.mrf.mxu0
        %v3850 = vadd.f32 %v3249, %v3849
        %3851 = vmatmul.bf16.gmra.mxu0 %v3189
        %v3852 = vpop.f32.mrf.mxu0
        %v3853 = vadd.f32 %v3249, %v3852
        %v3854 = vpop.f32.mrf.mxu0
        %v3855 = vadd.f32 %v3249, %v3854
        %3856 = vmatmul.bf16.gmra.mxu0 %v3191
        %v3857 = vpop.f32.mrf.mxu0
        %v3858 = vadd.f32 %v3249, %v3857
        %v3859 = vpop.f32.mrf.mxu0
        %v3860 = vadd.f32 %v3249, %v3859
        %3861 = vmatmul.bf16.gmra.mxu0 %v3193
        %v3862 = vpop.f32.mrf.mxu0
        %v3863 = vadd.f32 %v3249, %v3862
        %v3864 = vpop.f32.mrf.mxu0
        %v3865 = vadd.f32 %v3249, %v3864
        %3866 = vmatmul.bf16.gmra.mxu0 %v3195
        %v3867 = vpop.f32.mrf.mxu0
        %v3868 = vadd.f32 %v3249, %v3867
        %v3869 = vpop.f32.mrf.mxu0
        %v3870 = vadd.f32 %v3249, %v3869
        %3871 = vmatmul.bf16.gmra.mxu0 %v3197
        %v3872 = vpop.f32.mrf.mxu0
        %v3873 = vadd.f32 %v3249, %v3872
        %v3874 = vpop.f32.mrf.mxu0
        %v3875 = vadd.f32 %v3249, %v3874
        %3876 = vmatmul.bf16.gmra.mxu0 %v3199
        %v3877 = vpop.f32.mrf.mxu0
        %v3878 = vadd.f32 %v3249, %v3877
        %v3879 = vpop.f32.mrf.mxu0
        %v3880 = vadd.f32 %v3249, %v3879
        %3881 = vmatmul.bf16.gmra.mxu0 %v3201
        %v3882 = vpop.f32.mrf.mxu0
        %v3883 = vadd.f32 %v3249, %v3882
        %v3884 = vpop.f32.mrf.mxu0
        %v3885 = vadd.f32 %v3249, %v3884
        %3886 = vmatmul.bf16.gmra.mxu0 %v3203
        %v3887 = vpop.f32.mrf.mxu0
        %v3888 = vadd.f32 %v3249, %v3887
        %v3889 = vpop.f32.mrf.mxu0
        %v3890 = vadd.f32 %v3249, %v3889
        %3891 = vmatmul.bf16.gmra.mxu0 %v3205
        %v3892 = vpop.f32.mrf.mxu0
        %v3893 = vadd.f32 %v3249, %v3892
        %v3894 = vpop.f32.mrf.mxu0
        %v3895 = vadd.f32 %v3249, %v3894
        %3896 = vmatmul.bf16.gmra.mxu0 %v3207
        %v3897 = vpop.f32.mrf.mxu0
        %v3898 = vadd.f32 %v3249, %v3897
        %v3899 = vpop.f32.mrf.mxu0
        %v3900 = vadd.f32 %v3249, %v3899
        %3901 = vmatmul.bf16.gmra.mxu0 %v3209
        %v3902 = vpop.f32.mrf.mxu0
        %v3903 = vadd.f32 %v3249, %v3902
        %v3904 = vpop.f32.mrf.mxu0
        %v3905 = vadd.f32 %v3249, %v3904
        %3906 = vmatmul.bf16.gmra.mxu0 %v3211
        %v3907 = vpop.f32.mrf.mxu0
        %v3908 = vadd.f32 %v3249, %v3907
        %v3909 = vpop.f32.mrf.mxu0
        %v3910 = vadd.f32 %v3249, %v3909
        %3911 = vmatmul.bf16.gmra.mxu0 %v3213
        %v3912 = vpop.f32.mrf.mxu0
        %v3913 = vadd.f32 %v3249, %v3912
        %v3914 = vpop.f32.mrf.mxu0
        %v3915 = vadd.f32 %v3249, %v3914
        %3916 = vdwg.mxu0
        %3917 = vmatpush.bf16.msra.mxu0 %v3377
        %3918 = vmatpush.bf16.msra.mxu0 %v3375
        %3919 = vmatpush.bf16.msra.mxu0 %v3373
        %3920 = vmatpush.bf16.msra.mxu0 %v3371
        %3921 = vmatpush.bf16.msra.mxu0 %v3369
        %3922 = vmatpush.bf16.msra.mxu0 %v3367
        %3923 = vmatpush.bf16.msra.mxu0 %v3365
        %3924 = vmatpush.bf16.msra.mxu0 %v3363
        %3925 = vmatmul.bf16.gmra.mxu0 %v3152
        %v3926 = vpop.f32.mrf.mxu0
        %v3927 = vadd.f32 %v3758, %v3926
        %v3928 = vpop.f32.mrf.mxu0
        %v3929 = vadd.f32 %v3760, %v3928
        %3930 = vmatmul.bf16.gmra.mxu0 %v3154
        %v3931 = vpop.f32.mrf.mxu0
        %v3932 = vadd.f32 %v3763, %v3931
        %v3933 = vpop.f32.mrf.mxu0
        %v3934 = vadd.f32 %v3765, %v3933
        %3935 = vmatmul.bf16.gmra.mxu0 %v3156
        %v3936 = vpop.f32.mrf.mxu0
        %v3937 = vadd.f32 %v3768, %v3936
        %v3938 = vpop.f32.mrf.mxu0
        %v3939 = vadd.f32 %v3770, %v3938
        %3940 = vmatmul.bf16.gmra.mxu0 %v3158
        %v3941 = vpop.f32.mrf.mxu0
        %v3942 = vadd.f32 %v3773, %v3941
        %v3943 = vpop.f32.mrf.mxu0
        %v3944 = vadd.f32 %v3775, %v3943
        %3945 = vmatmul.bf16.gmra.mxu0 %v3160
        %v3946 = vpop.f32.mrf.mxu0
        %v3947 = vadd.f32 %v3778, %v3946
        %v3948 = vpop.f32.mrf.mxu0
        %v3949 = vadd.f32 %v3780, %v3948
        %3950 = vmatmul.bf16.gmra.mxu0 %v3162
        %v3951 = vpop.f32.mrf.mxu0
        %v3952 = vadd.f32 %v3783, %v3951
        %v3953 = vpop.f32.mrf.mxu0
        %v3954 = vadd.f32 %v3785, %v3953
        %3955 = vmatmul.bf16.gmra.mxu0 %v3164
        %v3956 = vpop.f32.mrf.mxu0
        %v3957 = vadd.f32 %v3788, %v3956
        %v3958 = vpop.f32.mrf.mxu0
        %v3959 = vadd.f32 %v3790, %v3958
        %3960 = vmatmul.bf16.gmra.mxu0 %v3166
        %v3961 = vpop.f32.mrf.mxu0
        %v3962 = vadd.f32 %v3793, %v3961
        %v3963 = vpop.f32.mrf.mxu0
        %v3964 = vadd.f32 %v3795, %v3963
        %3965 = vmatmul.bf16.gmra.mxu0 %v3168
        %v3966 = vpop.f32.mrf.mxu0
        %v3967 = vadd.f32 %v3798, %v3966
        %v3968 = vpop.f32.mrf.mxu0
        %v3969 = vadd.f32 %v3800, %v3968
        %3970 = vmatmul.bf16.gmra.mxu0 %v3170
        %v3971 = vpop.f32.mrf.mxu0
        %v3972 = vadd.f32 %v3803, %v3971
        %v3973 = vpop.f32.mrf.mxu0
        %v3974 = vadd.f32 %v3805, %v3973
        %3975 = vmatmul.bf16.gmra.mxu0 %v3172
        %v3976 = vpop.f32.mrf.mxu0
        %v3977 = vadd.f32 %v3808, %v3976
        %v3978 = vpop.f32.mrf.mxu0
        %v3979 = vadd.f32 %v3810, %v3978
        %3980 = vmatmul.bf16.gmra.mxu0 %v3174
        %v3981 = vpop.f32.mrf.mxu0
        %v3982 = vadd.f32 %v3813, %v3981
        %v3983 = vpop.f32.mrf.mxu0
        %v3984 = vadd.f32 %v3815, %v3983
        %3985 = vmatmul.bf16.gmra.mxu0 %v3176
        %v3986 = vpop.f32.mrf.mxu0
        %v3987 = vadd.f32 %v3818, %v3986
        %v3988 = vpop.f32.mrf.mxu0
        %v3989 = vadd.f32 %v3820, %v3988
        %3990 = vmatmul.bf16.gmra.mxu0 %v3178
        %v3991 = vpop.f32.mrf.mxu0
        %v3992 = vadd.f32 %v3823, %v3991
        %v3993 = vpop.f32.mrf.mxu0
        %v3994 = vadd.f32 %v3825, %v3993
        %3995 = vmatmul.bf16.gmra.mxu0 %v3180
        %v3996 = vpop.f32.mrf.mxu0
        %v3997 = vadd.f32 %v3828, %v3996
        %v3998 = vpop.f32.mrf.mxu0
        %v3999 = vadd.f32 %v3830, %v3998
        %4000 = vmatmul.bf16.gmra.mxu0 %v3182
        %v4001 = vpop.f32.mrf.mxu0
        %v4002 = vadd.f32 %v3833, %v4001
        %v4003 = vpop.f32.mrf.mxu0
        %v4004 = vadd.f32 %v3835, %v4003
        %4005 = vmatmul.bf16.gmra.mxu0 %v3184
        %v4006 = vpop.f32.mrf.mxu0
        %v4007 = vadd.f32 %v3838, %v4006
        %v4008 = vpop.f32.mrf.mxu0
        %v4009 = vadd.f32 %v3840, %v4008
        %4010 = vmatmul.bf16.gmra.mxu0 %v3186
        %v4011 = vpop.f32.mrf.mxu0
        %v4012 = vadd.f32 %v3843, %v4011
        %v4013 = vpop.f32.mrf.mxu0
        %v4014 = vadd.f32 %v3845, %v4013
        %4015 = vmatmul.bf16.gmra.mxu0 %v3188
        %v4016 = vpop.f32.mrf.mxu0
        %v4017 = vadd.f32 %v3848, %v4016
        %v4018 = vpop.f32.mrf.mxu0
        %v4019 = vadd.f32 %v3850, %v4018
        %4020 = vmatmul.bf16.gmra.mxu0 %v3190
        %v4021 = vpop.f32.mrf.mxu0
        %v4022 = vadd.f32 %v3853, %v4021
        %v4023 = vpop.f32.mrf.mxu0
        %v4024 = vadd.f32 %v3855, %v4023
        %4025 = vmatmul.bf16.gmra.mxu0 %v3192
        %v4026 = vpop.f32.mrf.mxu0
        %v4027 = vadd.f32 %v3858, %v4026
        %v4028 = vpop.f32.mrf.mxu0
        %v4029 = vadd.f32 %v3860, %v4028
        %4030 = vmatmul.bf16.gmra.mxu0 %v3194
        %v4031 = vpop.f32.mrf.mxu0
        %v4032 = vadd.f32 %v3863, %v4031
        %v4033 = vpop.f32.mrf.mxu0
        %v4034 = vadd.f32 %v3865, %v4033
        %4035 = vmatmul.bf16.gmra.mxu0 %v3196
        %v4036 = vpop.f32.mrf.mxu0
        %v4037 = vadd.f32 %v3868, %v4036
        %v4038 = vpop.f32.mrf.mxu0
        %v4039 = vadd.f32 %v3870, %v4038
        %4040 = vmatmul.bf16.gmra.mxu0 %v3198
        %v4041 = vpop.f32.mrf.mxu0
        %v4042 = vadd.f32 %v3873, %v4041
        %v4043 = vpop.f32.mrf.mxu0
        %v4044 = vadd.f32 %v3875, %v4043
        %4045 = vmatmul.bf16.gmra.mxu0 %v3200
        %v4046 = vpop.f32.mrf.mxu0
        %v4047 = vadd.f32 %v3878, %v4046
        %v4048 = vpop.f32.mrf.mxu0
        %v4049 = vadd.f32 %v3880, %v4048
        %4050 = vmatmul.bf16.gmra.mxu0 %v3202
        %v4051 = vpop.f32.mrf.mxu0
        %v4052 = vadd.f32 %v3883, %v4051
        %v4053 = vpop.f32.mrf.mxu0
        %v4054 = vadd.f32 %v3885, %v4053
        %4055 = vmatmul.bf16.gmra.mxu0 %v3204
        %v4056 = vpop.f32.mrf.mxu0
        %v4057 = vadd.f32 %v3888, %v4056
        %v4058 = vpop.f32.mrf.mxu0
        %v4059 = vadd.f32 %v3890, %v4058
        %4060 = vmatmul.bf16.gmra.mxu0 %v3206
        %v4061 = vpop.f32.mrf.mxu0
        %v4062 = vadd.f32 %v3893, %v4061
        %v4063 = vpop.f32.mrf.mxu0
        %v4064 = vadd.f32 %v3895, %v4063
        %4065 = vmatmul.bf16.gmra.mxu0 %v3208
        %v4066 = vpop.f32.mrf.mxu0
        %v4067 = vadd.f32 %v3898, %v4066
        %v4068 = vpop.f32.mrf.mxu0
        %v4069 = vadd.f32 %v3900, %v4068
        %4070 = vmatmul.bf16.gmra.mxu0 %v3210
        %v4071 = vpop.f32.mrf.mxu0
        %v4072 = vadd.f32 %v3903, %v4071
        %v4073 = vpop.f32.mrf.mxu0
        %v4074 = vadd.f32 %v3905, %v4073
        %4075 = vmatmul.bf16.gmra.mxu0 %v3212
        %v4076 = vpop.f32.mrf.mxu0
        %v4077 = vadd.f32 %v3908, %v4076
        %v4078 = vpop.f32.mrf.mxu0
        %v4079 = vadd.f32 %v3910, %v4078
        %4080 = vmatmul.bf16.gmra.mxu0 %v3214
        %v4081 = vpop.f32.mrf.mxu0
        %v4082 = vadd.f32 %v3913, %v4081
        %v4083 = vpop.f32.mrf.mxu0
        %v4084 = vadd.f32 %v3915, %v4083
        %4085 = vdwg.mxu0
        %v4086 = vmax.f32 %v3589, 0.0
        %v4087 = vmax.f32 %v3927, 0.0
        %v4088 = vmax.f32 %v3591, 0.0
        %v4089 = vmax.f32 %v3929, 0.0
        %v4090 = vmax.f32 %v3594, 0.0
        %v4091 = vmax.f32 %v3932, 0.0
        %v4092 = vmax.f32 %v3596, 0.0
        %v4093 = vmax.f32 %v3934, 0.0
        %v4094 = vmax.f32 %v3599, 0.0
        %v4095 = vmax.f32 %v3937, 0.0
        %v4096 = vmax.f32 %v3601, 0.0
        %v4097 = vmax.f32 %v3939, 0.0
        %v4098 = vmax.f32 %v3604, 0.0
        %v4099 = vmax.f32 %v3942, 0.0
        %v4100 = vmax.f32 %v3606, 0.0
        %v4101 = vmax.f32 %v3944, 0.0
        %v4102 = vmax.f32 %v3609, 0.0
        %v4103 = vmax.f32 %v3947, 0.0
        %v4104 = vmax.f32 %v3611, 0.0
        %v4105 = vmax.f32 %v3949, 0.0
        %v4106 = vmax.f32 %v3614, 0.0
        %v4107 = vmax.f32 %v3952, 0.0
        %v4108 = vmax.f32 %v3616, 0.0
        %v4109 = vmax.f32 %v3954, 0.0
        %v4110 = vmax.f32 %v3619, 0.0
        %v4111 = vmax.f32 %v3957, 0.0
        %v4112 = vmax.f32 %v3621, 0.0
        %v4113 = vmax.f32 %v3959, 0.0
        %v4114 = vmax.f32 %v3624, 0.0
        %v4115 = vmax.f32 %v3962, 0.0
        %v4116 = vmax.f32 %v3626, 0.0
        %v4117 = vmax.f32 %v3964, 0.0
        %v4118 = vmax.f32 %v3629, 0.0
        %v4119 = vmax.f32 %v3967, 0.0
        %v4120 = vmax.f32 %v3631, 0.0
        %v4121 = vmax.f32 %v3969, 0.0
        %v4122 = vmax.f32 %v3634, 0.0
        %v4123 = vmax.f32 %v3972, 0.0
        %v4124 = vmax.f32 %v3636, 0.0
        %v4125 = vmax.f32 %v3974, 0.0
        %v4126 = vmax.f32 %v3639, 0.0
        %v4127 = vmax.f32 %v3977, 0.0
        %v4128 = vmax.f32 %v3641, 0.0
        %v4129 = vmax.f32 %v3979, 0.0
        %v4130 = vmax.f32 %v3644, 0.0
        %v4131 = vmax.f32 %v3982, 0.0
        %v4132 = vmax.f32 %v3646, 0.0
        %v4133 = vmax.f32 %v3984, 0.0
        %v4134 = vmax.f32 %v3649, 0.0
        %v4135 = vmax.f32 %v3987, 0.0
        %v4136 = vmax.f32 %v3651, 0.0
        %v4137 = vmax.f32 %v3989, 0.0
        %v4138 = vmax.f32 %v3654, 0.0
        %v4139 = vmax.f32 %v3992, 0.0
        %v4140 = vmax.f32 %v3656, 0.0
        %v4141 = vmax.f32 %v3994, 0.0
        %v4142 = vmax.f32 %v3659, 0.0
        %v4143 = vmax.f32 %v3997, 0.0
        %v4144 = vmax.f32 %v3661, 0.0
        %v4145 = vmax.f32 %v3999, 0.0
        %v4146 = vmax.f32 %v3664, 0.0
        %v4147 = vmax.f32 %v4002, 0.0
        %v4148 = vmax.f32 %v3666, 0.0
        %v4149 = vmax.f32 %v4004, 0.0
        %v4150 = vmax.f32 %v3669, 0.0
        %v4151 = vmax.f32 %v4007, 0.0
        %v4152 = vmax.f32 %v3671, 0.0
        %v4153 = vmax.f32 %v4009, 0.0
        %v4154 = vmax.f32 %v3674, 0.0
        %v4155 = vmax.f32 %v4012, 0.0
        %v4156 = vmax.f32 %v3676, 0.0
        %v4157 = vmax.f32 %v4014, 0.0
        %v4158 = vmax.f32 %v3679, 0.0
        %v4159 = vmax.f32 %v4017, 0.0
        %v4160 = vmax.f32 %v3681, 0.0
        %v4161 = vmax.f32 %v4019, 0.0
        %v4162 = vmax.f32 %v3684, 0.0
        %v4163 = vmax.f32 %v4022, 0.0
        %v4164 = vmax.f32 %v3686, 0.0
        %v4165 = vmax.f32 %v4024, 0.0
        %v4166 = vmax.f32 %v3689, 0.0
        %v4167 = vmax.f32 %v4027, 0.0
        %v4168 = vmax.f32 %v3691, 0.0
        %v4169 = vmax.f32 %v4029, 0.0
        %v4170 = vmax.f32 %v3694, 0.0
        %v4171 = vmax.f32 %v4032, 0.0
        %v4172 = vmax.f32 %v3696, 0.0
        %v4173 = vmax.f32 %v4034, 0.0
        %v4174 = vmax.f32 %v3699, 0.0
        %v4175 = vmax.f32 %v4037, 0.0
        %v4176 = vmax.f32 %v3701, 0.0
        %v4177 = vmax.f32 %v4039, 0.0
        %v4178 = vmax.f32 %v3704, 0.0
        %v4179 = vmax.f32 %v4042, 0.0
        %v4180 = vmax.f32 %v3706, 0.0
        %v4181 = vmax.f32 %v4044, 0.0
        %v4182 = vmax.f32 %v3709, 0.0
        %v4183 = vmax.f32 %v4047, 0.0
        %v4184 = vmax.f32 %v3711, 0.0
        %v4185 = vmax.f32 %v4049, 0.0
        %v4186 = vmax.f32 %v3714, 0.0
        %v4187 = vmax.f32 %v4052, 0.0
        %v4188 = vmax.f32 %v3716, 0.0
        %v4189 = vmax.f32 %v4054, 0.0
        %v4190 = vmax.f32 %v3719, 0.0
        %v4191 = vmax.f32 %v4057, 0.0
        %v4192 = vmax.f32 %v3721, 0.0
        %v4193 = vmax.f32 %v4059, 0.0
        %v4194 = vmax.f32 %v3724, 0.0
        %v4195 = vmax.f32 %v4062, 0.0
        %v4196 = vmax.f32 %v3726, 0.0
        %v4197 = vmax.f32 %v4064, 0.0
        %v4198 = vmax.f32 %v3729, 0.0
        %v4199 = vmax.f32 %v4067, 0.0
        %v4200 = vmax.f32 %v3731, 0.0
        %v4201 = vmax.f32 %v4069, 0.0
        %v4202 = vmax.f32 %v3734, 0.0
        %v4203 = vmax.f32 %v4072, 0.0
        %v4204 = vmax.f32 %v3736, 0.0
        %v4205 = vmax.f32 %v4074, 0.0
        %v4206 = vmax.f32 %v3739, 0.0
        %v4207 = vmax.f32 %v4077, 0.0
        %v4208 = vmax.f32 %v3741, 0.0
        %v4209 = vmax.f32 %v4079, 0.0
        %v4210 = vmax.f32 %v3744, 0.0
        %v4211 = vmax.f32 %v4082, 0.0
        %v4212 = vmax.f32 %v3746, 0.0
        %v4213 = vmax.f32 %v4084, 0.0
        %v4214 = vpack.c.bf16 %v4088, %v4086
        %v4215 = vpack.c.bf16 %v4089, %v4087
        %v4216 = vpack.c.bf16 %v4092, %v4090
        %v4217 = vpack.c.bf16 %v4093, %v4091
        %v4218 = vpack.c.bf16 %v4096, %v4094
        %v4219 = vpack.c.bf16 %v4097, %v4095
        %v4220 = vpack.c.bf16 %v4100, %v4098
        %v4221 = vpack.c.bf16 %v4101, %v4099
        %v4222 = vpack.c.bf16 %v4104, %v4102
        %v4223 = vpack.c.bf16 %v4105, %v4103
        %v4224 = vpack.c.bf16 %v4108, %v4106
        %v4225 = vpack.c.bf16 %v4109, %v4107
        %v4226 = vpack.c.bf16 %v4112, %v4110
        %v4227 = vpack.c.bf16 %v4113, %v4111
        %v4228 = vpack.c.bf16 %v4116, %v4114
        %v4229 = vpack.c.bf16 %v4117, %v4115
        %v4230 = vpack.c.bf16 %v4120, %v4118
        %v4231 = vpack.c.bf16 %v4121, %v4119
        %v4232 = vpack.c.bf16 %v4124, %v4122
        %v4233 = vpack.c.bf16 %v4125, %v4123
        %v4234 = vpack.c.bf16 %v4128, %v4126
        %v4235 = vpack.c.bf16 %v4129, %v4127
        %v4236 = vpack.c.bf16 %v4132, %v4130
        %v4237 = vpack.c.bf16 %v4133, %v4131
        %v4238 = vpack.c.bf16 %v4136, %v4134
        %v4239 = vpack.c.bf16 %v4137, %v4135
        %v4240 = vpack.c.bf16 %v4140, %v4138
        %v4241 = vpack.c.bf16 %v4141, %v4139
        %v4242 = vpack.c.bf16 %v4144, %v4142
        %v4243 = vpack.c.bf16 %v4145, %v4143
        %v4244 = vpack.c.bf16 %v4148, %v4146
        %v4245 = vpack.c.bf16 %v4149, %v4147
        %v4246 = vpack.c.bf16 %v4152, %v4150
        %v4247 = vpack.c.bf16 %v4153, %v4151
        %v4248 = vpack.c.bf16 %v4156, %v4154
        %v4249 = vpack.c.bf16 %v4157, %v4155
        %v4250 = vpack.c.bf16 %v4160, %v4158
        %v4251 = vpack.c.bf16 %v4161, %v4159
        %v4252 = vpack.c.bf16 %v4164, %v4162
        %v4253 = vpack.c.bf16 %v4165, %v4163
        %v4254 = vpack.c.bf16 %v4168, %v4166
        %v4255 = vpack.c.bf16 %v4169, %v4167
        %v4256 = vpack.c.bf16 %v4172, %v4170
        %v4257 = vpack.c.bf16 %v4173, %v4171
        %v4258 = vpack.c.bf16 %v4176, %v4174
        %v4259 = vpack.c.bf16 %v4177, %v4175
        %v4260 = vpack.c.bf16 %v4180, %v4178
        %v4261 = vpack.c.bf16 %v4181, %v4179
        %v4262 = vpack.c.bf16 %v4184, %v4182
        %v4263 = vpack.c.bf16 %v4185, %v4183
        %v4264 = vpack.c.bf16 %v4188, %v4186
        %v4265 = vpack.c.bf16 %v4189, %v4187
        %v4266 = vpack.c.bf16 %v4192, %v4190
        %v4267 = vpack.c.bf16 %v4193, %v4191
        %v4268 = vpack.c.bf16 %v4196, %v4194
        %v4269 = vpack.c.bf16 %v4197, %v4195
        %v4270 = vpack.c.bf16 %v4200, %v4198
        %v4271 = vpack.c.bf16 %v4201, %v4199
        %v4272 = vpack.c.bf16 %v4204, %v4202
        %v4273 = vpack.c.bf16 %v4205, %v4203
        %v4274 = vpack.c.bf16 %v4208, %v4206
        %v4275 = vpack.c.bf16 %v4209, %v4207
        %v4276 = vpack.c.bf16 %v4212, %v4210
        %v4277 = vpack.c.bf16 %v4213, %v4211
        %s4278 = scalar_lea.vmem [#allocation2], 512
        %v4279 = vld [vmem:[%s4278] sm:$0xff]
        %v4280 = vld [vmem:[%s4278 + $0x8] sm:$0xff]
        %v4281 = vld [vmem:[%s4278 + $0x10] sm:$0xff]
        %v4282 = vld [vmem:[%s4278 + $0x18] sm:$0xff]
        %v4283 = vld [vmem:[%s4278 + $0x20] sm:$0xff]
        %v4284 = vld [vmem:[%s4278 + $0x28] sm:$0xff]
        %v4285 = vld [vmem:[%s4278 + $0x30] sm:$0xff]
        %v4286 = vld [vmem:[%s4278 + $0x38] sm:$0xff]
        %v4287 = vld [vmem:[%s4278 + $0x40] sm:$0xff]
        %v4288 = vld [vmem:[%s4278 + $0x48] sm:$0xff]
        %v4289 = vld [vmem:[%s4278 + $0x50] sm:$0xff]
        %v4290 = vld [vmem:[%s4278 + $0x58] sm:$0xff]
        %v4291 = vld [vmem:[%s4278 + $0x60] sm:$0xff]
        %v4292 = vld [vmem:[%s4278 + $0x68] sm:$0xff]
        %v4293 = vld [vmem:[%s4278 + $0x70] sm:$0xff]
        %v4294 = vld [vmem:[%s4278 + $0x78] sm:$0xff]
        %v4295 = vld [vmem:[%s4278 + $0x80] sm:$0xff]
        %v4296 = vld [vmem:[%s4278 + $0x88] sm:$0xff]
        %v4297 = vld [vmem:[%s4278 + $0x90] sm:$0xff]
        %v4298 = vld [vmem:[%s4278 + $0x98] sm:$0xff]
        %v4299 = vld [vmem:[%s4278 + $0xa0] sm:$0xff]
        %v4300 = vld [vmem:[%s4278 + $0xa8] sm:$0xff]
        %v4301 = vld [vmem:[%s4278 + $0xb0] sm:$0xff]
        %v4302 = vld [vmem:[%s4278 + $0xb8] sm:$0xff]
        %v4303 = vld [vmem:[%s4278 + $0xc0] sm:$0xff]
        %v4304 = vld [vmem:[%s4278 + $0xc8] sm:$0xff]
        %v4305 = vld [vmem:[%s4278 + $0xd0] sm:$0xff]
        %v4306 = vld [vmem:[%s4278 + $0xd8] sm:$0xff]
        %v4307 = vld [vmem:[%s4278 + $0xe0] sm:$0xff]
        %v4308 = vld [vmem:[%s4278 + $0xe8] sm:$0xff]
        %v4309 = vld [vmem:[%s4278 + $0xf0] sm:$0xff]
        %v4310 = vld [vmem:[%s4278 + $0xf8] sm:$0xff]
        %v4311 = vperm.slane %v338, 3
        %v4312 = vperm.slane %v339, 3
        %v4345 = vunpack.c.l.b16 %v4279
        %v4346 = vunpack.c.h.b16 %v4279
        %v4347 = vunpack.c.l.b16 %v4280
        %v4348 = vunpack.c.h.b16 %v4280
        %v4349 = vunpack.c.l.b16 %v4281
        %v4350 = vunpack.c.h.b16 %v4281
        %v4351 = vunpack.c.l.b16 %v4282
        %v4352 = vunpack.c.h.b16 %v4282
        %v4353 = vunpack.c.l.b16 %v4283
        %v4354 = vunpack.c.h.b16 %v4283
        %v4355 = vunpack.c.l.b16 %v4284
        %v4356 = vunpack.c.h.b16 %v4284
        %v4357 = vunpack.c.l.b16 %v4285
        %v4358 = vunpack.c.h.b16 %v4285
        %v4359 = vunpack.c.l.b16 %v4286
        %v4360 = vunpack.c.h.b16 %v4286
        %v4361 = vunpack.c.l.b16 %v4287
        %v4362 = vunpack.c.h.b16 %v4287
        %v4363 = vunpack.c.l.b16 %v4288
        %v4364 = vunpack.c.h.b16 %v4288
        %v4365 = vunpack.c.l.b16 %v4289
        %v4366 = vunpack.c.h.b16 %v4289
        %v4367 = vunpack.c.l.b16 %v4290
        %v4368 = vunpack.c.h.b16 %v4290
        %v4369 = vunpack.c.l.b16 %v4291
        %v4370 = vunpack.c.h.b16 %v4291
        %v4371 = vunpack.c.l.b16 %v4292
        %v4372 = vunpack.c.h.b16 %v4292
        %v4373 = vunpack.c.l.b16 %v4293
        %v4374 = vunpack.c.h.b16 %v4293
        %v4375 = vunpack.c.l.b16 %v4294
        %v4376 = vunpack.c.h.b16 %v4294
        %v4377 = vunpack.c.l.b16 %v4295
        %v4378 = vunpack.c.h.b16 %v4295
        %v4379 = vunpack.c.l.b16 %v4296
        %v4380 = vunpack.c.h.b16 %v4296
        %v4381 = vunpack.c.l.b16 %v4297
        %v4382 = vunpack.c.h.b16 %v4297
        %v4383 = vunpack.c.l.b16 %v4298
        %v4384 = vunpack.c.h.b16 %v4298
        %v4385 = vunpack.c.l.b16 %v4299
        %v4386 = vunpack.c.h.b16 %v4299
        %v4387 = vunpack.c.l.b16 %v4300
        %v4388 = vunpack.c.h.b16 %v4300
        %v4389 = vunpack.c.l.b16 %v4301
        %v4390 = vunpack.c.h.b16 %v4301
        %v4391 = vunpack.c.l.b16 %v4302
        %v4392 = vunpack.c.h.b16 %v4302
        %v4393 = vunpack.c.l.b16 %v4303
        %v4394 = vunpack.c.h.b16 %v4303
        %v4395 = vunpack.c.l.b16 %v4304
        %v4396 = vunpack.c.h.b16 %v4304
        %v4397 = vunpack.c.l.b16 %v4305
        %v4398 = vunpack.c.h.b16 %v4305
        %v4399 = vunpack.c.l.b16 %v4306
        %v4400 = vunpack.c.h.b16 %v4306
        %v4401 = vunpack.c.l.b16 %v4307
        %v4402 = vunpack.c.h.b16 %v4307
        %v4403 = vunpack.c.l.b16 %v4308
        %v4404 = vunpack.c.h.b16 %v4308
        %v4405 = vunpack.c.l.b16 %v4309
        %v4406 = vunpack.c.h.b16 %v4309
        %v4407 = vunpack.c.l.b16 %v4310
        %v4408 = vunpack.c.h.b16 %v4310
        %v4409 = vpack.c.b16 %v4347, %v4345
        %v4410 = vpack.c.b16 %v4348, %v4346
        %v4411 = vpack.c.b16 %v4351, %v4349
        %v4412 = vpack.c.b16 %v4352, %v4350
        %v4413 = vpack.c.b16 %v4355, %v4353
        %v4414 = vpack.c.b16 %v4356, %v4354
        %v4415 = vpack.c.b16 %v4359, %v4357
        %v4416 = vpack.c.b16 %v4360, %v4358
        %v4417 = vpack.c.b16 %v4363, %v4361
        %v4418 = vpack.c.b16 %v4364, %v4362
        %v4419 = vpack.c.b16 %v4367, %v4365
        %v4420 = vpack.c.b16 %v4368, %v4366
        %v4421 = vpack.c.b16 %v4371, %v4369
        %v4422 = vpack.c.b16 %v4372, %v4370
        %v4423 = vpack.c.b16 %v4375, %v4373
        %v4424 = vpack.c.b16 %v4376, %v4374
        %v4425 = vpack.c.b16 %v4379, %v4377
        %v4426 = vpack.c.b16 %v4380, %v4378
        %v4427 = vpack.c.b16 %v4383, %v4381
        %v4428 = vpack.c.b16 %v4384, %v4382
        %v4429 = vpack.c.b16 %v4387, %v4385
        %v4430 = vpack.c.b16 %v4388, %v4386
        %v4431 = vpack.c.b16 %v4391, %v4389
        %v4432 = vpack.c.b16 %v4392, %v4390
        %v4433 = vpack.c.b16 %v4395, %v4393
        %v4434 = vpack.c.b16 %v4396, %v4394
        %v4435 = vpack.c.b16 %v4399, %v4397
        %v4436 = vpack.c.b16 %v4400, %v4398
        %v4437 = vpack.c.b16 %v4403, %v4401
        %v4438 = vpack.c.b16 %v4404, %v4402
        %v4439 = vpack.c.b16 %v4407, %v4405
        %v4440 = vpack.c.b16 %v4408, %v4406
        %4473 = vmatpush.bf16.msra.mxu0 %v4423
        %4474 = vmatpush.bf16.msra.mxu0 %v4421
        %4475 = vmatpush.bf16.msra.mxu0 %v4419
        %4476 = vmatpush.bf16.msra.mxu0 %v4417
        %4477 = vmatpush.bf16.msra.mxu0 %v4415
        %4478 = vmatpush.bf16.msra.mxu0 %v4413
        %4479 = vmatpush.bf16.msra.mxu0 %v4411
        %4480 = vmatpush.bf16.msra.mxu0 %v4409
        %4481 = vmatmul.bf16.gmra.mxu0 %v4214
        %v4482 = vpop.f32.mrf.mxu0
        %v4483 = vadd.f32 %v4311, %v4482
        %v4484 = vpop.f32.mrf.mxu0
        %v4485 = vadd.f32 %v4311, %v4484
        %4486 = vmatmul.bf16.gmra.mxu0 %v4216
        %v4487 = vpop.f32.mrf.mxu0
        %v4488 = vadd.f32 %v4311, %v4487
        %v4489 = vpop.f32.mrf.mxu0
        %v4490 = vadd.f32 %v4311, %v4489
        %4491 = vmatmul.bf16.gmra.mxu0 %v4218
        %v4492 = vpop.f32.mrf.mxu0
        %v4493 = vadd.f32 %v4311, %v4492
        %v4494 = vpop.f32.mrf.mxu0
        %v4495 = vadd.f32 %v4311, %v4494
        %4496 = vmatmul.bf16.gmra.mxu0 %v4220
        %v4497 = vpop.f32.mrf.mxu0
        %v4498 = vadd.f32 %v4311, %v4497
        %v4499 = vpop.f32.mrf.mxu0
        %v4500 = vadd.f32 %v4311, %v4499
        %4501 = vmatmul.bf16.gmra.mxu0 %v4222
        %v4502 = vpop.f32.mrf.mxu0
        %v4503 = vadd.f32 %v4311, %v4502
        %v4504 = vpop.f32.mrf.mxu0
        %v4505 = vadd.f32 %v4311, %v4504
        %4506 = vmatmul.bf16.gmra.mxu0 %v4224
        %v4507 = vpop.f32.mrf.mxu0
        %v4508 = vadd.f32 %v4311, %v4507
        %v4509 = vpop.f32.mrf.mxu0
        %v4510 = vadd.f32 %v4311, %v4509
        %4511 = vmatmul.bf16.gmra.mxu0 %v4226
        %v4512 = vpop.f32.mrf.mxu0
        %v4513 = vadd.f32 %v4311, %v4512
        %v4514 = vpop.f32.mrf.mxu0
        %v4515 = vadd.f32 %v4311, %v4514
        %4516 = vmatmul.bf16.gmra.mxu0 %v4228
        %v4517 = vpop.f32.mrf.mxu0
        %v4518 = vadd.f32 %v4311, %v4517
        %v4519 = vpop.f32.mrf.mxu0
        %v4520 = vadd.f32 %v4311, %v4519
        %4521 = vmatmul.bf16.gmra.mxu0 %v4230
        %v4522 = vpop.f32.mrf.mxu0
        %v4523 = vadd.f32 %v4311, %v4522
        %v4524 = vpop.f32.mrf.mxu0
        %v4525 = vadd.f32 %v4311, %v4524
        %4526 = vmatmul.bf16.gmra.mxu0 %v4232
        %v4527 = vpop.f32.mrf.mxu0
        %v4528 = vadd.f32 %v4311, %v4527
        %v4529 = vpop.f32.mrf.mxu0
        %v4530 = vadd.f32 %v4311, %v4529
        %4531 = vmatmul.bf16.gmra.mxu0 %v4234
        %v4532 = vpop.f32.mrf.mxu0
        %v4533 = vadd.f32 %v4311, %v4532
        %v4534 = vpop.f32.mrf.mxu0
        %v4535 = vadd.f32 %v4311, %v4534
        %4536 = vmatmul.bf16.gmra.mxu0 %v4236
        %v4537 = vpop.f32.mrf.mxu0
        %v4538 = vadd.f32 %v4311, %v4537
        %v4539 = vpop.f32.mrf.mxu0
        %v4540 = vadd.f32 %v4311, %v4539
        %4541 = vmatmul.bf16.gmra.mxu0 %v4238
        %v4542 = vpop.f32.mrf.mxu0
        %v4543 = vadd.f32 %v4311, %v4542
        %v4544 = vpop.f32.mrf.mxu0
        %v4545 = vadd.f32 %v4311, %v4544
        %4546 = vmatmul.bf16.gmra.mxu0 %v4240
        %v4547 = vpop.f32.mrf.mxu0
        %v4548 = vadd.f32 %v4311, %v4547
        %v4549 = vpop.f32.mrf.mxu0
        %v4550 = vadd.f32 %v4311, %v4549
        %4551 = vmatmul.bf16.gmra.mxu0 %v4242
        %v4552 = vpop.f32.mrf.mxu0
        %v4553 = vadd.f32 %v4311, %v4552
        %v4554 = vpop.f32.mrf.mxu0
        %v4555 = vadd.f32 %v4311, %v4554
        %4556 = vmatmul.bf16.gmra.mxu0 %v4244
        %v4557 = vpop.f32.mrf.mxu0
        %v4558 = vadd.f32 %v4311, %v4557
        %v4559 = vpop.f32.mrf.mxu0
        %v4560 = vadd.f32 %v4311, %v4559
        %4561 = vmatmul.bf16.gmra.mxu0 %v4246
        %v4562 = vpop.f32.mrf.mxu0
        %v4563 = vadd.f32 %v4311, %v4562
        %v4564 = vpop.f32.mrf.mxu0
        %v4565 = vadd.f32 %v4311, %v4564
        %4566 = vmatmul.bf16.gmra.mxu0 %v4248
        %v4567 = vpop.f32.mrf.mxu0
        %v4568 = vadd.f32 %v4311, %v4567
        %v4569 = vpop.f32.mrf.mxu0
        %v4570 = vadd.f32 %v4311, %v4569
        %4571 = vmatmul.bf16.gmra.mxu0 %v4250
        %v4572 = vpop.f32.mrf.mxu0
        %v4573 = vadd.f32 %v4311, %v4572
        %v4574 = vpop.f32.mrf.mxu0
        %v4575 = vadd.f32 %v4311, %v4574
        %4576 = vmatmul.bf16.gmra.mxu0 %v4252
        %v4577 = vpop.f32.mrf.mxu0
        %v4578 = vadd.f32 %v4311, %v4577
        %v4579 = vpop.f32.mrf.mxu0
        %v4580 = vadd.f32 %v4311, %v4579
        %4581 = vmatmul.bf16.gmra.mxu0 %v4254
        %v4582 = vpop.f32.mrf.mxu0
        %v4583 = vadd.f32 %v4311, %v4582
        %v4584 = vpop.f32.mrf.mxu0
        %v4585 = vadd.f32 %v4311, %v4584
        %4586 = vmatmul.bf16.gmra.mxu0 %v4256
        %v4587 = vpop.f32.mrf.mxu0
        %v4588 = vadd.f32 %v4311, %v4587
        %v4589 = vpop.f32.mrf.mxu0
        %v4590 = vadd.f32 %v4311, %v4589
        %4591 = vmatmul.bf16.gmra.mxu0 %v4258
        %v4592 = vpop.f32.mrf.mxu0
        %v4593 = vadd.f32 %v4311, %v4592
        %v4594 = vpop.f32.mrf.mxu0
        %v4595 = vadd.f32 %v4311, %v4594
        %4596 = vmatmul.bf16.gmra.mxu0 %v4260
        %v4597 = vpop.f32.mrf.mxu0
        %v4598 = vadd.f32 %v4311, %v4597
        %v4599 = vpop.f32.mrf.mxu0
        %v4600 = vadd.f32 %v4311, %v4599
        %4601 = vmatmul.bf16.gmra.mxu0 %v4262
        %v4602 = vpop.f32.mrf.mxu0
        %v4603 = vadd.f32 %v4311, %v4602
        %v4604 = vpop.f32.mrf.mxu0
        %v4605 = vadd.f32 %v4311, %v4604
        %4606 = vmatmul.bf16.gmra.mxu0 %v4264
        %v4607 = vpop.f32.mrf.mxu0
        %v4608 = vadd.f32 %v4311, %v4607
        %v4609 = vpop.f32.mrf.mxu0
        %v4610 = vadd.f32 %v4311, %v4609
        %4611 = vmatmul.bf16.gmra.mxu0 %v4266
        %v4612 = vpop.f32.mrf.mxu0
        %v4613 = vadd.f32 %v4311, %v4612
        %v4614 = vpop.f32.mrf.mxu0
        %v4615 = vadd.f32 %v4311, %v4614
        %4616 = vmatmul.bf16.gmra.mxu0 %v4268
        %v4617 = vpop.f32.mrf.mxu0
        %v4618 = vadd.f32 %v4311, %v4617
        %v4619 = vpop.f32.mrf.mxu0
        %v4620 = vadd.f32 %v4311, %v4619
        %4621 = vmatmul.bf16.gmra.mxu0 %v4270
        %v4622 = vpop.f32.mrf.mxu0
        %v4623 = vadd.f32 %v4311, %v4622
        %v4624 = vpop.f32.mrf.mxu0
        %v4625 = vadd.f32 %v4311, %v4624
        %4626 = vmatmul.bf16.gmra.mxu0 %v4272
        %v4627 = vpop.f32.mrf.mxu0
        %v4628 = vadd.f32 %v4311, %v4627
        %v4629 = vpop.f32.mrf.mxu0
        %v4630 = vadd.f32 %v4311, %v4629
        %4631 = vmatmul.bf16.gmra.mxu0 %v4274
        %v4632 = vpop.f32.mrf.mxu0
        %v4633 = vadd.f32 %v4311, %v4632
        %v4634 = vpop.f32.mrf.mxu0
        %v4635 = vadd.f32 %v4311, %v4634
        %4636 = vmatmul.bf16.gmra.mxu0 %v4276
        %v4637 = vpop.f32.mrf.mxu0
        %v4638 = vadd.f32 %v4311, %v4637
        %v4639 = vpop.f32.mrf.mxu0
        %v4640 = vadd.f32 %v4311, %v4639
        %4641 = vdwg.mxu0
        %4642 = vmatpush.bf16.msra.mxu0 %v4439
        %4643 = vmatpush.bf16.msra.mxu0 %v4437
        %4644 = vmatpush.bf16.msra.mxu0 %v4435
        %4645 = vmatpush.bf16.msra.mxu0 %v4433
        %4646 = vmatpush.bf16.msra.mxu0 %v4431
        %4647 = vmatpush.bf16.msra.mxu0 %v4429
        %4648 = vmatpush.bf16.msra.mxu0 %v4427
        %4649 = vmatpush.bf16.msra.mxu0 %v4425
        %4650 = vmatmul.bf16.gmra.mxu0 %v4215
        %v4651 = vpop.f32.mrf.mxu0
        %v4652 = vadd.f32 %v4483, %v4651
        %v4653 = vpop.f32.mrf.mxu0
        %v4654 = vadd.f32 %v4485, %v4653
        %4655 = vmatmul.bf16.gmra.mxu0 %v4217
        %v4656 = vpop.f32.mrf.mxu0
        %v4657 = vadd.f32 %v4488, %v4656
        %v4658 = vpop.f32.mrf.mxu0
        %v4659 = vadd.f32 %v4490, %v4658
        %4660 = vmatmul.bf16.gmra.mxu0 %v4219
        %v4661 = vpop.f32.mrf.mxu0
        %v4662 = vadd.f32 %v4493, %v4661
        %v4663 = vpop.f32.mrf.mxu0
        %v4664 = vadd.f32 %v4495, %v4663
        %4665 = vmatmul.bf16.gmra.mxu0 %v4221
        %v4666 = vpop.f32.mrf.mxu0
        %v4667 = vadd.f32 %v4498, %v4666
        %v4668 = vpop.f32.mrf.mxu0
        %v4669 = vadd.f32 %v4500, %v4668
        %4670 = vmatmul.bf16.gmra.mxu0 %v4223
        %v4671 = vpop.f32.mrf.mxu0
        %v4672 = vadd.f32 %v4503, %v4671
        %v4673 = vpop.f32.mrf.mxu0
        %v4674 = vadd.f32 %v4505, %v4673
        %4675 = vmatmul.bf16.gmra.mxu0 %v4225
        %v4676 = vpop.f32.mrf.mxu0
        %v4677 = vadd.f32 %v4508, %v4676
        %v4678 = vpop.f32.mrf.mxu0
        %v4679 = vadd.f32 %v4510, %v4678
        %4680 = vmatmul.bf16.gmra.mxu0 %v4227
        %v4681 = vpop.f32.mrf.mxu0
        %v4682 = vadd.f32 %v4513, %v4681
        %v4683 = vpop.f32.mrf.mxu0
        %v4684 = vadd.f32 %v4515, %v4683
        %4685 = vmatmul.bf16.gmra.mxu0 %v4229
        %v4686 = vpop.f32.mrf.mxu0
        %v4687 = vadd.f32 %v4518, %v4686
        %v4688 = vpop.f32.mrf.mxu0
        %v4689 = vadd.f32 %v4520, %v4688
        %4690 = vmatmul.bf16.gmra.mxu0 %v4231
        %v4691 = vpop.f32.mrf.mxu0
        %v4692 = vadd.f32 %v4523, %v4691
        %v4693 = vpop.f32.mrf.mxu0
        %v4694 = vadd.f32 %v4525, %v4693
        %4695 = vmatmul.bf16.gmra.mxu0 %v4233
        %v4696 = vpop.f32.mrf.mxu0
        %v4697 = vadd.f32 %v4528, %v4696
        %v4698 = vpop.f32.mrf.mxu0
        %v4699 = vadd.f32 %v4530, %v4698
        %4700 = vmatmul.bf16.gmra.mxu0 %v4235
        %v4701 = vpop.f32.mrf.mxu0
        %v4702 = vadd.f32 %v4533, %v4701
        %v4703 = vpop.f32.mrf.mxu0
        %v4704 = vadd.f32 %v4535, %v4703
        %4705 = vmatmul.bf16.gmra.mxu0 %v4237
        %v4706 = vpop.f32.mrf.mxu0
        %v4707 = vadd.f32 %v4538, %v4706
        %v4708 = vpop.f32.mrf.mxu0
        %v4709 = vadd.f32 %v4540, %v4708
        %4710 = vmatmul.bf16.gmra.mxu0 %v4239
        %v4711 = vpop.f32.mrf.mxu0
        %v4712 = vadd.f32 %v4543, %v4711
        %v4713 = vpop.f32.mrf.mxu0
        %v4714 = vadd.f32 %v4545, %v4713
        %4715 = vmatmul.bf16.gmra.mxu0 %v4241
        %v4716 = vpop.f32.mrf.mxu0
        %v4717 = vadd.f32 %v4548, %v4716
        %v4718 = vpop.f32.mrf.mxu0
        %v4719 = vadd.f32 %v4550, %v4718
        %4720 = vmatmul.bf16.gmra.mxu0 %v4243
        %v4721 = vpop.f32.mrf.mxu0
        %v4722 = vadd.f32 %v4553, %v4721
        %v4723 = vpop.f32.mrf.mxu0
        %v4724 = vadd.f32 %v4555, %v4723
        %4725 = vmatmul.bf16.gmra.mxu0 %v4245
        %v4726 = vpop.f32.mrf.mxu0
        %v4727 = vadd.f32 %v4558, %v4726
        %v4728 = vpop.f32.mrf.mxu0
        %v4729 = vadd.f32 %v4560, %v4728
        %4730 = vmatmul.bf16.gmra.mxu0 %v4247
        %v4731 = vpop.f32.mrf.mxu0
        %v4732 = vadd.f32 %v4563, %v4731
        %v4733 = vpop.f32.mrf.mxu0
        %v4734 = vadd.f32 %v4565, %v4733
        %4735 = vmatmul.bf16.gmra.mxu0 %v4249
        %v4736 = vpop.f32.mrf.mxu0
        %v4737 = vadd.f32 %v4568, %v4736
        %v4738 = vpop.f32.mrf.mxu0
        %v4739 = vadd.f32 %v4570, %v4738
        %4740 = vmatmul.bf16.gmra.mxu0 %v4251
        %v4741 = vpop.f32.mrf.mxu0
        %v4742 = vadd.f32 %v4573, %v4741
        %v4743 = vpop.f32.mrf.mxu0
        %v4744 = vadd.f32 %v4575, %v4743
        %4745 = vmatmul.bf16.gmra.mxu0 %v4253
        %v4746 = vpop.f32.mrf.mxu0
        %v4747 = vadd.f32 %v4578, %v4746
        %v4748 = vpop.f32.mrf.mxu0
        %v4749 = vadd.f32 %v4580, %v4748
        %4750 = vmatmul.bf16.gmra.mxu0 %v4255
        %v4751 = vpop.f32.mrf.mxu0
        %v4752 = vadd.f32 %v4583, %v4751
        %v4753 = vpop.f32.mrf.mxu0
        %v4754 = vadd.f32 %v4585, %v4753
        %4755 = vmatmul.bf16.gmra.mxu0 %v4257
        %v4756 = vpop.f32.mrf.mxu0
        %v4757 = vadd.f32 %v4588, %v4756
        %v4758 = vpop.f32.mrf.mxu0
        %v4759 = vadd.f32 %v4590, %v4758
        %4760 = vmatmul.bf16.gmra.mxu0 %v4259
        %v4761 = vpop.f32.mrf.mxu0
        %v4762 = vadd.f32 %v4593, %v4761
        %v4763 = vpop.f32.mrf.mxu0
        %v4764 = vadd.f32 %v4595, %v4763
        %4765 = vmatmul.bf16.gmra.mxu0 %v4261
        %v4766 = vpop.f32.mrf.mxu0
        %v4767 = vadd.f32 %v4598, %v4766
        %v4768 = vpop.f32.mrf.mxu0
        %v4769 = vadd.f32 %v4600, %v4768
        %4770 = vmatmul.bf16.gmra.mxu0 %v4263
        %v4771 = vpop.f32.mrf.mxu0
        %v4772 = vadd.f32 %v4603, %v4771
        %v4773 = vpop.f32.mrf.mxu0
        %v4774 = vadd.f32 %v4605, %v4773
        %4775 = vmatmul.bf16.gmra.mxu0 %v4265
        %v4776 = vpop.f32.mrf.mxu0
        %v4777 = vadd.f32 %v4608, %v4776
        %v4778 = vpop.f32.mrf.mxu0
        %v4779 = vadd.f32 %v4610, %v4778
        %4780 = vmatmul.bf16.gmra.mxu0 %v4267
        %v4781 = vpop.f32.mrf.mxu0
        %v4782 = vadd.f32 %v4613, %v4781
        %v4783 = vpop.f32.mrf.mxu0
        %v4784 = vadd.f32 %v4615, %v4783
        %4785 = vmatmul.bf16.gmra.mxu0 %v4269
        %v4786 = vpop.f32.mrf.mxu0
        %v4787 = vadd.f32 %v4618, %v4786
        %v4788 = vpop.f32.mrf.mxu0
        %v4789 = vadd.f32 %v4620, %v4788
        %4790 = vmatmul.bf16.gmra.mxu0 %v4271
        %v4791 = vpop.f32.mrf.mxu0
        %v4792 = vadd.f32 %v4623, %v4791
        %v4793 = vpop.f32.mrf.mxu0
        %v4794 = vadd.f32 %v4625, %v4793
        %4795 = vmatmul.bf16.gmra.mxu0 %v4273
        %v4796 = vpop.f32.mrf.mxu0
        %v4797 = vadd.f32 %v4628, %v4796
        %v4798 = vpop.f32.mrf.mxu0
        %v4799 = vadd.f32 %v4630, %v4798
        %4800 = vmatmul.bf16.gmra.mxu0 %v4275
        %v4801 = vpop.f32.mrf.mxu0
        %v4802 = vadd.f32 %v4633, %v4801
        %v4803 = vpop.f32.mrf.mxu0
        %v4804 = vadd.f32 %v4635, %v4803
        %4805 = vmatmul.bf16.gmra.mxu0 %v4277
        %v4806 = vpop.f32.mrf.mxu0
        %v4807 = vadd.f32 %v4638, %v4806
        %v4808 = vpop.f32.mrf.mxu0
        %v4809 = vadd.f32 %v4640, %v4808
        %4810 = vdwg.mxu0
        %4811 = vmatpush.bf16.msra.mxu0 %v4424
        %4812 = vmatpush.bf16.msra.mxu0 %v4422
        %4813 = vmatpush.bf16.msra.mxu0 %v4420
        %4814 = vmatpush.bf16.msra.mxu0 %v4418
        %4815 = vmatpush.bf16.msra.mxu0 %v4416
        %4816 = vmatpush.bf16.msra.mxu0 %v4414
        %4817 = vmatpush.bf16.msra.mxu0 %v4412
        %4818 = vmatpush.bf16.msra.mxu0 %v4410
        %4819 = vmatmul.bf16.gmra.mxu0 %v4214
        %v4820 = vpop.f32.mrf.mxu0
        %v4821 = vadd.f32 %v4312, %v4820
        %v4822 = vpop.f32.mrf.mxu0
        %v4823 = vadd.f32 %v4312, %v4822
        %4824 = vmatmul.bf16.gmra.mxu0 %v4216
        %v4825 = vpop.f32.mrf.mxu0
        %v4826 = vadd.f32 %v4312, %v4825
        %v4827 = vpop.f32.mrf.mxu0
        %v4828 = vadd.f32 %v4312, %v4827
        %4829 = vmatmul.bf16.gmra.mxu0 %v4218
        %v4830 = vpop.f32.mrf.mxu0
        %v4831 = vadd.f32 %v4312, %v4830
        %v4832 = vpop.f32.mrf.mxu0
        %v4833 = vadd.f32 %v4312, %v4832
        %4834 = vmatmul.bf16.gmra.mxu0 %v4220
        %v4835 = vpop.f32.mrf.mxu0
        %v4836 = vadd.f32 %v4312, %v4835
        %v4837 = vpop.f32.mrf.mxu0
        %v4838 = vadd.f32 %v4312, %v4837
        %4839 = vmatmul.bf16.gmra.mxu0 %v4222
        %v4840 = vpop.f32.mrf.mxu0
        %v4841 = vadd.f32 %v4312, %v4840
        %v4842 = vpop.f32.mrf.mxu0
        %v4843 = vadd.f32 %v4312, %v4842
        %4844 = vmatmul.bf16.gmra.mxu0 %v4224
        %v4845 = vpop.f32.mrf.mxu0
        %v4846 = vadd.f32 %v4312, %v4845
        %v4847 = vpop.f32.mrf.mxu0
        %v4848 = vadd.f32 %v4312, %v4847
        %4849 = vmatmul.bf16.gmra.mxu0 %v4226
        %v4850 = vpop.f32.mrf.mxu0
        %v4851 = vadd.f32 %v4312, %v4850
        %v4852 = vpop.f32.mrf.mxu0
        %v4853 = vadd.f32 %v4312, %v4852
        %4854 = vmatmul.bf16.gmra.mxu0 %v4228
        %v4855 = vpop.f32.mrf.mxu0
        %v4856 = vadd.f32 %v4312, %v4855
        %v4857 = vpop.f32.mrf.mxu0
        %v4858 = vadd.f32 %v4312, %v4857
        %4859 = vmatmul.bf16.gmra.mxu0 %v4230
        %v4860 = vpop.f32.mrf.mxu0
        %v4861 = vadd.f32 %v4312, %v4860
        %v4862 = vpop.f32.mrf.mxu0
        %v4863 = vadd.f32 %v4312, %v4862
        %4864 = vmatmul.bf16.gmra.mxu0 %v4232
        %v4865 = vpop.f32.mrf.mxu0
        %v4866 = vadd.f32 %v4312, %v4865
        %v4867 = vpop.f32.mrf.mxu0
        %v4868 = vadd.f32 %v4312, %v4867
        %4869 = vmatmul.bf16.gmra.mxu0 %v4234
        %v4870 = vpop.f32.mrf.mxu0
        %v4871 = vadd.f32 %v4312, %v4870
        %v4872 = vpop.f32.mrf.mxu0
        %v4873 = vadd.f32 %v4312, %v4872
        %4874 = vmatmul.bf16.gmra.mxu0 %v4236
        %v4875 = vpop.f32.mrf.mxu0
        %v4876 = vadd.f32 %v4312, %v4875
        %v4877 = vpop.f32.mrf.mxu0
        %v4878 = vadd.f32 %v4312, %v4877
        %4879 = vmatmul.bf16.gmra.mxu0 %v4238
        %v4880 = vpop.f32.mrf.mxu0
        %v4881 = vadd.f32 %v4312, %v4880
        %v4882 = vpop.f32.mrf.mxu0
        %v4883 = vadd.f32 %v4312, %v4882
        %4884 = vmatmul.bf16.gmra.mxu0 %v4240
        %v4885 = vpop.f32.mrf.mxu0
        %v4886 = vadd.f32 %v4312, %v4885
        %v4887 = vpop.f32.mrf.mxu0
        %v4888 = vadd.f32 %v4312, %v4887
        %4889 = vmatmul.bf16.gmra.mxu0 %v4242
        %v4890 = vpop.f32.mrf.mxu0
        %v4891 = vadd.f32 %v4312, %v4890
        %v4892 = vpop.f32.mrf.mxu0
        %v4893 = vadd.f32 %v4312, %v4892
        %4894 = vmatmul.bf16.gmra.mxu0 %v4244
        %v4895 = vpop.f32.mrf.mxu0
        %v4896 = vadd.f32 %v4312, %v4895
        %v4897 = vpop.f32.mrf.mxu0
        %v4898 = vadd.f32 %v4312, %v4897
        %4899 = vmatmul.bf16.gmra.mxu0 %v4246
        %v4900 = vpop.f32.mrf.mxu0
        %v4901 = vadd.f32 %v4312, %v4900
        %v4902 = vpop.f32.mrf.mxu0
        %v4903 = vadd.f32 %v4312, %v4902
        %4904 = vmatmul.bf16.gmra.mxu0 %v4248
        %v4905 = vpop.f32.mrf.mxu0
        %v4906 = vadd.f32 %v4312, %v4905
        %v4907 = vpop.f32.mrf.mxu0
        %v4908 = vadd.f32 %v4312, %v4907
        %4909 = vmatmul.bf16.gmra.mxu0 %v4250
        %v4910 = vpop.f32.mrf.mxu0
        %v4911 = vadd.f32 %v4312, %v4910
        %v4912 = vpop.f32.mrf.mxu0
        %v4913 = vadd.f32 %v4312, %v4912
        %4914 = vmatmul.bf16.gmra.mxu0 %v4252
        %v4915 = vpop.f32.mrf.mxu0
        %v4916 = vadd.f32 %v4312, %v4915
        %v4917 = vpop.f32.mrf.mxu0
        %v4918 = vadd.f32 %v4312, %v4917
        %4919 = vmatmul.bf16.gmra.mxu0 %v4254
        %v4920 = vpop.f32.mrf.mxu0
        %v4921 = vadd.f32 %v4312, %v4920
        %v4922 = vpop.f32.mrf.mxu0
        %v4923 = vadd.f32 %v4312, %v4922
        %4924 = vmatmul.bf16.gmra.mxu0 %v4256
        %v4925 = vpop.f32.mrf.mxu0
        %v4926 = vadd.f32 %v4312, %v4925
        %v4927 = vpop.f32.mrf.mxu0
        %v4928 = vadd.f32 %v4312, %v4927
        %4929 = vmatmul.bf16.gmra.mxu0 %v4258
        %v4930 = vpop.f32.mrf.mxu0
        %v4931 = vadd.f32 %v4312, %v4930
        %v4932 = vpop.f32.mrf.mxu0
        %v4933 = vadd.f32 %v4312, %v4932
        %4934 = vmatmul.bf16.gmra.mxu0 %v4260
        %v4935 = vpop.f32.mrf.mxu0
        %v4936 = vadd.f32 %v4312, %v4935
        %v4937 = vpop.f32.mrf.mxu0
        %v4938 = vadd.f32 %v4312, %v4937
        %4939 = vmatmul.bf16.gmra.mxu0 %v4262
        %v4940 = vpop.f32.mrf.mxu0
        %v4941 = vadd.f32 %v4312, %v4940
        %v4942 = vpop.f32.mrf.mxu0
        %v4943 = vadd.f32 %v4312, %v4942
        %4944 = vmatmul.bf16.gmra.mxu0 %v4264
        %v4945 = vpop.f32.mrf.mxu0
        %v4946 = vadd.f32 %v4312, %v4945
        %v4947 = vpop.f32.mrf.mxu0
        %v4948 = vadd.f32 %v4312, %v4947
        %4949 = vmatmul.bf16.gmra.mxu0 %v4266
        %v4950 = vpop.f32.mrf.mxu0
        %v4951 = vadd.f32 %v4312, %v4950
        %v4952 = vpop.f32.mrf.mxu0
        %v4953 = vadd.f32 %v4312, %v4952
        %4954 = vmatmul.bf16.gmra.mxu0 %v4268
        %v4955 = vpop.f32.mrf.mxu0
        %v4956 = vadd.f32 %v4312, %v4955
        %v4957 = vpop.f32.mrf.mxu0
        %v4958 = vadd.f32 %v4312, %v4957
        %4959 = vmatmul.bf16.gmra.mxu0 %v4270
        %v4960 = vpop.f32.mrf.mxu0
        %v4961 = vadd.f32 %v4312, %v4960
        %v4962 = vpop.f32.mrf.mxu0
        %v4963 = vadd.f32 %v4312, %v4962
        %4964 = vmatmul.bf16.gmra.mxu0 %v4272
        %v4965 = vpop.f32.mrf.mxu0
        %v4966 = vadd.f32 %v4312, %v4965
        %v4967 = vpop.f32.mrf.mxu0
        %v4968 = vadd.f32 %v4312, %v4967
        %4969 = vmatmul.bf16.gmra.mxu0 %v4274
        %v4970 = vpop.f32.mrf.mxu0
        %v4971 = vadd.f32 %v4312, %v4970
        %v4972 = vpop.f32.mrf.mxu0
        %v4973 = vadd.f32 %v4312, %v4972
        %4974 = vmatmul.bf16.gmra.mxu0 %v4276
        %v4975 = vpop.f32.mrf.mxu0
        %v4976 = vadd.f32 %v4312, %v4975
        %v4977 = vpop.f32.mrf.mxu0
        %v4978 = vadd.f32 %v4312, %v4977
        %4979 = vdwg.mxu0
        %4980 = vmatpush.bf16.msra.mxu0 %v4440
        %4981 = vmatpush.bf16.msra.mxu0 %v4438
        %4982 = vmatpush.bf16.msra.mxu0 %v4436
        %4983 = vmatpush.bf16.msra.mxu0 %v4434
        %4984 = vmatpush.bf16.msra.mxu0 %v4432
        %4985 = vmatpush.bf16.msra.mxu0 %v4430
        %4986 = vmatpush.bf16.msra.mxu0 %v4428
        %4987 = vmatpush.bf16.msra.mxu0 %v4426
        %4988 = vmatmul.bf16.gmra.mxu0 %v4215
        %v4989 = vpop.f32.mrf.mxu0
        %v4990 = vadd.f32 %v4821, %v4989
        %v4991 = vpop.f32.mrf.mxu0
        %v4992 = vadd.f32 %v4823, %v4991
        %4993 = vmatmul.bf16.gmra.mxu0 %v4217
        %v4994 = vpop.f32.mrf.mxu0
        %v4995 = vadd.f32 %v4826, %v4994
        %v4996 = vpop.f32.mrf.mxu0
        %v4997 = vadd.f32 %v4828, %v4996
        %4998 = vmatmul.bf16.gmra.mxu0 %v4219
        %v4999 = vpop.f32.mrf.mxu0
        %v5000 = vadd.f32 %v4831, %v4999
        %v5001 = vpop.f32.mrf.mxu0
        %v5002 = vadd.f32 %v4833, %v5001
        %5003 = vmatmul.bf16.gmra.mxu0 %v4221
        %v5004 = vpop.f32.mrf.mxu0
        %v5005 = vadd.f32 %v4836, %v5004
        %v5006 = vpop.f32.mrf.mxu0
        %v5007 = vadd.f32 %v4838, %v5006
        %5008 = vmatmul.bf16.gmra.mxu0 %v4223
        %v5009 = vpop.f32.mrf.mxu0
        %v5010 = vadd.f32 %v4841, %v5009
        %v5011 = vpop.f32.mrf.mxu0
        %v5012 = vadd.f32 %v4843, %v5011
        %5013 = vmatmul.bf16.gmra.mxu0 %v4225
        %v5014 = vpop.f32.mrf.mxu0
        %v5015 = vadd.f32 %v4846, %v5014
        %v5016 = vpop.f32.mrf.mxu0
        %v5017 = vadd.f32 %v4848, %v5016
        %5018 = vmatmul.bf16.gmra.mxu0 %v4227
        %v5019 = vpop.f32.mrf.mxu0
        %v5020 = vadd.f32 %v4851, %v5019
        %v5021 = vpop.f32.mrf.mxu0
        %v5022 = vadd.f32 %v4853, %v5021
        %5023 = vmatmul.bf16.gmra.mxu0 %v4229
        %v5024 = vpop.f32.mrf.mxu0
        %v5025 = vadd.f32 %v4856, %v5024
        %v5026 = vpop.f32.mrf.mxu0
        %v5027 = vadd.f32 %v4858, %v5026
        %5028 = vmatmul.bf16.gmra.mxu0 %v4231
        %v5029 = vpop.f32.mrf.mxu0
        %v5030 = vadd.f32 %v4861, %v5029
        %v5031 = vpop.f32.mrf.mxu0
        %v5032 = vadd.f32 %v4863, %v5031
        %5033 = vmatmul.bf16.gmra.mxu0 %v4233
        %v5034 = vpop.f32.mrf.mxu0
        %v5035 = vadd.f32 %v4866, %v5034
        %v5036 = vpop.f32.mrf.mxu0
        %v5037 = vadd.f32 %v4868, %v5036
        %5038 = vmatmul.bf16.gmra.mxu0 %v4235
        %v5039 = vpop.f32.mrf.mxu0
        %v5040 = vadd.f32 %v4871, %v5039
        %v5041 = vpop.f32.mrf.mxu0
        %v5042 = vadd.f32 %v4873, %v5041
        %5043 = vmatmul.bf16.gmra.mxu0 %v4237
        %v5044 = vpop.f32.mrf.mxu0
        %v5045 = vadd.f32 %v4876, %v5044
        %v5046 = vpop.f32.mrf.mxu0
        %v5047 = vadd.f32 %v4878, %v5046
        %5048 = vmatmul.bf16.gmra.mxu0 %v4239
        %v5049 = vpop.f32.mrf.mxu0
        %v5050 = vadd.f32 %v4881, %v5049
        %v5051 = vpop.f32.mrf.mxu0
        %v5052 = vadd.f32 %v4883, %v5051
        %5053 = vmatmul.bf16.gmra.mxu0 %v4241
        %v5054 = vpop.f32.mrf.mxu0
        %v5055 = vadd.f32 %v4886, %v5054
        %v5056 = vpop.f32.mrf.mxu0
        %v5057 = vadd.f32 %v4888, %v5056
        %5058 = vmatmul.bf16.gmra.mxu0 %v4243
        %v5059 = vpop.f32.mrf.mxu0
        %v5060 = vadd.f32 %v4891, %v5059
        %v5061 = vpop.f32.mrf.mxu0
        %v5062 = vadd.f32 %v4893, %v5061
        %5063 = vmatmul.bf16.gmra.mxu0 %v4245
        %v5064 = vpop.f32.mrf.mxu0
        %v5065 = vadd.f32 %v4896, %v5064
        %v5066 = vpop.f32.mrf.mxu0
        %v5067 = vadd.f32 %v4898, %v5066
        %5068 = vmatmul.bf16.gmra.mxu0 %v4247
        %v5069 = vpop.f32.mrf.mxu0
        %v5070 = vadd.f32 %v4901, %v5069
        %v5071 = vpop.f32.mrf.mxu0
        %v5072 = vadd.f32 %v4903, %v5071
        %5073 = vmatmul.bf16.gmra.mxu0 %v4249
        %v5074 = vpop.f32.mrf.mxu0
        %v5075 = vadd.f32 %v4906, %v5074
        %v5076 = vpop.f32.mrf.mxu0
        %v5077 = vadd.f32 %v4908, %v5076
        %5078 = vmatmul.bf16.gmra.mxu0 %v4251
        %v5079 = vpop.f32.mrf.mxu0
        %v5080 = vadd.f32 %v4911, %v5079
        %v5081 = vpop.f32.mrf.mxu0
        %v5082 = vadd.f32 %v4913, %v5081
        %5083 = vmatmul.bf16.gmra.mxu0 %v4253
        %v5084 = vpop.f32.mrf.mxu0
        %v5085 = vadd.f32 %v4916, %v5084
        %v5086 = vpop.f32.mrf.mxu0
        %v5087 = vadd.f32 %v4918, %v5086
        %5088 = vmatmul.bf16.gmra.mxu0 %v4255
        %v5089 = vpop.f32.mrf.mxu0
        %v5090 = vadd.f32 %v4921, %v5089
        %v5091 = vpop.f32.mrf.mxu0
        %v5092 = vadd.f32 %v4923, %v5091
        %5093 = vmatmul.bf16.gmra.mxu0 %v4257
        %v5094 = vpop.f32.mrf.mxu0
        %v5095 = vadd.f32 %v4926, %v5094
        %v5096 = vpop.f32.mrf.mxu0
        %v5097 = vadd.f32 %v4928, %v5096
        %5098 = vmatmul.bf16.gmra.mxu0 %v4259
        %v5099 = vpop.f32.mrf.mxu0
        %v5100 = vadd.f32 %v4931, %v5099
        %v5101 = vpop.f32.mrf.mxu0
        %v5102 = vadd.f32 %v4933, %v5101
        %5103 = vmatmul.bf16.gmra.mxu0 %v4261
        %v5104 = vpop.f32.mrf.mxu0
        %v5105 = vadd.f32 %v4936, %v5104
        %v5106 = vpop.f32.mrf.mxu0
        %v5107 = vadd.f32 %v4938, %v5106
        %5108 = vmatmul.bf16.gmra.mxu0 %v4263
        %v5109 = vpop.f32.mrf.mxu0
        %v5110 = vadd.f32 %v4941, %v5109
        %v5111 = vpop.f32.mrf.mxu0
        %v5112 = vadd.f32 %v4943, %v5111
        %5113 = vmatmul.bf16.gmra.mxu0 %v4265
        %v5114 = vpop.f32.mrf.mxu0
        %v5115 = vadd.f32 %v4946, %v5114
        %v5116 = vpop.f32.mrf.mxu0
        %v5117 = vadd.f32 %v4948, %v5116
        %5118 = vmatmul.bf16.gmra.mxu0 %v4267
        %v5119 = vpop.f32.mrf.mxu0
        %v5120 = vadd.f32 %v4951, %v5119
        %v5121 = vpop.f32.mrf.mxu0
        %v5122 = vadd.f32 %v4953, %v5121
        %5123 = vmatmul.bf16.gmra.mxu0 %v4269
        %v5124 = vpop.f32.mrf.mxu0
        %v5125 = vadd.f32 %v4956, %v5124
        %v5126 = vpop.f32.mrf.mxu0
        %v5127 = vadd.f32 %v4958, %v5126
        %5128 = vmatmul.bf16.gmra.mxu0 %v4271
        %v5129 = vpop.f32.mrf.mxu0
        %v5130 = vadd.f32 %v4961, %v5129
        %v5131 = vpop.f32.mrf.mxu0
        %v5132 = vadd.f32 %v4963, %v5131
        %5133 = vmatmul.bf16.gmra.mxu0 %v4273
        %v5134 = vpop.f32.mrf.mxu0
        %v5135 = vadd.f32 %v4966, %v5134
        %v5136 = vpop.f32.mrf.mxu0
        %v5137 = vadd.f32 %v4968, %v5136
        %5138 = vmatmul.bf16.gmra.mxu0 %v4275
        %v5139 = vpop.f32.mrf.mxu0
        %v5140 = vadd.f32 %v4971, %v5139
        %v5141 = vpop.f32.mrf.mxu0
        %v5142 = vadd.f32 %v4973, %v5141
        %5143 = vmatmul.bf16.gmra.mxu0 %v4277
        %v5144 = vpop.f32.mrf.mxu0
        %v5145 = vadd.f32 %v4976, %v5144
        %v5146 = vpop.f32.mrf.mxu0
        %v5147 = vadd.f32 %v4978, %v5146
        %5148 = vdwg.mxu0
        %v5149 = vmax.f32 %v4652, 0.0
        %v5150 = vmax.f32 %v4990, 0.0
        %v5151 = vmax.f32 %v4654, 0.0
        %v5152 = vmax.f32 %v4992, 0.0
        %v5153 = vmax.f32 %v4657, 0.0
        %v5154 = vmax.f32 %v4995, 0.0
        %v5155 = vmax.f32 %v4659, 0.0
        %v5156 = vmax.f32 %v4997, 0.0
        %v5157 = vmax.f32 %v4662, 0.0
        %v5158 = vmax.f32 %v5000, 0.0
        %v5159 = vmax.f32 %v4664, 0.0
        %v5160 = vmax.f32 %v5002, 0.0
        %v5161 = vmax.f32 %v4667, 0.0
        %v5162 = vmax.f32 %v5005, 0.0
        %v5163 = vmax.f32 %v4669, 0.0
        %v5164 = vmax.f32 %v5007, 0.0
        %v5165 = vmax.f32 %v4672, 0.0
        %v5166 = vmax.f32 %v5010, 0.0
        %v5167 = vmax.f32 %v4674, 0.0
        %v5168 = vmax.f32 %v5012, 0.0
        %v5169 = vmax.f32 %v4677, 0.0
        %v5170 = vmax.f32 %v5015, 0.0
        %v5171 = vmax.f32 %v4679, 0.0
        %v5172 = vmax.f32 %v5017, 0.0
        %v5173 = vmax.f32 %v4682, 0.0
        %v5174 = vmax.f32 %v5020, 0.0
        %v5175 = vmax.f32 %v4684, 0.0
        %v5176 = vmax.f32 %v5022, 0.0
        %v5177 = vmax.f32 %v4687, 0.0
        %v5178 = vmax.f32 %v5025, 0.0
        %v5179 = vmax.f32 %v4689, 0.0
        %v5180 = vmax.f32 %v5027, 0.0
        %v5181 = vmax.f32 %v4692, 0.0
        %v5182 = vmax.f32 %v5030, 0.0
        %v5183 = vmax.f32 %v4694, 0.0
        %v5184 = vmax.f32 %v5032, 0.0
        %v5185 = vmax.f32 %v4697, 0.0
        %v5186 = vmax.f32 %v5035, 0.0
        %v5187 = vmax.f32 %v4699, 0.0
        %v5188 = vmax.f32 %v5037, 0.0
        %v5189 = vmax.f32 %v4702, 0.0
        %v5190 = vmax.f32 %v5040, 0.0
        %v5191 = vmax.f32 %v4704, 0.0
        %v5192 = vmax.f32 %v5042, 0.0
        %v5193 = vmax.f32 %v4707, 0.0
        %v5194 = vmax.f32 %v5045, 0.0
        %v5195 = vmax.f32 %v4709, 0.0
        %v5196 = vmax.f32 %v5047, 0.0
        %v5197 = vmax.f32 %v4712, 0.0
        %v5198 = vmax.f32 %v5050, 0.0
        %v5199 = vmax.f32 %v4714, 0.0
        %v5200 = vmax.f32 %v5052, 0.0
        %v5201 = vmax.f32 %v4717, 0.0
        %v5202 = vmax.f32 %v5055, 0.0
        %v5203 = vmax.f32 %v4719, 0.0
        %v5204 = vmax.f32 %v5057, 0.0
        %v5205 = vmax.f32 %v4722, 0.0
        %v5206 = vmax.f32 %v5060, 0.0
        %v5207 = vmax.f32 %v4724, 0.0
        %v5208 = vmax.f32 %v5062, 0.0
        %v5209 = vmax.f32 %v4727, 0.0
        %v5210 = vmax.f32 %v5065, 0.0
        %v5211 = vmax.f32 %v4729, 0.0
        %v5212 = vmax.f32 %v5067, 0.0
        %v5213 = vmax.f32 %v4732, 0.0
        %v5214 = vmax.f32 %v5070, 0.0
        %v5215 = vmax.f32 %v4734, 0.0
        %v5216 = vmax.f32 %v5072, 0.0
        %v5217 = vmax.f32 %v4737, 0.0
        %v5218 = vmax.f32 %v5075, 0.0
        %v5219 = vmax.f32 %v4739, 0.0
        %v5220 = vmax.f32 %v5077, 0.0
        %v5221 = vmax.f32 %v4742, 0.0
        %v5222 = vmax.f32 %v5080, 0.0
        %v5223 = vmax.f32 %v4744, 0.0
        %v5224 = vmax.f32 %v5082, 0.0
        %v5225 = vmax.f32 %v4747, 0.0
        %v5226 = vmax.f32 %v5085, 0.0
        %v5227 = vmax.f32 %v4749, 0.0
        %v5228 = vmax.f32 %v5087, 0.0
        %v5229 = vmax.f32 %v4752, 0.0
        %v5230 = vmax.f32 %v5090, 0.0
        %v5231 = vmax.f32 %v4754, 0.0
        %v5232 = vmax.f32 %v5092, 0.0
        %v5233 = vmax.f32 %v4757, 0.0
        %v5234 = vmax.f32 %v5095, 0.0
        %v5235 = vmax.f32 %v4759, 0.0
        %v5236 = vmax.f32 %v5097, 0.0
        %v5237 = vmax.f32 %v4762, 0.0
        %v5238 = vmax.f32 %v5100, 0.0
        %v5239 = vmax.f32 %v4764, 0.0
        %v5240 = vmax.f32 %v5102, 0.0
        %v5241 = vmax.f32 %v4767, 0.0
        %v5242 = vmax.f32 %v5105, 0.0
        %v5243 = vmax.f32 %v4769, 0.0
        %v5244 = vmax.f32 %v5107, 0.0
        %v5245 = vmax.f32 %v4772, 0.0
        %v5246 = vmax.f32 %v5110, 0.0
        %v5247 = vmax.f32 %v4774, 0.0
        %v5248 = vmax.f32 %v5112, 0.0
        %v5249 = vmax.f32 %v4777, 0.0
        %v5250 = vmax.f32 %v5115, 0.0
        %v5251 = vmax.f32 %v4779, 0.0
        %v5252 = vmax.f32 %v5117, 0.0
        %v5253 = vmax.f32 %v4782, 0.0
        %v5254 = vmax.f32 %v5120, 0.0
        %v5255 = vmax.f32 %v4784, 0.0
        %v5256 = vmax.f32 %v5122, 0.0
        %v5257 = vmax.f32 %v4787, 0.0
        %v5258 = vmax.f32 %v5125, 0.0
        %v5259 = vmax.f32 %v4789, 0.0
        %v5260 = vmax.f32 %v5127, 0.0
        %v5261 = vmax.f32 %v4792, 0.0
        %v5262 = vmax.f32 %v5130, 0.0
        %v5263 = vmax.f32 %v4794, 0.0
        %v5264 = vmax.f32 %v5132, 0.0
        %v5265 = vmax.f32 %v4797, 0.0
        %v5266 = vmax.f32 %v5135, 0.0
        %v5267 = vmax.f32 %v4799, 0.0
        %v5268 = vmax.f32 %v5137, 0.0
        %v5269 = vmax.f32 %v4802, 0.0
        %v5270 = vmax.f32 %v5140, 0.0
        %v5271 = vmax.f32 %v4804, 0.0
        %v5272 = vmax.f32 %v5142, 0.0
        %v5273 = vmax.f32 %v4807, 0.0
        %v5274 = vmax.f32 %v5145, 0.0
        %v5275 = vmax.f32 %v4809, 0.0
        %v5276 = vmax.f32 %v5147, 0.0
        %v5277 = vpack.c.bf16 %v5151, %v5149
        %v5278 = vpack.c.bf16 %v5152, %v5150
        %v5279 = vpack.c.bf16 %v5155, %v5153
        %v5280 = vpack.c.bf16 %v5156, %v5154
        %v5281 = vpack.c.bf16 %v5159, %v5157
        %v5282 = vpack.c.bf16 %v5160, %v5158
        %v5283 = vpack.c.bf16 %v5163, %v5161
        %v5284 = vpack.c.bf16 %v5164, %v5162
        %v5285 = vpack.c.bf16 %v5167, %v5165
        %v5286 = vpack.c.bf16 %v5168, %v5166
        %v5287 = vpack.c.bf16 %v5171, %v5169
        %v5288 = vpack.c.bf16 %v5172, %v5170
        %v5289 = vpack.c.bf16 %v5175, %v5173
        %v5290 = vpack.c.bf16 %v5176, %v5174
        %v5291 = vpack.c.bf16 %v5179, %v5177
        %v5292 = vpack.c.bf16 %v5180, %v5178
        %v5293 = vpack.c.bf16 %v5183, %v5181
        %v5294 = vpack.c.bf16 %v5184, %v5182
        %v5295 = vpack.c.bf16 %v5187, %v5185
        %v5296 = vpack.c.bf16 %v5188, %v5186
        %v5297 = vpack.c.bf16 %v5191, %v5189
        %v5298 = vpack.c.bf16 %v5192, %v5190
        %v5299 = vpack.c.bf16 %v5195, %v5193
        %v5300 = vpack.c.bf16 %v5196, %v5194
        %v5301 = vpack.c.bf16 %v5199, %v5197
        %v5302 = vpack.c.bf16 %v5200, %v5198
        %v5303 = vpack.c.bf16 %v5203, %v5201
        %v5304 = vpack.c.bf16 %v5204, %v5202
        %v5305 = vpack.c.bf16 %v5207, %v5205
        %v5306 = vpack.c.bf16 %v5208, %v5206
        %v5307 = vpack.c.bf16 %v5211, %v5209
        %v5308 = vpack.c.bf16 %v5212, %v5210
        %v5309 = vpack.c.bf16 %v5215, %v5213
        %v5310 = vpack.c.bf16 %v5216, %v5214
        %v5311 = vpack.c.bf16 %v5219, %v5217
        %v5312 = vpack.c.bf16 %v5220, %v5218
        %v5313 = vpack.c.bf16 %v5223, %v5221
        %v5314 = vpack.c.bf16 %v5224, %v5222
        %v5315 = vpack.c.bf16 %v5227, %v5225
        %v5316 = vpack.c.bf16 %v5228, %v5226
        %v5317 = vpack.c.bf16 %v5231, %v5229
        %v5318 = vpack.c.bf16 %v5232, %v5230
        %v5319 = vpack.c.bf16 %v5235, %v5233
        %v5320 = vpack.c.bf16 %v5236, %v5234
        %v5321 = vpack.c.bf16 %v5239, %v5237
        %v5322 = vpack.c.bf16 %v5240, %v5238
        %v5323 = vpack.c.bf16 %v5243, %v5241
        %v5324 = vpack.c.bf16 %v5244, %v5242
        %v5325 = vpack.c.bf16 %v5247, %v5245
        %v5326 = vpack.c.bf16 %v5248, %v5246
        %v5327 = vpack.c.bf16 %v5251, %v5249
        %v5328 = vpack.c.bf16 %v5252, %v5250
        %v5329 = vpack.c.bf16 %v5255, %v5253
        %v5330 = vpack.c.bf16 %v5256, %v5254
        %v5331 = vpack.c.bf16 %v5259, %v5257
        %v5332 = vpack.c.bf16 %v5260, %v5258
        %v5333 = vpack.c.bf16 %v5263, %v5261
        %v5334 = vpack.c.bf16 %v5264, %v5262
        %v5335 = vpack.c.bf16 %v5267, %v5265
        %v5336 = vpack.c.bf16 %v5268, %v5266
        %v5337 = vpack.c.bf16 %v5271, %v5269
        %v5338 = vpack.c.bf16 %v5272, %v5270
        %v5339 = vpack.c.bf16 %v5275, %v5273
        %v5340 = vpack.c.bf16 %v5276, %v5274
        %s5341 = scalar_lea.vmem [#allocation2], 768
        %v5342 = vld [vmem:[%s5341] sm:$0xff]
        %v5343 = vld [vmem:[%s5341 + $0x8] sm:$0xff]
        %v5344 = vld [vmem:[%s5341 + $0x10] sm:$0xff]
        %v5345 = vld [vmem:[%s5341 + $0x18] sm:$0xff]
        %v5346 = vld [vmem:[%s5341 + $0x20] sm:$0xff]
        %v5347 = vld [vmem:[%s5341 + $0x28] sm:$0xff]
        %v5348 = vld [vmem:[%s5341 + $0x30] sm:$0xff]
        %v5349 = vld [vmem:[%s5341 + $0x38] sm:$0xff]
        %v5350 = vld [vmem:[%s5341 + $0x40] sm:$0xff]
        %v5351 = vld [vmem:[%s5341 + $0x48] sm:$0xff]
        %v5352 = vld [vmem:[%s5341 + $0x50] sm:$0xff]
        %v5353 = vld [vmem:[%s5341 + $0x58] sm:$0xff]
        %v5354 = vld [vmem:[%s5341 + $0x60] sm:$0xff]
        %v5355 = vld [vmem:[%s5341 + $0x68] sm:$0xff]
        %v5356 = vld [vmem:[%s5341 + $0x70] sm:$0xff]
        %v5357 = vld [vmem:[%s5341 + $0x78] sm:$0xff]
        %v5358 = vld [vmem:[%s5341 + $0x80] sm:$0xff]
        %v5359 = vld [vmem:[%s5341 + $0x88] sm:$0xff]
        %v5360 = vld [vmem:[%s5341 + $0x90] sm:$0xff]
        %v5361 = vld [vmem:[%s5341 + $0x98] sm:$0xff]
        %v5362 = vld [vmem:[%s5341 + $0xa0] sm:$0xff]
        %v5363 = vld [vmem:[%s5341 + $0xa8] sm:$0xff]
        %v5364 = vld [vmem:[%s5341 + $0xb0] sm:$0xff]
        %v5365 = vld [vmem:[%s5341 + $0xb8] sm:$0xff]
        %v5366 = vld [vmem:[%s5341 + $0xc0] sm:$0xff]
        %v5367 = vld [vmem:[%s5341 + $0xc8] sm:$0xff]
        %v5368 = vld [vmem:[%s5341 + $0xd0] sm:$0xff]
        %v5369 = vld [vmem:[%s5341 + $0xd8] sm:$0xff]
        %v5370 = vld [vmem:[%s5341 + $0xe0] sm:$0xff]
        %v5371 = vld [vmem:[%s5341 + $0xe8] sm:$0xff]
        %v5372 = vld [vmem:[%s5341 + $0xf0] sm:$0xff]
        %v5373 = vld [vmem:[%s5341 + $0xf8] sm:$0xff]
        %v5374 = vperm.slane %v338, 4
        %v5375 = vperm.slane %v339, 4
        %v5408 = vunpack.c.l.b16 %v5342
        %v5409 = vunpack.c.h.b16 %v5342
        %v5410 = vunpack.c.l.b16 %v5343
        %v5411 = vunpack.c.h.b16 %v5343
        %v5412 = vunpack.c.l.b16 %v5344
        %v5413 = vunpack.c.h.b16 %v5344
        %v5414 = vunpack.c.l.b16 %v5345
        %v5415 = vunpack.c.h.b16 %v5345
        %v5416 = vunpack.c.l.b16 %v5346
        %v5417 = vunpack.c.h.b16 %v5346
        %v5418 = vunpack.c.l.b16 %v5347
        %v5419 = vunpack.c.h.b16 %v5347
        %v5420 = vunpack.c.l.b16 %v5348
        %v5421 = vunpack.c.h.b16 %v5348
        %v5422 = vunpack.c.l.b16 %v5349
        %v5423 = vunpack.c.h.b16 %v5349
        %v5424 = vunpack.c.l.b16 %v5350
        %v5425 = vunpack.c.h.b16 %v5350
        %v5426 = vunpack.c.l.b16 %v5351
        %v5427 = vunpack.c.h.b16 %v5351
        %v5428 = vunpack.c.l.b16 %v5352
        %v5429 = vunpack.c.h.b16 %v5352
        %v5430 = vunpack.c.l.b16 %v5353
        %v5431 = vunpack.c.h.b16 %v5353
        %v5432 = vunpack.c.l.b16 %v5354
        %v5433 = vunpack.c.h.b16 %v5354
        %v5434 = vunpack.c.l.b16 %v5355
        %v5435 = vunpack.c.h.b16 %v5355
        %v5436 = vunpack.c.l.b16 %v5356
        %v5437 = vunpack.c.h.b16 %v5356
        %v5438 = vunpack.c.l.b16 %v5357
        %v5439 = vunpack.c.h.b16 %v5357
        %v5440 = vunpack.c.l.b16 %v5358
        %v5441 = vunpack.c.h.b16 %v5358
        %v5442 = vunpack.c.l.b16 %v5359
        %v5443 = vunpack.c.h.b16 %v5359
        %v5444 = vunpack.c.l.b16 %v5360
        %v5445 = vunpack.c.h.b16 %v5360
        %v5446 = vunpack.c.l.b16 %v5361
        %v5447 = vunpack.c.h.b16 %v5361
        %v5448 = vunpack.c.l.b16 %v5362
        %v5449 = vunpack.c.h.b16 %v5362
        %v5450 = vunpack.c.l.b16 %v5363
        %v5451 = vunpack.c.h.b16 %v5363
        %v5452 = vunpack.c.l.b16 %v5364
        %v5453 = vunpack.c.h.b16 %v5364
        %v5454 = vunpack.c.l.b16 %v5365
        %v5455 = vunpack.c.h.b16 %v5365
        %v5456 = vunpack.c.l.b16 %v5366
        %v5457 = vunpack.c.h.b16 %v5366
        %v5458 = vunpack.c.l.b16 %v5367
        %v5459 = vunpack.c.h.b16 %v5367
        %v5460 = vunpack.c.l.b16 %v5368
        %v5461 = vunpack.c.h.b16 %v5368
        %v5462 = vunpack.c.l.b16 %v5369
        %v5463 = vunpack.c.h.b16 %v5369
        %v5464 = vunpack.c.l.b16 %v5370
        %v5465 = vunpack.c.h.b16 %v5370
        %v5466 = vunpack.c.l.b16 %v5371
        %v5467 = vunpack.c.h.b16 %v5371
        %v5468 = vunpack.c.l.b16 %v5372
        %v5469 = vunpack.c.h.b16 %v5372
        %v5470 = vunpack.c.l.b16 %v5373
        %v5471 = vunpack.c.h.b16 %v5373
        %v5472 = vpack.c.b16 %v5410, %v5408
        %v5473 = vpack.c.b16 %v5411, %v5409
        %v5474 = vpack.c.b16 %v5414, %v5412
        %v5475 = vpack.c.b16 %v5415, %v5413
        %v5476 = vpack.c.b16 %v5418, %v5416
        %v5477 = vpack.c.b16 %v5419, %v5417
        %v5478 = vpack.c.b16 %v5422, %v5420
        %v5479 = vpack.c.b16 %v5423, %v5421
        %v5480 = vpack.c.b16 %v5426, %v5424
        %v5481 = vpack.c.b16 %v5427, %v5425
        %v5482 = vpack.c.b16 %v5430, %v5428
        %v5483 = vpack.c.b16 %v5431, %v5429
        %v5484 = vpack.c.b16 %v5434, %v5432
        %v5485 = vpack.c.b16 %v5435, %v5433
        %v5486 = vpack.c.b16 %v5438, %v5436
        %v5487 = vpack.c.b16 %v5439, %v5437
        %v5488 = vpack.c.b16 %v5442, %v5440
        %v5489 = vpack.c.b16 %v5443, %v5441
        %v5490 = vpack.c.b16 %v5446, %v5444
        %v5491 = vpack.c.b16 %v5447, %v5445
        %v5492 = vpack.c.b16 %v5450, %v5448
        %v5493 = vpack.c.b16 %v5451, %v5449
        %v5494 = vpack.c.b16 %v5454, %v5452
        %v5495 = vpack.c.b16 %v5455, %v5453
        %v5496 = vpack.c.b16 %v5458, %v5456
        %v5497 = vpack.c.b16 %v5459, %v5457
        %v5498 = vpack.c.b16 %v5462, %v5460
        %v5499 = vpack.c.b16 %v5463, %v5461
        %v5500 = vpack.c.b16 %v5466, %v5464
        %v5501 = vpack.c.b16 %v5467, %v5465
        %v5502 = vpack.c.b16 %v5470, %v5468
        %v5503 = vpack.c.b16 %v5471, %v5469
        %5536 = vmatpush.bf16.msra.mxu0 %v5486
        %5537 = vmatpush.bf16.msra.mxu0 %v5484
        %5538 = vmatpush.bf16.msra.mxu0 %v5482
        %5539 = vmatpush.bf16.msra.mxu0 %v5480
        %5540 = vmatpush.bf16.msra.mxu0 %v5478
        %5541 = vmatpush.bf16.msra.mxu0 %v5476
        %5542 = vmatpush.bf16.msra.mxu0 %v5474
        %5543 = vmatpush.bf16.msra.mxu0 %v5472
        %5544 = vmatmul.bf16.gmra.mxu0 %v5277
        %v5545 = vpop.f32.mrf.mxu0
        %v5546 = vadd.f32 %v5374, %v5545
        %v5547 = vpop.f32.mrf.mxu0
        %v5548 = vadd.f32 %v5374, %v5547
        %5549 = vmatmul.bf16.gmra.mxu0 %v5279
        %v5550 = vpop.f32.mrf.mxu0
        %v5551 = vadd.f32 %v5374, %v5550
        %v5552 = vpop.f32.mrf.mxu0
        %v5553 = vadd.f32 %v5374, %v5552
        %5554 = vmatmul.bf16.gmra.mxu0 %v5281
        %v5555 = vpop.f32.mrf.mxu0
        %v5556 = vadd.f32 %v5374, %v5555
        %v5557 = vpop.f32.mrf.mxu0
        %v5558 = vadd.f32 %v5374, %v5557
        %5559 = vmatmul.bf16.gmra.mxu0 %v5283
        %v5560 = vpop.f32.mrf.mxu0
        %v5561 = vadd.f32 %v5374, %v5560
        %v5562 = vpop.f32.mrf.mxu0
        %v5563 = vadd.f32 %v5374, %v5562
        %5564 = vmatmul.bf16.gmra.mxu0 %v5285
        %v5565 = vpop.f32.mrf.mxu0
        %v5566 = vadd.f32 %v5374, %v5565
        %v5567 = vpop.f32.mrf.mxu0
        %v5568 = vadd.f32 %v5374, %v5567
        %5569 = vmatmul.bf16.gmra.mxu0 %v5287
        %v5570 = vpop.f32.mrf.mxu0
        %v5571 = vadd.f32 %v5374, %v5570
        %v5572 = vpop.f32.mrf.mxu0
        %v5573 = vadd.f32 %v5374, %v5572
        %5574 = vmatmul.bf16.gmra.mxu0 %v5289
        %v5575 = vpop.f32.mrf.mxu0
        %v5576 = vadd.f32 %v5374, %v5575
        %v5577 = vpop.f32.mrf.mxu0
        %v5578 = vadd.f32 %v5374, %v5577
        %5579 = vmatmul.bf16.gmra.mxu0 %v5291
        %v5580 = vpop.f32.mrf.mxu0
        %v5581 = vadd.f32 %v5374, %v5580
        %v5582 = vpop.f32.mrf.mxu0
        %v5583 = vadd.f32 %v5374, %v5582
        %5584 = vmatmul.bf16.gmra.mxu0 %v5293
        %v5585 = vpop.f32.mrf.mxu0
        %v5586 = vadd.f32 %v5374, %v5585
        %v5587 = vpop.f32.mrf.mxu0
        %v5588 = vadd.f32 %v5374, %v5587
        %5589 = vmatmul.bf16.gmra.mxu0 %v5295
        %v5590 = vpop.f32.mrf.mxu0
        %v5591 = vadd.f32 %v5374, %v5590
        %v5592 = vpop.f32.mrf.mxu0
        %v5593 = vadd.f32 %v5374, %v5592
        %5594 = vmatmul.bf16.gmra.mxu0 %v5297
        %v5595 = vpop.f32.mrf.mxu0
        %v5596 = vadd.f32 %v5374, %v5595
        %v5597 = vpop.f32.mrf.mxu0
        %v5598 = vadd.f32 %v5374, %v5597
        %5599 = vmatmul.bf16.gmra.mxu0 %v5299
        %v5600 = vpop.f32.mrf.mxu0
        %v5601 = vadd.f32 %v5374, %v5600
        %v5602 = vpop.f32.mrf.mxu0
        %v5603 = vadd.f32 %v5374, %v5602
        %5604 = vmatmul.bf16.gmra.mxu0 %v5301
        %v5605 = vpop.f32.mrf.mxu0
        %v5606 = vadd.f32 %v5374, %v5605
        %v5607 = vpop.f32.mrf.mxu0
        %v5608 = vadd.f32 %v5374, %v5607
        %5609 = vmatmul.bf16.gmra.mxu0 %v5303
        %v5610 = vpop.f32.mrf.mxu0
        %v5611 = vadd.f32 %v5374, %v5610
        %v5612 = vpop.f32.mrf.mxu0
        %v5613 = vadd.f32 %v5374, %v5612
        %5614 = vmatmul.bf16.gmra.mxu0 %v5305
        %v5615 = vpop.f32.mrf.mxu0
        %v5616 = vadd.f32 %v5374, %v5615
        %v5617 = vpop.f32.mrf.mxu0
        %v5618 = vadd.f32 %v5374, %v5617
        %5619 = vmatmul.bf16.gmra.mxu0 %v5307
        %v5620 = vpop.f32.mrf.mxu0
        %v5621 = vadd.f32 %v5374, %v5620
        %v5622 = vpop.f32.mrf.mxu0
        %v5623 = vadd.f32 %v5374, %v5622
        %5624 = vmatmul.bf16.gmra.mxu0 %v5309
        %v5625 = vpop.f32.mrf.mxu0
        %v5626 = vadd.f32 %v5374, %v5625
        %v5627 = vpop.f32.mrf.mxu0
        %v5628 = vadd.f32 %v5374, %v5627
        %5629 = vmatmul.bf16.gmra.mxu0 %v5311
        %v5630 = vpop.f32.mrf.mxu0
        %v5631 = vadd.f32 %v5374, %v5630
        %v5632 = vpop.f32.mrf.mxu0
        %v5633 = vadd.f32 %v5374, %v5632
        %5634 = vmatmul.bf16.gmra.mxu0 %v5313
        %v5635 = vpop.f32.mrf.mxu0
        %v5636 = vadd.f32 %v5374, %v5635
        %v5637 = vpop.f32.mrf.mxu0
        %v5638 = vadd.f32 %v5374, %v5637
        %5639 = vmatmul.bf16.gmra.mxu0 %v5315
        %v5640 = vpop.f32.mrf.mxu0
        %v5641 = vadd.f32 %v5374, %v5640
        %v5642 = vpop.f32.mrf.mxu0
        %v5643 = vadd.f32 %v5374, %v5642
        %5644 = vmatmul.bf16.gmra.mxu0 %v5317
        %v5645 = vpop.f32.mrf.mxu0
        %v5646 = vadd.f32 %v5374, %v5645
        %v5647 = vpop.f32.mrf.mxu0
        %v5648 = vadd.f32 %v5374, %v5647
        %5649 = vmatmul.bf16.gmra.mxu0 %v5319
        %v5650 = vpop.f32.mrf.mxu0
        %v5651 = vadd.f32 %v5374, %v5650
        %v5652 = vpop.f32.mrf.mxu0
        %v5653 = vadd.f32 %v5374, %v5652
        %5654 = vmatmul.bf16.gmra.mxu0 %v5321
        %v5655 = vpop.f32.mrf.mxu0
        %v5656 = vadd.f32 %v5374, %v5655
        %v5657 = vpop.f32.mrf.mxu0
        %v5658 = vadd.f32 %v5374, %v5657
        %5659 = vmatmul.bf16.gmra.mxu0 %v5323
        %v5660 = vpop.f32.mrf.mxu0
        %v5661 = vadd.f32 %v5374, %v5660
        %v5662 = vpop.f32.mrf.mxu0
        %v5663 = vadd.f32 %v5374, %v5662
        %5664 = vmatmul.bf16.gmra.mxu0 %v5325
        %v5665 = vpop.f32.mrf.mxu0
        %v5666 = vadd.f32 %v5374, %v5665
        %v5667 = vpop.f32.mrf.mxu0
        %v5668 = vadd.f32 %v5374, %v5667
        %5669 = vmatmul.bf16.gmra.mxu0 %v5327
        %v5670 = vpop.f32.mrf.mxu0
        %v5671 = vadd.f32 %v5374, %v5670
        %v5672 = vpop.f32.mrf.mxu0
        %v5673 = vadd.f32 %v5374, %v5672
        %5674 = vmatmul.bf16.gmra.mxu0 %v5329
        %v5675 = vpop.f32.mrf.mxu0
        %v5676 = vadd.f32 %v5374, %v5675
        %v5677 = vpop.f32.mrf.mxu0
        %v5678 = vadd.f32 %v5374, %v5677
        %5679 = vmatmul.bf16.gmra.mxu0 %v5331
        %v5680 = vpop.f32.mrf.mxu0
        %v5681 = vadd.f32 %v5374, %v5680
        %v5682 = vpop.f32.mrf.mxu0
        %v5683 = vadd.f32 %v5374, %v5682
        %5684 = vmatmul.bf16.gmra.mxu0 %v5333
        %v5685 = vpop.f32.mrf.mxu0
        %v5686 = vadd.f32 %v5374, %v5685
        %v5687 = vpop.f32.mrf.mxu0
        %v5688 = vadd.f32 %v5374, %v5687
        %5689 = vmatmul.bf16.gmra.mxu0 %v5335
        %v5690 = vpop.f32.mrf.mxu0
        %v5691 = vadd.f32 %v5374, %v5690
        %v5692 = vpop.f32.mrf.mxu0
        %v5693 = vadd.f32 %v5374, %v5692
        %5694 = vmatmul.bf16.gmra.mxu0 %v5337
        %v5695 = vpop.f32.mrf.mxu0
        %v5696 = vadd.f32 %v5374, %v5695
        %v5697 = vpop.f32.mrf.mxu0
        %v5698 = vadd.f32 %v5374, %v5697
        %5699 = vmatmul.bf16.gmra.mxu0 %v5339
        %v5700 = vpop.f32.mrf.mxu0
        %v5701 = vadd.f32 %v5374, %v5700
        %v5702 = vpop.f32.mrf.mxu0
        %v5703 = vadd.f32 %v5374, %v5702
        %5704 = vdwg.mxu0
        %5705 = vmatpush.bf16.msra.mxu0 %v5502
        %5706 = vmatpush.bf16.msra.mxu0 %v5500
        %5707 = vmatpush.bf16.msra.mxu0 %v5498
        %5708 = vmatpush.bf16.msra.mxu0 %v5496
        %5709 = vmatpush.bf16.msra.mxu0 %v5494
        %5710 = vmatpush.bf16.msra.mxu0 %v5492
        %5711 = vmatpush.bf16.msra.mxu0 %v5490
        %5712 = vmatpush.bf16.msra.mxu0 %v5488
        %5713 = vmatmul.bf16.gmra.mxu0 %v5278
        %v5714 = vpop.f32.mrf.mxu0
        %v5715 = vadd.f32 %v5546, %v5714
        %v5716 = vpop.f32.mrf.mxu0
        %v5717 = vadd.f32 %v5548, %v5716
        %5718 = vmatmul.bf16.gmra.mxu0 %v5280
        %v5719 = vpop.f32.mrf.mxu0
        %v5720 = vadd.f32 %v5551, %v5719
        %v5721 = vpop.f32.mrf.mxu0
        %v5722 = vadd.f32 %v5553, %v5721
        %5723 = vmatmul.bf16.gmra.mxu0 %v5282
        %v5724 = vpop.f32.mrf.mxu0
        %v5725 = vadd.f32 %v5556, %v5724
        %v5726 = vpop.f32.mrf.mxu0
        %v5727 = vadd.f32 %v5558, %v5726
        %5728 = vmatmul.bf16.gmra.mxu0 %v5284
        %v5729 = vpop.f32.mrf.mxu0
        %v5730 = vadd.f32 %v5561, %v5729
        %v5731 = vpop.f32.mrf.mxu0
        %v5732 = vadd.f32 %v5563, %v5731
        %5733 = vmatmul.bf16.gmra.mxu0 %v5286
        %v5734 = vpop.f32.mrf.mxu0
        %v5735 = vadd.f32 %v5566, %v5734
        %v5736 = vpop.f32.mrf.mxu0
        %v5737 = vadd.f32 %v5568, %v5736
        %5738 = vmatmul.bf16.gmra.mxu0 %v5288
        %v5739 = vpop.f32.mrf.mxu0
        %v5740 = vadd.f32 %v5571, %v5739
        %v5741 = vpop.f32.mrf.mxu0
        %v5742 = vadd.f32 %v5573, %v5741
        %5743 = vmatmul.bf16.gmra.mxu0 %v5290
        %v5744 = vpop.f32.mrf.mxu0
        %v5745 = vadd.f32 %v5576, %v5744
        %v5746 = vpop.f32.mrf.mxu0
        %v5747 = vadd.f32 %v5578, %v5746
        %5748 = vmatmul.bf16.gmra.mxu0 %v5292
        %v5749 = vpop.f32.mrf.mxu0
        %v5750 = vadd.f32 %v5581, %v5749
        %v5751 = vpop.f32.mrf.mxu0
        %v5752 = vadd.f32 %v5583, %v5751
        %5753 = vmatmul.bf16.gmra.mxu0 %v5294
        %v5754 = vpop.f32.mrf.mxu0
        %v5755 = vadd.f32 %v5586, %v5754
        %v5756 = vpop.f32.mrf.mxu0
        %v5757 = vadd.f32 %v5588, %v5756
        %5758 = vmatmul.bf16.gmra.mxu0 %v5296
        %v5759 = vpop.f32.mrf.mxu0
        %v5760 = vadd.f32 %v5591, %v5759
        %v5761 = vpop.f32.mrf.mxu0
        %v5762 = vadd.f32 %v5593, %v5761
        %5763 = vmatmul.bf16.gmra.mxu0 %v5298
        %v5764 = vpop.f32.mrf.mxu0
        %v5765 = vadd.f32 %v5596, %v5764
        %v5766 = vpop.f32.mrf.mxu0
        %v5767 = vadd.f32 %v5598, %v5766
        %5768 = vmatmul.bf16.gmra.mxu0 %v5300
        %v5769 = vpop.f32.mrf.mxu0
        %v5770 = vadd.f32 %v5601, %v5769
        %v5771 = vpop.f32.mrf.mxu0
        %v5772 = vadd.f32 %v5603, %v5771
        %5773 = vmatmul.bf16.gmra.mxu0 %v5302
        %v5774 = vpop.f32.mrf.mxu0
        %v5775 = vadd.f32 %v5606, %v5774
        %v5776 = vpop.f32.mrf.mxu0
        %v5777 = vadd.f32 %v5608, %v5776
        %5778 = vmatmul.bf16.gmra.mxu0 %v5304
        %v5779 = vpop.f32.mrf.mxu0
        %v5780 = vadd.f32 %v5611, %v5779
        %v5781 = vpop.f32.mrf.mxu0
        %v5782 = vadd.f32 %v5613, %v5781
        %5783 = vmatmul.bf16.gmra.mxu0 %v5306
        %v5784 = vpop.f32.mrf.mxu0
        %v5785 = vadd.f32 %v5616, %v5784
        %v5786 = vpop.f32.mrf.mxu0
        %v5787 = vadd.f32 %v5618, %v5786
        %5788 = vmatmul.bf16.gmra.mxu0 %v5308
        %v5789 = vpop.f32.mrf.mxu0
        %v5790 = vadd.f32 %v5621, %v5789
        %v5791 = vpop.f32.mrf.mxu0
        %v5792 = vadd.f32 %v5623, %v5791
        %5793 = vmatmul.bf16.gmra.mxu0 %v5310
        %v5794 = vpop.f32.mrf.mxu0
        %v5795 = vadd.f32 %v5626, %v5794
        %v5796 = vpop.f32.mrf.mxu0
        %v5797 = vadd.f32 %v5628, %v5796
        %5798 = vmatmul.bf16.gmra.mxu0 %v5312
        %v5799 = vpop.f32.mrf.mxu0
        %v5800 = vadd.f32 %v5631, %v5799
        %v5801 = vpop.f32.mrf.mxu0
        %v5802 = vadd.f32 %v5633, %v5801
        %5803 = vmatmul.bf16.gmra.mxu0 %v5314
        %v5804 = vpop.f32.mrf.mxu0
        %v5805 = vadd.f32 %v5636, %v5804
        %v5806 = vpop.f32.mrf.mxu0
        %v5807 = vadd.f32 %v5638, %v5806
        %5808 = vmatmul.bf16.gmra.mxu0 %v5316
        %v5809 = vpop.f32.mrf.mxu0
        %v5810 = vadd.f32 %v5641, %v5809
        %v5811 = vpop.f32.mrf.mxu0
        %v5812 = vadd.f32 %v5643, %v5811
        %5813 = vmatmul.bf16.gmra.mxu0 %v5318
        %v5814 = vpop.f32.mrf.mxu0
        %v5815 = vadd.f32 %v5646, %v5814
        %v5816 = vpop.f32.mrf.mxu0
        %v5817 = vadd.f32 %v5648, %v5816
        %5818 = vmatmul.bf16.gmra.mxu0 %v5320
        %v5819 = vpop.f32.mrf.mxu0
        %v5820 = vadd.f32 %v5651, %v5819
        %v5821 = vpop.f32.mrf.mxu0
        %v5822 = vadd.f32 %v5653, %v5821
        %5823 = vmatmul.bf16.gmra.mxu0 %v5322
        %v5824 = vpop.f32.mrf.mxu0
        %v5825 = vadd.f32 %v5656, %v5824
        %v5826 = vpop.f32.mrf.mxu0
        %v5827 = vadd.f32 %v5658, %v5826
        %5828 = vmatmul.bf16.gmra.mxu0 %v5324
        %v5829 = vpop.f32.mrf.mxu0
        %v5830 = vadd.f32 %v5661, %v5829
        %v5831 = vpop.f32.mrf.mxu0
        %v5832 = vadd.f32 %v5663, %v5831
        %5833 = vmatmul.bf16.gmra.mxu0 %v5326
        %v5834 = vpop.f32.mrf.mxu0
        %v5835 = vadd.f32 %v5666, %v5834
        %v5836 = vpop.f32.mrf.mxu0
        %v5837 = vadd.f32 %v5668, %v5836
        %5838 = vmatmul.bf16.gmra.mxu0 %v5328
        %v5839 = vpop.f32.mrf.mxu0
        %v5840 = vadd.f32 %v5671, %v5839
        %v5841 = vpop.f32.mrf.mxu0
        %v5842 = vadd.f32 %v5673, %v5841
        %5843 = vmatmul.bf16.gmra.mxu0 %v5330
        %v5844 = vpop.f32.mrf.mxu0
        %v5845 = vadd.f32 %v5676, %v5844
        %v5846 = vpop.f32.mrf.mxu0
        %v5847 = vadd.f32 %v5678, %v5846
        %5848 = vmatmul.bf16.gmra.mxu0 %v5332
        %v5849 = vpop.f32.mrf.mxu0
        %v5850 = vadd.f32 %v5681, %v5849
        %v5851 = vpop.f32.mrf.mxu0
        %v5852 = vadd.f32 %v5683, %v5851
        %5853 = vmatmul.bf16.gmra.mxu0 %v5334
        %v5854 = vpop.f32.mrf.mxu0
        %v5855 = vadd.f32 %v5686, %v5854
        %v5856 = vpop.f32.mrf.mxu0
        %v5857 = vadd.f32 %v5688, %v5856
        %5858 = vmatmul.bf16.gmra.mxu0 %v5336
        %v5859 = vpop.f32.mrf.mxu0
        %v5860 = vadd.f32 %v5691, %v5859
        %v5861 = vpop.f32.mrf.mxu0
        %v5862 = vadd.f32 %v5693, %v5861
        %5863 = vmatmul.bf16.gmra.mxu0 %v5338
        %v5864 = vpop.f32.mrf.mxu0
        %v5865 = vadd.f32 %v5696, %v5864
        %v5866 = vpop.f32.mrf.mxu0
        %v5867 = vadd.f32 %v5698, %v5866
        %5868 = vmatmul.bf16.gmra.mxu0 %v5340
        %v5869 = vpop.f32.mrf.mxu0
        %v5870 = vadd.f32 %v5701, %v5869
        %v5871 = vpop.f32.mrf.mxu0
        %v5872 = vadd.f32 %v5703, %v5871
        %5873 = vdwg.mxu0
        %5874 = vmatpush.bf16.msra.mxu0 %v5487
        %5875 = vmatpush.bf16.msra.mxu0 %v5485
        %5876 = vmatpush.bf16.msra.mxu0 %v5483
        %5877 = vmatpush.bf16.msra.mxu0 %v5481
        %5878 = vmatpush.bf16.msra.mxu0 %v5479
        %5879 = vmatpush.bf16.msra.mxu0 %v5477
        %5880 = vmatpush.bf16.msra.mxu0 %v5475
        %5881 = vmatpush.bf16.msra.mxu0 %v5473
        %5882 = vmatmul.bf16.gmra.mxu0 %v5277
        %v5883 = vpop.f32.mrf.mxu0
        %v5884 = vadd.f32 %v5375, %v5883
        %v5885 = vpop.f32.mrf.mxu0
        %v5886 = vadd.f32 %v5375, %v5885
        %5887 = vmatmul.bf16.gmra.mxu0 %v5279
        %v5888 = vpop.f32.mrf.mxu0
        %v5889 = vadd.f32 %v5375, %v5888
        %v5890 = vpop.f32.mrf.mxu0
        %v5891 = vadd.f32 %v5375, %v5890
        %5892 = vmatmul.bf16.gmra.mxu0 %v5281
        %v5893 = vpop.f32.mrf.mxu0
        %v5894 = vadd.f32 %v5375, %v5893
        %v5895 = vpop.f32.mrf.mxu0
        %v5896 = vadd.f32 %v5375, %v5895
        %5897 = vmatmul.bf16.gmra.mxu0 %v5283
        %v5898 = vpop.f32.mrf.mxu0
        %v5899 = vadd.f32 %v5375, %v5898
        %v5900 = vpop.f32.mrf.mxu0
        %v5901 = vadd.f32 %v5375, %v5900
        %5902 = vmatmul.bf16.gmra.mxu0 %v5285
        %v5903 = vpop.f32.mrf.mxu0
        %v5904 = vadd.f32 %v5375, %v5903
        %v5905 = vpop.f32.mrf.mxu0
        %v5906 = vadd.f32 %v5375, %v5905
        %5907 = vmatmul.bf16.gmra.mxu0 %v5287
        %v5908 = vpop.f32.mrf.mxu0
        %v5909 = vadd.f32 %v5375, %v5908
        %v5910 = vpop.f32.mrf.mxu0
        %v5911 = vadd.f32 %v5375, %v5910
        %5912 = vmatmul.bf16.gmra.mxu0 %v5289
        %v5913 = vpop.f32.mrf.mxu0
        %v5914 = vadd.f32 %v5375, %v5913
        %v5915 = vpop.f32.mrf.mxu0
        %v5916 = vadd.f32 %v5375, %v5915
        %5917 = vmatmul.bf16.gmra.mxu0 %v5291
        %v5918 = vpop.f32.mrf.mxu0
        %v5919 = vadd.f32 %v5375, %v5918
        %v5920 = vpop.f32.mrf.mxu0
        %v5921 = vadd.f32 %v5375, %v5920
        %5922 = vmatmul.bf16.gmra.mxu0 %v5293
        %v5923 = vpop.f32.mrf.mxu0
        %v5924 = vadd.f32 %v5375, %v5923
        %v5925 = vpop.f32.mrf.mxu0
        %v5926 = vadd.f32 %v5375, %v5925
        %5927 = vmatmul.bf16.gmra.mxu0 %v5295
        %v5928 = vpop.f32.mrf.mxu0
        %v5929 = vadd.f32 %v5375, %v5928
        %v5930 = vpop.f32.mrf.mxu0
        %v5931 = vadd.f32 %v5375, %v5930
        %5932 = vmatmul.bf16.gmra.mxu0 %v5297
        %v5933 = vpop.f32.mrf.mxu0
        %v5934 = vadd.f32 %v5375, %v5933
        %v5935 = vpop.f32.mrf.mxu0
        %v5936 = vadd.f32 %v5375, %v5935
        %5937 = vmatmul.bf16.gmra.mxu0 %v5299
        %v5938 = vpop.f32.mrf.mxu0
        %v5939 = vadd.f32 %v5375, %v5938
        %v5940 = vpop.f32.mrf.mxu0
        %v5941 = vadd.f32 %v5375, %v5940
        %5942 = vmatmul.bf16.gmra.mxu0 %v5301
        %v5943 = vpop.f32.mrf.mxu0
        %v5944 = vadd.f32 %v5375, %v5943
        %v5945 = vpop.f32.mrf.mxu0
        %v5946 = vadd.f32 %v5375, %v5945
        %5947 = vmatmul.bf16.gmra.mxu0 %v5303
        %v5948 = vpop.f32.mrf.mxu0
        %v5949 = vadd.f32 %v5375, %v5948
        %v5950 = vpop.f32.mrf.mxu0
        %v5951 = vadd.f32 %v5375, %v5950
        %5952 = vmatmul.bf16.gmra.mxu0 %v5305
        %v5953 = vpop.f32.mrf.mxu0
        %v5954 = vadd.f32 %v5375, %v5953
        %v5955 = vpop.f32.mrf.mxu0
        %v5956 = vadd.f32 %v5375, %v5955
        %5957 = vmatmul.bf16.gmra.mxu0 %v5307
        %v5958 = vpop.f32.mrf.mxu0
        %v5959 = vadd.f32 %v5375, %v5958
        %v5960 = vpop.f32.mrf.mxu0
        %v5961 = vadd.f32 %v5375, %v5960
        %5962 = vmatmul.bf16.gmra.mxu0 %v5309
        %v5963 = vpop.f32.mrf.mxu0
        %v5964 = vadd.f32 %v5375, %v5963
        %v5965 = vpop.f32.mrf.mxu0
        %v5966 = vadd.f32 %v5375, %v5965
        %5967 = vmatmul.bf16.gmra.mxu0 %v5311
        %v5968 = vpop.f32.mrf.mxu0
        %v5969 = vadd.f32 %v5375, %v5968
        %v5970 = vpop.f32.mrf.mxu0
        %v5971 = vadd.f32 %v5375, %v5970
        %5972 = vmatmul.bf16.gmra.mxu0 %v5313
        %v5973 = vpop.f32.mrf.mxu0
        %v5974 = vadd.f32 %v5375, %v5973
        %v5975 = vpop.f32.mrf.mxu0
        %v5976 = vadd.f32 %v5375, %v5975
        %5977 = vmatmul.bf16.gmra.mxu0 %v5315
        %v5978 = vpop.f32.mrf.mxu0
        %v5979 = vadd.f32 %v5375, %v5978
        %v5980 = vpop.f32.mrf.mxu0
        %v5981 = vadd.f32 %v5375, %v5980
        %5982 = vmatmul.bf16.gmra.mxu0 %v5317
        %v5983 = vpop.f32.mrf.mxu0
        %v5984 = vadd.f32 %v5375, %v5983
        %v5985 = vpop.f32.mrf.mxu0
        %v5986 = vadd.f32 %v5375, %v5985
        %5987 = vmatmul.bf16.gmra.mxu0 %v5319
        %v5988 = vpop.f32.mrf.mxu0
        %v5989 = vadd.f32 %v5375, %v5988
        %v5990 = vpop.f32.mrf.mxu0
        %v5991 = vadd.f32 %v5375, %v5990
        %5992 = vmatmul.bf16.gmra.mxu0 %v5321
        %v5993 = vpop.f32.mrf.mxu0
        %v5994 = vadd.f32 %v5375, %v5993
        %v5995 = vpop.f32.mrf.mxu0
        %v5996 = vadd.f32 %v5375, %v5995
        %5997 = vmatmul.bf16.gmra.mxu0 %v5323
        %v5998 = vpop.f32.mrf.mxu0
        %v5999 = vadd.f32 %v5375, %v5998
        %v6000 = vpop.f32.mrf.mxu0
        %v6001 = vadd.f32 %v5375, %v6000
        %6002 = vmatmul.bf16.gmra.mxu0 %v5325
        %v6003 = vpop.f32.mrf.mxu0
        %v6004 = vadd.f32 %v5375, %v6003
        %v6005 = vpop.f32.mrf.mxu0
        %v6006 = vadd.f32 %v5375, %v6005
        %6007 = vmatmul.bf16.gmra.mxu0 %v5327
        %v6008 = vpop.f32.mrf.mxu0
        %v6009 = vadd.f32 %v5375, %v6008
        %v6010 = vpop.f32.mrf.mxu0
        %v6011 = vadd.f32 %v5375, %v6010
        %6012 = vmatmul.bf16.gmra.mxu0 %v5329
        %v6013 = vpop.f32.mrf.mxu0
        %v6014 = vadd.f32 %v5375, %v6013
        %v6015 = vpop.f32.mrf.mxu0
        %v6016 = vadd.f32 %v5375, %v6015
        %6017 = vmatmul.bf16.gmra.mxu0 %v5331
        %v6018 = vpop.f32.mrf.mxu0
        %v6019 = vadd.f32 %v5375, %v6018
        %v6020 = vpop.f32.mrf.mxu0
        %v6021 = vadd.f32 %v5375, %v6020
        %6022 = vmatmul.bf16.gmra.mxu0 %v5333
        %v6023 = vpop.f32.mrf.mxu0
        %v6024 = vadd.f32 %v5375, %v6023
        %v6025 = vpop.f32.mrf.mxu0
        %v6026 = vadd.f32 %v5375, %v6025
        %6027 = vmatmul.bf16.gmra.mxu0 %v5335
        %v6028 = vpop.f32.mrf.mxu0
        %v6029 = vadd.f32 %v5375, %v6028
        %v6030 = vpop.f32.mrf.mxu0
        %v6031 = vadd.f32 %v5375, %v6030
        %6032 = vmatmul.bf16.gmra.mxu0 %v5337
        %v6033 = vpop.f32.mrf.mxu0
        %v6034 = vadd.f32 %v5375, %v6033
        %v6035 = vpop.f32.mrf.mxu0
        %v6036 = vadd.f32 %v5375, %v6035
        %6037 = vmatmul.bf16.gmra.mxu0 %v5339
        %v6038 = vpop.f32.mrf.mxu0
        %v6039 = vadd.f32 %v5375, %v6038
        %v6040 = vpop.f32.mrf.mxu0
        %v6041 = vadd.f32 %v5375, %v6040
        %6042 = vdwg.mxu0
        %6043 = vmatpush.bf16.msra.mxu0 %v5503
        %6044 = vmatpush.bf16.msra.mxu0 %v5501
        %6045 = vmatpush.bf16.msra.mxu0 %v5499
        %6046 = vmatpush.bf16.msra.mxu0 %v5497
        %6047 = vmatpush.bf16.msra.mxu0 %v5495
        %6048 = vmatpush.bf16.msra.mxu0 %v5493
        %6049 = vmatpush.bf16.msra.mxu0 %v5491
        %6050 = vmatpush.bf16.msra.mxu0 %v5489
        %6051 = vmatmul.bf16.gmra.mxu0 %v5278
        %v6052 = vpop.f32.mrf.mxu0
        %v6053 = vadd.f32 %v5884, %v6052
        %v6054 = vpop.f32.mrf.mxu0
        %v6055 = vadd.f32 %v5886, %v6054
        %6056 = vmatmul.bf16.gmra.mxu0 %v5280
        %v6057 = vpop.f32.mrf.mxu0
        %v6058 = vadd.f32 %v5889, %v6057
        %v6059 = vpop.f32.mrf.mxu0
        %v6060 = vadd.f32 %v5891, %v6059
        %6061 = vmatmul.bf16.gmra.mxu0 %v5282
        %v6062 = vpop.f32.mrf.mxu0
        %v6063 = vadd.f32 %v5894, %v6062
        %v6064 = vpop.f32.mrf.mxu0
        %v6065 = vadd.f32 %v5896, %v6064
        %6066 = vmatmul.bf16.gmra.mxu0 %v5284
        %v6067 = vpop.f32.mrf.mxu0
        %v6068 = vadd.f32 %v5899, %v6067
        %v6069 = vpop.f32.mrf.mxu0
        %v6070 = vadd.f32 %v5901, %v6069
        %6071 = vmatmul.bf16.gmra.mxu0 %v5286
        %v6072 = vpop.f32.mrf.mxu0
        %v6073 = vadd.f32 %v5904, %v6072
        %v6074 = vpop.f32.mrf.mxu0
        %v6075 = vadd.f32 %v5906, %v6074
        %6076 = vmatmul.bf16.gmra.mxu0 %v5288
        %v6077 = vpop.f32.mrf.mxu0
        %v6078 = vadd.f32 %v5909, %v6077
        %v6079 = vpop.f32.mrf.mxu0
        %v6080 = vadd.f32 %v5911, %v6079
        %6081 = vmatmul.bf16.gmra.mxu0 %v5290
        %v6082 = vpop.f32.mrf.mxu0
        %v6083 = vadd.f32 %v5914, %v6082
        %v6084 = vpop.f32.mrf.mxu0
        %v6085 = vadd.f32 %v5916, %v6084
        %6086 = vmatmul.bf16.gmra.mxu0 %v5292
        %v6087 = vpop.f32.mrf.mxu0
        %v6088 = vadd.f32 %v5919, %v6087
        %v6089 = vpop.f32.mrf.mxu0
        %v6090 = vadd.f32 %v5921, %v6089
        %6091 = vmatmul.bf16.gmra.mxu0 %v5294
        %v6092 = vpop.f32.mrf.mxu0
        %v6093 = vadd.f32 %v5924, %v6092
        %v6094 = vpop.f32.mrf.mxu0
        %v6095 = vadd.f32 %v5926, %v6094
        %6096 = vmatmul.bf16.gmra.mxu0 %v5296
        %v6097 = vpop.f32.mrf.mxu0
        %v6098 = vadd.f32 %v5929, %v6097
        %v6099 = vpop.f32.mrf.mxu0
        %v6100 = vadd.f32 %v5931, %v6099
        %6101 = vmatmul.bf16.gmra.mxu0 %v5298
        %v6102 = vpop.f32.mrf.mxu0
        %v6103 = vadd.f32 %v5934, %v6102
        %v6104 = vpop.f32.mrf.mxu0
        %v6105 = vadd.f32 %v5936, %v6104
        %6106 = vmatmul.bf16.gmra.mxu0 %v5300
        %v6107 = vpop.f32.mrf.mxu0
        %v6108 = vadd.f32 %v5939, %v6107
        %v6109 = vpop.f32.mrf.mxu0
        %v6110 = vadd.f32 %v5941, %v6109
        %6111 = vmatmul.bf16.gmra.mxu0 %v5302
        %v6112 = vpop.f32.mrf.mxu0
        %v6113 = vadd.f32 %v5944, %v6112
        %v6114 = vpop.f32.mrf.mxu0
        %v6115 = vadd.f32 %v5946, %v6114
        %6116 = vmatmul.bf16.gmra.mxu0 %v5304
        %v6117 = vpop.f32.mrf.mxu0
        %v6118 = vadd.f32 %v5949, %v6117
        %v6119 = vpop.f32.mrf.mxu0
        %v6120 = vadd.f32 %v5951, %v6119
        %6121 = vmatmul.bf16.gmra.mxu0 %v5306
        %v6122 = vpop.f32.mrf.mxu0
        %v6123 = vadd.f32 %v5954, %v6122
        %v6124 = vpop.f32.mrf.mxu0
        %v6125 = vadd.f32 %v5956, %v6124
        %6126 = vmatmul.bf16.gmra.mxu0 %v5308
        %v6127 = vpop.f32.mrf.mxu0
        %v6128 = vadd.f32 %v5959, %v6127
        %v6129 = vpop.f32.mrf.mxu0
        %v6130 = vadd.f32 %v5961, %v6129
        %6131 = vmatmul.bf16.gmra.mxu0 %v5310
        %v6132 = vpop.f32.mrf.mxu0
        %v6133 = vadd.f32 %v5964, %v6132
        %v6134 = vpop.f32.mrf.mxu0
        %v6135 = vadd.f32 %v5966, %v6134
        %6136 = vmatmul.bf16.gmra.mxu0 %v5312
        %v6137 = vpop.f32.mrf.mxu0
        %v6138 = vadd.f32 %v5969, %v6137
        %v6139 = vpop.f32.mrf.mxu0
        %v6140 = vadd.f32 %v5971, %v6139
        %6141 = vmatmul.bf16.gmra.mxu0 %v5314
        %v6142 = vpop.f32.mrf.mxu0
        %v6143 = vadd.f32 %v5974, %v6142
        %v6144 = vpop.f32.mrf.mxu0
        %v6145 = vadd.f32 %v5976, %v6144
        %6146 = vmatmul.bf16.gmra.mxu0 %v5316
        %v6147 = vpop.f32.mrf.mxu0
        %v6148 = vadd.f32 %v5979, %v6147
        %v6149 = vpop.f32.mrf.mxu0
        %v6150 = vadd.f32 %v5981, %v6149
        %6151 = vmatmul.bf16.gmra.mxu0 %v5318
        %v6152 = vpop.f32.mrf.mxu0
        %v6153 = vadd.f32 %v5984, %v6152
        %v6154 = vpop.f32.mrf.mxu0
        %v6155 = vadd.f32 %v5986, %v6154
        %6156 = vmatmul.bf16.gmra.mxu0 %v5320
        %v6157 = vpop.f32.mrf.mxu0
        %v6158 = vadd.f32 %v5989, %v6157
        %v6159 = vpop.f32.mrf.mxu0
        %v6160 = vadd.f32 %v5991, %v6159
        %6161 = vmatmul.bf16.gmra.mxu0 %v5322
        %v6162 = vpop.f32.mrf.mxu0
        %v6163 = vadd.f32 %v5994, %v6162
        %v6164 = vpop.f32.mrf.mxu0
        %v6165 = vadd.f32 %v5996, %v6164
        %6166 = vmatmul.bf16.gmra.mxu0 %v5324
        %v6167 = vpop.f32.mrf.mxu0
        %v6168 = vadd.f32 %v5999, %v6167
        %v6169 = vpop.f32.mrf.mxu0
        %v6170 = vadd.f32 %v6001, %v6169
        %6171 = vmatmul.bf16.gmra.mxu0 %v5326
        %v6172 = vpop.f32.mrf.mxu0
        %v6173 = vadd.f32 %v6004, %v6172
        %v6174 = vpop.f32.mrf.mxu0
        %v6175 = vadd.f32 %v6006, %v6174
        %6176 = vmatmul.bf16.gmra.mxu0 %v5328
        %v6177 = vpop.f32.mrf.mxu0
        %v6178 = vadd.f32 %v6009, %v6177
        %v6179 = vpop.f32.mrf.mxu0
        %v6180 = vadd.f32 %v6011, %v6179
        %6181 = vmatmul.bf16.gmra.mxu0 %v5330
        %v6182 = vpop.f32.mrf.mxu0
        %v6183 = vadd.f32 %v6014, %v6182
        %v6184 = vpop.f32.mrf.mxu0
        %v6185 = vadd.f32 %v6016, %v6184
        %6186 = vmatmul.bf16.gmra.mxu0 %v5332
        %v6187 = vpop.f32.mrf.mxu0
        %v6188 = vadd.f32 %v6019, %v6187
        %v6189 = vpop.f32.mrf.mxu0
        %v6190 = vadd.f32 %v6021, %v6189
        %6191 = vmatmul.bf16.gmra.mxu0 %v5334
        %v6192 = vpop.f32.mrf.mxu0
        %v6193 = vadd.f32 %v6024, %v6192
        %v6194 = vpop.f32.mrf.mxu0
        %v6195 = vadd.f32 %v6026, %v6194
        %6196 = vmatmul.bf16.gmra.mxu0 %v5336
        %v6197 = vpop.f32.mrf.mxu0
        %v6198 = vadd.f32 %v6029, %v6197
        %v6199 = vpop.f32.mrf.mxu0
        %v6200 = vadd.f32 %v6031, %v6199
        %6201 = vmatmul.bf16.gmra.mxu0 %v5338
        %v6202 = vpop.f32.mrf.mxu0
        %v6203 = vadd.f32 %v6034, %v6202
        %v6204 = vpop.f32.mrf.mxu0
        %v6205 = vadd.f32 %v6036, %v6204
        %6206 = vmatmul.bf16.gmra.mxu0 %v5340
        %v6207 = vpop.f32.mrf.mxu0
        %v6208 = vadd.f32 %v6039, %v6207
        %v6209 = vpop.f32.mrf.mxu0
        %v6210 = vadd.f32 %v6041, %v6209
        %6211 = vdwg.mxu0
        %v6212 = vmax.f32 %v5715, 0.0
        %v6213 = vmax.f32 %v6053, 0.0
        %v6214 = vmax.f32 %v5717, 0.0
        %v6215 = vmax.f32 %v6055, 0.0
        %v6216 = vmax.f32 %v5720, 0.0
        %v6217 = vmax.f32 %v6058, 0.0
        %v6218 = vmax.f32 %v5722, 0.0
        %v6219 = vmax.f32 %v6060, 0.0
        %v6220 = vmax.f32 %v5725, 0.0
        %v6221 = vmax.f32 %v6063, 0.0
        %v6222 = vmax.f32 %v5727, 0.0
        %v6223 = vmax.f32 %v6065, 0.0
        %v6224 = vmax.f32 %v5730, 0.0
        %v6225 = vmax.f32 %v6068, 0.0
        %v6226 = vmax.f32 %v5732, 0.0
        %v6227 = vmax.f32 %v6070, 0.0
        %v6228 = vmax.f32 %v5735, 0.0
        %v6229 = vmax.f32 %v6073, 0.0
        %v6230 = vmax.f32 %v5737, 0.0
        %v6231 = vmax.f32 %v6075, 0.0
        %v6232 = vmax.f32 %v5740, 0.0
        %v6233 = vmax.f32 %v6078, 0.0
        %v6234 = vmax.f32 %v5742, 0.0
        %v6235 = vmax.f32 %v6080, 0.0
        %v6236 = vmax.f32 %v5745, 0.0
        %v6237 = vmax.f32 %v6083, 0.0
        %v6238 = vmax.f32 %v5747, 0.0
        %v6239 = vmax.f32 %v6085, 0.0
        %v6240 = vmax.f32 %v5750, 0.0
        %v6241 = vmax.f32 %v6088, 0.0
        %v6242 = vmax.f32 %v5752, 0.0
        %v6243 = vmax.f32 %v6090, 0.0
        %v6244 = vmax.f32 %v5755, 0.0
        %v6245 = vmax.f32 %v6093, 0.0
        %v6246 = vmax.f32 %v5757, 0.0
        %v6247 = vmax.f32 %v6095, 0.0
        %v6248 = vmax.f32 %v5760, 0.0
        %v6249 = vmax.f32 %v6098, 0.0
        %v6250 = vmax.f32 %v5762, 0.0
        %v6251 = vmax.f32 %v6100, 0.0
        %v6252 = vmax.f32 %v5765, 0.0
        %v6253 = vmax.f32 %v6103, 0.0
        %v6254 = vmax.f32 %v5767, 0.0
        %v6255 = vmax.f32 %v6105, 0.0
        %v6256 = vmax.f32 %v5770, 0.0
        %v6257 = vmax.f32 %v6108, 0.0
        %v6258 = vmax.f32 %v5772, 0.0
        %v6259 = vmax.f32 %v6110, 0.0
        %v6260 = vmax.f32 %v5775, 0.0
        %v6261 = vmax.f32 %v6113, 0.0
        %v6262 = vmax.f32 %v5777, 0.0
        %v6263 = vmax.f32 %v6115, 0.0
        %v6264 = vmax.f32 %v5780, 0.0
        %v6265 = vmax.f32 %v6118, 0.0
        %v6266 = vmax.f32 %v5782, 0.0
        %v6267 = vmax.f32 %v6120, 0.0
        %v6268 = vmax.f32 %v5785, 0.0
        %v6269 = vmax.f32 %v6123, 0.0
        %v6270 = vmax.f32 %v5787, 0.0
        %v6271 = vmax.f32 %v6125, 0.0
        %v6272 = vmax.f32 %v5790, 0.0
        %v6273 = vmax.f32 %v6128, 0.0
        %v6274 = vmax.f32 %v5792, 0.0
        %v6275 = vmax.f32 %v6130, 0.0
        %v6276 = vmax.f32 %v5795, 0.0
        %v6277 = vmax.f32 %v6133, 0.0
        %v6278 = vmax.f32 %v5797, 0.0
        %v6279 = vmax.f32 %v6135, 0.0
        %v6280 = vmax.f32 %v5800, 0.0
        %v6281 = vmax.f32 %v6138, 0.0
        %v6282 = vmax.f32 %v5802, 0.0
        %v6283 = vmax.f32 %v6140, 0.0
        %v6284 = vmax.f32 %v5805, 0.0
        %v6285 = vmax.f32 %v6143, 0.0
        %v6286 = vmax.f32 %v5807, 0.0
        %v6287 = vmax.f32 %v6145, 0.0
        %v6288 = vmax.f32 %v5810, 0.0
        %v6289 = vmax.f32 %v6148, 0.0
        %v6290 = vmax.f32 %v5812, 0.0
        %v6291 = vmax.f32 %v6150, 0.0
        %v6292 = vmax.f32 %v5815, 0.0
        %v6293 = vmax.f32 %v6153, 0.0
        %v6294 = vmax.f32 %v5817, 0.0
        %v6295 = vmax.f32 %v6155, 0.0
        %v6296 = vmax.f32 %v5820, 0.0
        %v6297 = vmax.f32 %v6158, 0.0
        %v6298 = vmax.f32 %v5822, 0.0
        %v6299 = vmax.f32 %v6160, 0.0
        %v6300 = vmax.f32 %v5825, 0.0
        %v6301 = vmax.f32 %v6163, 0.0
        %v6302 = vmax.f32 %v5827, 0.0
        %v6303 = vmax.f32 %v6165, 0.0
        %v6304 = vmax.f32 %v5830, 0.0
        %v6305 = vmax.f32 %v6168, 0.0
        %v6306 = vmax.f32 %v5832, 0.0
        %v6307 = vmax.f32 %v6170, 0.0
        %v6308 = vmax.f32 %v5835, 0.0
        %v6309 = vmax.f32 %v6173, 0.0
        %v6310 = vmax.f32 %v5837, 0.0
        %v6311 = vmax.f32 %v6175, 0.0
        %v6312 = vmax.f32 %v5840, 0.0
        %v6313 = vmax.f32 %v6178, 0.0
        %v6314 = vmax.f32 %v5842, 0.0
        %v6315 = vmax.f32 %v6180, 0.0
        %v6316 = vmax.f32 %v5845, 0.0
        %v6317 = vmax.f32 %v6183, 0.0
        %v6318 = vmax.f32 %v5847, 0.0
        %v6319 = vmax.f32 %v6185, 0.0
        %v6320 = vmax.f32 %v5850, 0.0
        %v6321 = vmax.f32 %v6188, 0.0
        %v6322 = vmax.f32 %v5852, 0.0
        %v6323 = vmax.f32 %v6190, 0.0
        %v6324 = vmax.f32 %v5855, 0.0
        %v6325 = vmax.f32 %v6193, 0.0
        %v6326 = vmax.f32 %v5857, 0.0
        %v6327 = vmax.f32 %v6195, 0.0
        %v6328 = vmax.f32 %v5860, 0.0
        %v6329 = vmax.f32 %v6198, 0.0
        %v6330 = vmax.f32 %v5862, 0.0
        %v6331 = vmax.f32 %v6200, 0.0
        %v6332 = vmax.f32 %v5865, 0.0
        %v6333 = vmax.f32 %v6203, 0.0
        %v6334 = vmax.f32 %v5867, 0.0
        %v6335 = vmax.f32 %v6205, 0.0
        %v6336 = vmax.f32 %v5870, 0.0
        %v6337 = vmax.f32 %v6208, 0.0
        %v6338 = vmax.f32 %v5872, 0.0
        %v6339 = vmax.f32 %v6210, 0.0
        %v6340 = vpack.c.bf16 %v6214, %v6212
        %v6341 = vpack.c.bf16 %v6215, %v6213
        %v6342 = vpack.c.bf16 %v6218, %v6216
        %v6343 = vpack.c.bf16 %v6219, %v6217
        %v6344 = vpack.c.bf16 %v6222, %v6220
        %v6345 = vpack.c.bf16 %v6223, %v6221
        %v6346 = vpack.c.bf16 %v6226, %v6224
        %v6347 = vpack.c.bf16 %v6227, %v6225
        %v6348 = vpack.c.bf16 %v6230, %v6228
        %v6349 = vpack.c.bf16 %v6231, %v6229
        %v6350 = vpack.c.bf16 %v6234, %v6232
        %v6351 = vpack.c.bf16 %v6235, %v6233
        %v6352 = vpack.c.bf16 %v6238, %v6236
        %v6353 = vpack.c.bf16 %v6239, %v6237
        %v6354 = vpack.c.bf16 %v6242, %v6240
        %v6355 = vpack.c.bf16 %v6243, %v6241
        %v6356 = vpack.c.bf16 %v6246, %v6244
        %v6357 = vpack.c.bf16 %v6247, %v6245
        %v6358 = vpack.c.bf16 %v6250, %v6248
        %v6359 = vpack.c.bf16 %v6251, %v6249
        %v6360 = vpack.c.bf16 %v6254, %v6252
        %v6361 = vpack.c.bf16 %v6255, %v6253
        %v6362 = vpack.c.bf16 %v6258, %v6256
        %v6363 = vpack.c.bf16 %v6259, %v6257
        %v6364 = vpack.c.bf16 %v6262, %v6260
        %v6365 = vpack.c.bf16 %v6263, %v6261
        %v6366 = vpack.c.bf16 %v6266, %v6264
        %v6367 = vpack.c.bf16 %v6267, %v6265
        %v6368 = vpack.c.bf16 %v6270, %v6268
        %v6369 = vpack.c.bf16 %v6271, %v6269
        %v6370 = vpack.c.bf16 %v6274, %v6272
        %v6371 = vpack.c.bf16 %v6275, %v6273
        %v6372 = vpack.c.bf16 %v6278, %v6276
        %v6373 = vpack.c.bf16 %v6279, %v6277
        %v6374 = vpack.c.bf16 %v6282, %v6280
        %v6375 = vpack.c.bf16 %v6283, %v6281
        %v6376 = vpack.c.bf16 %v6286, %v6284
        %v6377 = vpack.c.bf16 %v6287, %v6285
        %v6378 = vpack.c.bf16 %v6290, %v6288
        %v6379 = vpack.c.bf16 %v6291, %v6289
        %v6380 = vpack.c.bf16 %v6294, %v6292
        %v6381 = vpack.c.bf16 %v6295, %v6293
        %v6382 = vpack.c.bf16 %v6298, %v6296
        %v6383 = vpack.c.bf16 %v6299, %v6297
        %v6384 = vpack.c.bf16 %v6302, %v6300
        %v6385 = vpack.c.bf16 %v6303, %v6301
        %v6386 = vpack.c.bf16 %v6306, %v6304
        %v6387 = vpack.c.bf16 %v6307, %v6305
        %v6388 = vpack.c.bf16 %v6310, %v6308
        %v6389 = vpack.c.bf16 %v6311, %v6309
        %v6390 = vpack.c.bf16 %v6314, %v6312
        %v6391 = vpack.c.bf16 %v6315, %v6313
        %v6392 = vpack.c.bf16 %v6318, %v6316
        %v6393 = vpack.c.bf16 %v6319, %v6317
        %v6394 = vpack.c.bf16 %v6322, %v6320
        %v6395 = vpack.c.bf16 %v6323, %v6321
        %v6396 = vpack.c.bf16 %v6326, %v6324
        %v6397 = vpack.c.bf16 %v6327, %v6325
        %v6398 = vpack.c.bf16 %v6330, %v6328
        %v6399 = vpack.c.bf16 %v6331, %v6329
        %v6400 = vpack.c.bf16 %v6334, %v6332
        %v6401 = vpack.c.bf16 %v6335, %v6333
        %v6402 = vpack.c.bf16 %v6338, %v6336
        %v6403 = vpack.c.bf16 %v6339, %v6337
        %s6404 = scalar_lea.vmem [#allocation2], 1024
        %v6405 = vld [vmem:[%s6404] sm:$0xff]
        %v6406 = vld [vmem:[%s6404 + $0x8] sm:$0xff]
        %v6407 = vld [vmem:[%s6404 + $0x10] sm:$0xff]
        %v6408 = vld [vmem:[%s6404 + $0x18] sm:$0xff]
        %v6409 = vld [vmem:[%s6404 + $0x20] sm:$0xff]
        %v6410 = vld [vmem:[%s6404 + $0x28] sm:$0xff]
        %v6411 = vld [vmem:[%s6404 + $0x30] sm:$0xff]
        %v6412 = vld [vmem:[%s6404 + $0x38] sm:$0xff]
        %v6413 = vld [vmem:[%s6404 + $0x40] sm:$0xff]
        %v6414 = vld [vmem:[%s6404 + $0x48] sm:$0xff]
        %v6415 = vld [vmem:[%s6404 + $0x50] sm:$0xff]
        %v6416 = vld [vmem:[%s6404 + $0x58] sm:$0xff]
        %v6417 = vld [vmem:[%s6404 + $0x60] sm:$0xff]
        %v6418 = vld [vmem:[%s6404 + $0x68] sm:$0xff]
        %v6419 = vld [vmem:[%s6404 + $0x70] sm:$0xff]
        %v6420 = vld [vmem:[%s6404 + $0x78] sm:$0xff]
        %v6421 = vld [vmem:[%s6404 + $0x80] sm:$0xff]
        %v6422 = vld [vmem:[%s6404 + $0x88] sm:$0xff]
        %v6423 = vld [vmem:[%s6404 + $0x90] sm:$0xff]
        %v6424 = vld [vmem:[%s6404 + $0x98] sm:$0xff]
        %v6425 = vld [vmem:[%s6404 + $0xa0] sm:$0xff]
        %v6426 = vld [vmem:[%s6404 + $0xa8] sm:$0xff]
        %v6427 = vld [vmem:[%s6404 + $0xb0] sm:$0xff]
        %v6428 = vld [vmem:[%s6404 + $0xb8] sm:$0xff]
        %v6429 = vld [vmem:[%s6404 + $0xc0] sm:$0xff]
        %v6430 = vld [vmem:[%s6404 + $0xc8] sm:$0xff]
        %v6431 = vld [vmem:[%s6404 + $0xd0] sm:$0xff]
        %v6432 = vld [vmem:[%s6404 + $0xd8] sm:$0xff]
        %v6433 = vld [vmem:[%s6404 + $0xe0] sm:$0xff]
        %v6434 = vld [vmem:[%s6404 + $0xe8] sm:$0xff]
        %v6435 = vld [vmem:[%s6404 + $0xf0] sm:$0xff]
        %v6436 = vld [vmem:[%s6404 + $0xf8] sm:$0xff]
        %v6438 = vperm.slane %v337, 0
        %v6439 = vperm.slane %v337, 4
        %v6442 = vperm.slane %v6438, 0
        %v6443 = vperm.slane %v6439, 0
        %v6444 = vmul.f32 %v343, %v6442
        %v6445 = vmul.f32 %v343, %v6443
        %v6446 = vmul.f32 %v348, %v6442
        %v6447 = vmul.f32 %v348, %v6443
        %v6448 = vmul.f32 %v353, %v6442
        %v6449 = vmul.f32 %v353, %v6443
        %v6450 = vmul.f32 %v358, %v6442
        %v6451 = vmul.f32 %v358, %v6443
        %v6452 = vmul.f32 %v363, %v6442
        %v6453 = vmul.f32 %v363, %v6443
        %v6454 = vmul.f32 %v368, %v6442
        %v6455 = vmul.f32 %v368, %v6443
        %v6456 = vmul.f32 %v373, %v6442
        %v6457 = vmul.f32 %v373, %v6443
        %v6458 = vmul.f32 %v378, %v6442
        %v6459 = vmul.f32 %v378, %v6443
        %v6460 = vmul.f32 %v383, %v6442
        %v6461 = vmul.f32 %v383, %v6443
        %v6462 = vmul.f32 %v388, %v6442
        %v6463 = vmul.f32 %v388, %v6443
        %v6464 = vmul.f32 %v393, %v6442
        %v6465 = vmul.f32 %v393, %v6443
        %v6466 = vmul.f32 %v398, %v6442
        %v6467 = vmul.f32 %v398, %v6443
        %v6468 = vmul.f32 %v403, %v6442
        %v6469 = vmul.f32 %v403, %v6443
        %v6470 = vmul.f32 %v408, %v6442
        %v6471 = vmul.f32 %v408, %v6443
        %v6472 = vmul.f32 %v413, %v6442
        %v6473 = vmul.f32 %v413, %v6443
        %v6474 = vmul.f32 %v418, %v6442
        %v6475 = vmul.f32 %v418, %v6443
        %v6476 = vmul.f32 %v423, %v6442
        %v6477 = vmul.f32 %v423, %v6443
        %v6478 = vmul.f32 %v428, %v6442
        %v6479 = vmul.f32 %v428, %v6443
        %v6480 = vmul.f32 %v433, %v6442
        %v6481 = vmul.f32 %v433, %v6443
        %v6482 = vmul.f32 %v438, %v6442
        %v6483 = vmul.f32 %v438, %v6443
        %v6484 = vmul.f32 %v443, %v6442
        %v6485 = vmul.f32 %v443, %v6443
        %v6486 = vmul.f32 %v448, %v6442
        %v6487 = vmul.f32 %v448, %v6443
        %v6488 = vmul.f32 %v453, %v6442
        %v6489 = vmul.f32 %v453, %v6443
        %v6490 = vmul.f32 %v458, %v6442
        %v6491 = vmul.f32 %v458, %v6443
        %v6492 = vmul.f32 %v463, %v6442
        %v6493 = vmul.f32 %v463, %v6443
        %v6494 = vmul.f32 %v468, %v6442
        %v6495 = vmul.f32 %v468, %v6443
        %v6496 = vmul.f32 %v473, %v6442
        %v6497 = vmul.f32 %v473, %v6443
        %v6498 = vmul.f32 %v478, %v6442
        %v6499 = vmul.f32 %v478, %v6443
        %v6500 = vmul.f32 %v483, %v6442
        %v6501 = vmul.f32 %v483, %v6443
        %v6502 = vmul.f32 %v488, %v6442
        %v6503 = vmul.f32 %v488, %v6443
        %v6504 = vmul.f32 %v493, %v6442
        %v6505 = vmul.f32 %v493, %v6443
        %v6506 = vmul.f32 %v498, %v6442
        %v6507 = vmul.f32 %v498, %v6443
        %v6508 = vmul.f32 %v503, %v6442
        %v6509 = vmul.f32 %v503, %v6443
        %v6510 = vmul.f32 %v508, %v6442
        %v6511 = vmul.f32 %v508, %v6443
        %v6512 = vmul.f32 %v513, %v6442
        %v6513 = vmul.f32 %v513, %v6443
        %v6514 = vmul.f32 %v518, %v6442
        %v6515 = vmul.f32 %v518, %v6443
        %v6516 = vmul.f32 %v523, %v6442
        %v6517 = vmul.f32 %v523, %v6443
        %v6518 = vmul.f32 %v528, %v6442
        %v6519 = vmul.f32 %v528, %v6443
        %v6520 = vmul.f32 %v533, %v6442
        %v6521 = vmul.f32 %v533, %v6443
        %v6522 = vmul.f32 %v538, %v6442
        %v6523 = vmul.f32 %v538, %v6443
        %v6524 = vmul.f32 %v543, %v6442
        %v6525 = vmul.f32 %v543, %v6443
        %v6526 = vmul.f32 %v548, %v6442
        %v6527 = vmul.f32 %v548, %v6443
        %v6528 = vmul.f32 %v553, %v6442
        %v6529 = vmul.f32 %v553, %v6443
        %v6530 = vmul.f32 %v558, %v6442
        %v6531 = vmul.f32 %v558, %v6443
        %v6532 = vmul.f32 %v563, %v6442
        %v6533 = vmul.f32 %v563, %v6443
        %v6534 = vmul.f32 %v568, %v6442
        %v6535 = vmul.f32 %v568, %v6443
        %v6536 = vmul.f32 %v573, %v6442
        %v6537 = vmul.f32 %v573, %v6443
        %v6538 = vmul.f32 %v578, %v6442
        %v6539 = vmul.f32 %v578, %v6443
        %v6540 = vmul.f32 %v583, %v6442
        %v6541 = vmul.f32 %v583, %v6443
        %v6542 = vmul.f32 %v588, %v6442
        %v6543 = vmul.f32 %v588, %v6443
        %v6544 = vmul.f32 %v593, %v6442
        %v6545 = vmul.f32 %v593, %v6443
        %v6546 = vmul.f32 %v598, %v6442
        %v6547 = vmul.f32 %v598, %v6443
        %v6548 = vmul.f32 %v603, %v6442
        %v6549 = vmul.f32 %v603, %v6443
        %v6550 = vmul.f32 %v608, %v6442
        %v6551 = vmul.f32 %v608, %v6443
        %v6552 = vmul.f32 %v613, %v6442
        %v6553 = vmul.f32 %v613, %v6443
        %v6554 = vmul.f32 %v618, %v6442
        %v6555 = vmul.f32 %v618, %v6443
        %v6556 = vmul.f32 %v623, %v6442
        %v6557 = vmul.f32 %v623, %v6443
        %v6558 = vmul.f32 %v628, %v6442
        %v6559 = vmul.f32 %v628, %v6443
        %v6560 = vmul.f32 %v633, %v6442
        %v6561 = vmul.f32 %v633, %v6443
        %v6562 = vmul.f32 %v638, %v6442
        %v6563 = vmul.f32 %v638, %v6443
        %v6564 = vmul.f32 %v643, %v6442
        %v6565 = vmul.f32 %v643, %v6443
        %v6566 = vmul.f32 %v648, %v6442
        %v6567 = vmul.f32 %v648, %v6443
        %v6568 = vmul.f32 %v653, %v6442
        %v6569 = vmul.f32 %v653, %v6443
        %v6570 = vmul.f32 %v658, %v6442
        %v6571 = vmul.f32 %v658, %v6443
        %v6572 = vperm.slane %v337, 1
        %v6573 = vperm.slane %v337, 5
        %v6576 = vperm.slane %v6572, 1
        %v6577 = vperm.slane %v6573, 1
        %v6578 = vmul.f32 %v797, %v6576
        %v6579 = vmul.f32 %v797, %v6577
        %v6580 = vmul.f32 %v801, %v6576
        %v6581 = vmul.f32 %v801, %v6577
        %v6582 = vmul.f32 %v805, %v6576
        %v6583 = vmul.f32 %v805, %v6577
        %v6584 = vmul.f32 %v809, %v6576
        %v6585 = vmul.f32 %v809, %v6577
        %v6586 = vmul.f32 %v813, %v6576
        %v6587 = vmul.f32 %v813, %v6577
        %v6588 = vmul.f32 %v817, %v6576
        %v6589 = vmul.f32 %v817, %v6577
        %v6590 = vmul.f32 %v821, %v6576
        %v6591 = vmul.f32 %v821, %v6577
        %v6592 = vmul.f32 %v825, %v6576
        %v6593 = vmul.f32 %v825, %v6577
        %v6594 = vmul.f32 %v829, %v6576
        %v6595 = vmul.f32 %v829, %v6577
        %v6596 = vmul.f32 %v833, %v6576
        %v6597 = vmul.f32 %v833, %v6577
        %v6598 = vmul.f32 %v837, %v6576
        %v6599 = vmul.f32 %v837, %v6577
        %v6600 = vmul.f32 %v841, %v6576
        %v6601 = vmul.f32 %v841, %v6577
        %v6602 = vmul.f32 %v845, %v6576
        %v6603 = vmul.f32 %v845, %v6577
        %v6604 = vmul.f32 %v849, %v6576
        %v6605 = vmul.f32 %v849, %v6577
        %v6606 = vmul.f32 %v853, %v6576
        %v6607 = vmul.f32 %v853, %v6577
        %v6608 = vmul.f32 %v857, %v6576
        %v6609 = vmul.f32 %v857, %v6577
        %v6610 = vmul.f32 %v861, %v6576
        %v6611 = vmul.f32 %v861, %v6577
        %v6612 = vmul.f32 %v865, %v6576
        %v6613 = vmul.f32 %v865, %v6577
        %v6614 = vmul.f32 %v869, %v6576
        %v6615 = vmul.f32 %v869, %v6577
        %v6616 = vmul.f32 %v873, %v6576
        %v6617 = vmul.f32 %v873, %v6577
        %v6618 = vmul.f32 %v877, %v6576
        %v6619 = vmul.f32 %v877, %v6577
        %v6620 = vmul.f32 %v881, %v6576
        %v6621 = vmul.f32 %v881, %v6577
        %v6622 = vmul.f32 %v885, %v6576
        %v6623 = vmul.f32 %v885, %v6577
        %v6624 = vmul.f32 %v889, %v6576
        %v6625 = vmul.f32 %v889, %v6577
        %v6626 = vmul.f32 %v893, %v6576
        %v6627 = vmul.f32 %v893, %v6577
        %v6628 = vmul.f32 %v897, %v6576
        %v6629 = vmul.f32 %v897, %v6577
        %v6630 = vmul.f32 %v901, %v6576
        %v6631 = vmul.f32 %v901, %v6577
        %v6632 = vmul.f32 %v905, %v6576
        %v6633 = vmul.f32 %v905, %v6577
        %v6634 = vmul.f32 %v909, %v6576
        %v6635 = vmul.f32 %v909, %v6577
        %v6636 = vmul.f32 %v913, %v6576
        %v6637 = vmul.f32 %v913, %v6577
        %v6638 = vmul.f32 %v917, %v6576
        %v6639 = vmul.f32 %v917, %v6577
        %v6640 = vmul.f32 %v921, %v6576
        %v6641 = vmul.f32 %v921, %v6577
        %v6642 = vmul.f32 %v925, %v6576
        %v6643 = vmul.f32 %v925, %v6577
        %v6644 = vmul.f32 %v929, %v6576
        %v6645 = vmul.f32 %v929, %v6577
        %v6646 = vmul.f32 %v933, %v6576
        %v6647 = vmul.f32 %v933, %v6577
        %v6648 = vmul.f32 %v937, %v6576
        %v6649 = vmul.f32 %v937, %v6577
        %v6650 = vmul.f32 %v941, %v6576
        %v6651 = vmul.f32 %v941, %v6577
        %v6652 = vmul.f32 %v945, %v6576
        %v6653 = vmul.f32 %v945, %v6577
        %v6654 = vmul.f32 %v949, %v6576
        %v6655 = vmul.f32 %v949, %v6577
        %v6656 = vmul.f32 %v953, %v6576
        %v6657 = vmul.f32 %v953, %v6577
        %v6658 = vmul.f32 %v957, %v6576
        %v6659 = vmul.f32 %v957, %v6577
        %v6660 = vmul.f32 %v961, %v6576
        %v6661 = vmul.f32 %v961, %v6577
        %v6662 = vmul.f32 %v965, %v6576
        %v6663 = vmul.f32 %v965, %v6577
        %v6664 = vmul.f32 %v969, %v6576
        %v6665 = vmul.f32 %v969, %v6577
        %v6666 = vmul.f32 %v973, %v6576
        %v6667 = vmul.f32 %v973, %v6577
        %v6668 = vmul.f32 %v977, %v6576
        %v6669 = vmul.f32 %v977, %v6577
        %v6670 = vmul.f32 %v981, %v6576
        %v6671 = vmul.f32 %v981, %v6577
        %v6672 = vmul.f32 %v985, %v6576
        %v6673 = vmul.f32 %v985, %v6577
        %v6674 = vmul.f32 %v989, %v6576
        %v6675 = vmul.f32 %v989, %v6577
        %v6676 = vmul.f32 %v993, %v6576
        %v6677 = vmul.f32 %v993, %v6577
        %v6678 = vmul.f32 %v997, %v6576
        %v6679 = vmul.f32 %v997, %v6577
        %v6680 = vmul.f32 %v1001, %v6576
        %v6681 = vmul.f32 %v1001, %v6577
        %v6682 = vmul.f32 %v1005, %v6576
        %v6683 = vmul.f32 %v1005, %v6577
        %v6684 = vmul.f32 %v1009, %v6576
        %v6685 = vmul.f32 %v1009, %v6577
        %v6686 = vmul.f32 %v1013, %v6576
        %v6687 = vmul.f32 %v1013, %v6577
        %v6688 = vmul.f32 %v1017, %v6576
        %v6689 = vmul.f32 %v1017, %v6577
        %v6690 = vmul.f32 %v1021, %v6576
        %v6691 = vmul.f32 %v1021, %v6577
        %v6692 = vmul.f32 %v1025, %v6576
        %v6693 = vmul.f32 %v1025, %v6577
        %v6694 = vmul.f32 %v1029, %v6576
        %v6695 = vmul.f32 %v1029, %v6577
        %v6696 = vmul.f32 %v1033, %v6576
        %v6697 = vmul.f32 %v1033, %v6577
        %v6698 = vmul.f32 %v1037, %v6576
        %v6699 = vmul.f32 %v1037, %v6577
        %v6700 = vmul.f32 %v1041, %v6576
        %v6701 = vmul.f32 %v1041, %v6577
        %v6702 = vmul.f32 %v1045, %v6576
        %v6703 = vmul.f32 %v1045, %v6577
        %v6704 = vmul.f32 %v1049, %v6576
        %v6705 = vmul.f32 %v1049, %v6577
        %v6706 = vadd.f32 %v6444, %v6578
        %v6707 = vadd.f32 %v6445, %v6579
        %v6708 = vadd.f32 %v6446, %v6580
        %v6709 = vadd.f32 %v6447, %v6581
        %v6710 = vadd.f32 %v6448, %v6582
        %v6711 = vadd.f32 %v6449, %v6583
        %v6712 = vadd.f32 %v6450, %v6584
        %v6713 = vadd.f32 %v6451, %v6585
        %v6714 = vadd.f32 %v6452, %v6586
        %v6715 = vadd.f32 %v6453, %v6587
        %v6716 = vadd.f32 %v6454, %v6588
        %v6717 = vadd.f32 %v6455, %v6589
        %v6718 = vadd.f32 %v6456, %v6590
        %v6719 = vadd.f32 %v6457, %v6591
        %v6720 = vadd.f32 %v6458, %v6592
        %v6721 = vadd.f32 %v6459, %v6593
        %v6722 = vadd.f32 %v6460, %v6594
        %v6723 = vadd.f32 %v6461, %v6595
        %v6724 = vadd.f32 %v6462, %v6596
        %v6725 = vadd.f32 %v6463, %v6597
        %v6726 = vadd.f32 %v6464, %v6598
        %v6727 = vadd.f32 %v6465, %v6599
        %v6728 = vadd.f32 %v6466, %v6600
        %v6729 = vadd.f32 %v6467, %v6601
        %v6730 = vadd.f32 %v6468, %v6602
        %v6731 = vadd.f32 %v6469, %v6603
        %v6732 = vadd.f32 %v6470, %v6604
        %v6733 = vadd.f32 %v6471, %v6605
        %v6734 = vadd.f32 %v6472, %v6606
        %v6735 = vadd.f32 %v6473, %v6607
        %v6736 = vadd.f32 %v6474, %v6608
        %v6737 = vadd.f32 %v6475, %v6609
        %v6738 = vadd.f32 %v6476, %v6610
        %v6739 = vadd.f32 %v6477, %v6611
        %v6740 = vadd.f32 %v6478, %v6612
        %v6741 = vadd.f32 %v6479, %v6613
        %v6742 = vadd.f32 %v6480, %v6614
        %v6743 = vadd.f32 %v6481, %v6615
        %v6744 = vadd.f32 %v6482, %v6616
        %v6745 = vadd.f32 %v6483, %v6617
        %v6746 = vadd.f32 %v6484, %v6618
        %v6747 = vadd.f32 %v6485, %v6619
        %v6748 = vadd.f32 %v6486, %v6620
        %v6749 = vadd.f32 %v6487, %v6621
        %v6750 = vadd.f32 %v6488, %v6622
        %v6751 = vadd.f32 %v6489, %v6623
        %v6752 = vadd.f32 %v6490, %v6624
        %v6753 = vadd.f32 %v6491, %v6625
        %v6754 = vadd.f32 %v6492, %v6626
        %v6755 = vadd.f32 %v6493, %v6627
        %v6756 = vadd.f32 %v6494, %v6628
        %v6757 = vadd.f32 %v6495, %v6629
        %v6758 = vadd.f32 %v6496, %v6630
        %v6759 = vadd.f32 %v6497, %v6631
        %v6760 = vadd.f32 %v6498, %v6632
        %v6761 = vadd.f32 %v6499, %v6633
        %v6762 = vadd.f32 %v6500, %v6634
        %v6763 = vadd.f32 %v6501, %v6635
        %v6764 = vadd.f32 %v6502, %v6636
        %v6765 = vadd.f32 %v6503, %v6637
        %v6766 = vadd.f32 %v6504, %v6638
        %v6767 = vadd.f32 %v6505, %v6639
        %v6768 = vadd.f32 %v6506, %v6640
        %v6769 = vadd.f32 %v6507, %v6641
        %v6770 = vadd.f32 %v6508, %v6642
        %v6771 = vadd.f32 %v6509, %v6643
        %v6772 = vadd.f32 %v6510, %v6644
        %v6773 = vadd.f32 %v6511, %v6645
        %v6774 = vadd.f32 %v6512, %v6646
        %v6775 = vadd.f32 %v6513, %v6647
        %v6776 = vadd.f32 %v6514, %v6648
        %v6777 = vadd.f32 %v6515, %v6649
        %v6778 = vadd.f32 %v6516, %v6650
        %v6779 = vadd.f32 %v6517, %v6651
        %v6780 = vadd.f32 %v6518, %v6652
        %v6781 = vadd.f32 %v6519, %v6653
        %v6782 = vadd.f32 %v6520, %v6654
        %v6783 = vadd.f32 %v6521, %v6655
        %v6784 = vadd.f32 %v6522, %v6656
        %v6785 = vadd.f32 %v6523, %v6657
        %v6786 = vadd.f32 %v6524, %v6658
        %v6787 = vadd.f32 %v6525, %v6659
        %v6788 = vadd.f32 %v6526, %v6660
        %v6789 = vadd.f32 %v6527, %v6661
        %v6790 = vadd.f32 %v6528, %v6662
        %v6791 = vadd.f32 %v6529, %v6663
        %v6792 = vadd.f32 %v6530, %v6664
        %v6793 = vadd.f32 %v6531, %v6665
        %v6794 = vadd.f32 %v6532, %v6666
        %v6795 = vadd.f32 %v6533, %v6667
        %v6796 = vadd.f32 %v6534, %v6668
        %v6797 = vadd.f32 %v6535, %v6669
        %v6798 = vadd.f32 %v6536, %v6670
        %v6799 = vadd.f32 %v6537, %v6671
        %v6800 = vadd.f32 %v6538, %v6672
        %v6801 = vadd.f32 %v6539, %v6673
        %v6802 = vadd.f32 %v6540, %v6674
        %v6803 = vadd.f32 %v6541, %v6675
        %v6804 = vadd.f32 %v6542, %v6676
        %v6805 = vadd.f32 %v6543, %v6677
        %v6806 = vadd.f32 %v6544, %v6678
        %v6807 = vadd.f32 %v6545, %v6679
        %v6808 = vadd.f32 %v6546, %v6680
        %v6809 = vadd.f32 %v6547, %v6681
        %v6810 = vadd.f32 %v6548, %v6682
        %v6811 = vadd.f32 %v6549, %v6683
        %v6812 = vadd.f32 %v6550, %v6684
        %v6813 = vadd.f32 %v6551, %v6685
        %v6814 = vadd.f32 %v6552, %v6686
        %v6815 = vadd.f32 %v6553, %v6687
        %v6816 = vadd.f32 %v6554, %v6688
        %v6817 = vadd.f32 %v6555, %v6689
        %v6818 = vadd.f32 %v6556, %v6690
        %v6819 = vadd.f32 %v6557, %v6691
        %v6820 = vadd.f32 %v6558, %v6692
        %v6821 = vadd.f32 %v6559, %v6693
        %v6822 = vadd.f32 %v6560, %v6694
        %v6823 = vadd.f32 %v6561, %v6695
        %v6824 = vadd.f32 %v6562, %v6696
        %v6825 = vadd.f32 %v6563, %v6697
        %v6826 = vadd.f32 %v6564, %v6698
        %v6827 = vadd.f32 %v6565, %v6699
        %v6828 = vadd.f32 %v6566, %v6700
        %v6829 = vadd.f32 %v6567, %v6701
        %v6830 = vadd.f32 %v6568, %v6702
        %v6831 = vadd.f32 %v6569, %v6703
        %v6832 = vadd.f32 %v6570, %v6704
        %v6833 = vadd.f32 %v6571, %v6705
        %v6834 = vperm.slane %v337, 2
        %v6835 = vperm.slane %v337, 6
        %v6838 = vperm.slane %v6834, 2
        %v6839 = vperm.slane %v6835, 2
        %v6840 = vmul.f32 %v1315, %v6838
        %v6841 = vmul.f32 %v1315, %v6839
        %v6842 = vmul.f32 %v1319, %v6838
        %v6843 = vmul.f32 %v1319, %v6839
        %v6844 = vmul.f32 %v1323, %v6838
        %v6845 = vmul.f32 %v1323, %v6839
        %v6846 = vmul.f32 %v1327, %v6838
        %v6847 = vmul.f32 %v1327, %v6839
        %v6848 = vmul.f32 %v1331, %v6838
        %v6849 = vmul.f32 %v1331, %v6839
        %v6850 = vmul.f32 %v1335, %v6838
        %v6851 = vmul.f32 %v1335, %v6839
        %v6852 = vmul.f32 %v1339, %v6838
        %v6853 = vmul.f32 %v1339, %v6839
        %v6854 = vmul.f32 %v1343, %v6838
        %v6855 = vmul.f32 %v1343, %v6839
        %v6856 = vmul.f32 %v1347, %v6838
        %v6857 = vmul.f32 %v1347, %v6839
        %v6858 = vmul.f32 %v1351, %v6838
        %v6859 = vmul.f32 %v1351, %v6839
        %v6860 = vmul.f32 %v1355, %v6838
        %v6861 = vmul.f32 %v1355, %v6839
        %v6862 = vmul.f32 %v1359, %v6838
        %v6863 = vmul.f32 %v1359, %v6839
        %v6864 = vmul.f32 %v1363, %v6838
        %v6865 = vmul.f32 %v1363, %v6839
        %v6866 = vmul.f32 %v1367, %v6838
        %v6867 = vmul.f32 %v1367, %v6839
        %v6868 = vmul.f32 %v1371, %v6838
        %v6869 = vmul.f32 %v1371, %v6839
        %v6870 = vmul.f32 %v1375, %v6838
        %v6871 = vmul.f32 %v1375, %v6839
        %v6872 = vmul.f32 %v1379, %v6838
        %v6873 = vmul.f32 %v1379, %v6839
        %v6874 = vmul.f32 %v1383, %v6838
        %v6875 = vmul.f32 %v1383, %v6839
        %v6876 = vmul.f32 %v1387, %v6838
        %v6877 = vmul.f32 %v1387, %v6839
        %v6878 = vmul.f32 %v1391, %v6838
        %v6879 = vmul.f32 %v1391, %v6839
        %v6880 = vmul.f32 %v1395, %v6838
        %v6881 = vmul.f32 %v1395, %v6839
        %v6882 = vmul.f32 %v1399, %v6838
        %v6883 = vmul.f32 %v1399, %v6839
        %v6884 = vmul.f32 %v1403, %v6838
        %v6885 = vmul.f32 %v1403, %v6839
        %v6886 = vmul.f32 %v1407, %v6838
        %v6887 = vmul.f32 %v1407, %v6839
        %v6888 = vmul.f32 %v1411, %v6838
        %v6889 = vmul.f32 %v1411, %v6839
        %v6890 = vmul.f32 %v1415, %v6838
        %v6891 = vmul.f32 %v1415, %v6839
        %v6892 = vmul.f32 %v1419, %v6838
        %v6893 = vmul.f32 %v1419, %v6839
        %v6894 = vmul.f32 %v1423, %v6838
        %v6895 = vmul.f32 %v1423, %v6839
        %v6896 = vmul.f32 %v1427, %v6838
        %v6897 = vmul.f32 %v1427, %v6839
        %v6898 = vmul.f32 %v1431, %v6838
        %v6899 = vmul.f32 %v1431, %v6839
        %v6900 = vmul.f32 %v1435, %v6838
        %v6901 = vmul.f32 %v1435, %v6839
        %v6902 = vmul.f32 %v1439, %v6838
        %v6903 = vmul.f32 %v1439, %v6839
        %v6904 = vmul.f32 %v1443, %v6838
        %v6905 = vmul.f32 %v1443, %v6839
        %v6906 = vmul.f32 %v1447, %v6838
        %v6907 = vmul.f32 %v1447, %v6839
        %v6908 = vmul.f32 %v1451, %v6838
        %v6909 = vmul.f32 %v1451, %v6839
        %v6910 = vmul.f32 %v1455, %v6838
        %v6911 = vmul.f32 %v1455, %v6839
        %v6912 = vmul.f32 %v1459, %v6838
        %v6913 = vmul.f32 %v1459, %v6839
        %v6914 = vmul.f32 %v1463, %v6838
        %v6915 = vmul.f32 %v1463, %v6839
        %v6916 = vmul.f32 %v1467, %v6838
        %v6917 = vmul.f32 %v1467, %v6839
        %v6918 = vmul.f32 %v1471, %v6838
        %v6919 = vmul.f32 %v1471, %v6839
        %v6920 = vmul.f32 %v1475, %v6838
        %v6921 = vmul.f32 %v1475, %v6839
        %v6922 = vmul.f32 %v1479, %v6838
        %v6923 = vmul.f32 %v1479, %v6839
        %v6924 = vmul.f32 %v1483, %v6838
        %v6925 = vmul.f32 %v1483, %v6839
        %v6926 = vmul.f32 %v1487, %v6838
        %v6927 = vmul.f32 %v1487, %v6839
        %v6928 = vmul.f32 %v1491, %v6838
        %v6929 = vmul.f32 %v1491, %v6839
        %v6930 = vmul.f32 %v1495, %v6838
        %v6931 = vmul.f32 %v1495, %v6839
        %v6932 = vmul.f32 %v1499, %v6838
        %v6933 = vmul.f32 %v1499, %v6839
        %v6934 = vmul.f32 %v1503, %v6838
        %v6935 = vmul.f32 %v1503, %v6839
        %v6936 = vmul.f32 %v1507, %v6838
        %v6937 = vmul.f32 %v1507, %v6839
        %v6938 = vmul.f32 %v1511, %v6838
        %v6939 = vmul.f32 %v1511, %v6839
        %v6940 = vmul.f32 %v1515, %v6838
        %v6941 = vmul.f32 %v1515, %v6839
        %v6942 = vmul.f32 %v1519, %v6838
        %v6943 = vmul.f32 %v1519, %v6839
        %v6944 = vmul.f32 %v1523, %v6838
        %v6945 = vmul.f32 %v1523, %v6839
        %v6946 = vmul.f32 %v1527, %v6838
        %v6947 = vmul.f32 %v1527, %v6839
        %v6948 = vmul.f32 %v1531, %v6838
        %v6949 = vmul.f32 %v1531, %v6839
        %v6950 = vmul.f32 %v1535, %v6838
        %v6951 = vmul.f32 %v1535, %v6839
        %v6952 = vmul.f32 %v1539, %v6838
        %v6953 = vmul.f32 %v1539, %v6839
        %v6954 = vmul.f32 %v1543, %v6838
        %v6955 = vmul.f32 %v1543, %v6839
        %v6956 = vmul.f32 %v1547, %v6838
        %v6957 = vmul.f32 %v1547, %v6839
        %v6958 = vmul.f32 %v1551, %v6838
        %v6959 = vmul.f32 %v1551, %v6839
        %v6960 = vmul.f32 %v1555, %v6838
        %v6961 = vmul.f32 %v1555, %v6839
        %v6962 = vmul.f32 %v1559, %v6838
        %v6963 = vmul.f32 %v1559, %v6839
        %v6964 = vmul.f32 %v1563, %v6838
        %v6965 = vmul.f32 %v1563, %v6839
        %v6966 = vmul.f32 %v1567, %v6838
        %v6967 = vmul.f32 %v1567, %v6839
        %v6968 = vadd.f32 %v6706, %v6840
        %v6969 = vadd.f32 %v6707, %v6841
        %v6970 = vadd.f32 %v6708, %v6842
        %v6971 = vadd.f32 %v6709, %v6843
        %v6972 = vadd.f32 %v6710, %v6844
        %v6973 = vadd.f32 %v6711, %v6845
        %v6974 = vadd.f32 %v6712, %v6846
        %v6975 = vadd.f32 %v6713, %v6847
        %v6976 = vadd.f32 %v6714, %v6848
        %v6977 = vadd.f32 %v6715, %v6849
        %v6978 = vadd.f32 %v6716, %v6850
        %v6979 = vadd.f32 %v6717, %v6851
        %v6980 = vadd.f32 %v6718, %v6852
        %v6981 = vadd.f32 %v6719, %v6853
        %v6982 = vadd.f32 %v6720, %v6854
        %v6983 = vadd.f32 %v6721, %v6855
        %v6984 = vadd.f32 %v6722, %v6856
        %v6985 = vadd.f32 %v6723, %v6857
        %v6986 = vadd.f32 %v6724, %v6858
        %v6987 = vadd.f32 %v6725, %v6859
        %v6988 = vadd.f32 %v6726, %v6860
        %v6989 = vadd.f32 %v6727, %v6861
        %v6990 = vadd.f32 %v6728, %v6862
        %v6991 = vadd.f32 %v6729, %v6863
        %v6992 = vadd.f32 %v6730, %v6864
        %v6993 = vadd.f32 %v6731, %v6865
        %v6994 = vadd.f32 %v6732, %v6866
        %v6995 = vadd.f32 %v6733, %v6867
        %v6996 = vadd.f32 %v6734, %v6868
        %v6997 = vadd.f32 %v6735, %v6869
        %v6998 = vadd.f32 %v6736, %v6870
        %v6999 = vadd.f32 %v6737, %v6871
        %v7000 = vadd.f32 %v6738, %v6872
        %v7001 = vadd.f32 %v6739, %v6873
        %v7002 = vadd.f32 %v6740, %v6874
        %v7003 = vadd.f32 %v6741, %v6875
        %v7004 = vadd.f32 %v6742, %v6876
        %v7005 = vadd.f32 %v6743, %v6877
        %v7006 = vadd.f32 %v6744, %v6878
        %v7007 = vadd.f32 %v6745, %v6879
        %v7008 = vadd.f32 %v6746, %v6880
        %v7009 = vadd.f32 %v6747, %v6881
        %v7010 = vadd.f32 %v6748, %v6882
        %v7011 = vadd.f32 %v6749, %v6883
        %v7012 = vadd.f32 %v6750, %v6884
        %v7013 = vadd.f32 %v6751, %v6885
        %v7014 = vadd.f32 %v6752, %v6886
        %v7015 = vadd.f32 %v6753, %v6887
        %v7016 = vadd.f32 %v6754, %v6888
        %v7017 = vadd.f32 %v6755, %v6889
        %v7018 = vadd.f32 %v6756, %v6890
        %v7019 = vadd.f32 %v6757, %v6891
        %v7020 = vadd.f32 %v6758, %v6892
        %v7021 = vadd.f32 %v6759, %v6893
        %v7022 = vadd.f32 %v6760, %v6894
        %v7023 = vadd.f32 %v6761, %v6895
        %v7024 = vadd.f32 %v6762, %v6896
        %v7025 = vadd.f32 %v6763, %v6897
        %v7026 = vadd.f32 %v6764, %v6898
        %v7027 = vadd.f32 %v6765, %v6899
        %v7028 = vadd.f32 %v6766, %v6900
        %v7029 = vadd.f32 %v6767, %v6901
        %v7030 = vadd.f32 %v6768, %v6902
        %v7031 = vadd.f32 %v6769, %v6903
        %v7032 = vadd.f32 %v6770, %v6904
        %v7033 = vadd.f32 %v6771, %v6905
        %v7034 = vadd.f32 %v6772, %v6906
        %v7035 = vadd.f32 %v6773, %v6907
        %v7036 = vadd.f32 %v6774, %v6908
        %v7037 = vadd.f32 %v6775, %v6909
        %v7038 = vadd.f32 %v6776, %v6910
        %v7039 = vadd.f32 %v6777, %v6911
        %v7040 = vadd.f32 %v6778, %v6912
        %v7041 = vadd.f32 %v6779, %v6913
        %v7042 = vadd.f32 %v6780, %v6914
        %v7043 = vadd.f32 %v6781, %v6915
        %v7044 = vadd.f32 %v6782, %v6916
        %v7045 = vadd.f32 %v6783, %v6917
        %v7046 = vadd.f32 %v6784, %v6918
        %v7047 = vadd.f32 %v6785, %v6919
        %v7048 = vadd.f32 %v6786, %v6920
        %v7049 = vadd.f32 %v6787, %v6921
        %v7050 = vadd.f32 %v6788, %v6922
        %v7051 = vadd.f32 %v6789, %v6923
        %v7052 = vadd.f32 %v6790, %v6924
        %v7053 = vadd.f32 %v6791, %v6925
        %v7054 = vadd.f32 %v6792, %v6926
        %v7055 = vadd.f32 %v6793, %v6927
        %v7056 = vadd.f32 %v6794, %v6928
        %v7057 = vadd.f32 %v6795, %v6929
        %v7058 = vadd.f32 %v6796, %v6930
        %v7059 = vadd.f32 %v6797, %v6931
        %v7060 = vadd.f32 %v6798, %v6932
        %v7061 = vadd.f32 %v6799, %v6933
        %v7062 = vadd.f32 %v6800, %v6934
        %v7063 = vadd.f32 %v6801, %v6935
        %v7064 = vadd.f32 %v6802, %v6936
        %v7065 = vadd.f32 %v6803, %v6937
        %v7066 = vadd.f32 %v6804, %v6938
        %v7067 = vadd.f32 %v6805, %v6939
        %v7068 = vadd.f32 %v6806, %v6940
        %v7069 = vadd.f32 %v6807, %v6941
        %v7070 = vadd.f32 %v6808, %v6942
        %v7071 = vadd.f32 %v6809, %v6943
        %v7072 = vadd.f32 %v6810, %v6944
        %v7073 = vadd.f32 %v6811, %v6945
        %v7074 = vadd.f32 %v6812, %v6946
        %v7075 = vadd.f32 %v6813, %v6947
        %v7076 = vadd.f32 %v6814, %v6948
        %v7077 = vadd.f32 %v6815, %v6949
        %v7078 = vadd.f32 %v6816, %v6950
        %v7079 = vadd.f32 %v6817, %v6951
        %v7080 = vadd.f32 %v6818, %v6952
        %v7081 = vadd.f32 %v6819, %v6953
        %v7082 = vadd.f32 %v6820, %v6954
        %v7083 = vadd.f32 %v6821, %v6955
        %v7084 = vadd.f32 %v6822, %v6956
        %v7085 = vadd.f32 %v6823, %v6957
        %v7086 = vadd.f32 %v6824, %v6958
        %v7087 = vadd.f32 %v6825, %v6959
        %v7088 = vadd.f32 %v6826, %v6960
        %v7089 = vadd.f32 %v6827, %v6961
        %v7090 = vadd.f32 %v6828, %v6962
        %v7091 = vadd.f32 %v6829, %v6963
        %v7092 = vadd.f32 %v6830, %v6964
        %v7093 = vadd.f32 %v6831, %v6965
        %v7094 = vadd.f32 %v6832, %v6966
        %v7095 = vadd.f32 %v6833, %v6967
        %v7128 = vunpack.c.l.b16 %v6405
        %v7129 = vunpack.c.h.b16 %v6405
        %v7130 = vunpack.c.l.b16 %v6406
        %v7131 = vunpack.c.h.b16 %v6406
        %v7132 = vunpack.c.l.b16 %v6407
        %v7133 = vunpack.c.h.b16 %v6407
        %v7134 = vunpack.c.l.b16 %v6408
        %v7135 = vunpack.c.h.b16 %v6408
        %v7136 = vunpack.c.l.b16 %v6409
        %v7137 = vunpack.c.h.b16 %v6409
        %v7138 = vunpack.c.l.b16 %v6410
        %v7139 = vunpack.c.h.b16 %v6410
        %v7140 = vunpack.c.l.b16 %v6411
        %v7141 = vunpack.c.h.b16 %v6411
        %v7142 = vunpack.c.l.b16 %v6412
        %v7143 = vunpack.c.h.b16 %v6412
        %v7144 = vunpack.c.l.b16 %v6413
        %v7145 = vunpack.c.h.b16 %v6413
        %v7146 = vunpack.c.l.b16 %v6414
        %v7147 = vunpack.c.h.b16 %v6414
        %v7148 = vunpack.c.l.b16 %v6415
        %v7149 = vunpack.c.h.b16 %v6415
        %v7150 = vunpack.c.l.b16 %v6416
        %v7151 = vunpack.c.h.b16 %v6416
        %v7152 = vunpack.c.l.b16 %v6417
        %v7153 = vunpack.c.h.b16 %v6417
        %v7154 = vunpack.c.l.b16 %v6418
        %v7155 = vunpack.c.h.b16 %v6418
        %v7156 = vunpack.c.l.b16 %v6419
        %v7157 = vunpack.c.h.b16 %v6419
        %v7158 = vunpack.c.l.b16 %v6420
        %v7159 = vunpack.c.h.b16 %v6420
        %v7160 = vunpack.c.l.b16 %v6421
        %v7161 = vunpack.c.h.b16 %v6421
        %v7162 = vunpack.c.l.b16 %v6422
        %v7163 = vunpack.c.h.b16 %v6422
        %v7164 = vunpack.c.l.b16 %v6423
        %v7165 = vunpack.c.h.b16 %v6423
        %v7166 = vunpack.c.l.b16 %v6424
        %v7167 = vunpack.c.h.b16 %v6424
        %v7168 = vunpack.c.l.b16 %v6425
        %v7169 = vunpack.c.h.b16 %v6425
        %v7170 = vunpack.c.l.b16 %v6426
        %v7171 = vunpack.c.h.b16 %v6426
        %v7172 = vunpack.c.l.b16 %v6427
        %v7173 = vunpack.c.h.b16 %v6427
        %v7174 = vunpack.c.l.b16 %v6428
        %v7175 = vunpack.c.h.b16 %v6428
        %v7176 = vunpack.c.l.b16 %v6429
        %v7177 = vunpack.c.h.b16 %v6429
        %v7178 = vunpack.c.l.b16 %v6430
        %v7179 = vunpack.c.h.b16 %v6430
        %v7180 = vunpack.c.l.b16 %v6431
        %v7181 = vunpack.c.h.b16 %v6431
        %v7182 = vunpack.c.l.b16 %v6432
        %v7183 = vunpack.c.h.b16 %v6432
        %v7184 = vunpack.c.l.b16 %v6433
        %v7185 = vunpack.c.h.b16 %v6433
        %v7186 = vunpack.c.l.b16 %v6434
        %v7187 = vunpack.c.h.b16 %v6434
        %v7188 = vunpack.c.l.b16 %v6435
        %v7189 = vunpack.c.h.b16 %v6435
        %v7190 = vunpack.c.l.b16 %v6436
        %v7191 = vunpack.c.h.b16 %v6436
        %v7192 = vpack.c.b16 %v7130, %v7128
        %v7193 = vpack.c.b16 %v7131, %v7129
        %v7194 = vpack.c.b16 %v7134, %v7132
        %v7195 = vpack.c.b16 %v7135, %v7133
        %v7196 = vpack.c.b16 %v7138, %v7136
        %v7197 = vpack.c.b16 %v7139, %v7137
        %v7198 = vpack.c.b16 %v7142, %v7140
        %v7199 = vpack.c.b16 %v7143, %v7141
        %v7200 = vpack.c.b16 %v7146, %v7144
        %v7201 = vpack.c.b16 %v7147, %v7145
        %v7202 = vpack.c.b16 %v7150, %v7148
        %v7203 = vpack.c.b16 %v7151, %v7149
        %v7204 = vpack.c.b16 %v7154, %v7152
        %v7205 = vpack.c.b16 %v7155, %v7153
        %v7206 = vpack.c.b16 %v7158, %v7156
        %v7207 = vpack.c.b16 %v7159, %v7157
        %v7208 = vpack.c.b16 %v7162, %v7160
        %v7209 = vpack.c.b16 %v7163, %v7161
        %v7210 = vpack.c.b16 %v7166, %v7164
        %v7211 = vpack.c.b16 %v7167, %v7165
        %v7212 = vpack.c.b16 %v7170, %v7168
        %v7213 = vpack.c.b16 %v7171, %v7169
        %v7214 = vpack.c.b16 %v7174, %v7172
        %v7215 = vpack.c.b16 %v7175, %v7173
        %v7216 = vpack.c.b16 %v7178, %v7176
        %v7217 = vpack.c.b16 %v7179, %v7177
        %v7218 = vpack.c.b16 %v7182, %v7180
        %v7219 = vpack.c.b16 %v7183, %v7181
        %v7220 = vpack.c.b16 %v7186, %v7184
        %v7221 = vpack.c.b16 %v7187, %v7185
        %v7222 = vpack.c.b16 %v7190, %v7188
        %v7223 = vpack.c.b16 %v7191, %v7189
        %7256 = vmatpush.bf16.msra.mxu0 %v7206
        %7257 = vmatpush.bf16.msra.mxu0 %v7204
        %7258 = vmatpush.bf16.msra.mxu0 %v7202
        %7259 = vmatpush.bf16.msra.mxu0 %v7200
        %7260 = vmatpush.bf16.msra.mxu0 %v7198
        %7261 = vmatpush.bf16.msra.mxu0 %v7196
        %7262 = vmatpush.bf16.msra.mxu0 %v7194
        %7263 = vmatpush.bf16.msra.mxu0 %v7192
        %7264 = vmatmul.bf16.gmra.mxu0 %v6340
        %v7265 = vpop.f32.mrf.mxu0
        %v7266 = vadd.f32 %v6968, %v7265
        %v7267 = vpop.f32.mrf.mxu0
        %v7268 = vadd.f32 %v6970, %v7267
        %7269 = vmatmul.bf16.gmra.mxu0 %v6342
        %v7270 = vpop.f32.mrf.mxu0
        %v7271 = vadd.f32 %v6972, %v7270
        %v7272 = vpop.f32.mrf.mxu0
        %v7273 = vadd.f32 %v6974, %v7272
        %7274 = vmatmul.bf16.gmra.mxu0 %v6344
        %v7275 = vpop.f32.mrf.mxu0
        %v7276 = vadd.f32 %v6976, %v7275
        %v7277 = vpop.f32.mrf.mxu0
        %v7278 = vadd.f32 %v6978, %v7277
        %7279 = vmatmul.bf16.gmra.mxu0 %v6346
        %v7280 = vpop.f32.mrf.mxu0
        %v7281 = vadd.f32 %v6980, %v7280
        %v7282 = vpop.f32.mrf.mxu0
        %v7283 = vadd.f32 %v6982, %v7282
        %7284 = vmatmul.bf16.gmra.mxu0 %v6348
        %v7285 = vpop.f32.mrf.mxu0
        %v7286 = vadd.f32 %v6984, %v7285
        %v7287 = vpop.f32.mrf.mxu0
        %v7288 = vadd.f32 %v6986, %v7287
        %7289 = vmatmul.bf16.gmra.mxu0 %v6350
        %v7290 = vpop.f32.mrf.mxu0
        %v7291 = vadd.f32 %v6988, %v7290
        %v7292 = vpop.f32.mrf.mxu0
        %v7293 = vadd.f32 %v6990, %v7292
        %7294 = vmatmul.bf16.gmra.mxu0 %v6352
        %v7295 = vpop.f32.mrf.mxu0
        %v7296 = vadd.f32 %v6992, %v7295
        %v7297 = vpop.f32.mrf.mxu0
        %v7298 = vadd.f32 %v6994, %v7297
        %7299 = vmatmul.bf16.gmra.mxu0 %v6354
        %v7300 = vpop.f32.mrf.mxu0
        %v7301 = vadd.f32 %v6996, %v7300
        %v7302 = vpop.f32.mrf.mxu0
        %v7303 = vadd.f32 %v6998, %v7302
        %7304 = vmatmul.bf16.gmra.mxu0 %v6356
        %v7305 = vpop.f32.mrf.mxu0
        %v7306 = vadd.f32 %v7000, %v7305
        %v7307 = vpop.f32.mrf.mxu0
        %v7308 = vadd.f32 %v7002, %v7307
        %7309 = vmatmul.bf16.gmra.mxu0 %v6358
        %v7310 = vpop.f32.mrf.mxu0
        %v7311 = vadd.f32 %v7004, %v7310
        %v7312 = vpop.f32.mrf.mxu0
        %v7313 = vadd.f32 %v7006, %v7312
        %7314 = vmatmul.bf16.gmra.mxu0 %v6360
        %v7315 = vpop.f32.mrf.mxu0
        %v7316 = vadd.f32 %v7008, %v7315
        %v7317 = vpop.f32.mrf.mxu0
        %v7318 = vadd.f32 %v7010, %v7317
        %7319 = vmatmul.bf16.gmra.mxu0 %v6362
        %v7320 = vpop.f32.mrf.mxu0
        %v7321 = vadd.f32 %v7012, %v7320
        %v7322 = vpop.f32.mrf.mxu0
        %v7323 = vadd.f32 %v7014, %v7322
        %7324 = vmatmul.bf16.gmra.mxu0 %v6364
        %v7325 = vpop.f32.mrf.mxu0
        %v7326 = vadd.f32 %v7016, %v7325
        %v7327 = vpop.f32.mrf.mxu0
        %v7328 = vadd.f32 %v7018, %v7327
        %7329 = vmatmul.bf16.gmra.mxu0 %v6366
        %v7330 = vpop.f32.mrf.mxu0
        %v7331 = vadd.f32 %v7020, %v7330
        %v7332 = vpop.f32.mrf.mxu0
        %v7333 = vadd.f32 %v7022, %v7332
        %7334 = vmatmul.bf16.gmra.mxu0 %v6368
        %v7335 = vpop.f32.mrf.mxu0
        %v7336 = vadd.f32 %v7024, %v7335
        %v7337 = vpop.f32.mrf.mxu0
        %v7338 = vadd.f32 %v7026, %v7337
        %7339 = vmatmul.bf16.gmra.mxu0 %v6370
        %v7340 = vpop.f32.mrf.mxu0
        %v7341 = vadd.f32 %v7028, %v7340
        %v7342 = vpop.f32.mrf.mxu0
        %v7343 = vadd.f32 %v7030, %v7342
        %7344 = vmatmul.bf16.gmra.mxu0 %v6372
        %v7345 = vpop.f32.mrf.mxu0
        %v7346 = vadd.f32 %v7032, %v7345
        %v7347 = vpop.f32.mrf.mxu0
        %v7348 = vadd.f32 %v7034, %v7347
        %7349 = vmatmul.bf16.gmra.mxu0 %v6374
        %v7350 = vpop.f32.mrf.mxu0
        %v7351 = vadd.f32 %v7036, %v7350
        %v7352 = vpop.f32.mrf.mxu0
        %v7353 = vadd.f32 %v7038, %v7352
        %7354 = vmatmul.bf16.gmra.mxu0 %v6376
        %v7355 = vpop.f32.mrf.mxu0
        %v7356 = vadd.f32 %v7040, %v7355
        %v7357 = vpop.f32.mrf.mxu0
        %v7358 = vadd.f32 %v7042, %v7357
        %7359 = vmatmul.bf16.gmra.mxu0 %v6378
        %v7360 = vpop.f32.mrf.mxu0
        %v7361 = vadd.f32 %v7044, %v7360
        %v7362 = vpop.f32.mrf.mxu0
        %v7363 = vadd.f32 %v7046, %v7362
        %7364 = vmatmul.bf16.gmra.mxu0 %v6380
        %v7365 = vpop.f32.mrf.mxu0
        %v7366 = vadd.f32 %v7048, %v7365
        %v7367 = vpop.f32.mrf.mxu0
        %v7368 = vadd.f32 %v7050, %v7367
        %7369 = vmatmul.bf16.gmra.mxu0 %v6382
        %v7370 = vpop.f32.mrf.mxu0
        %v7371 = vadd.f32 %v7052, %v7370
        %v7372 = vpop.f32.mrf.mxu0
        %v7373 = vadd.f32 %v7054, %v7372
        %7374 = vmatmul.bf16.gmra.mxu0 %v6384
        %v7375 = vpop.f32.mrf.mxu0
        %v7376 = vadd.f32 %v7056, %v7375
        %v7377 = vpop.f32.mrf.mxu0
        %v7378 = vadd.f32 %v7058, %v7377
        %7379 = vmatmul.bf16.gmra.mxu0 %v6386
        %v7380 = vpop.f32.mrf.mxu0
        %v7381 = vadd.f32 %v7060, %v7380
        %v7382 = vpop.f32.mrf.mxu0
        %v7383 = vadd.f32 %v7062, %v7382
        %7384 = vmatmul.bf16.gmra.mxu0 %v6388
        %v7385 = vpop.f32.mrf.mxu0
        %v7386 = vadd.f32 %v7064, %v7385
        %v7387 = vpop.f32.mrf.mxu0
        %v7388 = vadd.f32 %v7066, %v7387
        %7389 = vmatmul.bf16.gmra.mxu0 %v6390
        %v7390 = vpop.f32.mrf.mxu0
        %v7391 = vadd.f32 %v7068, %v7390
        %v7392 = vpop.f32.mrf.mxu0
        %v7393 = vadd.f32 %v7070, %v7392
        %7394 = vmatmul.bf16.gmra.mxu0 %v6392
        %v7395 = vpop.f32.mrf.mxu0
        %v7396 = vadd.f32 %v7072, %v7395
        %v7397 = vpop.f32.mrf.mxu0
        %v7398 = vadd.f32 %v7074, %v7397
        %7399 = vmatmul.bf16.gmra.mxu0 %v6394
        %v7400 = vpop.f32.mrf.mxu0
        %v7401 = vadd.f32 %v7076, %v7400
        %v7402 = vpop.f32.mrf.mxu0
        %v7403 = vadd.f32 %v7078, %v7402
        %7404 = vmatmul.bf16.gmra.mxu0 %v6396
        %v7405 = vpop.f32.mrf.mxu0
        %v7406 = vadd.f32 %v7080, %v7405
        %v7407 = vpop.f32.mrf.mxu0
        %v7408 = vadd.f32 %v7082, %v7407
        %7409 = vmatmul.bf16.gmra.mxu0 %v6398
        %v7410 = vpop.f32.mrf.mxu0
        %v7411 = vadd.f32 %v7084, %v7410
        %v7412 = vpop.f32.mrf.mxu0
        %v7413 = vadd.f32 %v7086, %v7412
        %7414 = vmatmul.bf16.gmra.mxu0 %v6400
        %v7415 = vpop.f32.mrf.mxu0
        %v7416 = vadd.f32 %v7088, %v7415
        %v7417 = vpop.f32.mrf.mxu0
        %v7418 = vadd.f32 %v7090, %v7417
        %7419 = vmatmul.bf16.gmra.mxu0 %v6402
        %v7420 = vpop.f32.mrf.mxu0
        %v7421 = vadd.f32 %v7092, %v7420
        %v7422 = vpop.f32.mrf.mxu0
        %v7423 = vadd.f32 %v7094, %v7422
        %7424 = vdwg.mxu0
        %7425 = vmatpush.bf16.msra.mxu0 %v7222
        %7426 = vmatpush.bf16.msra.mxu0 %v7220
        %7427 = vmatpush.bf16.msra.mxu0 %v7218
        %7428 = vmatpush.bf16.msra.mxu0 %v7216
        %7429 = vmatpush.bf16.msra.mxu0 %v7214
        %7430 = vmatpush.bf16.msra.mxu0 %v7212
        %7431 = vmatpush.bf16.msra.mxu0 %v7210
        %7432 = vmatpush.bf16.msra.mxu0 %v7208
        %7433 = vmatmul.bf16.gmra.mxu0 %v6341
        %v7434 = vpop.f32.mrf.mxu0
        %v7435 = vadd.f32 %v7266, %v7434
        %v7436 = vpop.f32.mrf.mxu0
        %v7437 = vadd.f32 %v7268, %v7436
        %7438 = vmatmul.bf16.gmra.mxu0 %v6343
        %v7439 = vpop.f32.mrf.mxu0
        %v7440 = vadd.f32 %v7271, %v7439
        %v7441 = vpop.f32.mrf.mxu0
        %v7442 = vadd.f32 %v7273, %v7441
        %7443 = vmatmul.bf16.gmra.mxu0 %v6345
        %v7444 = vpop.f32.mrf.mxu0
        %v7445 = vadd.f32 %v7276, %v7444
        %v7446 = vpop.f32.mrf.mxu0
        %v7447 = vadd.f32 %v7278, %v7446
        %7448 = vmatmul.bf16.gmra.mxu0 %v6347
        %v7449 = vpop.f32.mrf.mxu0
        %v7450 = vadd.f32 %v7281, %v7449
        %v7451 = vpop.f32.mrf.mxu0
        %v7452 = vadd.f32 %v7283, %v7451
        %7453 = vmatmul.bf16.gmra.mxu0 %v6349
        %v7454 = vpop.f32.mrf.mxu0
        %v7455 = vadd.f32 %v7286, %v7454
        %v7456 = vpop.f32.mrf.mxu0
        %v7457 = vadd.f32 %v7288, %v7456
        %7458 = vmatmul.bf16.gmra.mxu0 %v6351
        %v7459 = vpop.f32.mrf.mxu0
        %v7460 = vadd.f32 %v7291, %v7459
        %v7461 = vpop.f32.mrf.mxu0
        %v7462 = vadd.f32 %v7293, %v7461
        %7463 = vmatmul.bf16.gmra.mxu0 %v6353
        %v7464 = vpop.f32.mrf.mxu0
        %v7465 = vadd.f32 %v7296, %v7464
        %v7466 = vpop.f32.mrf.mxu0
        %v7467 = vadd.f32 %v7298, %v7466
        %7468 = vmatmul.bf16.gmra.mxu0 %v6355
        %v7469 = vpop.f32.mrf.mxu0
        %v7470 = vadd.f32 %v7301, %v7469
        %v7471 = vpop.f32.mrf.mxu0
        %v7472 = vadd.f32 %v7303, %v7471
        %7473 = vmatmul.bf16.gmra.mxu0 %v6357
        %v7474 = vpop.f32.mrf.mxu0
        %v7475 = vadd.f32 %v7306, %v7474
        %v7476 = vpop.f32.mrf.mxu0
        %v7477 = vadd.f32 %v7308, %v7476
        %7478 = vmatmul.bf16.gmra.mxu0 %v6359
        %v7479 = vpop.f32.mrf.mxu0
        %v7480 = vadd.f32 %v7311, %v7479
        %v7481 = vpop.f32.mrf.mxu0
        %v7482 = vadd.f32 %v7313, %v7481
        %7483 = vmatmul.bf16.gmra.mxu0 %v6361
        %v7484 = vpop.f32.mrf.mxu0
        %v7485 = vadd.f32 %v7316, %v7484
        %v7486 = vpop.f32.mrf.mxu0
        %v7487 = vadd.f32 %v7318, %v7486
        %7488 = vmatmul.bf16.gmra.mxu0 %v6363
        %v7489 = vpop.f32.mrf.mxu0
        %v7490 = vadd.f32 %v7321, %v7489
        %v7491 = vpop.f32.mrf.mxu0
        %v7492 = vadd.f32 %v7323, %v7491
        %7493 = vmatmul.bf16.gmra.mxu0 %v6365
        %v7494 = vpop.f32.mrf.mxu0
        %v7495 = vadd.f32 %v7326, %v7494
        %v7496 = vpop.f32.mrf.mxu0
        %v7497 = vadd.f32 %v7328, %v7496
        %7498 = vmatmul.bf16.gmra.mxu0 %v6367
        %v7499 = vpop.f32.mrf.mxu0
        %v7500 = vadd.f32 %v7331, %v7499
        %v7501 = vpop.f32.mrf.mxu0
        %v7502 = vadd.f32 %v7333, %v7501
        %7503 = vmatmul.bf16.gmra.mxu0 %v6369
        %v7504 = vpop.f32.mrf.mxu0
        %v7505 = vadd.f32 %v7336, %v7504
        %v7506 = vpop.f32.mrf.mxu0
        %v7507 = vadd.f32 %v7338, %v7506
        %7508 = vmatmul.bf16.gmra.mxu0 %v6371
        %v7509 = vpop.f32.mrf.mxu0
        %v7510 = vadd.f32 %v7341, %v7509
        %v7511 = vpop.f32.mrf.mxu0
        %v7512 = vadd.f32 %v7343, %v7511
        %7513 = vmatmul.bf16.gmra.mxu0 %v6373
        %v7514 = vpop.f32.mrf.mxu0
        %v7515 = vadd.f32 %v7346, %v7514
        %v7516 = vpop.f32.mrf.mxu0
        %v7517 = vadd.f32 %v7348, %v7516
        %7518 = vmatmul.bf16.gmra.mxu0 %v6375
        %v7519 = vpop.f32.mrf.mxu0
        %v7520 = vadd.f32 %v7351, %v7519
        %v7521 = vpop.f32.mrf.mxu0
        %v7522 = vadd.f32 %v7353, %v7521
        %7523 = vmatmul.bf16.gmra.mxu0 %v6377
        %v7524 = vpop.f32.mrf.mxu0
        %v7525 = vadd.f32 %v7356, %v7524
        %v7526 = vpop.f32.mrf.mxu0
        %v7527 = vadd.f32 %v7358, %v7526
        %7528 = vmatmul.bf16.gmra.mxu0 %v6379
        %v7529 = vpop.f32.mrf.mxu0
        %v7530 = vadd.f32 %v7361, %v7529
        %v7531 = vpop.f32.mrf.mxu0
        %v7532 = vadd.f32 %v7363, %v7531
        %7533 = vmatmul.bf16.gmra.mxu0 %v6381
        %v7534 = vpop.f32.mrf.mxu0
        %v7535 = vadd.f32 %v7366, %v7534
        %v7536 = vpop.f32.mrf.mxu0
        %v7537 = vadd.f32 %v7368, %v7536
        %7538 = vmatmul.bf16.gmra.mxu0 %v6383
        %v7539 = vpop.f32.mrf.mxu0
        %v7540 = vadd.f32 %v7371, %v7539
        %v7541 = vpop.f32.mrf.mxu0
        %v7542 = vadd.f32 %v7373, %v7541
        %7543 = vmatmul.bf16.gmra.mxu0 %v6385
        %v7544 = vpop.f32.mrf.mxu0
        %v7545 = vadd.f32 %v7376, %v7544
        %v7546 = vpop.f32.mrf.mxu0
        %v7547 = vadd.f32 %v7378, %v7546
        %7548 = vmatmul.bf16.gmra.mxu0 %v6387
        %v7549 = vpop.f32.mrf.mxu0
        %v7550 = vadd.f32 %v7381, %v7549
        %v7551 = vpop.f32.mrf.mxu0
        %v7552 = vadd.f32 %v7383, %v7551
        %7553 = vmatmul.bf16.gmra.mxu0 %v6389
        %v7554 = vpop.f32.mrf.mxu0
        %v7555 = vadd.f32 %v7386, %v7554
        %v7556 = vpop.f32.mrf.mxu0
        %v7557 = vadd.f32 %v7388, %v7556
        %7558 = vmatmul.bf16.gmra.mxu0 %v6391
        %v7559 = vpop.f32.mrf.mxu0
        %v7560 = vadd.f32 %v7391, %v7559
        %v7561 = vpop.f32.mrf.mxu0
        %v7562 = vadd.f32 %v7393, %v7561
        %7563 = vmatmul.bf16.gmra.mxu0 %v6393
        %v7564 = vpop.f32.mrf.mxu0
        %v7565 = vadd.f32 %v7396, %v7564
        %v7566 = vpop.f32.mrf.mxu0
        %v7567 = vadd.f32 %v7398, %v7566
        %7568 = vmatmul.bf16.gmra.mxu0 %v6395
        %v7569 = vpop.f32.mrf.mxu0
        %v7570 = vadd.f32 %v7401, %v7569
        %v7571 = vpop.f32.mrf.mxu0
        %v7572 = vadd.f32 %v7403, %v7571
        %7573 = vmatmul.bf16.gmra.mxu0 %v6397
        %v7574 = vpop.f32.mrf.mxu0
        %v7575 = vadd.f32 %v7406, %v7574
        %v7576 = vpop.f32.mrf.mxu0
        %v7577 = vadd.f32 %v7408, %v7576
        %7578 = vmatmul.bf16.gmra.mxu0 %v6399
        %v7579 = vpop.f32.mrf.mxu0
        %v7580 = vadd.f32 %v7411, %v7579
        %v7581 = vpop.f32.mrf.mxu0
        %v7582 = vadd.f32 %v7413, %v7581
        %7583 = vmatmul.bf16.gmra.mxu0 %v6401
        %v7584 = vpop.f32.mrf.mxu0
        %v7585 = vadd.f32 %v7416, %v7584
        %v7586 = vpop.f32.mrf.mxu0
        %v7587 = vadd.f32 %v7418, %v7586
        %7588 = vmatmul.bf16.gmra.mxu0 %v6403
        %v7589 = vpop.f32.mrf.mxu0
        %v7590 = vadd.f32 %v7421, %v7589
        %v7591 = vpop.f32.mrf.mxu0
        %v7592 = vadd.f32 %v7423, %v7591
        %7593 = vdwg.mxu0
        %7594 = vmatpush.bf16.msra.mxu0 %v7207
        %7595 = vmatpush.bf16.msra.mxu0 %v7205
        %7596 = vmatpush.bf16.msra.mxu0 %v7203
        %7597 = vmatpush.bf16.msra.mxu0 %v7201
        %7598 = vmatpush.bf16.msra.mxu0 %v7199
        %7599 = vmatpush.bf16.msra.mxu0 %v7197
        %7600 = vmatpush.bf16.msra.mxu0 %v7195
        %7601 = vmatpush.bf16.msra.mxu0 %v7193
        %7602 = vmatmul.bf16.gmra.mxu0 %v6340
        %v7603 = vpop.f32.mrf.mxu0
        %v7604 = vadd.f32 %v6969, %v7603
        %v7605 = vpop.f32.mrf.mxu0
        %v7606 = vadd.f32 %v6971, %v7605
        %7607 = vmatmul.bf16.gmra.mxu0 %v6342
        %v7608 = vpop.f32.mrf.mxu0
        %v7609 = vadd.f32 %v6973, %v7608
        %v7610 = vpop.f32.mrf.mxu0
        %v7611 = vadd.f32 %v6975, %v7610
        %7612 = vmatmul.bf16.gmra.mxu0 %v6344
        %v7613 = vpop.f32.mrf.mxu0
        %v7614 = vadd.f32 %v6977, %v7613
        %v7615 = vpop.f32.mrf.mxu0
        %v7616 = vadd.f32 %v6979, %v7615
        %7617 = vmatmul.bf16.gmra.mxu0 %v6346
        %v7618 = vpop.f32.mrf.mxu0
        %v7619 = vadd.f32 %v6981, %v7618
        %v7620 = vpop.f32.mrf.mxu0
        %v7621 = vadd.f32 %v6983, %v7620
        %7622 = vmatmul.bf16.gmra.mxu0 %v6348
        %v7623 = vpop.f32.mrf.mxu0
        %v7624 = vadd.f32 %v6985, %v7623
        %v7625 = vpop.f32.mrf.mxu0
        %v7626 = vadd.f32 %v6987, %v7625
        %7627 = vmatmul.bf16.gmra.mxu0 %v6350
        %v7628 = vpop.f32.mrf.mxu0
        %v7629 = vadd.f32 %v6989, %v7628
        %v7630 = vpop.f32.mrf.mxu0
        %v7631 = vadd.f32 %v6991, %v7630
        %7632 = vmatmul.bf16.gmra.mxu0 %v6352
        %v7633 = vpop.f32.mrf.mxu0
        %v7634 = vadd.f32 %v6993, %v7633
        %v7635 = vpop.f32.mrf.mxu0
        %v7636 = vadd.f32 %v6995, %v7635
        %7637 = vmatmul.bf16.gmra.mxu0 %v6354
        %v7638 = vpop.f32.mrf.mxu0
        %v7639 = vadd.f32 %v6997, %v7638
        %v7640 = vpop.f32.mrf.mxu0
        %v7641 = vadd.f32 %v6999, %v7640
        %7642 = vmatmul.bf16.gmra.mxu0 %v6356
        %v7643 = vpop.f32.mrf.mxu0
        %v7644 = vadd.f32 %v7001, %v7643
        %v7645 = vpop.f32.mrf.mxu0
        %v7646 = vadd.f32 %v7003, %v7645
        %7647 = vmatmul.bf16.gmra.mxu0 %v6358
        %v7648 = vpop.f32.mrf.mxu0
        %v7649 = vadd.f32 %v7005, %v7648
        %v7650 = vpop.f32.mrf.mxu0
        %v7651 = vadd.f32 %v7007, %v7650
        %7652 = vmatmul.bf16.gmra.mxu0 %v6360
        %v7653 = vpop.f32.mrf.mxu0
        %v7654 = vadd.f32 %v7009, %v7653
        %v7655 = vpop.f32.mrf.mxu0
        %v7656 = vadd.f32 %v7011, %v7655
        %7657 = vmatmul.bf16.gmra.mxu0 %v6362
        %v7658 = vpop.f32.mrf.mxu0
        %v7659 = vadd.f32 %v7013, %v7658
        %v7660 = vpop.f32.mrf.mxu0
        %v7661 = vadd.f32 %v7015, %v7660
        %7662 = vmatmul.bf16.gmra.mxu0 %v6364
        %v7663 = vpop.f32.mrf.mxu0
        %v7664 = vadd.f32 %v7017, %v7663
        %v7665 = vpop.f32.mrf.mxu0
        %v7666 = vadd.f32 %v7019, %v7665
        %7667 = vmatmul.bf16.gmra.mxu0 %v6366
        %v7668 = vpop.f32.mrf.mxu0
        %v7669 = vadd.f32 %v7021, %v7668
        %v7670 = vpop.f32.mrf.mxu0
        %v7671 = vadd.f32 %v7023, %v7670
        %7672 = vmatmul.bf16.gmra.mxu0 %v6368
        %v7673 = vpop.f32.mrf.mxu0
        %v7674 = vadd.f32 %v7025, %v7673
        %v7675 = vpop.f32.mrf.mxu0
        %v7676 = vadd.f32 %v7027, %v7675
        %7677 = vmatmul.bf16.gmra.mxu0 %v6370
        %v7678 = vpop.f32.mrf.mxu0
        %v7679 = vadd.f32 %v7029, %v7678
        %v7680 = vpop.f32.mrf.mxu0
        %v7681 = vadd.f32 %v7031, %v7680
        %7682 = vmatmul.bf16.gmra.mxu0 %v6372
        %v7683 = vpop.f32.mrf.mxu0
        %v7684 = vadd.f32 %v7033, %v7683
        %v7685 = vpop.f32.mrf.mxu0
        %v7686 = vadd.f32 %v7035, %v7685
        %7687 = vmatmul.bf16.gmra.mxu0 %v6374
        %v7688 = vpop.f32.mrf.mxu0
        %v7689 = vadd.f32 %v7037, %v7688
        %v7690 = vpop.f32.mrf.mxu0
        %v7691 = vadd.f32 %v7039, %v7690
        %7692 = vmatmul.bf16.gmra.mxu0 %v6376
        %v7693 = vpop.f32.mrf.mxu0
        %v7694 = vadd.f32 %v7041, %v7693
        %v7695 = vpop.f32.mrf.mxu0
        %v7696 = vadd.f32 %v7043, %v7695
        %7697 = vmatmul.bf16.gmra.mxu0 %v6378
        %v7698 = vpop.f32.mrf.mxu0
        %v7699 = vadd.f32 %v7045, %v7698
        %v7700 = vpop.f32.mrf.mxu0
        %v7701 = vadd.f32 %v7047, %v7700
        %7702 = vmatmul.bf16.gmra.mxu0 %v6380
        %v7703 = vpop.f32.mrf.mxu0
        %v7704 = vadd.f32 %v7049, %v7703
        %v7705 = vpop.f32.mrf.mxu0
        %v7706 = vadd.f32 %v7051, %v7705
        %7707 = vmatmul.bf16.gmra.mxu0 %v6382
        %v7708 = vpop.f32.mrf.mxu0
        %v7709 = vadd.f32 %v7053, %v7708
        %v7710 = vpop.f32.mrf.mxu0
        %v7711 = vadd.f32 %v7055, %v7710
        %7712 = vmatmul.bf16.gmra.mxu0 %v6384
        %v7713 = vpop.f32.mrf.mxu0
        %v7714 = vadd.f32 %v7057, %v7713
        %v7715 = vpop.f32.mrf.mxu0
        %v7716 = vadd.f32 %v7059, %v7715
        %7717 = vmatmul.bf16.gmra.mxu0 %v6386
        %v7718 = vpop.f32.mrf.mxu0
        %v7719 = vadd.f32 %v7061, %v7718
        %v7720 = vpop.f32.mrf.mxu0
        %v7721 = vadd.f32 %v7063, %v7720
        %7722 = vmatmul.bf16.gmra.mxu0 %v6388
        %v7723 = vpop.f32.mrf.mxu0
        %v7724 = vadd.f32 %v7065, %v7723
        %v7725 = vpop.f32.mrf.mxu0
        %v7726 = vadd.f32 %v7067, %v7725
        %7727 = vmatmul.bf16.gmra.mxu0 %v6390
        %v7728 = vpop.f32.mrf.mxu0
        %v7729 = vadd.f32 %v7069, %v7728
        %v7730 = vpop.f32.mrf.mxu0
        %v7731 = vadd.f32 %v7071, %v7730
        %7732 = vmatmul.bf16.gmra.mxu0 %v6392
        %v7733 = vpop.f32.mrf.mxu0
        %v7734 = vadd.f32 %v7073, %v7733
        %v7735 = vpop.f32.mrf.mxu0
        %v7736 = vadd.f32 %v7075, %v7735
        %7737 = vmatmul.bf16.gmra.mxu0 %v6394
        %v7738 = vpop.f32.mrf.mxu0
        %v7739 = vadd.f32 %v7077, %v7738
        %v7740 = vpop.f32.mrf.mxu0
        %v7741 = vadd.f32 %v7079, %v7740
        %7742 = vmatmul.bf16.gmra.mxu0 %v6396
        %v7743 = vpop.f32.mrf.mxu0
        %v7744 = vadd.f32 %v7081, %v7743
        %v7745 = vpop.f32.mrf.mxu0
        %v7746 = vadd.f32 %v7083, %v7745
        %7747 = vmatmul.bf16.gmra.mxu0 %v6398
        %v7748 = vpop.f32.mrf.mxu0
        %v7749 = vadd.f32 %v7085, %v7748
        %v7750 = vpop.f32.mrf.mxu0
        %v7751 = vadd.f32 %v7087, %v7750
        %7752 = vmatmul.bf16.gmra.mxu0 %v6400
        %v7753 = vpop.f32.mrf.mxu0
        %v7754 = vadd.f32 %v7089, %v7753
        %v7755 = vpop.f32.mrf.mxu0
        %v7756 = vadd.f32 %v7091, %v7755
        %7757 = vmatmul.bf16.gmra.mxu0 %v6402
        %v7758 = vpop.f32.mrf.mxu0
        %v7759 = vadd.f32 %v7093, %v7758
        %v7760 = vpop.f32.mrf.mxu0
        %v7761 = vadd.f32 %v7095, %v7760
        %7762 = vdwg.mxu0
        %7763 = vmatpush.bf16.msra.mxu0 %v7223
        %7764 = vmatpush.bf16.msra.mxu0 %v7221
        %7765 = vmatpush.bf16.msra.mxu0 %v7219
        %7766 = vmatpush.bf16.msra.mxu0 %v7217
        %7767 = vmatpush.bf16.msra.mxu0 %v7215
        %7768 = vmatpush.bf16.msra.mxu0 %v7213
        %7769 = vmatpush.bf16.msra.mxu0 %v7211
        %7770 = vmatpush.bf16.msra.mxu0 %v7209
        %7771 = vmatmul.bf16.gmra.mxu0 %v6341
        %v7772 = vpop.f32.mrf.mxu0
        %v7773 = vadd.f32 %v7604, %v7772
        %v7774 = vpop.f32.mrf.mxu0
        %v7775 = vadd.f32 %v7606, %v7774
        %7776 = vmatmul.bf16.gmra.mxu0 %v6343
        %v7777 = vpop.f32.mrf.mxu0
        %v7778 = vadd.f32 %v7609, %v7777
        %v7779 = vpop.f32.mrf.mxu0
        %v7780 = vadd.f32 %v7611, %v7779
        %7781 = vmatmul.bf16.gmra.mxu0 %v6345
        %v7782 = vpop.f32.mrf.mxu0
        %v7783 = vadd.f32 %v7614, %v7782
        %v7784 = vpop.f32.mrf.mxu0
        %v7785 = vadd.f32 %v7616, %v7784
        %7786 = vmatmul.bf16.gmra.mxu0 %v6347
        %v7787 = vpop.f32.mrf.mxu0
        %v7788 = vadd.f32 %v7619, %v7787
        %v7789 = vpop.f32.mrf.mxu0
        %v7790 = vadd.f32 %v7621, %v7789
        %7791 = vmatmul.bf16.gmra.mxu0 %v6349
        %v7792 = vpop.f32.mrf.mxu0
        %v7793 = vadd.f32 %v7624, %v7792
        %v7794 = vpop.f32.mrf.mxu0
        %v7795 = vadd.f32 %v7626, %v7794
        %7796 = vmatmul.bf16.gmra.mxu0 %v6351
        %v7797 = vpop.f32.mrf.mxu0
        %v7798 = vadd.f32 %v7629, %v7797
        %v7799 = vpop.f32.mrf.mxu0
        %v7800 = vadd.f32 %v7631, %v7799
        %7801 = vmatmul.bf16.gmra.mxu0 %v6353
        %v7802 = vpop.f32.mrf.mxu0
        %v7803 = vadd.f32 %v7634, %v7802
        %v7804 = vpop.f32.mrf.mxu0
        %v7805 = vadd.f32 %v7636, %v7804
        %7806 = vmatmul.bf16.gmra.mxu0 %v6355
        %v7807 = vpop.f32.mrf.mxu0
        %v7808 = vadd.f32 %v7639, %v7807
        %v7809 = vpop.f32.mrf.mxu0
        %v7810 = vadd.f32 %v7641, %v7809
        %7811 = vmatmul.bf16.gmra.mxu0 %v6357
        %v7812 = vpop.f32.mrf.mxu0
        %v7813 = vadd.f32 %v7644, %v7812
        %v7814 = vpop.f32.mrf.mxu0
        %v7815 = vadd.f32 %v7646, %v7814
        %7816 = vmatmul.bf16.gmra.mxu0 %v6359
        %v7817 = vpop.f32.mrf.mxu0
        %v7818 = vadd.f32 %v7649, %v7817
        %v7819 = vpop.f32.mrf.mxu0
        %v7820 = vadd.f32 %v7651, %v7819
        %7821 = vmatmul.bf16.gmra.mxu0 %v6361
        %v7822 = vpop.f32.mrf.mxu0
        %v7823 = vadd.f32 %v7654, %v7822
        %v7824 = vpop.f32.mrf.mxu0
        %v7825 = vadd.f32 %v7656, %v7824
        %7826 = vmatmul.bf16.gmra.mxu0 %v6363
        %v7827 = vpop.f32.mrf.mxu0
        %v7828 = vadd.f32 %v7659, %v7827
        %v7829 = vpop.f32.mrf.mxu0
        %v7830 = vadd.f32 %v7661, %v7829
        %7831 = vmatmul.bf16.gmra.mxu0 %v6365
        %v7832 = vpop.f32.mrf.mxu0
        %v7833 = vadd.f32 %v7664, %v7832
        %v7834 = vpop.f32.mrf.mxu0
        %v7835 = vadd.f32 %v7666, %v7834
        %7836 = vmatmul.bf16.gmra.mxu0 %v6367
        %v7837 = vpop.f32.mrf.mxu0
        %v7838 = vadd.f32 %v7669, %v7837
        %v7839 = vpop.f32.mrf.mxu0
        %v7840 = vadd.f32 %v7671, %v7839
        %7841 = vmatmul.bf16.gmra.mxu0 %v6369
        %v7842 = vpop.f32.mrf.mxu0
        %v7843 = vadd.f32 %v7674, %v7842
        %v7844 = vpop.f32.mrf.mxu0
        %v7845 = vadd.f32 %v7676, %v7844
        %7846 = vmatmul.bf16.gmra.mxu0 %v6371
        %v7847 = vpop.f32.mrf.mxu0
        %v7848 = vadd.f32 %v7679, %v7847
        %v7849 = vpop.f32.mrf.mxu0
        %v7850 = vadd.f32 %v7681, %v7849
        %7851 = vmatmul.bf16.gmra.mxu0 %v6373
        %v7852 = vpop.f32.mrf.mxu0
        %v7853 = vadd.f32 %v7684, %v7852
        %v7854 = vpop.f32.mrf.mxu0
        %v7855 = vadd.f32 %v7686, %v7854
        %7856 = vmatmul.bf16.gmra.mxu0 %v6375
        %v7857 = vpop.f32.mrf.mxu0
        %v7858 = vadd.f32 %v7689, %v7857
        %v7859 = vpop.f32.mrf.mxu0
        %v7860 = vadd.f32 %v7691, %v7859
        %7861 = vmatmul.bf16.gmra.mxu0 %v6377
        %v7862 = vpop.f32.mrf.mxu0
        %v7863 = vadd.f32 %v7694, %v7862
        %v7864 = vpop.f32.mrf.mxu0
        %v7865 = vadd.f32 %v7696, %v7864
        %7866 = vmatmul.bf16.gmra.mxu0 %v6379
        %v7867 = vpop.f32.mrf.mxu0
        %v7868 = vadd.f32 %v7699, %v7867
        %v7869 = vpop.f32.mrf.mxu0
        %v7870 = vadd.f32 %v7701, %v7869
        %7871 = vmatmul.bf16.gmra.mxu0 %v6381
        %v7872 = vpop.f32.mrf.mxu0
        %v7873 = vadd.f32 %v7704, %v7872
        %v7874 = vpop.f32.mrf.mxu0
        %v7875 = vadd.f32 %v7706, %v7874
        %7876 = vmatmul.bf16.gmra.mxu0 %v6383
        %v7877 = vpop.f32.mrf.mxu0
        %v7878 = vadd.f32 %v7709, %v7877
        %v7879 = vpop.f32.mrf.mxu0
        %v7880 = vadd.f32 %v7711, %v7879
        %7881 = vmatmul.bf16.gmra.mxu0 %v6385
        %v7882 = vpop.f32.mrf.mxu0
        %v7883 = vadd.f32 %v7714, %v7882
        %v7884 = vpop.f32.mrf.mxu0
        %v7885 = vadd.f32 %v7716, %v7884
        %7886 = vmatmul.bf16.gmra.mxu0 %v6387
        %v7887 = vpop.f32.mrf.mxu0
        %v7888 = vadd.f32 %v7719, %v7887
        %v7889 = vpop.f32.mrf.mxu0
        %v7890 = vadd.f32 %v7721, %v7889
        %7891 = vmatmul.bf16.gmra.mxu0 %v6389
        %v7892 = vpop.f32.mrf.mxu0
        %v7893 = vadd.f32 %v7724, %v7892
        %v7894 = vpop.f32.mrf.mxu0
        %v7895 = vadd.f32 %v7726, %v7894
        %7896 = vmatmul.bf16.gmra.mxu0 %v6391
        %v7897 = vpop.f32.mrf.mxu0
        %v7898 = vadd.f32 %v7729, %v7897
        %v7899 = vpop.f32.mrf.mxu0
        %v7900 = vadd.f32 %v7731, %v7899
        %7901 = vmatmul.bf16.gmra.mxu0 %v6393
        %v7902 = vpop.f32.mrf.mxu0
        %v7903 = vadd.f32 %v7734, %v7902
        %v7904 = vpop.f32.mrf.mxu0
        %v7905 = vadd.f32 %v7736, %v7904
        %7906 = vmatmul.bf16.gmra.mxu0 %v6395
        %v7907 = vpop.f32.mrf.mxu0
        %v7908 = vadd.f32 %v7739, %v7907
        %v7909 = vpop.f32.mrf.mxu0
        %v7910 = vadd.f32 %v7741, %v7909
        %7911 = vmatmul.bf16.gmra.mxu0 %v6397
        %v7912 = vpop.f32.mrf.mxu0
        %v7913 = vadd.f32 %v7744, %v7912
        %v7914 = vpop.f32.mrf.mxu0
        %v7915 = vadd.f32 %v7746, %v7914
        %7916 = vmatmul.bf16.gmra.mxu0 %v6399
        %v7917 = vpop.f32.mrf.mxu0
        %v7918 = vadd.f32 %v7749, %v7917
        %v7919 = vpop.f32.mrf.mxu0
        %v7920 = vadd.f32 %v7751, %v7919
        %7921 = vmatmul.bf16.gmra.mxu0 %v6401
        %v7922 = vpop.f32.mrf.mxu0
        %v7923 = vadd.f32 %v7754, %v7922
        %v7924 = vpop.f32.mrf.mxu0
        %v7925 = vadd.f32 %v7756, %v7924
        %7926 = vmatmul.bf16.gmra.mxu0 %v6403
        %v7927 = vpop.f32.mrf.mxu0
        %v7928 = vadd.f32 %v7759, %v7927
        %v7929 = vpop.f32.mrf.mxu0
        %v7930 = vadd.f32 %v7761, %v7929
        %7931 = vdwg.mxu0
        %v7932 = vperm.slane %v338, 5
        %v7933 = vperm.slane %v339, 5
        %v7934 = vadd.f32 %v7435, %v7932
        %v7935 = vadd.f32 %v7773, %v7933
        %v7936 = vadd.f32 %v7437, %v7932
        %v7937 = vadd.f32 %v7775, %v7933
        %v7938 = vadd.f32 %v7440, %v7932
        %v7939 = vadd.f32 %v7778, %v7933
        %v7940 = vadd.f32 %v7442, %v7932
        %v7941 = vadd.f32 %v7780, %v7933
        %v7942 = vadd.f32 %v7445, %v7932
        %v7943 = vadd.f32 %v7783, %v7933
        %v7944 = vadd.f32 %v7447, %v7932
        %v7945 = vadd.f32 %v7785, %v7933
        %v7946 = vadd.f32 %v7450, %v7932
        %v7947 = vadd.f32 %v7788, %v7933
        %v7948 = vadd.f32 %v7452, %v7932
        %v7949 = vadd.f32 %v7790, %v7933
        %v7950 = vadd.f32 %v7455, %v7932
        %v7951 = vadd.f32 %v7793, %v7933
        %v7952 = vadd.f32 %v7457, %v7932
        %v7953 = vadd.f32 %v7795, %v7933
        %v7954 = vadd.f32 %v7460, %v7932
        %v7955 = vadd.f32 %v7798, %v7933
        %v7956 = vadd.f32 %v7462, %v7932
        %v7957 = vadd.f32 %v7800, %v7933
        %v7958 = vadd.f32 %v7465, %v7932
        %v7959 = vadd.f32 %v7803, %v7933
        %v7960 = vadd.f32 %v7467, %v7932
        %v7961 = vadd.f32 %v7805, %v7933
        %v7962 = vadd.f32 %v7470, %v7932
        %v7963 = vadd.f32 %v7808, %v7933
        %v7964 = vadd.f32 %v7472, %v7932
        %v7965 = vadd.f32 %v7810, %v7933
        %v7966 = vadd.f32 %v7475, %v7932
        %v7967 = vadd.f32 %v7813, %v7933
        %v7968 = vadd.f32 %v7477, %v7932
        %v7969 = vadd.f32 %v7815, %v7933
        %v7970 = vadd.f32 %v7480, %v7932
        %v7971 = vadd.f32 %v7818, %v7933
        %v7972 = vadd.f32 %v7482, %v7932
        %v7973 = vadd.f32 %v7820, %v7933
        %v7974 = vadd.f32 %v7485, %v7932
        %v7975 = vadd.f32 %v7823, %v7933
        %v7976 = vadd.f32 %v7487, %v7932
        %v7977 = vadd.f32 %v7825, %v7933
        %v7978 = vadd.f32 %v7490, %v7932
        %v7979 = vadd.f32 %v7828, %v7933
        %v7980 = vadd.f32 %v7492, %v7932
        %v7981 = vadd.f32 %v7830, %v7933
        %v7982 = vadd.f32 %v7495, %v7932
        %v7983 = vadd.f32 %v7833, %v7933
        %v7984 = vadd.f32 %v7497, %v7932
        %v7985 = vadd.f32 %v7835, %v7933
        %v7986 = vadd.f32 %v7500, %v7932
        %v7987 = vadd.f32 %v7838, %v7933
        %v7988 = vadd.f32 %v7502, %v7932
        %v7989 = vadd.f32 %v7840, %v7933
        %v7990 = vadd.f32 %v7505, %v7932
        %v7991 = vadd.f32 %v7843, %v7933
        %v7992 = vadd.f32 %v7507, %v7932
        %v7993 = vadd.f32 %v7845, %v7933
        %v7994 = vadd.f32 %v7510, %v7932
        %v7995 = vadd.f32 %v7848, %v7933
        %v7996 = vadd.f32 %v7512, %v7932
        %v7997 = vadd.f32 %v7850, %v7933
        %v7998 = vadd.f32 %v7515, %v7932
        %v7999 = vadd.f32 %v7853, %v7933
        %v8000 = vadd.f32 %v7517, %v7932
        %v8001 = vadd.f32 %v7855, %v7933
        %v8002 = vadd.f32 %v7520, %v7932
        %v8003 = vadd.f32 %v7858, %v7933
        %v8004 = vadd.f32 %v7522, %v7932
        %v8005 = vadd.f32 %v7860, %v7933
        %v8006 = vadd.f32 %v7525, %v7932
        %v8007 = vadd.f32 %v7863, %v7933
        %v8008 = vadd.f32 %v7527, %v7932
        %v8009 = vadd.f32 %v7865, %v7933
        %v8010 = vadd.f32 %v7530, %v7932
        %v8011 = vadd.f32 %v7868, %v7933
        %v8012 = vadd.f32 %v7532, %v7932
        %v8013 = vadd.f32 %v7870, %v7933
        %v8014 = vadd.f32 %v7535, %v7932
        %v8015 = vadd.f32 %v7873, %v7933
        %v8016 = vadd.f32 %v7537, %v7932
        %v8017 = vadd.f32 %v7875, %v7933
        %v8018 = vadd.f32 %v7540, %v7932
        %v8019 = vadd.f32 %v7878, %v7933
        %v8020 = vadd.f32 %v7542, %v7932
        %v8021 = vadd.f32 %v7880, %v7933
        %v8022 = vadd.f32 %v7545, %v7932
        %v8023 = vadd.f32 %v7883, %v7933
        %v8024 = vadd.f32 %v7547, %v7932
        %v8025 = vadd.f32 %v7885, %v7933
        %v8026 = vadd.f32 %v7550, %v7932
        %v8027 = vadd.f32 %v7888, %v7933
        %v8028 = vadd.f32 %v7552, %v7932
        %v8029 = vadd.f32 %v7890, %v7933
        %v8030 = vadd.f32 %v7555, %v7932
        %v8031 = vadd.f32 %v7893, %v7933
        %v8032 = vadd.f32 %v7557, %v7932
        %v8033 = vadd.f32 %v7895, %v7933
        %v8034 = vadd.f32 %v7560, %v7932
        %v8035 = vadd.f32 %v7898, %v7933
        %v8036 = vadd.f32 %v7562, %v7932
        %v8037 = vadd.f32 %v7900, %v7933
        %v8038 = vadd.f32 %v7565, %v7932
        %v8039 = vadd.f32 %v7903, %v7933
        %v8040 = vadd.f32 %v7567, %v7932
        %v8041 = vadd.f32 %v7905, %v7933
        %v8042 = vadd.f32 %v7570, %v7932
        %v8043 = vadd.f32 %v7908, %v7933
        %v8044 = vadd.f32 %v7572, %v7932
        %v8045 = vadd.f32 %v7910, %v7933
        %v8046 = vadd.f32 %v7575, %v7932
        %v8047 = vadd.f32 %v7913, %v7933
        %v8048 = vadd.f32 %v7577, %v7932
        %v8049 = vadd.f32 %v7915, %v7933
        %v8050 = vadd.f32 %v7580, %v7932
        %v8051 = vadd.f32 %v7918, %v7933
        %v8052 = vadd.f32 %v7582, %v7932
        %v8053 = vadd.f32 %v7920, %v7933
        %v8054 = vadd.f32 %v7585, %v7932
        %v8055 = vadd.f32 %v7923, %v7933
        %v8056 = vadd.f32 %v7587, %v7932
        %v8057 = vadd.f32 %v7925, %v7933
        %v8058 = vadd.f32 %v7590, %v7932
        %v8059 = vadd.f32 %v7928, %v7933
        %v8060 = vadd.f32 %v7592, %v7932
        %v8061 = vadd.f32 %v7930, %v7933
        %v8062 = vmax.f32 %v7934, 0.0
        %v8063 = vmax.f32 %v7935, 0.0
        %v8064 = vmax.f32 %v7936, 0.0
        %v8065 = vmax.f32 %v7937, 0.0
        %v8066 = vmax.f32 %v7938, 0.0
        %v8067 = vmax.f32 %v7939, 0.0
        %v8068 = vmax.f32 %v7940, 0.0
        %v8069 = vmax.f32 %v7941, 0.0
        %v8070 = vmax.f32 %v7942, 0.0
        %v8071 = vmax.f32 %v7943, 0.0
        %v8072 = vmax.f32 %v7944, 0.0
        %v8073 = vmax.f32 %v7945, 0.0
        %v8074 = vmax.f32 %v7946, 0.0
        %v8075 = vmax.f32 %v7947, 0.0
        %v8076 = vmax.f32 %v7948, 0.0
        %v8077 = vmax.f32 %v7949, 0.0
        %v8078 = vmax.f32 %v7950, 0.0
        %v8079 = vmax.f32 %v7951, 0.0
        %v8080 = vmax.f32 %v7952, 0.0
        %v8081 = vmax.f32 %v7953, 0.0
        %v8082 = vmax.f32 %v7954, 0.0
        %v8083 = vmax.f32 %v7955, 0.0
        %v8084 = vmax.f32 %v7956, 0.0
        %v8085 = vmax.f32 %v7957, 0.0
        %v8086 = vmax.f32 %v7958, 0.0
        %v8087 = vmax.f32 %v7959, 0.0
        %v8088 = vmax.f32 %v7960, 0.0
        %v8089 = vmax.f32 %v7961, 0.0
        %v8090 = vmax.f32 %v7962, 0.0
        %v8091 = vmax.f32 %v7963, 0.0
        %v8092 = vmax.f32 %v7964, 0.0
        %v8093 = vmax.f32 %v7965, 0.0
        %v8094 = vmax.f32 %v7966, 0.0
        %v8095 = vmax.f32 %v7967, 0.0
        %v8096 = vmax.f32 %v7968, 0.0
        %v8097 = vmax.f32 %v7969, 0.0
        %v8098 = vmax.f32 %v7970, 0.0
        %v8099 = vmax.f32 %v7971, 0.0
        %v8100 = vmax.f32 %v7972, 0.0
        %v8101 = vmax.f32 %v7973, 0.0
        %v8102 = vmax.f32 %v7974, 0.0
        %v8103 = vmax.f32 %v7975, 0.0
        %v8104 = vmax.f32 %v7976, 0.0
        %v8105 = vmax.f32 %v7977, 0.0
        %v8106 = vmax.f32 %v7978, 0.0
        %v8107 = vmax.f32 %v7979, 0.0
        %v8108 = vmax.f32 %v7980, 0.0
        %v8109 = vmax.f32 %v7981, 0.0
        %v8110 = vmax.f32 %v7982, 0.0
        %v8111 = vmax.f32 %v7983, 0.0
        %v8112 = vmax.f32 %v7984, 0.0
        %v8113 = vmax.f32 %v7985, 0.0
        %v8114 = vmax.f32 %v7986, 0.0
        %v8115 = vmax.f32 %v7987, 0.0
        %v8116 = vmax.f32 %v7988, 0.0
        %v8117 = vmax.f32 %v7989, 0.0
        %v8118 = vmax.f32 %v7990, 0.0
        %v8119 = vmax.f32 %v7991, 0.0
        %v8120 = vmax.f32 %v7992, 0.0
        %v8121 = vmax.f32 %v7993, 0.0
        %v8122 = vmax.f32 %v7994, 0.0
        %v8123 = vmax.f32 %v7995, 0.0
        %v8124 = vmax.f32 %v7996, 0.0
        %v8125 = vmax.f32 %v7997, 0.0
        %v8126 = vmax.f32 %v7998, 0.0
        %v8127 = vmax.f32 %v7999, 0.0
        %v8128 = vmax.f32 %v8000, 0.0
        %v8129 = vmax.f32 %v8001, 0.0
        %v8130 = vmax.f32 %v8002, 0.0
        %v8131 = vmax.f32 %v8003, 0.0
        %v8132 = vmax.f32 %v8004, 0.0
        %v8133 = vmax.f32 %v8005, 0.0
        %v8134 = vmax.f32 %v8006, 0.0
        %v8135 = vmax.f32 %v8007, 0.0
        %v8136 = vmax.f32 %v8008, 0.0
        %v8137 = vmax.f32 %v8009, 0.0
        %v8138 = vmax.f32 %v8010, 0.0
        %v8139 = vmax.f32 %v8011, 0.0
        %v8140 = vmax.f32 %v8012, 0.0
        %v8141 = vmax.f32 %v8013, 0.0
        %v8142 = vmax.f32 %v8014, 0.0
        %v8143 = vmax.f32 %v8015, 0.0
        %v8144 = vmax.f32 %v8016, 0.0
        %v8145 = vmax.f32 %v8017, 0.0
        %v8146 = vmax.f32 %v8018, 0.0
        %v8147 = vmax.f32 %v8019, 0.0
        %v8148 = vmax.f32 %v8020, 0.0
        %v8149 = vmax.f32 %v8021, 0.0
        %v8150 = vmax.f32 %v8022, 0.0
        %v8151 = vmax.f32 %v8023, 0.0
        %v8152 = vmax.f32 %v8024, 0.0
        %v8153 = vmax.f32 %v8025, 0.0
        %v8154 = vmax.f32 %v8026, 0.0
        %v8155 = vmax.f32 %v8027, 0.0
        %v8156 = vmax.f32 %v8028, 0.0
        %v8157 = vmax.f32 %v8029, 0.0
        %v8158 = vmax.f32 %v8030, 0.0
        %v8159 = vmax.f32 %v8031, 0.0
        %v8160 = vmax.f32 %v8032, 0.0
        %v8161 = vmax.f32 %v8033, 0.0
        %v8162 = vmax.f32 %v8034, 0.0
        %v8163 = vmax.f32 %v8035, 0.0
        %v8164 = vmax.f32 %v8036, 0.0
        %v8165 = vmax.f32 %v8037, 0.0
        %v8166 = vmax.f32 %v8038, 0.0
        %v8167 = vmax.f32 %v8039, 0.0
        %v8168 = vmax.f32 %v8040, 0.0
        %v8169 = vmax.f32 %v8041, 0.0
        %v8170 = vmax.f32 %v8042, 0.0
        %v8171 = vmax.f32 %v8043, 0.0
        %v8172 = vmax.f32 %v8044, 0.0
        %v8173 = vmax.f32 %v8045, 0.0
        %v8174 = vmax.f32 %v8046, 0.0
        %v8175 = vmax.f32 %v8047, 0.0
        %v8176 = vmax.f32 %v8048, 0.0
        %v8177 = vmax.f32 %v8049, 0.0
        %v8178 = vmax.f32 %v8050, 0.0
        %v8179 = vmax.f32 %v8051, 0.0
        %v8180 = vmax.f32 %v8052, 0.0
        %v8181 = vmax.f32 %v8053, 0.0
        %v8182 = vmax.f32 %v8054, 0.0
        %v8183 = vmax.f32 %v8055, 0.0
        %v8184 = vmax.f32 %v8056, 0.0
        %v8185 = vmax.f32 %v8057, 0.0
        %v8186 = vmax.f32 %v8058, 0.0
        %v8187 = vmax.f32 %v8059, 0.0
        %v8188 = vmax.f32 %v8060, 0.0
        %v8189 = vmax.f32 %v8061, 0.0
        %v8190 = vpack.c.bf16 %v8064, %v8062
        %v8191 = vpack.c.bf16 %v8065, %v8063
        %v8192 = vpack.c.bf16 %v8068, %v8066
        %v8193 = vpack.c.bf16 %v8069, %v8067
        %v8194 = vpack.c.bf16 %v8072, %v8070
        %v8195 = vpack.c.bf16 %v8073, %v8071
        %v8196 = vpack.c.bf16 %v8076, %v8074
        %v8197 = vpack.c.bf16 %v8077, %v8075
        %v8198 = vpack.c.bf16 %v8080, %v8078
        %v8199 = vpack.c.bf16 %v8081, %v8079
        %v8200 = vpack.c.bf16 %v8084, %v8082
        %v8201 = vpack.c.bf16 %v8085, %v8083
        %v8202 = vpack.c.bf16 %v8088, %v8086
        %v8203 = vpack.c.bf16 %v8089, %v8087
        %v8204 = vpack.c.bf16 %v8092, %v8090
        %v8205 = vpack.c.bf16 %v8093, %v8091
        %v8206 = vpack.c.bf16 %v8096, %v8094
        %v8207 = vpack.c.bf16 %v8097, %v8095
        %v8208 = vpack.c.bf16 %v8100, %v8098
        %v8209 = vpack.c.bf16 %v8101, %v8099
        %v8210 = vpack.c.bf16 %v8104, %v8102
        %v8211 = vpack.c.bf16 %v8105, %v8103
        %v8212 = vpack.c.bf16 %v8108, %v8106
        %v8213 = vpack.c.bf16 %v8109, %v8107
        %v8214 = vpack.c.bf16 %v8112, %v8110
        %v8215 = vpack.c.bf16 %v8113, %v8111
        %v8216 = vpack.c.bf16 %v8116, %v8114
        %v8217 = vpack.c.bf16 %v8117, %v8115
        %v8218 = vpack.c.bf16 %v8120, %v8118
        %v8219 = vpack.c.bf16 %v8121, %v8119
        %v8220 = vpack.c.bf16 %v8124, %v8122
        %v8221 = vpack.c.bf16 %v8125, %v8123
        %v8222 = vpack.c.bf16 %v8128, %v8126
        %v8223 = vpack.c.bf16 %v8129, %v8127
        %v8224 = vpack.c.bf16 %v8132, %v8130
        %v8225 = vpack.c.bf16 %v8133, %v8131
        %v8226 = vpack.c.bf16 %v8136, %v8134
        %v8227 = vpack.c.bf16 %v8137, %v8135
        %v8228 = vpack.c.bf16 %v8140, %v8138
        %v8229 = vpack.c.bf16 %v8141, %v8139
        %v8230 = vpack.c.bf16 %v8144, %v8142
        %v8231 = vpack.c.bf16 %v8145, %v8143
        %v8232 = vpack.c.bf16 %v8148, %v8146
        %v8233 = vpack.c.bf16 %v8149, %v8147
        %v8234 = vpack.c.bf16 %v8152, %v8150
        %v8235 = vpack.c.bf16 %v8153, %v8151
        %v8236 = vpack.c.bf16 %v8156, %v8154
        %v8237 = vpack.c.bf16 %v8157, %v8155
        %v8238 = vpack.c.bf16 %v8160, %v8158
        %v8239 = vpack.c.bf16 %v8161, %v8159
        %v8240 = vpack.c.bf16 %v8164, %v8162
        %v8241 = vpack.c.bf16 %v8165, %v8163
        %v8242 = vpack.c.bf16 %v8168, %v8166
        %v8243 = vpack.c.bf16 %v8169, %v8167
        %v8244 = vpack.c.bf16 %v8172, %v8170
        %v8245 = vpack.c.bf16 %v8173, %v8171
        %v8246 = vpack.c.bf16 %v8176, %v8174
        %v8247 = vpack.c.bf16 %v8177, %v8175
        %v8248 = vpack.c.bf16 %v8180, %v8178
        %v8249 = vpack.c.bf16 %v8181, %v8179
        %v8250 = vpack.c.bf16 %v8184, %v8182
        %v8251 = vpack.c.bf16 %v8185, %v8183
        %v8252 = vpack.c.bf16 %v8188, %v8186
        %v8253 = vpack.c.bf16 %v8189, %v8187
        %s8254 = scalar_lea.vmem [#allocation2], 1280
        %v8255 = vld [vmem:[%s8254] sm:$0xff]
        %v8256 = vld [vmem:[%s8254 + $0x8] sm:$0xff]
        %v8257 = vld [vmem:[%s8254 + $0x10] sm:$0xff]
        %v8258 = vld [vmem:[%s8254 + $0x18] sm:$0xff]
        %v8259 = vld [vmem:[%s8254 + $0x20] sm:$0xff]
        %v8260 = vld [vmem:[%s8254 + $0x28] sm:$0xff]
        %v8261 = vld [vmem:[%s8254 + $0x30] sm:$0xff]
        %v8262 = vld [vmem:[%s8254 + $0x38] sm:$0xff]
        %v8263 = vld [vmem:[%s8254 + $0x40] sm:$0xff]
        %v8264 = vld [vmem:[%s8254 + $0x48] sm:$0xff]
        %v8265 = vld [vmem:[%s8254 + $0x50] sm:$0xff]
        %v8266 = vld [vmem:[%s8254 + $0x58] sm:$0xff]
        %v8267 = vld [vmem:[%s8254 + $0x60] sm:$0xff]
        %v8268 = vld [vmem:[%s8254 + $0x68] sm:$0xff]
        %v8269 = vld [vmem:[%s8254 + $0x70] sm:$0xff]
        %v8270 = vld [vmem:[%s8254 + $0x78] sm:$0xff]
        %v8271 = vld [vmem:[%s8254 + $0x80] sm:$0xff]
        %v8272 = vld [vmem:[%s8254 + $0x88] sm:$0xff]
        %v8273 = vld [vmem:[%s8254 + $0x90] sm:$0xff]
        %v8274 = vld [vmem:[%s8254 + $0x98] sm:$0xff]
        %v8275 = vld [vmem:[%s8254 + $0xa0] sm:$0xff]
        %v8276 = vld [vmem:[%s8254 + $0xa8] sm:$0xff]
        %v8277 = vld [vmem:[%s8254 + $0xb0] sm:$0xff]
        %v8278 = vld [vmem:[%s8254 + $0xb8] sm:$0xff]
        %v8279 = vld [vmem:[%s8254 + $0xc0] sm:$0xff]
        %v8280 = vld [vmem:[%s8254 + $0xc8] sm:$0xff]
        %v8281 = vld [vmem:[%s8254 + $0xd0] sm:$0xff]
        %v8282 = vld [vmem:[%s8254 + $0xd8] sm:$0xff]
        %v8283 = vld [vmem:[%s8254 + $0xe0] sm:$0xff]
        %v8284 = vld [vmem:[%s8254 + $0xe8] sm:$0xff]
        %v8285 = vld [vmem:[%s8254 + $0xf0] sm:$0xff]
        %v8286 = vld [vmem:[%s8254 + $0xf8] sm:$0xff]
        %v8287 = vperm.slane %v338, 6
        %v8288 = vperm.slane %v339, 6
        %v8321 = vunpack.c.l.b16 %v8255
        %v8322 = vunpack.c.h.b16 %v8255
        %v8323 = vunpack.c.l.b16 %v8256
        %v8324 = vunpack.c.h.b16 %v8256
        %v8325 = vunpack.c.l.b16 %v8257
        %v8326 = vunpack.c.h.b16 %v8257
        %v8327 = vunpack.c.l.b16 %v8258
        %v8328 = vunpack.c.h.b16 %v8258
        %v8329 = vunpack.c.l.b16 %v8259
        %v8330 = vunpack.c.h.b16 %v8259
        %v8331 = vunpack.c.l.b16 %v8260
        %v8332 = vunpack.c.h.b16 %v8260
        %v8333 = vunpack.c.l.b16 %v8261
        %v8334 = vunpack.c.h.b16 %v8261
        %v8335 = vunpack.c.l.b16 %v8262
        %v8336 = vunpack.c.h.b16 %v8262
        %v8337 = vunpack.c.l.b16 %v8263
        %v8338 = vunpack.c.h.b16 %v8263
        %v8339 = vunpack.c.l.b16 %v8264
        %v8340 = vunpack.c.h.b16 %v8264
        %v8341 = vunpack.c.l.b16 %v8265
        %v8342 = vunpack.c.h.b16 %v8265
        %v8343 = vunpack.c.l.b16 %v8266
        %v8344 = vunpack.c.h.b16 %v8266
        %v8345 = vunpack.c.l.b16 %v8267
        %v8346 = vunpack.c.h.b16 %v8267
        %v8347 = vunpack.c.l.b16 %v8268
        %v8348 = vunpack.c.h.b16 %v8268
        %v8349 = vunpack.c.l.b16 %v8269
        %v8350 = vunpack.c.h.b16 %v8269
        %v8351 = vunpack.c.l.b16 %v8270
        %v8352 = vunpack.c.h.b16 %v8270
        %v8353 = vunpack.c.l.b16 %v8271
        %v8354 = vunpack.c.h.b16 %v8271
        %v8355 = vunpack.c.l.b16 %v8272
        %v8356 = vunpack.c.h.b16 %v8272
        %v8357 = vunpack.c.l.b16 %v8273
        %v8358 = vunpack.c.h.b16 %v8273
        %v8359 = vunpack.c.l.b16 %v8274
        %v8360 = vunpack.c.h.b16 %v8274
        %v8361 = vunpack.c.l.b16 %v8275
        %v8362 = vunpack.c.h.b16 %v8275
        %v8363 = vunpack.c.l.b16 %v8276
        %v8364 = vunpack.c.h.b16 %v8276
        %v8365 = vunpack.c.l.b16 %v8277
        %v8366 = vunpack.c.h.b16 %v8277
        %v8367 = vunpack.c.l.b16 %v8278
        %v8368 = vunpack.c.h.b16 %v8278
        %v8369 = vunpack.c.l.b16 %v8279
        %v8370 = vunpack.c.h.b16 %v8279
        %v8371 = vunpack.c.l.b16 %v8280
        %v8372 = vunpack.c.h.b16 %v8280
        %v8373 = vunpack.c.l.b16 %v8281
        %v8374 = vunpack.c.h.b16 %v8281
        %v8375 = vunpack.c.l.b16 %v8282
        %v8376 = vunpack.c.h.b16 %v8282
        %v8377 = vunpack.c.l.b16 %v8283
        %v8378 = vunpack.c.h.b16 %v8283
        %v8379 = vunpack.c.l.b16 %v8284
        %v8380 = vunpack.c.h.b16 %v8284
        %v8381 = vunpack.c.l.b16 %v8285
        %v8382 = vunpack.c.h.b16 %v8285
        %v8383 = vunpack.c.l.b16 %v8286
        %v8384 = vunpack.c.h.b16 %v8286
        %v8385 = vpack.c.b16 %v8323, %v8321
        %v8386 = vpack.c.b16 %v8324, %v8322
        %v8387 = vpack.c.b16 %v8327, %v8325
        %v8388 = vpack.c.b16 %v8328, %v8326
        %v8389 = vpack.c.b16 %v8331, %v8329
        %v8390 = vpack.c.b16 %v8332, %v8330
        %v8391 = vpack.c.b16 %v8335, %v8333
        %v8392 = vpack.c.b16 %v8336, %v8334
        %v8393 = vpack.c.b16 %v8339, %v8337
        %v8394 = vpack.c.b16 %v8340, %v8338
        %v8395 = vpack.c.b16 %v8343, %v8341
        %v8396 = vpack.c.b16 %v8344, %v8342
        %v8397 = vpack.c.b16 %v8347, %v8345
        %v8398 = vpack.c.b16 %v8348, %v8346
        %v8399 = vpack.c.b16 %v8351, %v8349
        %v8400 = vpack.c.b16 %v8352, %v8350
        %v8401 = vpack.c.b16 %v8355, %v8353
        %v8402 = vpack.c.b16 %v8356, %v8354
        %v8403 = vpack.c.b16 %v8359, %v8357
        %v8404 = vpack.c.b16 %v8360, %v8358
        %v8405 = vpack.c.b16 %v8363, %v8361
        %v8406 = vpack.c.b16 %v8364, %v8362
        %v8407 = vpack.c.b16 %v8367, %v8365
        %v8408 = vpack.c.b16 %v8368, %v8366
        %v8409 = vpack.c.b16 %v8371, %v8369
        %v8410 = vpack.c.b16 %v8372, %v8370
        %v8411 = vpack.c.b16 %v8375, %v8373
        %v8412 = vpack.c.b16 %v8376, %v8374
        %v8413 = vpack.c.b16 %v8379, %v8377
        %v8414 = vpack.c.b16 %v8380, %v8378
        %v8415 = vpack.c.b16 %v8383, %v8381
        %v8416 = vpack.c.b16 %v8384, %v8382
        %8449 = vmatpush.bf16.msra.mxu0 %v8399
        %8450 = vmatpush.bf16.msra.mxu0 %v8397
        %8451 = vmatpush.bf16.msra.mxu0 %v8395
        %8452 = vmatpush.bf16.msra.mxu0 %v8393
        %8453 = vmatpush.bf16.msra.mxu0 %v8391
        %8454 = vmatpush.bf16.msra.mxu0 %v8389
        %8455 = vmatpush.bf16.msra.mxu0 %v8387
        %8456 = vmatpush.bf16.msra.mxu0 %v8385
        %8457 = vmatmul.bf16.gmra.mxu0 %v8190
        %v8458 = vpop.f32.mrf.mxu0
        %v8459 = vadd.f32 %v8287, %v8458
        %v8460 = vpop.f32.mrf.mxu0
        %v8461 = vadd.f32 %v8287, %v8460
        %8462 = vmatmul.bf16.gmra.mxu0 %v8192
        %v8463 = vpop.f32.mrf.mxu0
        %v8464 = vadd.f32 %v8287, %v8463
        %v8465 = vpop.f32.mrf.mxu0
        %v8466 = vadd.f32 %v8287, %v8465
        %8467 = vmatmul.bf16.gmra.mxu0 %v8194
        %v8468 = vpop.f32.mrf.mxu0
        %v8469 = vadd.f32 %v8287, %v8468
        %v8470 = vpop.f32.mrf.mxu0
        %v8471 = vadd.f32 %v8287, %v8470
        %8472 = vmatmul.bf16.gmra.mxu0 %v8196
        %v8473 = vpop.f32.mrf.mxu0
        %v8474 = vadd.f32 %v8287, %v8473
        %v8475 = vpop.f32.mrf.mxu0
        %v8476 = vadd.f32 %v8287, %v8475
        %8477 = vmatmul.bf16.gmra.mxu0 %v8198
        %v8478 = vpop.f32.mrf.mxu0
        %v8479 = vadd.f32 %v8287, %v8478
        %v8480 = vpop.f32.mrf.mxu0
        %v8481 = vadd.f32 %v8287, %v8480
        %8482 = vmatmul.bf16.gmra.mxu0 %v8200
        %v8483 = vpop.f32.mrf.mxu0
        %v8484 = vadd.f32 %v8287, %v8483
        %v8485 = vpop.f32.mrf.mxu0
        %v8486 = vadd.f32 %v8287, %v8485
        %8487 = vmatmul.bf16.gmra.mxu0 %v8202
        %v8488 = vpop.f32.mrf.mxu0
        %v8489 = vadd.f32 %v8287, %v8488
        %v8490 = vpop.f32.mrf.mxu0
        %v8491 = vadd.f32 %v8287, %v8490
        %8492 = vmatmul.bf16.gmra.mxu0 %v8204
        %v8493 = vpop.f32.mrf.mxu0
        %v8494 = vadd.f32 %v8287, %v8493
        %v8495 = vpop.f32.mrf.mxu0
        %v8496 = vadd.f32 %v8287, %v8495
        %8497 = vmatmul.bf16.gmra.mxu0 %v8206
        %v8498 = vpop.f32.mrf.mxu0
        %v8499 = vadd.f32 %v8287, %v8498
        %v8500 = vpop.f32.mrf.mxu0
        %v8501 = vadd.f32 %v8287, %v8500
        %8502 = vmatmul.bf16.gmra.mxu0 %v8208
        %v8503 = vpop.f32.mrf.mxu0
        %v8504 = vadd.f32 %v8287, %v8503
        %v8505 = vpop.f32.mrf.mxu0
        %v8506 = vadd.f32 %v8287, %v8505
        %8507 = vmatmul.bf16.gmra.mxu0 %v8210
        %v8508 = vpop.f32.mrf.mxu0
        %v8509 = vadd.f32 %v8287, %v8508
        %v8510 = vpop.f32.mrf.mxu0
        %v8511 = vadd.f32 %v8287, %v8510
        %8512 = vmatmul.bf16.gmra.mxu0 %v8212
        %v8513 = vpop.f32.mrf.mxu0
        %v8514 = vadd.f32 %v8287, %v8513
        %v8515 = vpop.f32.mrf.mxu0
        %v8516 = vadd.f32 %v8287, %v8515
        %8517 = vmatmul.bf16.gmra.mxu0 %v8214
        %v8518 = vpop.f32.mrf.mxu0
        %v8519 = vadd.f32 %v8287, %v8518
        %v8520 = vpop.f32.mrf.mxu0
        %v8521 = vadd.f32 %v8287, %v8520
        %8522 = vmatmul.bf16.gmra.mxu0 %v8216
        %v8523 = vpop.f32.mrf.mxu0
        %v8524 = vadd.f32 %v8287, %v8523
        %v8525 = vpop.f32.mrf.mxu0
        %v8526 = vadd.f32 %v8287, %v8525
        %8527 = vmatmul.bf16.gmra.mxu0 %v8218
        %v8528 = vpop.f32.mrf.mxu0
        %v8529 = vadd.f32 %v8287, %v8528
        %v8530 = vpop.f32.mrf.mxu0
        %v8531 = vadd.f32 %v8287, %v8530
        %8532 = vmatmul.bf16.gmra.mxu0 %v8220
        %v8533 = vpop.f32.mrf.mxu0
        %v8534 = vadd.f32 %v8287, %v8533
        %v8535 = vpop.f32.mrf.mxu0
        %v8536 = vadd.f32 %v8287, %v8535
        %8537 = vmatmul.bf16.gmra.mxu0 %v8222
        %v8538 = vpop.f32.mrf.mxu0
        %v8539 = vadd.f32 %v8287, %v8538
        %v8540 = vpop.f32.mrf.mxu0
        %v8541 = vadd.f32 %v8287, %v8540
        %8542 = vmatmul.bf16.gmra.mxu0 %v8224
        %v8543 = vpop.f32.mrf.mxu0
        %v8544 = vadd.f32 %v8287, %v8543
        %v8545 = vpop.f32.mrf.mxu0
        %v8546 = vadd.f32 %v8287, %v8545
        %8547 = vmatmul.bf16.gmra.mxu0 %v8226
        %v8548 = vpop.f32.mrf.mxu0
        %v8549 = vadd.f32 %v8287, %v8548
        %v8550 = vpop.f32.mrf.mxu0
        %v8551 = vadd.f32 %v8287, %v8550
        %8552 = vmatmul.bf16.gmra.mxu0 %v8228
        %v8553 = vpop.f32.mrf.mxu0
        %v8554 = vadd.f32 %v8287, %v8553
        %v8555 = vpop.f32.mrf.mxu0
        %v8556 = vadd.f32 %v8287, %v8555
        %8557 = vmatmul.bf16.gmra.mxu0 %v8230
        %v8558 = vpop.f32.mrf.mxu0
        %v8559 = vadd.f32 %v8287, %v8558
        %v8560 = vpop.f32.mrf.mxu0
        %v8561 = vadd.f32 %v8287, %v8560
        %8562 = vmatmul.bf16.gmra.mxu0 %v8232
        %v8563 = vpop.f32.mrf.mxu0
        %v8564 = vadd.f32 %v8287, %v8563
        %v8565 = vpop.f32.mrf.mxu0
        %v8566 = vadd.f32 %v8287, %v8565
        %8567 = vmatmul.bf16.gmra.mxu0 %v8234
        %v8568 = vpop.f32.mrf.mxu0
        %v8569 = vadd.f32 %v8287, %v8568
        %v8570 = vpop.f32.mrf.mxu0
        %v8571 = vadd.f32 %v8287, %v8570
        %8572 = vmatmul.bf16.gmra.mxu0 %v8236
        %v8573 = vpop.f32.mrf.mxu0
        %v8574 = vadd.f32 %v8287, %v8573
        %v8575 = vpop.f32.mrf.mxu0
        %v8576 = vadd.f32 %v8287, %v8575
        %8577 = vmatmul.bf16.gmra.mxu0 %v8238
        %v8578 = vpop.f32.mrf.mxu0
        %v8579 = vadd.f32 %v8287, %v8578
        %v8580 = vpop.f32.mrf.mxu0
        %v8581 = vadd.f32 %v8287, %v8580
        %8582 = vmatmul.bf16.gmra.mxu0 %v8240
        %v8583 = vpop.f32.mrf.mxu0
        %v8584 = vadd.f32 %v8287, %v8583
        %v8585 = vpop.f32.mrf.mxu0
        %v8586 = vadd.f32 %v8287, %v8585
        %8587 = vmatmul.bf16.gmra.mxu0 %v8242
        %v8588 = vpop.f32.mrf.mxu0
        %v8589 = vadd.f32 %v8287, %v8588
        %v8590 = vpop.f32.mrf.mxu0
        %v8591 = vadd.f32 %v8287, %v8590
        %8592 = vmatmul.bf16.gmra.mxu0 %v8244
        %v8593 = vpop.f32.mrf.mxu0
        %v8594 = vadd.f32 %v8287, %v8593
        %v8595 = vpop.f32.mrf.mxu0
        %v8596 = vadd.f32 %v8287, %v8595
        %8597 = vmatmul.bf16.gmra.mxu0 %v8246
        %v8598 = vpop.f32.mrf.mxu0
        %v8599 = vadd.f32 %v8287, %v8598
        %v8600 = vpop.f32.mrf.mxu0
        %v8601 = vadd.f32 %v8287, %v8600
        %8602 = vmatmul.bf16.gmra.mxu0 %v8248
        %v8603 = vpop.f32.mrf.mxu0
        %v8604 = vadd.f32 %v8287, %v8603
        %v8605 = vpop.f32.mrf.mxu0
        %v8606 = vadd.f32 %v8287, %v8605
        %8607 = vmatmul.bf16.gmra.mxu0 %v8250
        %v8608 = vpop.f32.mrf.mxu0
        %v8609 = vadd.f32 %v8287, %v8608
        %v8610 = vpop.f32.mrf.mxu0
        %v8611 = vadd.f32 %v8287, %v8610
        %8612 = vmatmul.bf16.gmra.mxu0 %v8252
        %v8613 = vpop.f32.mrf.mxu0
        %v8614 = vadd.f32 %v8287, %v8613
        %v8615 = vpop.f32.mrf.mxu0
        %v8616 = vadd.f32 %v8287, %v8615
        %8617 = vdwg.mxu0
        %8618 = vmatpush.bf16.msra.mxu0 %v8415
        %8619 = vmatpush.bf16.msra.mxu0 %v8413
        %8620 = vmatpush.bf16.msra.mxu0 %v8411
        %8621 = vmatpush.bf16.msra.mxu0 %v8409
        %8622 = vmatpush.bf16.msra.mxu0 %v8407
        %8623 = vmatpush.bf16.msra.mxu0 %v8405
        %8624 = vmatpush.bf16.msra.mxu0 %v8403
        %8625 = vmatpush.bf16.msra.mxu0 %v8401
        %8626 = vmatmul.bf16.gmra.mxu0 %v8191
        %v8627 = vpop.f32.mrf.mxu0
        %v8628 = vadd.f32 %v8459, %v8627
        %v8629 = vpop.f32.mrf.mxu0
        %v8630 = vadd.f32 %v8461, %v8629
        %8631 = vmatmul.bf16.gmra.mxu0 %v8193
        %v8632 = vpop.f32.mrf.mxu0
        %v8633 = vadd.f32 %v8464, %v8632
        %v8634 = vpop.f32.mrf.mxu0
        %v8635 = vadd.f32 %v8466, %v8634
        %8636 = vmatmul.bf16.gmra.mxu0 %v8195
        %v8637 = vpop.f32.mrf.mxu0
        %v8638 = vadd.f32 %v8469, %v8637
        %v8639 = vpop.f32.mrf.mxu0
        %v8640 = vadd.f32 %v8471, %v8639
        %8641 = vmatmul.bf16.gmra.mxu0 %v8197
        %v8642 = vpop.f32.mrf.mxu0
        %v8643 = vadd.f32 %v8474, %v8642
        %v8644 = vpop.f32.mrf.mxu0
        %v8645 = vadd.f32 %v8476, %v8644
        %8646 = vmatmul.bf16.gmra.mxu0 %v8199
        %v8647 = vpop.f32.mrf.mxu0
        %v8648 = vadd.f32 %v8479, %v8647
        %v8649 = vpop.f32.mrf.mxu0
        %v8650 = vadd.f32 %v8481, %v8649
        %8651 = vmatmul.bf16.gmra.mxu0 %v8201
        %v8652 = vpop.f32.mrf.mxu0
        %v8653 = vadd.f32 %v8484, %v8652
        %v8654 = vpop.f32.mrf.mxu0
        %v8655 = vadd.f32 %v8486, %v8654
        %8656 = vmatmul.bf16.gmra.mxu0 %v8203
        %v8657 = vpop.f32.mrf.mxu0
        %v8658 = vadd.f32 %v8489, %v8657
        %v8659 = vpop.f32.mrf.mxu0
        %v8660 = vadd.f32 %v8491, %v8659
        %8661 = vmatmul.bf16.gmra.mxu0 %v8205
        %v8662 = vpop.f32.mrf.mxu0
        %v8663 = vadd.f32 %v8494, %v8662
        %v8664 = vpop.f32.mrf.mxu0
        %v8665 = vadd.f32 %v8496, %v8664
        %8666 = vmatmul.bf16.gmra.mxu0 %v8207
        %v8667 = vpop.f32.mrf.mxu0
        %v8668 = vadd.f32 %v8499, %v8667
        %v8669 = vpop.f32.mrf.mxu0
        %v8670 = vadd.f32 %v8501, %v8669
        %8671 = vmatmul.bf16.gmra.mxu0 %v8209
        %v8672 = vpop.f32.mrf.mxu0
        %v8673 = vadd.f32 %v8504, %v8672
        %v8674 = vpop.f32.mrf.mxu0
        %v8675 = vadd.f32 %v8506, %v8674
        %8676 = vmatmul.bf16.gmra.mxu0 %v8211
        %v8677 = vpop.f32.mrf.mxu0
        %v8678 = vadd.f32 %v8509, %v8677
        %v8679 = vpop.f32.mrf.mxu0
        %v8680 = vadd.f32 %v8511, %v8679
        %8681 = vmatmul.bf16.gmra.mxu0 %v8213
        %v8682 = vpop.f32.mrf.mxu0
        %v8683 = vadd.f32 %v8514, %v8682
        %v8684 = vpop.f32.mrf.mxu0
        %v8685 = vadd.f32 %v8516, %v8684
        %8686 = vmatmul.bf16.gmra.mxu0 %v8215
        %v8687 = vpop.f32.mrf.mxu0
        %v8688 = vadd.f32 %v8519, %v8687
        %v8689 = vpop.f32.mrf.mxu0
        %v8690 = vadd.f32 %v8521, %v8689
        %8691 = vmatmul.bf16.gmra.mxu0 %v8217
        %v8692 = vpop.f32.mrf.mxu0
        %v8693 = vadd.f32 %v8524, %v8692
        %v8694 = vpop.f32.mrf.mxu0
        %v8695 = vadd.f32 %v8526, %v8694
        %8696 = vmatmul.bf16.gmra.mxu0 %v8219
        %v8697 = vpop.f32.mrf.mxu0
        %v8698 = vadd.f32 %v8529, %v8697
        %v8699 = vpop.f32.mrf.mxu0
        %v8700 = vadd.f32 %v8531, %v8699
        %8701 = vmatmul.bf16.gmra.mxu0 %v8221
        %v8702 = vpop.f32.mrf.mxu0
        %v8703 = vadd.f32 %v8534, %v8702
        %v8704 = vpop.f32.mrf.mxu0
        %v8705 = vadd.f32 %v8536, %v8704
        %8706 = vmatmul.bf16.gmra.mxu0 %v8223
        %v8707 = vpop.f32.mrf.mxu0
        %v8708 = vadd.f32 %v8539, %v8707
        %v8709 = vpop.f32.mrf.mxu0
        %v8710 = vadd.f32 %v8541, %v8709
        %8711 = vmatmul.bf16.gmra.mxu0 %v8225
        %v8712 = vpop.f32.mrf.mxu0
        %v8713 = vadd.f32 %v8544, %v8712
        %v8714 = vpop.f32.mrf.mxu0
        %v8715 = vadd.f32 %v8546, %v8714
        %8716 = vmatmul.bf16.gmra.mxu0 %v8227
        %v8717 = vpop.f32.mrf.mxu0
        %v8718 = vadd.f32 %v8549, %v8717
        %v8719 = vpop.f32.mrf.mxu0
        %v8720 = vadd.f32 %v8551, %v8719
        %8721 = vmatmul.bf16.gmra.mxu0 %v8229
        %v8722 = vpop.f32.mrf.mxu0
        %v8723 = vadd.f32 %v8554, %v8722
        %v8724 = vpop.f32.mrf.mxu0
        %v8725 = vadd.f32 %v8556, %v8724
        %8726 = vmatmul.bf16.gmra.mxu0 %v8231
        %v8727 = vpop.f32.mrf.mxu0
        %v8728 = vadd.f32 %v8559, %v8727
        %v8729 = vpop.f32.mrf.mxu0
        %v8730 = vadd.f32 %v8561, %v8729
        %8731 = vmatmul.bf16.gmra.mxu0 %v8233
        %v8732 = vpop.f32.mrf.mxu0
        %v8733 = vadd.f32 %v8564, %v8732
        %v8734 = vpop.f32.mrf.mxu0
        %v8735 = vadd.f32 %v8566, %v8734
        %8736 = vmatmul.bf16.gmra.mxu0 %v8235
        %v8737 = vpop.f32.mrf.mxu0
        %v8738 = vadd.f32 %v8569, %v8737
        %v8739 = vpop.f32.mrf.mxu0
        %v8740 = vadd.f32 %v8571, %v8739
        %8741 = vmatmul.bf16.gmra.mxu0 %v8237
        %v8742 = vpop.f32.mrf.mxu0
        %v8743 = vadd.f32 %v8574, %v8742
        %v8744 = vpop.f32.mrf.mxu0
        %v8745 = vadd.f32 %v8576, %v8744
        %8746 = vmatmul.bf16.gmra.mxu0 %v8239
        %v8747 = vpop.f32.mrf.mxu0
        %v8748 = vadd.f32 %v8579, %v8747
        %v8749 = vpop.f32.mrf.mxu0
        %v8750 = vadd.f32 %v8581, %v8749
        %8751 = vmatmul.bf16.gmra.mxu0 %v8241
        %v8752 = vpop.f32.mrf.mxu0
        %v8753 = vadd.f32 %v8584, %v8752
        %v8754 = vpop.f32.mrf.mxu0
        %v8755 = vadd.f32 %v8586, %v8754
        %8756 = vmatmul.bf16.gmra.mxu0 %v8243
        %v8757 = vpop.f32.mrf.mxu0
        %v8758 = vadd.f32 %v8589, %v8757
        %v8759 = vpop.f32.mrf.mxu0
        %v8760 = vadd.f32 %v8591, %v8759
        %8761 = vmatmul.bf16.gmra.mxu0 %v8245
        %v8762 = vpop.f32.mrf.mxu0
        %v8763 = vadd.f32 %v8594, %v8762
        %v8764 = vpop.f32.mrf.mxu0
        %v8765 = vadd.f32 %v8596, %v8764
        %8766 = vmatmul.bf16.gmra.mxu0 %v8247
        %v8767 = vpop.f32.mrf.mxu0
        %v8768 = vadd.f32 %v8599, %v8767
        %v8769 = vpop.f32.mrf.mxu0
        %v8770 = vadd.f32 %v8601, %v8769
        %8771 = vmatmul.bf16.gmra.mxu0 %v8249
        %v8772 = vpop.f32.mrf.mxu0
        %v8773 = vadd.f32 %v8604, %v8772
        %v8774 = vpop.f32.mrf.mxu0
        %v8775 = vadd.f32 %v8606, %v8774
        %8776 = vmatmul.bf16.gmra.mxu0 %v8251
        %v8777 = vpop.f32.mrf.mxu0
        %v8778 = vadd.f32 %v8609, %v8777
        %v8779 = vpop.f32.mrf.mxu0
        %v8780 = vadd.f32 %v8611, %v8779
        %8781 = vmatmul.bf16.gmra.mxu0 %v8253
        %v8782 = vpop.f32.mrf.mxu0
        %v8783 = vadd.f32 %v8614, %v8782
        %v8784 = vpop.f32.mrf.mxu0
        %v8785 = vadd.f32 %v8616, %v8784
        %8786 = vdwg.mxu0
        %8787 = vmatpush.bf16.msra.mxu0 %v8400
        %8788 = vmatpush.bf16.msra.mxu0 %v8398
        %8789 = vmatpush.bf16.msra.mxu0 %v8396
        %8790 = vmatpush.bf16.msra.mxu0 %v8394
        %8791 = vmatpush.bf16.msra.mxu0 %v8392
        %8792 = vmatpush.bf16.msra.mxu0 %v8390
        %8793 = vmatpush.bf16.msra.mxu0 %v8388
        %8794 = vmatpush.bf16.msra.mxu0 %v8386
        %8795 = vmatmul.bf16.gmra.mxu0 %v8190
        %v8796 = vpop.f32.mrf.mxu0
        %v8797 = vadd.f32 %v8288, %v8796
        %v8798 = vpop.f32.mrf.mxu0
        %v8799 = vadd.f32 %v8288, %v8798
        %8800 = vmatmul.bf16.gmra.mxu0 %v8192
        %v8801 = vpop.f32.mrf.mxu0
        %v8802 = vadd.f32 %v8288, %v8801
        %v8803 = vpop.f32.mrf.mxu0
        %v8804 = vadd.f32 %v8288, %v8803
        %8805 = vmatmul.bf16.gmra.mxu0 %v8194
        %v8806 = vpop.f32.mrf.mxu0
        %v8807 = vadd.f32 %v8288, %v8806
        %v8808 = vpop.f32.mrf.mxu0
        %v8809 = vadd.f32 %v8288, %v8808
        %8810 = vmatmul.bf16.gmra.mxu0 %v8196
        %v8811 = vpop.f32.mrf.mxu0
        %v8812 = vadd.f32 %v8288, %v8811
        %v8813 = vpop.f32.mrf.mxu0
        %v8814 = vadd.f32 %v8288, %v8813
        %8815 = vmatmul.bf16.gmra.mxu0 %v8198
        %v8816 = vpop.f32.mrf.mxu0
        %v8817 = vadd.f32 %v8288, %v8816
        %v8818 = vpop.f32.mrf.mxu0
        %v8819 = vadd.f32 %v8288, %v8818
        %8820 = vmatmul.bf16.gmra.mxu0 %v8200
        %v8821 = vpop.f32.mrf.mxu0
        %v8822 = vadd.f32 %v8288, %v8821
        %v8823 = vpop.f32.mrf.mxu0
        %v8824 = vadd.f32 %v8288, %v8823
        %8825 = vmatmul.bf16.gmra.mxu0 %v8202
        %v8826 = vpop.f32.mrf.mxu0
        %v8827 = vadd.f32 %v8288, %v8826
        %v8828 = vpop.f32.mrf.mxu0
        %v8829 = vadd.f32 %v8288, %v8828
        %8830 = vmatmul.bf16.gmra.mxu0 %v8204
        %v8831 = vpop.f32.mrf.mxu0
        %v8832 = vadd.f32 %v8288, %v8831
        %v8833 = vpop.f32.mrf.mxu0
        %v8834 = vadd.f32 %v8288, %v8833
        %8835 = vmatmul.bf16.gmra.mxu0 %v8206
        %v8836 = vpop.f32.mrf.mxu0
        %v8837 = vadd.f32 %v8288, %v8836
        %v8838 = vpop.f32.mrf.mxu0
        %v8839 = vadd.f32 %v8288, %v8838
        %8840 = vmatmul.bf16.gmra.mxu0 %v8208
        %v8841 = vpop.f32.mrf.mxu0
        %v8842 = vadd.f32 %v8288, %v8841
        %v8843 = vpop.f32.mrf.mxu0
        %v8844 = vadd.f32 %v8288, %v8843
        %8845 = vmatmul.bf16.gmra.mxu0 %v8210
        %v8846 = vpop.f32.mrf.mxu0
        %v8847 = vadd.f32 %v8288, %v8846
        %v8848 = vpop.f32.mrf.mxu0
        %v8849 = vadd.f32 %v8288, %v8848
        %8850 = vmatmul.bf16.gmra.mxu0 %v8212
        %v8851 = vpop.f32.mrf.mxu0
        %v8852 = vadd.f32 %v8288, %v8851
        %v8853 = vpop.f32.mrf.mxu0
        %v8854 = vadd.f32 %v8288, %v8853
        %8855 = vmatmul.bf16.gmra.mxu0 %v8214
        %v8856 = vpop.f32.mrf.mxu0
        %v8857 = vadd.f32 %v8288, %v8856
        %v8858 = vpop.f32.mrf.mxu0
        %v8859 = vadd.f32 %v8288, %v8858
        %8860 = vmatmul.bf16.gmra.mxu0 %v8216
        %v8861 = vpop.f32.mrf.mxu0
        %v8862 = vadd.f32 %v8288, %v8861
        %v8863 = vpop.f32.mrf.mxu0
        %v8864 = vadd.f32 %v8288, %v8863
        %8865 = vmatmul.bf16.gmra.mxu0 %v8218
        %v8866 = vpop.f32.mrf.mxu0
        %v8867 = vadd.f32 %v8288, %v8866
        %v8868 = vpop.f32.mrf.mxu0
        %v8869 = vadd.f32 %v8288, %v8868
        %8870 = vmatmul.bf16.gmra.mxu0 %v8220
        %v8871 = vpop.f32.mrf.mxu0
        %v8872 = vadd.f32 %v8288, %v8871
        %v8873 = vpop.f32.mrf.mxu0
        %v8874 = vadd.f32 %v8288, %v8873
        %8875 = vmatmul.bf16.gmra.mxu0 %v8222
        %v8876 = vpop.f32.mrf.mxu0
        %v8877 = vadd.f32 %v8288, %v8876
        %v8878 = vpop.f32.mrf.mxu0
        %v8879 = vadd.f32 %v8288, %v8878
        %8880 = vmatmul.bf16.gmra.mxu0 %v8224
        %v8881 = vpop.f32.mrf.mxu0
        %v8882 = vadd.f32 %v8288, %v8881
        %v8883 = vpop.f32.mrf.mxu0
        %v8884 = vadd.f32 %v8288, %v8883
        %8885 = vmatmul.bf16.gmra.mxu0 %v8226
        %v8886 = vpop.f32.mrf.mxu0
        %v8887 = vadd.f32 %v8288, %v8886
        %v8888 = vpop.f32.mrf.mxu0
        %v8889 = vadd.f32 %v8288, %v8888
        %8890 = vmatmul.bf16.gmra.mxu0 %v8228
        %v8891 = vpop.f32.mrf.mxu0
        %v8892 = vadd.f32 %v8288, %v8891
        %v8893 = vpop.f32.mrf.mxu0
        %v8894 = vadd.f32 %v8288, %v8893
        %8895 = vmatmul.bf16.gmra.mxu0 %v8230
        %v8896 = vpop.f32.mrf.mxu0
        %v8897 = vadd.f32 %v8288, %v8896
        %v8898 = vpop.f32.mrf.mxu0
        %v8899 = vadd.f32 %v8288, %v8898
        %8900 = vmatmul.bf16.gmra.mxu0 %v8232
        %v8901 = vpop.f32.mrf.mxu0
        %v8902 = vadd.f32 %v8288, %v8901
        %v8903 = vpop.f32.mrf.mxu0
        %v8904 = vadd.f32 %v8288, %v8903
        %8905 = vmatmul.bf16.gmra.mxu0 %v8234
        %v8906 = vpop.f32.mrf.mxu0
        %v8907 = vadd.f32 %v8288, %v8906
        %v8908 = vpop.f32.mrf.mxu0
        %v8909 = vadd.f32 %v8288, %v8908
        %8910 = vmatmul.bf16.gmra.mxu0 %v8236
        %v8911 = vpop.f32.mrf.mxu0
        %v8912 = vadd.f32 %v8288, %v8911
        %v8913 = vpop.f32.mrf.mxu0
        %v8914 = vadd.f32 %v8288, %v8913
        %8915 = vmatmul.bf16.gmra.mxu0 %v8238
        %v8916 = vpop.f32.mrf.mxu0
        %v8917 = vadd.f32 %v8288, %v8916
        %v8918 = vpop.f32.mrf.mxu0
        %v8919 = vadd.f32 %v8288, %v8918
        %8920 = vmatmul.bf16.gmra.mxu0 %v8240
        %v8921 = vpop.f32.mrf.mxu0
        %v8922 = vadd.f32 %v8288, %v8921
        %v8923 = vpop.f32.mrf.mxu0
        %v8924 = vadd.f32 %v8288, %v8923
        %8925 = vmatmul.bf16.gmra.mxu0 %v8242
        %v8926 = vpop.f32.mrf.mxu0
        %v8927 = vadd.f32 %v8288, %v8926
        %v8928 = vpop.f32.mrf.mxu0
        %v8929 = vadd.f32 %v8288, %v8928
        %8930 = vmatmul.bf16.gmra.mxu0 %v8244
        %v8931 = vpop.f32.mrf.mxu0
        %v8932 = vadd.f32 %v8288, %v8931
        %v8933 = vpop.f32.mrf.mxu0
        %v8934 = vadd.f32 %v8288, %v8933
        %8935 = vmatmul.bf16.gmra.mxu0 %v8246
        %v8936 = vpop.f32.mrf.mxu0
        %v8937 = vadd.f32 %v8288, %v8936
        %v8938 = vpop.f32.mrf.mxu0
        %v8939 = vadd.f32 %v8288, %v8938
        %8940 = vmatmul.bf16.gmra.mxu0 %v8248
        %v8941 = vpop.f32.mrf.mxu0
        %v8942 = vadd.f32 %v8288, %v8941
        %v8943 = vpop.f32.mrf.mxu0
        %v8944 = vadd.f32 %v8288, %v8943
        %8945 = vmatmul.bf16.gmra.mxu0 %v8250
        %v8946 = vpop.f32.mrf.mxu0
        %v8947 = vadd.f32 %v8288, %v8946
        %v8948 = vpop.f32.mrf.mxu0
        %v8949 = vadd.f32 %v8288, %v8948
        %8950 = vmatmul.bf16.gmra.mxu0 %v8252
        %v8951 = vpop.f32.mrf.mxu0
        %v8952 = vadd.f32 %v8288, %v8951
        %v8953 = vpop.f32.mrf.mxu0
        %v8954 = vadd.f32 %v8288, %v8953
        %8955 = vdwg.mxu0
        %8956 = vmatpush.bf16.msra.mxu0 %v8416
        %8957 = vmatpush.bf16.msra.mxu0 %v8414
        %8958 = vmatpush.bf16.msra.mxu0 %v8412
        %8959 = vmatpush.bf16.msra.mxu0 %v8410
        %8960 = vmatpush.bf16.msra.mxu0 %v8408
        %8961 = vmatpush.bf16.msra.mxu0 %v8406
        %8962 = vmatpush.bf16.msra.mxu0 %v8404
        %8963 = vmatpush.bf16.msra.mxu0 %v8402
        %8964 = vmatmul.bf16.gmra.mxu0 %v8191
        %v8965 = vpop.f32.mrf.mxu0
        %v8966 = vadd.f32 %v8797, %v8965
        %v8967 = vpop.f32.mrf.mxu0
        %v8968 = vadd.f32 %v8799, %v8967
        %8969 = vmatmul.bf16.gmra.mxu0 %v8193
        %v8970 = vpop.f32.mrf.mxu0
        %v8971 = vadd.f32 %v8802, %v8970
        %v8972 = vpop.f32.mrf.mxu0
        %v8973 = vadd.f32 %v8804, %v8972
        %8974 = vmatmul.bf16.gmra.mxu0 %v8195
        %v8975 = vpop.f32.mrf.mxu0
        %v8976 = vadd.f32 %v8807, %v8975
        %v8977 = vpop.f32.mrf.mxu0
        %v8978 = vadd.f32 %v8809, %v8977
        %8979 = vmatmul.bf16.gmra.mxu0 %v8197
        %v8980 = vpop.f32.mrf.mxu0
        %v8981 = vadd.f32 %v8812, %v8980
        %v8982 = vpop.f32.mrf.mxu0
        %v8983 = vadd.f32 %v8814, %v8982
        %8984 = vmatmul.bf16.gmra.mxu0 %v8199
        %v8985 = vpop.f32.mrf.mxu0
        %v8986 = vadd.f32 %v8817, %v8985
        %v8987 = vpop.f32.mrf.mxu0
        %v8988 = vadd.f32 %v8819, %v8987
        %8989 = vmatmul.bf16.gmra.mxu0 %v8201
        %v8990 = vpop.f32.mrf.mxu0
        %v8991 = vadd.f32 %v8822, %v8990
        %v8992 = vpop.f32.mrf.mxu0
        %v8993 = vadd.f32 %v8824, %v8992
        %8994 = vmatmul.bf16.gmra.mxu0 %v8203
        %v8995 = vpop.f32.mrf.mxu0
        %v8996 = vadd.f32 %v8827, %v8995
        %v8997 = vpop.f32.mrf.mxu0
        %v8998 = vadd.f32 %v8829, %v8997
        %8999 = vmatmul.bf16.gmra.mxu0 %v8205
        %v9000 = vpop.f32.mrf.mxu0
        %v9001 = vadd.f32 %v8832, %v9000
        %v9002 = vpop.f32.mrf.mxu0
        %v9003 = vadd.f32 %v8834, %v9002
        %9004 = vmatmul.bf16.gmra.mxu0 %v8207
        %v9005 = vpop.f32.mrf.mxu0
        %v9006 = vadd.f32 %v8837, %v9005
        %v9007 = vpop.f32.mrf.mxu0
        %v9008 = vadd.f32 %v8839, %v9007
        %9009 = vmatmul.bf16.gmra.mxu0 %v8209
        %v9010 = vpop.f32.mrf.mxu0
        %v9011 = vadd.f32 %v8842, %v9010
        %v9012 = vpop.f32.mrf.mxu0
        %v9013 = vadd.f32 %v8844, %v9012
        %9014 = vmatmul.bf16.gmra.mxu0 %v8211
        %v9015 = vpop.f32.mrf.mxu0
        %v9016 = vadd.f32 %v8847, %v9015
        %v9017 = vpop.f32.mrf.mxu0
        %v9018 = vadd.f32 %v8849, %v9017
        %9019 = vmatmul.bf16.gmra.mxu0 %v8213
        %v9020 = vpop.f32.mrf.mxu0
        %v9021 = vadd.f32 %v8852, %v9020
        %v9022 = vpop.f32.mrf.mxu0
        %v9023 = vadd.f32 %v8854, %v9022
        %9024 = vmatmul.bf16.gmra.mxu0 %v8215
        %v9025 = vpop.f32.mrf.mxu0
        %v9026 = vadd.f32 %v8857, %v9025
        %v9027 = vpop.f32.mrf.mxu0
        %v9028 = vadd.f32 %v8859, %v9027
        %9029 = vmatmul.bf16.gmra.mxu0 %v8217
        %v9030 = vpop.f32.mrf.mxu0
        %v9031 = vadd.f32 %v8862, %v9030
        %v9032 = vpop.f32.mrf.mxu0
        %v9033 = vadd.f32 %v8864, %v9032
        %9034 = vmatmul.bf16.gmra.mxu0 %v8219
        %v9035 = vpop.f32.mrf.mxu0
        %v9036 = vadd.f32 %v8867, %v9035
        %v9037 = vpop.f32.mrf.mxu0
        %v9038 = vadd.f32 %v8869, %v9037
        %9039 = vmatmul.bf16.gmra.mxu0 %v8221
        %v9040 = vpop.f32.mrf.mxu0
        %v9041 = vadd.f32 %v8872, %v9040
        %v9042 = vpop.f32.mrf.mxu0
        %v9043 = vadd.f32 %v8874, %v9042
        %9044 = vmatmul.bf16.gmra.mxu0 %v8223
        %v9045 = vpop.f32.mrf.mxu0
        %v9046 = vadd.f32 %v8877, %v9045
        %v9047 = vpop.f32.mrf.mxu0
        %v9048 = vadd.f32 %v8879, %v9047
        %9049 = vmatmul.bf16.gmra.mxu0 %v8225
        %v9050 = vpop.f32.mrf.mxu0
        %v9051 = vadd.f32 %v8882, %v9050
        %v9052 = vpop.f32.mrf.mxu0
        %v9053 = vadd.f32 %v8884, %v9052
        %9054 = vmatmul.bf16.gmra.mxu0 %v8227
        %v9055 = vpop.f32.mrf.mxu0
        %v9056 = vadd.f32 %v8887, %v9055
        %v9057 = vpop.f32.mrf.mxu0
        %v9058 = vadd.f32 %v8889, %v9057
        %9059 = vmatmul.bf16.gmra.mxu0 %v8229
        %v9060 = vpop.f32.mrf.mxu0
        %v9061 = vadd.f32 %v8892, %v9060
        %v9062 = vpop.f32.mrf.mxu0
        %v9063 = vadd.f32 %v8894, %v9062
        %9064 = vmatmul.bf16.gmra.mxu0 %v8231
        %v9065 = vpop.f32.mrf.mxu0
        %v9066 = vadd.f32 %v8897, %v9065
        %v9067 = vpop.f32.mrf.mxu0
        %v9068 = vadd.f32 %v8899, %v9067
        %9069 = vmatmul.bf16.gmra.mxu0 %v8233
        %v9070 = vpop.f32.mrf.mxu0
        %v9071 = vadd.f32 %v8902, %v9070
        %v9072 = vpop.f32.mrf.mxu0
        %v9073 = vadd.f32 %v8904, %v9072
        %9074 = vmatmul.bf16.gmra.mxu0 %v8235
        %v9075 = vpop.f32.mrf.mxu0
        %v9076 = vadd.f32 %v8907, %v9075
        %v9077 = vpop.f32.mrf.mxu0
        %v9078 = vadd.f32 %v8909, %v9077
        %9079 = vmatmul.bf16.gmra.mxu0 %v8237
        %v9080 = vpop.f32.mrf.mxu0
        %v9081 = vadd.f32 %v8912, %v9080
        %v9082 = vpop.f32.mrf.mxu0
        %v9083 = vadd.f32 %v8914, %v9082
        %9084 = vmatmul.bf16.gmra.mxu0 %v8239
        %v9085 = vpop.f32.mrf.mxu0
        %v9086 = vadd.f32 %v8917, %v9085
        %v9087 = vpop.f32.mrf.mxu0
        %v9088 = vadd.f32 %v8919, %v9087
        %9089 = vmatmul.bf16.gmra.mxu0 %v8241
        %v9090 = vpop.f32.mrf.mxu0
        %v9091 = vadd.f32 %v8922, %v9090
        %v9092 = vpop.f32.mrf.mxu0
        %v9093 = vadd.f32 %v8924, %v9092
        %9094 = vmatmul.bf16.gmra.mxu0 %v8243
        %v9095 = vpop.f32.mrf.mxu0
        %v9096 = vadd.f32 %v8927, %v9095
        %v9097 = vpop.f32.mrf.mxu0
        %v9098 = vadd.f32 %v8929, %v9097
        %9099 = vmatmul.bf16.gmra.mxu0 %v8245
        %v9100 = vpop.f32.mrf.mxu0
        %v9101 = vadd.f32 %v8932, %v9100
        %v9102 = vpop.f32.mrf.mxu0
        %v9103 = vadd.f32 %v8934, %v9102
        %9104 = vmatmul.bf16.gmra.mxu0 %v8247
        %v9105 = vpop.f32.mrf.mxu0
        %v9106 = vadd.f32 %v8937, %v9105
        %v9107 = vpop.f32.mrf.mxu0
        %v9108 = vadd.f32 %v8939, %v9107
        %9109 = vmatmul.bf16.gmra.mxu0 %v8249
        %v9110 = vpop.f32.mrf.mxu0
        %v9111 = vadd.f32 %v8942, %v9110
        %v9112 = vpop.f32.mrf.mxu0
        %v9113 = vadd.f32 %v8944, %v9112
        %9114 = vmatmul.bf16.gmra.mxu0 %v8251
        %v9115 = vpop.f32.mrf.mxu0
        %v9116 = vadd.f32 %v8947, %v9115
        %v9117 = vpop.f32.mrf.mxu0
        %v9118 = vadd.f32 %v8949, %v9117
        %9119 = vmatmul.bf16.gmra.mxu0 %v8253
        %v9120 = vpop.f32.mrf.mxu0
        %v9121 = vadd.f32 %v8952, %v9120
        %v9122 = vpop.f32.mrf.mxu0
        %v9123 = vadd.f32 %v8954, %v9122
        %9124 = vdwg.mxu0
        %v9125 = vmax.f32 %v8628, 0.0
        %v9126 = vmax.f32 %v8966, 0.0
        %v9127 = vmax.f32 %v8630, 0.0
        %v9128 = vmax.f32 %v8968, 0.0
        %v9129 = vmax.f32 %v8633, 0.0
        %v9130 = vmax.f32 %v8971, 0.0
        %v9131 = vmax.f32 %v8635, 0.0
        %v9132 = vmax.f32 %v8973, 0.0
        %v9133 = vmax.f32 %v8638, 0.0
        %v9134 = vmax.f32 %v8976, 0.0
        %v9135 = vmax.f32 %v8640, 0.0
        %v9136 = vmax.f32 %v8978, 0.0
        %v9137 = vmax.f32 %v8643, 0.0
        %v9138 = vmax.f32 %v8981, 0.0
        %v9139 = vmax.f32 %v8645, 0.0
        %v9140 = vmax.f32 %v8983, 0.0
        %v9141 = vmax.f32 %v8648, 0.0
        %v9142 = vmax.f32 %v8986, 0.0
        %v9143 = vmax.f32 %v8650, 0.0
        %v9144 = vmax.f32 %v8988, 0.0
        %v9145 = vmax.f32 %v8653, 0.0
        %v9146 = vmax.f32 %v8991, 0.0
        %v9147 = vmax.f32 %v8655, 0.0
        %v9148 = vmax.f32 %v8993, 0.0
        %v9149 = vmax.f32 %v8658, 0.0
        %v9150 = vmax.f32 %v8996, 0.0
        %v9151 = vmax.f32 %v8660, 0.0
        %v9152 = vmax.f32 %v8998, 0.0
        %v9153 = vmax.f32 %v8663, 0.0
        %v9154 = vmax.f32 %v9001, 0.0
        %v9155 = vmax.f32 %v8665, 0.0
        %v9156 = vmax.f32 %v9003, 0.0
        %v9157 = vmax.f32 %v8668, 0.0
        %v9158 = vmax.f32 %v9006, 0.0
        %v9159 = vmax.f32 %v8670, 0.0
        %v9160 = vmax.f32 %v9008, 0.0
        %v9161 = vmax.f32 %v8673, 0.0
        %v9162 = vmax.f32 %v9011, 0.0
        %v9163 = vmax.f32 %v8675, 0.0
        %v9164 = vmax.f32 %v9013, 0.0
        %v9165 = vmax.f32 %v8678, 0.0
        %v9166 = vmax.f32 %v9016, 0.0
        %v9167 = vmax.f32 %v8680, 0.0
        %v9168 = vmax.f32 %v9018, 0.0
        %v9169 = vmax.f32 %v8683, 0.0
        %v9170 = vmax.f32 %v9021, 0.0
        %v9171 = vmax.f32 %v8685, 0.0
        %v9172 = vmax.f32 %v9023, 0.0
        %v9173 = vmax.f32 %v8688, 0.0
        %v9174 = vmax.f32 %v9026, 0.0
        %v9175 = vmax.f32 %v8690, 0.0
        %v9176 = vmax.f32 %v9028, 0.0
        %v9177 = vmax.f32 %v8693, 0.0
        %v9178 = vmax.f32 %v9031, 0.0
        %v9179 = vmax.f32 %v8695, 0.0
        %v9180 = vmax.f32 %v9033, 0.0
        %v9181 = vmax.f32 %v8698, 0.0
        %v9182 = vmax.f32 %v9036, 0.0
        %v9183 = vmax.f32 %v8700, 0.0
        %v9184 = vmax.f32 %v9038, 0.0
        %v9185 = vmax.f32 %v8703, 0.0
        %v9186 = vmax.f32 %v9041, 0.0
        %v9187 = vmax.f32 %v8705, 0.0
        %v9188 = vmax.f32 %v9043, 0.0
        %v9189 = vmax.f32 %v8708, 0.0
        %v9190 = vmax.f32 %v9046, 0.0
        %v9191 = vmax.f32 %v8710, 0.0
        %v9192 = vmax.f32 %v9048, 0.0
        %v9193 = vmax.f32 %v8713, 0.0
        %v9194 = vmax.f32 %v9051, 0.0
        %v9195 = vmax.f32 %v8715, 0.0
        %v9196 = vmax.f32 %v9053, 0.0
        %v9197 = vmax.f32 %v8718, 0.0
        %v9198 = vmax.f32 %v9056, 0.0
        %v9199 = vmax.f32 %v8720, 0.0
        %v9200 = vmax.f32 %v9058, 0.0
        %v9201 = vmax.f32 %v8723, 0.0
        %v9202 = vmax.f32 %v9061, 0.0
        %v9203 = vmax.f32 %v8725, 0.0
        %v9204 = vmax.f32 %v9063, 0.0
        %v9205 = vmax.f32 %v8728, 0.0
        %v9206 = vmax.f32 %v9066, 0.0
        %v9207 = vmax.f32 %v8730, 0.0
        %v9208 = vmax.f32 %v9068, 0.0
        %v9209 = vmax.f32 %v8733, 0.0
        %v9210 = vmax.f32 %v9071, 0.0
        %v9211 = vmax.f32 %v8735, 0.0
        %v9212 = vmax.f32 %v9073, 0.0
        %v9213 = vmax.f32 %v8738, 0.0
        %v9214 = vmax.f32 %v9076, 0.0
        %v9215 = vmax.f32 %v8740, 0.0
        %v9216 = vmax.f32 %v9078, 0.0
        %v9217 = vmax.f32 %v8743, 0.0
        %v9218 = vmax.f32 %v9081, 0.0
        %v9219 = vmax.f32 %v8745, 0.0
        %v9220 = vmax.f32 %v9083, 0.0
        %v9221 = vmax.f32 %v8748, 0.0
        %v9222 = vmax.f32 %v9086, 0.0
        %v9223 = vmax.f32 %v8750, 0.0
        %v9224 = vmax.f32 %v9088, 0.0
        %v9225 = vmax.f32 %v8753, 0.0
        %v9226 = vmax.f32 %v9091, 0.0
        %v9227 = vmax.f32 %v8755, 0.0
        %v9228 = vmax.f32 %v9093, 0.0
        %v9229 = vmax.f32 %v8758, 0.0
        %v9230 = vmax.f32 %v9096, 0.0
        %v9231 = vmax.f32 %v8760, 0.0
        %v9232 = vmax.f32 %v9098, 0.0
        %v9233 = vmax.f32 %v8763, 0.0
        %v9234 = vmax.f32 %v9101, 0.0
        %v9235 = vmax.f32 %v8765, 0.0
        %v9236 = vmax.f32 %v9103, 0.0
        %v9237 = vmax.f32 %v8768, 0.0
        %v9238 = vmax.f32 %v9106, 0.0
        %v9239 = vmax.f32 %v8770, 0.0
        %v9240 = vmax.f32 %v9108, 0.0
        %v9241 = vmax.f32 %v8773, 0.0
        %v9242 = vmax.f32 %v9111, 0.0
        %v9243 = vmax.f32 %v8775, 0.0
        %v9244 = vmax.f32 %v9113, 0.0
        %v9245 = vmax.f32 %v8778, 0.0
        %v9246 = vmax.f32 %v9116, 0.0
        %v9247 = vmax.f32 %v8780, 0.0
        %v9248 = vmax.f32 %v9118, 0.0
        %v9249 = vmax.f32 %v8783, 0.0
        %v9250 = vmax.f32 %v9121, 0.0
        %v9251 = vmax.f32 %v8785, 0.0
        %v9252 = vmax.f32 %v9123, 0.0
        %v9253 = vpack.c.bf16 %v9127, %v9125
        %v9254 = vpack.c.bf16 %v9128, %v9126
        %v9255 = vpack.c.bf16 %v9131, %v9129
        %v9256 = vpack.c.bf16 %v9132, %v9130
        %v9257 = vpack.c.bf16 %v9135, %v9133
        %v9258 = vpack.c.bf16 %v9136, %v9134
        %v9259 = vpack.c.bf16 %v9139, %v9137
        %v9260 = vpack.c.bf16 %v9140, %v9138
        %v9261 = vpack.c.bf16 %v9143, %v9141
        %v9262 = vpack.c.bf16 %v9144, %v9142
        %v9263 = vpack.c.bf16 %v9147, %v9145
        %v9264 = vpack.c.bf16 %v9148, %v9146
        %v9265 = vpack.c.bf16 %v9151, %v9149
        %v9266 = vpack.c.bf16 %v9152, %v9150
        %v9267 = vpack.c.bf16 %v9155, %v9153
        %v9268 = vpack.c.bf16 %v9156, %v9154
        %v9269 = vpack.c.bf16 %v9159, %v9157
        %v9270 = vpack.c.bf16 %v9160, %v9158
        %v9271 = vpack.c.bf16 %v9163, %v9161
        %v9272 = vpack.c.bf16 %v9164, %v9162
        %v9273 = vpack.c.bf16 %v9167, %v9165
        %v9274 = vpack.c.bf16 %v9168, %v9166
        %v9275 = vpack.c.bf16 %v9171, %v9169
        %v9276 = vpack.c.bf16 %v9172, %v9170
        %v9277 = vpack.c.bf16 %v9175, %v9173
        %v9278 = vpack.c.bf16 %v9176, %v9174
        %v9279 = vpack.c.bf16 %v9179, %v9177
        %v9280 = vpack.c.bf16 %v9180, %v9178
        %v9281 = vpack.c.bf16 %v9183, %v9181
        %v9282 = vpack.c.bf16 %v9184, %v9182
        %v9283 = vpack.c.bf16 %v9187, %v9185
        %v9284 = vpack.c.bf16 %v9188, %v9186
        %v9285 = vpack.c.bf16 %v9191, %v9189
        %v9286 = vpack.c.bf16 %v9192, %v9190
        %v9287 = vpack.c.bf16 %v9195, %v9193
        %v9288 = vpack.c.bf16 %v9196, %v9194
        %v9289 = vpack.c.bf16 %v9199, %v9197
        %v9290 = vpack.c.bf16 %v9200, %v9198
        %v9291 = vpack.c.bf16 %v9203, %v9201
        %v9292 = vpack.c.bf16 %v9204, %v9202
        %v9293 = vpack.c.bf16 %v9207, %v9205
        %v9294 = vpack.c.bf16 %v9208, %v9206
        %v9295 = vpack.c.bf16 %v9211, %v9209
        %v9296 = vpack.c.bf16 %v9212, %v9210
        %v9297 = vpack.c.bf16 %v9215, %v9213
        %v9298 = vpack.c.bf16 %v9216, %v9214
        %v9299 = vpack.c.bf16 %v9219, %v9217
        %v9300 = vpack.c.bf16 %v9220, %v9218
        %v9301 = vpack.c.bf16 %v9223, %v9221
        %v9302 = vpack.c.bf16 %v9224, %v9222
        %v9303 = vpack.c.bf16 %v9227, %v9225
        %v9304 = vpack.c.bf16 %v9228, %v9226
        %v9305 = vpack.c.bf16 %v9231, %v9229
        %v9306 = vpack.c.bf16 %v9232, %v9230
        %v9307 = vpack.c.bf16 %v9235, %v9233
        %v9308 = vpack.c.bf16 %v9236, %v9234
        %v9309 = vpack.c.bf16 %v9239, %v9237
        %v9310 = vpack.c.bf16 %v9240, %v9238
        %v9311 = vpack.c.bf16 %v9243, %v9241
        %v9312 = vpack.c.bf16 %v9244, %v9242
        %v9313 = vpack.c.bf16 %v9247, %v9245
        %v9314 = vpack.c.bf16 %v9248, %v9246
        %v9315 = vpack.c.bf16 %v9251, %v9249
        %v9316 = vpack.c.bf16 %v9252, %v9250
        %s9317 = scalar_lea.vmem [#allocation2], 1536
        %v9318 = vld [vmem:[%s9317] sm:$0xff]
        %v9319 = vld [vmem:[%s9317 + $0x8] sm:$0xff]
        %v9320 = vld [vmem:[%s9317 + $0x10] sm:$0xff]
        %v9321 = vld [vmem:[%s9317 + $0x18] sm:$0xff]
        %v9322 = vld [vmem:[%s9317 + $0x20] sm:$0xff]
        %v9323 = vld [vmem:[%s9317 + $0x28] sm:$0xff]
        %v9324 = vld [vmem:[%s9317 + $0x30] sm:$0xff]
        %v9325 = vld [vmem:[%s9317 + $0x38] sm:$0xff]
        %v9326 = vld [vmem:[%s9317 + $0x40] sm:$0xff]
        %v9327 = vld [vmem:[%s9317 + $0x48] sm:$0xff]
        %v9328 = vld [vmem:[%s9317 + $0x50] sm:$0xff]
        %v9329 = vld [vmem:[%s9317 + $0x58] sm:$0xff]
        %v9330 = vld [vmem:[%s9317 + $0x60] sm:$0xff]
        %v9331 = vld [vmem:[%s9317 + $0x68] sm:$0xff]
        %v9332 = vld [vmem:[%s9317 + $0x70] sm:$0xff]
        %v9333 = vld [vmem:[%s9317 + $0x78] sm:$0xff]
        %v9334 = vld [vmem:[%s9317 + $0x80] sm:$0xff]
        %v9335 = vld [vmem:[%s9317 + $0x88] sm:$0xff]
        %v9336 = vld [vmem:[%s9317 + $0x90] sm:$0xff]
        %v9337 = vld [vmem:[%s9317 + $0x98] sm:$0xff]
        %v9338 = vld [vmem:[%s9317 + $0xa0] sm:$0xff]
        %v9339 = vld [vmem:[%s9317 + $0xa8] sm:$0xff]
        %v9340 = vld [vmem:[%s9317 + $0xb0] sm:$0xff]
        %v9341 = vld [vmem:[%s9317 + $0xb8] sm:$0xff]
        %v9342 = vld [vmem:[%s9317 + $0xc0] sm:$0xff]
        %v9343 = vld [vmem:[%s9317 + $0xc8] sm:$0xff]
        %v9344 = vld [vmem:[%s9317 + $0xd0] sm:$0xff]
        %v9345 = vld [vmem:[%s9317 + $0xd8] sm:$0xff]
        %v9346 = vld [vmem:[%s9317 + $0xe0] sm:$0xff]
        %v9347 = vld [vmem:[%s9317 + $0xe8] sm:$0xff]
        %v9348 = vld [vmem:[%s9317 + $0xf0] sm:$0xff]
        %v9349 = vld [vmem:[%s9317 + $0xf8] sm:$0xff]
        %v9350 = vperm.slane %v338, 7
        %v9351 = vperm.slane %v339, 7
        %v9384 = vunpack.c.l.b16 %v9318
        %v9385 = vunpack.c.h.b16 %v9318
        %v9386 = vunpack.c.l.b16 %v9319
        %v9387 = vunpack.c.h.b16 %v9319
        %v9388 = vunpack.c.l.b16 %v9320
        %v9389 = vunpack.c.h.b16 %v9320
        %v9390 = vunpack.c.l.b16 %v9321
        %v9391 = vunpack.c.h.b16 %v9321
        %v9392 = vunpack.c.l.b16 %v9322
        %v9393 = vunpack.c.h.b16 %v9322
        %v9394 = vunpack.c.l.b16 %v9323
        %v9395 = vunpack.c.h.b16 %v9323
        %v9396 = vunpack.c.l.b16 %v9324
        %v9397 = vunpack.c.h.b16 %v9324
        %v9398 = vunpack.c.l.b16 %v9325
        %v9399 = vunpack.c.h.b16 %v9325
        %v9400 = vunpack.c.l.b16 %v9326
        %v9401 = vunpack.c.h.b16 %v9326
        %v9402 = vunpack.c.l.b16 %v9327
        %v9403 = vunpack.c.h.b16 %v9327
        %v9404 = vunpack.c.l.b16 %v9328
        %v9405 = vunpack.c.h.b16 %v9328
        %v9406 = vunpack.c.l.b16 %v9329
        %v9407 = vunpack.c.h.b16 %v9329
        %v9408 = vunpack.c.l.b16 %v9330
        %v9409 = vunpack.c.h.b16 %v9330
        %v9410 = vunpack.c.l.b16 %v9331
        %v9411 = vunpack.c.h.b16 %v9331
        %v9412 = vunpack.c.l.b16 %v9332
        %v9413 = vunpack.c.h.b16 %v9332
        %v9414 = vunpack.c.l.b16 %v9333
        %v9415 = vunpack.c.h.b16 %v9333
        %v9416 = vunpack.c.l.b16 %v9334
        %v9417 = vunpack.c.h.b16 %v9334
        %v9418 = vunpack.c.l.b16 %v9335
        %v9419 = vunpack.c.h.b16 %v9335
        %v9420 = vunpack.c.l.b16 %v9336
        %v9421 = vunpack.c.h.b16 %v9336
        %v9422 = vunpack.c.l.b16 %v9337
        %v9423 = vunpack.c.h.b16 %v9337
        %v9424 = vunpack.c.l.b16 %v9338
        %v9425 = vunpack.c.h.b16 %v9338
        %v9426 = vunpack.c.l.b16 %v9339
        %v9427 = vunpack.c.h.b16 %v9339
        %v9428 = vunpack.c.l.b16 %v9340
        %v9429 = vunpack.c.h.b16 %v9340
        %v9430 = vunpack.c.l.b16 %v9341
        %v9431 = vunpack.c.h.b16 %v9341
        %v9432 = vunpack.c.l.b16 %v9342
        %v9433 = vunpack.c.h.b16 %v9342
        %v9434 = vunpack.c.l.b16 %v9343
        %v9435 = vunpack.c.h.b16 %v9343
        %v9436 = vunpack.c.l.b16 %v9344
        %v9437 = vunpack.c.h.b16 %v9344
        %v9438 = vunpack.c.l.b16 %v9345
        %v9439 = vunpack.c.h.b16 %v9345
        %v9440 = vunpack.c.l.b16 %v9346
        %v9441 = vunpack.c.h.b16 %v9346
        %v9442 = vunpack.c.l.b16 %v9347
        %v9443 = vunpack.c.h.b16 %v9347
        %v9444 = vunpack.c.l.b16 %v9348
        %v9445 = vunpack.c.h.b16 %v9348
        %v9446 = vunpack.c.l.b16 %v9349
        %v9447 = vunpack.c.h.b16 %v9349
        %v9448 = vpack.c.b16 %v9386, %v9384
        %v9449 = vpack.c.b16 %v9387, %v9385
        %v9450 = vpack.c.b16 %v9390, %v9388
        %v9451 = vpack.c.b16 %v9391, %v9389
        %v9452 = vpack.c.b16 %v9394, %v9392
        %v9453 = vpack.c.b16 %v9395, %v9393
        %v9454 = vpack.c.b16 %v9398, %v9396
        %v9455 = vpack.c.b16 %v9399, %v9397
        %v9456 = vpack.c.b16 %v9402, %v9400
        %v9457 = vpack.c.b16 %v9403, %v9401
        %v9458 = vpack.c.b16 %v9406, %v9404
        %v9459 = vpack.c.b16 %v9407, %v9405
        %v9460 = vpack.c.b16 %v9410, %v9408
        %v9461 = vpack.c.b16 %v9411, %v9409
        %v9462 = vpack.c.b16 %v9414, %v9412
        %v9463 = vpack.c.b16 %v9415, %v9413
        %v9464 = vpack.c.b16 %v9418, %v9416
        %v9465 = vpack.c.b16 %v9419, %v9417
        %v9466 = vpack.c.b16 %v9422, %v9420
        %v9467 = vpack.c.b16 %v9423, %v9421
        %v9468 = vpack.c.b16 %v9426, %v9424
        %v9469 = vpack.c.b16 %v9427, %v9425
        %v9470 = vpack.c.b16 %v9430, %v9428
        %v9471 = vpack.c.b16 %v9431, %v9429
        %v9472 = vpack.c.b16 %v9434, %v9432
        %v9473 = vpack.c.b16 %v9435, %v9433
        %v9474 = vpack.c.b16 %v9438, %v9436
        %v9475 = vpack.c.b16 %v9439, %v9437
        %v9476 = vpack.c.b16 %v9442, %v9440
        %v9477 = vpack.c.b16 %v9443, %v9441
        %v9478 = vpack.c.b16 %v9446, %v9444
        %v9479 = vpack.c.b16 %v9447, %v9445
        %9512 = vmatpush.bf16.msra.mxu0 %v9462
        %9513 = vmatpush.bf16.msra.mxu0 %v9460
        %9514 = vmatpush.bf16.msra.mxu0 %v9458
        %9515 = vmatpush.bf16.msra.mxu0 %v9456
        %9516 = vmatpush.bf16.msra.mxu0 %v9454
        %9517 = vmatpush.bf16.msra.mxu0 %v9452
        %9518 = vmatpush.bf16.msra.mxu0 %v9450
        %9519 = vmatpush.bf16.msra.mxu0 %v9448
        %9520 = vmatmul.bf16.gmra.mxu0 %v9253
        %v9521 = vpop.f32.mrf.mxu0
        %v9522 = vadd.f32 %v9350, %v9521
        %v9523 = vpop.f32.mrf.mxu0
        %v9524 = vadd.f32 %v9350, %v9523
        %9525 = vmatmul.bf16.gmra.mxu0 %v9255
        %v9526 = vpop.f32.mrf.mxu0
        %v9527 = vadd.f32 %v9350, %v9526
        %v9528 = vpop.f32.mrf.mxu0
        %v9529 = vadd.f32 %v9350, %v9528
        %9530 = vmatmul.bf16.gmra.mxu0 %v9257
        %v9531 = vpop.f32.mrf.mxu0
        %v9532 = vadd.f32 %v9350, %v9531
        %v9533 = vpop.f32.mrf.mxu0
        %v9534 = vadd.f32 %v9350, %v9533
        %9535 = vmatmul.bf16.gmra.mxu0 %v9259
        %v9536 = vpop.f32.mrf.mxu0
        %v9537 = vadd.f32 %v9350, %v9536
        %v9538 = vpop.f32.mrf.mxu0
        %v9539 = vadd.f32 %v9350, %v9538
        %9540 = vmatmul.bf16.gmra.mxu0 %v9261
        %v9541 = vpop.f32.mrf.mxu0
        %v9542 = vadd.f32 %v9350, %v9541
        %v9543 = vpop.f32.mrf.mxu0
        %v9544 = vadd.f32 %v9350, %v9543
        %9545 = vmatmul.bf16.gmra.mxu0 %v9263
        %v9546 = vpop.f32.mrf.mxu0
        %v9547 = vadd.f32 %v9350, %v9546
        %v9548 = vpop.f32.mrf.mxu0
        %v9549 = vadd.f32 %v9350, %v9548
        %9550 = vmatmul.bf16.gmra.mxu0 %v9265
        %v9551 = vpop.f32.mrf.mxu0
        %v9552 = vadd.f32 %v9350, %v9551
        %v9553 = vpop.f32.mrf.mxu0
        %v9554 = vadd.f32 %v9350, %v9553
        %9555 = vmatmul.bf16.gmra.mxu0 %v9267
        %v9556 = vpop.f32.mrf.mxu0
        %v9557 = vadd.f32 %v9350, %v9556
        %v9558 = vpop.f32.mrf.mxu0
        %v9559 = vadd.f32 %v9350, %v9558
        %9560 = vmatmul.bf16.gmra.mxu0 %v9269
        %v9561 = vpop.f32.mrf.mxu0
        %v9562 = vadd.f32 %v9350, %v9561
        %v9563 = vpop.f32.mrf.mxu0
        %v9564 = vadd.f32 %v9350, %v9563
        %9565 = vmatmul.bf16.gmra.mxu0 %v9271
        %v9566 = vpop.f32.mrf.mxu0
        %v9567 = vadd.f32 %v9350, %v9566
        %v9568 = vpop.f32.mrf.mxu0
        %v9569 = vadd.f32 %v9350, %v9568
        %9570 = vmatmul.bf16.gmra.mxu0 %v9273
        %v9571 = vpop.f32.mrf.mxu0
        %v9572 = vadd.f32 %v9350, %v9571
        %v9573 = vpop.f32.mrf.mxu0
        %v9574 = vadd.f32 %v9350, %v9573
        %9575 = vmatmul.bf16.gmra.mxu0 %v9275
        %v9576 = vpop.f32.mrf.mxu0
        %v9577 = vadd.f32 %v9350, %v9576
        %v9578 = vpop.f32.mrf.mxu0
        %v9579 = vadd.f32 %v9350, %v9578
        %9580 = vmatmul.bf16.gmra.mxu0 %v9277
        %v9581 = vpop.f32.mrf.mxu0
        %v9582 = vadd.f32 %v9350, %v9581
        %v9583 = vpop.f32.mrf.mxu0
        %v9584 = vadd.f32 %v9350, %v9583
        %9585 = vmatmul.bf16.gmra.mxu0 %v9279
        %v9586 = vpop.f32.mrf.mxu0
        %v9587 = vadd.f32 %v9350, %v9586
        %v9588 = vpop.f32.mrf.mxu0
        %v9589 = vadd.f32 %v9350, %v9588
        %9590 = vmatmul.bf16.gmra.mxu0 %v9281
        %v9591 = vpop.f32.mrf.mxu0
        %v9592 = vadd.f32 %v9350, %v9591
        %v9593 = vpop.f32.mrf.mxu0
        %v9594 = vadd.f32 %v9350, %v9593
        %9595 = vmatmul.bf16.gmra.mxu0 %v9283
        %v9596 = vpop.f32.mrf.mxu0
        %v9597 = vadd.f32 %v9350, %v9596
        %v9598 = vpop.f32.mrf.mxu0
        %v9599 = vadd.f32 %v9350, %v9598
        %9600 = vmatmul.bf16.gmra.mxu0 %v9285
        %v9601 = vpop.f32.mrf.mxu0
        %v9602 = vadd.f32 %v9350, %v9601
        %v9603 = vpop.f32.mrf.mxu0
        %v9604 = vadd.f32 %v9350, %v9603
        %9605 = vmatmul.bf16.gmra.mxu0 %v9287
        %v9606 = vpop.f32.mrf.mxu0
        %v9607 = vadd.f32 %v9350, %v9606
        %v9608 = vpop.f32.mrf.mxu0
        %v9609 = vadd.f32 %v9350, %v9608
        %9610 = vmatmul.bf16.gmra.mxu0 %v9289
        %v9611 = vpop.f32.mrf.mxu0
        %v9612 = vadd.f32 %v9350, %v9611
        %v9613 = vpop.f32.mrf.mxu0
        %v9614 = vadd.f32 %v9350, %v9613
        %9615 = vmatmul.bf16.gmra.mxu0 %v9291
        %v9616 = vpop.f32.mrf.mxu0
        %v9617 = vadd.f32 %v9350, %v9616
        %v9618 = vpop.f32.mrf.mxu0
        %v9619 = vadd.f32 %v9350, %v9618
        %9620 = vmatmul.bf16.gmra.mxu0 %v9293
        %v9621 = vpop.f32.mrf.mxu0
        %v9622 = vadd.f32 %v9350, %v9621
        %v9623 = vpop.f32.mrf.mxu0
        %v9624 = vadd.f32 %v9350, %v9623
        %9625 = vmatmul.bf16.gmra.mxu0 %v9295
        %v9626 = vpop.f32.mrf.mxu0
        %v9627 = vadd.f32 %v9350, %v9626
        %v9628 = vpop.f32.mrf.mxu0
        %v9629 = vadd.f32 %v9350, %v9628
        %9630 = vmatmul.bf16.gmra.mxu0 %v9297
        %v9631 = vpop.f32.mrf.mxu0
        %v9632 = vadd.f32 %v9350, %v9631
        %v9633 = vpop.f32.mrf.mxu0
        %v9634 = vadd.f32 %v9350, %v9633
        %9635 = vmatmul.bf16.gmra.mxu0 %v9299
        %v9636 = vpop.f32.mrf.mxu0
        %v9637 = vadd.f32 %v9350, %v9636
        %v9638 = vpop.f32.mrf.mxu0
        %v9639 = vadd.f32 %v9350, %v9638
        %9640 = vmatmul.bf16.gmra.mxu0 %v9301
        %v9641 = vpop.f32.mrf.mxu0
        %v9642 = vadd.f32 %v9350, %v9641
        %v9643 = vpop.f32.mrf.mxu0
        %v9644 = vadd.f32 %v9350, %v9643
        %9645 = vmatmul.bf16.gmra.mxu0 %v9303
        %v9646 = vpop.f32.mrf.mxu0
        %v9647 = vadd.f32 %v9350, %v9646
        %v9648 = vpop.f32.mrf.mxu0
        %v9649 = vadd.f32 %v9350, %v9648
        %9650 = vmatmul.bf16.gmra.mxu0 %v9305
        %v9651 = vpop.f32.mrf.mxu0
        %v9652 = vadd.f32 %v9350, %v9651
        %v9653 = vpop.f32.mrf.mxu0
        %v9654 = vadd.f32 %v9350, %v9653
        %9655 = vmatmul.bf16.gmra.mxu0 %v9307
        %v9656 = vpop.f32.mrf.mxu0
        %v9657 = vadd.f32 %v9350, %v9656
        %v9658 = vpop.f32.mrf.mxu0
        %v9659 = vadd.f32 %v9350, %v9658
        %9660 = vmatmul.bf16.gmra.mxu0 %v9309
        %v9661 = vpop.f32.mrf.mxu0
        %v9662 = vadd.f32 %v9350, %v9661
        %v9663 = vpop.f32.mrf.mxu0
        %v9664 = vadd.f32 %v9350, %v9663
        %9665 = vmatmul.bf16.gmra.mxu0 %v9311
        %v9666 = vpop.f32.mrf.mxu0
        %v9667 = vadd.f32 %v9350, %v9666
        %v9668 = vpop.f32.mrf.mxu0
        %v9669 = vadd.f32 %v9350, %v9668
        %9670 = vmatmul.bf16.gmra.mxu0 %v9313
        %v9671 = vpop.f32.mrf.mxu0
        %v9672 = vadd.f32 %v9350, %v9671
        %v9673 = vpop.f32.mrf.mxu0
        %v9674 = vadd.f32 %v9350, %v9673
        %9675 = vmatmul.bf16.gmra.mxu0 %v9315
        %v9676 = vpop.f32.mrf.mxu0
        %v9677 = vadd.f32 %v9350, %v9676
        %v9678 = vpop.f32.mrf.mxu0
        %v9679 = vadd.f32 %v9350, %v9678
        %9680 = vdwg.mxu0
        %9681 = vmatpush.bf16.msra.mxu0 %v9478
        %9682 = vmatpush.bf16.msra.mxu0 %v9476
        %9683 = vmatpush.bf16.msra.mxu0 %v9474
        %9684 = vmatpush.bf16.msra.mxu0 %v9472
        %9685 = vmatpush.bf16.msra.mxu0 %v9470
        %9686 = vmatpush.bf16.msra.mxu0 %v9468
        %9687 = vmatpush.bf16.msra.mxu0 %v9466
        %9688 = vmatpush.bf16.msra.mxu0 %v9464
        %9689 = vmatmul.bf16.gmra.mxu0 %v9254
        %v9690 = vpop.f32.mrf.mxu0
        %v9691 = vadd.f32 %v9522, %v9690
        %v9692 = vpop.f32.mrf.mxu0
        %v9693 = vadd.f32 %v9524, %v9692
        %9694 = vmatmul.bf16.gmra.mxu0 %v9256
        %v9695 = vpop.f32.mrf.mxu0
        %v9696 = vadd.f32 %v9527, %v9695
        %v9697 = vpop.f32.mrf.mxu0
        %v9698 = vadd.f32 %v9529, %v9697
        %9699 = vmatmul.bf16.gmra.mxu0 %v9258
        %v9700 = vpop.f32.mrf.mxu0
        %v9701 = vadd.f32 %v9532, %v9700
        %v9702 = vpop.f32.mrf.mxu0
        %v9703 = vadd.f32 %v9534, %v9702
        %9704 = vmatmul.bf16.gmra.mxu0 %v9260
        %v9705 = vpop.f32.mrf.mxu0
        %v9706 = vadd.f32 %v9537, %v9705
        %v9707 = vpop.f32.mrf.mxu0
        %v9708 = vadd.f32 %v9539, %v9707
        %9709 = vmatmul.bf16.gmra.mxu0 %v9262
        %v9710 = vpop.f32.mrf.mxu0
        %v9711 = vadd.f32 %v9542, %v9710
        %v9712 = vpop.f32.mrf.mxu0
        %v9713 = vadd.f32 %v9544, %v9712
        %9714 = vmatmul.bf16.gmra.mxu0 %v9264
        %v9715 = vpop.f32.mrf.mxu0
        %v9716 = vadd.f32 %v9547, %v9715
        %v9717 = vpop.f32.mrf.mxu0
        %v9718 = vadd.f32 %v9549, %v9717
        %9719 = vmatmul.bf16.gmra.mxu0 %v9266
        %v9720 = vpop.f32.mrf.mxu0
        %v9721 = vadd.f32 %v9552, %v9720
        %v9722 = vpop.f32.mrf.mxu0
        %v9723 = vadd.f32 %v9554, %v9722
        %9724 = vmatmul.bf16.gmra.mxu0 %v9268
        %v9725 = vpop.f32.mrf.mxu0
        %v9726 = vadd.f32 %v9557, %v9725
        %v9727 = vpop.f32.mrf.mxu0
        %v9728 = vadd.f32 %v9559, %v9727
        %9729 = vmatmul.bf16.gmra.mxu0 %v9270
        %v9730 = vpop.f32.mrf.mxu0
        %v9731 = vadd.f32 %v9562, %v9730
        %v9732 = vpop.f32.mrf.mxu0
        %v9733 = vadd.f32 %v9564, %v9732
        %9734 = vmatmul.bf16.gmra.mxu0 %v9272
        %v9735 = vpop.f32.mrf.mxu0
        %v9736 = vadd.f32 %v9567, %v9735
        %v9737 = vpop.f32.mrf.mxu0
        %v9738 = vadd.f32 %v9569, %v9737
        %9739 = vmatmul.bf16.gmra.mxu0 %v9274
        %v9740 = vpop.f32.mrf.mxu0
        %v9741 = vadd.f32 %v9572, %v9740
        %v9742 = vpop.f32.mrf.mxu0
        %v9743 = vadd.f32 %v9574, %v9742
        %9744 = vmatmul.bf16.gmra.mxu0 %v9276
        %v9745 = vpop.f32.mrf.mxu0
        %v9746 = vadd.f32 %v9577, %v9745
        %v9747 = vpop.f32.mrf.mxu0
        %v9748 = vadd.f32 %v9579, %v9747
        %9749 = vmatmul.bf16.gmra.mxu0 %v9278
        %v9750 = vpop.f32.mrf.mxu0
        %v9751 = vadd.f32 %v9582, %v9750
        %v9752 = vpop.f32.mrf.mxu0
        %v9753 = vadd.f32 %v9584, %v9752
        %9754 = vmatmul.bf16.gmra.mxu0 %v9280
        %v9755 = vpop.f32.mrf.mxu0
        %v9756 = vadd.f32 %v9587, %v9755
        %v9757 = vpop.f32.mrf.mxu0
        %v9758 = vadd.f32 %v9589, %v9757
        %9759 = vmatmul.bf16.gmra.mxu0 %v9282
        %v9760 = vpop.f32.mrf.mxu0
        %v9761 = vadd.f32 %v9592, %v9760
        %v9762 = vpop.f32.mrf.mxu0
        %v9763 = vadd.f32 %v9594, %v9762
        %9764 = vmatmul.bf16.gmra.mxu0 %v9284
        %v9765 = vpop.f32.mrf.mxu0
        %v9766 = vadd.f32 %v9597, %v9765
        %v9767 = vpop.f32.mrf.mxu0
        %v9768 = vadd.f32 %v9599, %v9767
        %9769 = vmatmul.bf16.gmra.mxu0 %v9286
        %v9770 = vpop.f32.mrf.mxu0
        %v9771 = vadd.f32 %v9602, %v9770
        %v9772 = vpop.f32.mrf.mxu0
        %v9773 = vadd.f32 %v9604, %v9772
        %9774 = vmatmul.bf16.gmra.mxu0 %v9288
        %v9775 = vpop.f32.mrf.mxu0
        %v9776 = vadd.f32 %v9607, %v9775
        %v9777 = vpop.f32.mrf.mxu0
        %v9778 = vadd.f32 %v9609, %v9777
        %9779 = vmatmul.bf16.gmra.mxu0 %v9290
        %v9780 = vpop.f32.mrf.mxu0
        %v9781 = vadd.f32 %v9612, %v9780
        %v9782 = vpop.f32.mrf.mxu0
        %v9783 = vadd.f32 %v9614, %v9782
        %9784 = vmatmul.bf16.gmra.mxu0 %v9292
        %v9785 = vpop.f32.mrf.mxu0
        %v9786 = vadd.f32 %v9617, %v9785
        %v9787 = vpop.f32.mrf.mxu0
        %v9788 = vadd.f32 %v9619, %v9787
        %9789 = vmatmul.bf16.gmra.mxu0 %v9294
        %v9790 = vpop.f32.mrf.mxu0
        %v9791 = vadd.f32 %v9622, %v9790
        %v9792 = vpop.f32.mrf.mxu0
        %v9793 = vadd.f32 %v9624, %v9792
        %9794 = vmatmul.bf16.gmra.mxu0 %v9296
        %v9795 = vpop.f32.mrf.mxu0
        %v9796 = vadd.f32 %v9627, %v9795
        %v9797 = vpop.f32.mrf.mxu0
        %v9798 = vadd.f32 %v9629, %v9797
        %9799 = vmatmul.bf16.gmra.mxu0 %v9298
        %v9800 = vpop.f32.mrf.mxu0
        %v9801 = vadd.f32 %v9632, %v9800
        %v9802 = vpop.f32.mrf.mxu0
        %v9803 = vadd.f32 %v9634, %v9802
        %9804 = vmatmul.bf16.gmra.mxu0 %v9300
        %v9805 = vpop.f32.mrf.mxu0
        %v9806 = vadd.f32 %v9637, %v9805
        %v9807 = vpop.f32.mrf.mxu0
        %v9808 = vadd.f32 %v9639, %v9807
        %9809 = vmatmul.bf16.gmra.mxu0 %v9302
        %v9810 = vpop.f32.mrf.mxu0
        %v9811 = vadd.f32 %v9642, %v9810
        %v9812 = vpop.f32.mrf.mxu0
        %v9813 = vadd.f32 %v9644, %v9812
        %9814 = vmatmul.bf16.gmra.mxu0 %v9304
        %v9815 = vpop.f32.mrf.mxu0
        %v9816 = vadd.f32 %v9647, %v9815
        %v9817 = vpop.f32.mrf.mxu0
        %v9818 = vadd.f32 %v9649, %v9817
        %9819 = vmatmul.bf16.gmra.mxu0 %v9306
        %v9820 = vpop.f32.mrf.mxu0
        %v9821 = vadd.f32 %v9652, %v9820
        %v9822 = vpop.f32.mrf.mxu0
        %v9823 = vadd.f32 %v9654, %v9822
        %9824 = vmatmul.bf16.gmra.mxu0 %v9308
        %v9825 = vpop.f32.mrf.mxu0
        %v9826 = vadd.f32 %v9657, %v9825
        %v9827 = vpop.f32.mrf.mxu0
        %v9828 = vadd.f32 %v9659, %v9827
        %9829 = vmatmul.bf16.gmra.mxu0 %v9310
        %v9830 = vpop.f32.mrf.mxu0
        %v9831 = vadd.f32 %v9662, %v9830
        %v9832 = vpop.f32.mrf.mxu0
        %v9833 = vadd.f32 %v9664, %v9832
        %9834 = vmatmul.bf16.gmra.mxu0 %v9312
        %v9835 = vpop.f32.mrf.mxu0
        %v9836 = vadd.f32 %v9667, %v9835
        %v9837 = vpop.f32.mrf.mxu0
        %v9838 = vadd.f32 %v9669, %v9837
        %9839 = vmatmul.bf16.gmra.mxu0 %v9314
        %v9840 = vpop.f32.mrf.mxu0
        %v9841 = vadd.f32 %v9672, %v9840
        %v9842 = vpop.f32.mrf.mxu0
        %v9843 = vadd.f32 %v9674, %v9842
        %9844 = vmatmul.bf16.gmra.mxu0 %v9316
        %v9845 = vpop.f32.mrf.mxu0
        %v9846 = vadd.f32 %v9677, %v9845
        %v9847 = vpop.f32.mrf.mxu0
        %v9848 = vadd.f32 %v9679, %v9847
        %9849 = vdwg.mxu0
        %9850 = vmatpush.bf16.msra.mxu0 %v9463
        %9851 = vmatpush.bf16.msra.mxu0 %v9461
        %9852 = vmatpush.bf16.msra.mxu0 %v9459
        %9853 = vmatpush.bf16.msra.mxu0 %v9457
        %9854 = vmatpush.bf16.msra.mxu0 %v9455
        %9855 = vmatpush.bf16.msra.mxu0 %v9453
        %9856 = vmatpush.bf16.msra.mxu0 %v9451
        %9857 = vmatpush.bf16.msra.mxu0 %v9449
        %9858 = vmatmul.bf16.gmra.mxu0 %v9253
        %v9859 = vpop.f32.mrf.mxu0
        %v9860 = vadd.f32 %v9351, %v9859
        %v9861 = vpop.f32.mrf.mxu0
        %v9862 = vadd.f32 %v9351, %v9861
        %9863 = vmatmul.bf16.gmra.mxu0 %v9255
        %v9864 = vpop.f32.mrf.mxu0
        %v9865 = vadd.f32 %v9351, %v9864
        %v9866 = vpop.f32.mrf.mxu0
        %v9867 = vadd.f32 %v9351, %v9866
        %9868 = vmatmul.bf16.gmra.mxu0 %v9257
        %v9869 = vpop.f32.mrf.mxu0
        %v9870 = vadd.f32 %v9351, %v9869
        %v9871 = vpop.f32.mrf.mxu0
        %v9872 = vadd.f32 %v9351, %v9871
        %9873 = vmatmul.bf16.gmra.mxu0 %v9259
        %v9874 = vpop.f32.mrf.mxu0
        %v9875 = vadd.f32 %v9351, %v9874
        %v9876 = vpop.f32.mrf.mxu0
        %v9877 = vadd.f32 %v9351, %v9876
        %9878 = vmatmul.bf16.gmra.mxu0 %v9261
        %v9879 = vpop.f32.mrf.mxu0
        %v9880 = vadd.f32 %v9351, %v9879
        %v9881 = vpop.f32.mrf.mxu0
        %v9882 = vadd.f32 %v9351, %v9881
        %9883 = vmatmul.bf16.gmra.mxu0 %v9263
        %v9884 = vpop.f32.mrf.mxu0
        %v9885 = vadd.f32 %v9351, %v9884
        %v9886 = vpop.f32.mrf.mxu0
        %v9887 = vadd.f32 %v9351, %v9886
        %9888 = vmatmul.bf16.gmra.mxu0 %v9265
        %v9889 = vpop.f32.mrf.mxu0
        %v9890 = vadd.f32 %v9351, %v9889
        %v9891 = vpop.f32.mrf.mxu0
        %v9892 = vadd.f32 %v9351, %v9891
        %9893 = vmatmul.bf16.gmra.mxu0 %v9267
        %v9894 = vpop.f32.mrf.mxu0
        %v9895 = vadd.f32 %v9351, %v9894
        %v9896 = vpop.f32.mrf.mxu0
        %v9897 = vadd.f32 %v9351, %v9896
        %9898 = vmatmul.bf16.gmra.mxu0 %v9269
        %v9899 = vpop.f32.mrf.mxu0
        %v9900 = vadd.f32 %v9351, %v9899
        %v9901 = vpop.f32.mrf.mxu0
        %v9902 = vadd.f32 %v9351, %v9901
        %9903 = vmatmul.bf16.gmra.mxu0 %v9271
        %v9904 = vpop.f32.mrf.mxu0
        %v9905 = vadd.f32 %v9351, %v9904
        %v9906 = vpop.f32.mrf.mxu0
        %v9907 = vadd.f32 %v9351, %v9906
        %9908 = vmatmul.bf16.gmra.mxu0 %v9273
        %v9909 = vpop.f32.mrf.mxu0
        %v9910 = vadd.f32 %v9351, %v9909
        %v9911 = vpop.f32.mrf.mxu0
        %v9912 = vadd.f32 %v9351, %v9911
        %9913 = vmatmul.bf16.gmra.mxu0 %v9275
        %v9914 = vpop.f32.mrf.mxu0
        %v9915 = vadd.f32 %v9351, %v9914
        %v9916 = vpop.f32.mrf.mxu0
        %v9917 = vadd.f32 %v9351, %v9916
        %9918 = vmatmul.bf16.gmra.mxu0 %v9277
        %v9919 = vpop.f32.mrf.mxu0
        %v9920 = vadd.f32 %v9351, %v9919
        %v9921 = vpop.f32.mrf.mxu0
        %v9922 = vadd.f32 %v9351, %v9921
        %9923 = vmatmul.bf16.gmra.mxu0 %v9279
        %v9924 = vpop.f32.mrf.mxu0
        %v9925 = vadd.f32 %v9351, %v9924
        %v9926 = vpop.f32.mrf.mxu0
        %v9927 = vadd.f32 %v9351, %v9926
        %9928 = vmatmul.bf16.gmra.mxu0 %v9281
        %v9929 = vpop.f32.mrf.mxu0
        %v9930 = vadd.f32 %v9351, %v9929
        %v9931 = vpop.f32.mrf.mxu0
        %v9932 = vadd.f32 %v9351, %v9931
        %9933 = vmatmul.bf16.gmra.mxu0 %v9283
        %v9934 = vpop.f32.mrf.mxu0
        %v9935 = vadd.f32 %v9351, %v9934
        %v9936 = vpop.f32.mrf.mxu0
        %v9937 = vadd.f32 %v9351, %v9936
        %9938 = vmatmul.bf16.gmra.mxu0 %v9285
        %v9939 = vpop.f32.mrf.mxu0
        %v9940 = vadd.f32 %v9351, %v9939
        %v9941 = vpop.f32.mrf.mxu0
        %v9942 = vadd.f32 %v9351, %v9941
        %9943 = vmatmul.bf16.gmra.mxu0 %v9287
        %v9944 = vpop.f32.mrf.mxu0
        %v9945 = vadd.f32 %v9351, %v9944
        %v9946 = vpop.f32.mrf.mxu0
        %v9947 = vadd.f32 %v9351, %v9946
        %9948 = vmatmul.bf16.gmra.mxu0 %v9289
        %v9949 = vpop.f32.mrf.mxu0
        %v9950 = vadd.f32 %v9351, %v9949
        %v9951 = vpop.f32.mrf.mxu0
        %v9952 = vadd.f32 %v9351, %v9951
        %9953 = vmatmul.bf16.gmra.mxu0 %v9291
        %v9954 = vpop.f32.mrf.mxu0
        %v9955 = vadd.f32 %v9351, %v9954
        %v9956 = vpop.f32.mrf.mxu0
        %v9957 = vadd.f32 %v9351, %v9956
        %9958 = vmatmul.bf16.gmra.mxu0 %v9293
        %v9959 = vpop.f32.mrf.mxu0
        %v9960 = vadd.f32 %v9351, %v9959
        %v9961 = vpop.f32.mrf.mxu0
        %v9962 = vadd.f32 %v9351, %v9961
        %9963 = vmatmul.bf16.gmra.mxu0 %v9295
        %v9964 = vpop.f32.mrf.mxu0
        %v9965 = vadd.f32 %v9351, %v9964
        %v9966 = vpop.f32.mrf.mxu0
        %v9967 = vadd.f32 %v9351, %v9966
        %9968 = vmatmul.bf16.gmra.mxu0 %v9297
        %v9969 = vpop.f32.mrf.mxu0
        %v9970 = vadd.f32 %v9351, %v9969
        %v9971 = vpop.f32.mrf.mxu0
        %v9972 = vadd.f32 %v9351, %v9971
        %9973 = vmatmul.bf16.gmra.mxu0 %v9299
        %v9974 = vpop.f32.mrf.mxu0
        %v9975 = vadd.f32 %v9351, %v9974
        %v9976 = vpop.f32.mrf.mxu0
        %v9977 = vadd.f32 %v9351, %v9976
        %9978 = vmatmul.bf16.gmra.mxu0 %v9301
        %v9979 = vpop.f32.mrf.mxu0
        %v9980 = vadd.f32 %v9351, %v9979
        %v9981 = vpop.f32.mrf.mxu0
        %v9982 = vadd.f32 %v9351, %v9981
        %9983 = vmatmul.bf16.gmra.mxu0 %v9303
        %v9984 = vpop.f32.mrf.mxu0
        %v9985 = vadd.f32 %v9351, %v9984
        %v9986 = vpop.f32.mrf.mxu0
        %v9987 = vadd.f32 %v9351, %v9986
        %9988 = vmatmul.bf16.gmra.mxu0 %v9305
        %v9989 = vpop.f32.mrf.mxu0
        %v9990 = vadd.f32 %v9351, %v9989
        %v9991 = vpop.f32.mrf.mxu0
        %v9992 = vadd.f32 %v9351, %v9991
        %9993 = vmatmul.bf16.gmra.mxu0 %v9307
        %v9994 = vpop.f32.mrf.mxu0
        %v9995 = vadd.f32 %v9351, %v9994
        %v9996 = vpop.f32.mrf.mxu0
        %v9997 = vadd.f32 %v9351, %v9996
        %9998 = vmatmul.bf16.gmra.mxu0 %v9309
        %v9999 = vpop.f32.mrf.mxu0
        %v10000 = vadd.f32 %v9351, %v9999
        %v10001 = vpop.f32.mrf.mxu0
        %v10002 = vadd.f32 %v9351, %v10001
        %10003 = vmatmul.bf16.gmra.mxu0 %v9311
        %v10004 = vpop.f32.mrf.mxu0
        %v10005 = vadd.f32 %v9351, %v10004
        %v10006 = vpop.f32.mrf.mxu0
        %v10007 = vadd.f32 %v9351, %v10006
        %10008 = vmatmul.bf16.gmra.mxu0 %v9313
        %v10009 = vpop.f32.mrf.mxu0
        %v10010 = vadd.f32 %v9351, %v10009
        %v10011 = vpop.f32.mrf.mxu0
        %v10012 = vadd.f32 %v9351, %v10011
        %10013 = vmatmul.bf16.gmra.mxu0 %v9315
        %v10014 = vpop.f32.mrf.mxu0
        %v10015 = vadd.f32 %v9351, %v10014
        %v10016 = vpop.f32.mrf.mxu0
        %v10017 = vadd.f32 %v9351, %v10016
        %10018 = vdwg.mxu0
        %10019 = vmatpush.bf16.msra.mxu0 %v9479
        %10020 = vmatpush.bf16.msra.mxu0 %v9477
        %10021 = vmatpush.bf16.msra.mxu0 %v9475
        %10022 = vmatpush.bf16.msra.mxu0 %v9473
        %10023 = vmatpush.bf16.msra.mxu0 %v9471
        %10024 = vmatpush.bf16.msra.mxu0 %v9469
        %10025 = vmatpush.bf16.msra.mxu0 %v9467
        %10026 = vmatpush.bf16.msra.mxu0 %v9465
        %10027 = vmatmul.bf16.gmra.mxu0 %v9254
        %v10028 = vpop.f32.mrf.mxu0
        %v10029 = vadd.f32 %v9860, %v10028
        %v10030 = vpop.f32.mrf.mxu0
        %v10031 = vadd.f32 %v9862, %v10030
        %10032 = vmatmul.bf16.gmra.mxu0 %v9256
        %v10033 = vpop.f32.mrf.mxu0
        %v10034 = vadd.f32 %v9865, %v10033
        %v10035 = vpop.f32.mrf.mxu0
        %v10036 = vadd.f32 %v9867, %v10035
        %10037 = vmatmul.bf16.gmra.mxu0 %v9258
        %v10038 = vpop.f32.mrf.mxu0
        %v10039 = vadd.f32 %v9870, %v10038
        %v10040 = vpop.f32.mrf.mxu0
        %v10041 = vadd.f32 %v9872, %v10040
        %10042 = vmatmul.bf16.gmra.mxu0 %v9260
        %v10043 = vpop.f32.mrf.mxu0
        %v10044 = vadd.f32 %v9875, %v10043
        %v10045 = vpop.f32.mrf.mxu0
        %v10046 = vadd.f32 %v9877, %v10045
        %10047 = vmatmul.bf16.gmra.mxu0 %v9262
        %v10048 = vpop.f32.mrf.mxu0
        %v10049 = vadd.f32 %v9880, %v10048
        %v10050 = vpop.f32.mrf.mxu0
        %v10051 = vadd.f32 %v9882, %v10050
        %10052 = vmatmul.bf16.gmra.mxu0 %v9264
        %v10053 = vpop.f32.mrf.mxu0
        %v10054 = vadd.f32 %v9885, %v10053
        %v10055 = vpop.f32.mrf.mxu0
        %v10056 = vadd.f32 %v9887, %v10055
        %10057 = vmatmul.bf16.gmra.mxu0 %v9266
        %v10058 = vpop.f32.mrf.mxu0
        %v10059 = vadd.f32 %v9890, %v10058
        %v10060 = vpop.f32.mrf.mxu0
        %v10061 = vadd.f32 %v9892, %v10060
        %10062 = vmatmul.bf16.gmra.mxu0 %v9268
        %v10063 = vpop.f32.mrf.mxu0
        %v10064 = vadd.f32 %v9895, %v10063
        %v10065 = vpop.f32.mrf.mxu0
        %v10066 = vadd.f32 %v9897, %v10065
        %10067 = vmatmul.bf16.gmra.mxu0 %v9270
        %v10068 = vpop.f32.mrf.mxu0
        %v10069 = vadd.f32 %v9900, %v10068
        %v10070 = vpop.f32.mrf.mxu0
        %v10071 = vadd.f32 %v9902, %v10070
        %10072 = vmatmul.bf16.gmra.mxu0 %v9272
        %v10073 = vpop.f32.mrf.mxu0
        %v10074 = vadd.f32 %v9905, %v10073
        %v10075 = vpop.f32.mrf.mxu0
        %v10076 = vadd.f32 %v9907, %v10075
        %10077 = vmatmul.bf16.gmra.mxu0 %v9274
        %v10078 = vpop.f32.mrf.mxu0
        %v10079 = vadd.f32 %v9910, %v10078
        %v10080 = vpop.f32.mrf.mxu0
        %v10081 = vadd.f32 %v9912, %v10080
        %10082 = vmatmul.bf16.gmra.mxu0 %v9276
        %v10083 = vpop.f32.mrf.mxu0
        %v10084 = vadd.f32 %v9915, %v10083
        %v10085 = vpop.f32.mrf.mxu0
        %v10086 = vadd.f32 %v9917, %v10085
        %10087 = vmatmul.bf16.gmra.mxu0 %v9278
        %v10088 = vpop.f32.mrf.mxu0
        %v10089 = vadd.f32 %v9920, %v10088
        %v10090 = vpop.f32.mrf.mxu0
        %v10091 = vadd.f32 %v9922, %v10090
        %10092 = vmatmul.bf16.gmra.mxu0 %v9280
        %v10093 = vpop.f32.mrf.mxu0
        %v10094 = vadd.f32 %v9925, %v10093
        %v10095 = vpop.f32.mrf.mxu0
        %v10096 = vadd.f32 %v9927, %v10095
        %10097 = vmatmul.bf16.gmra.mxu0 %v9282
        %v10098 = vpop.f32.mrf.mxu0
        %v10099 = vadd.f32 %v9930, %v10098
        %v10100 = vpop.f32.mrf.mxu0
        %v10101 = vadd.f32 %v9932, %v10100
        %10102 = vmatmul.bf16.gmra.mxu0 %v9284
        %v10103 = vpop.f32.mrf.mxu0
        %v10104 = vadd.f32 %v9935, %v10103
        %v10105 = vpop.f32.mrf.mxu0
        %v10106 = vadd.f32 %v9937, %v10105
        %10107 = vmatmul.bf16.gmra.mxu0 %v9286
        %v10108 = vpop.f32.mrf.mxu0
        %v10109 = vadd.f32 %v9940, %v10108
        %v10110 = vpop.f32.mrf.mxu0
        %v10111 = vadd.f32 %v9942, %v10110
        %10112 = vmatmul.bf16.gmra.mxu0 %v9288
        %v10113 = vpop.f32.mrf.mxu0
        %v10114 = vadd.f32 %v9945, %v10113
        %v10115 = vpop.f32.mrf.mxu0
        %v10116 = vadd.f32 %v9947, %v10115
        %10117 = vmatmul.bf16.gmra.mxu0 %v9290
        %v10118 = vpop.f32.mrf.mxu0
        %v10119 = vadd.f32 %v9950, %v10118
        %v10120 = vpop.f32.mrf.mxu0
        %v10121 = vadd.f32 %v9952, %v10120
        %10122 = vmatmul.bf16.gmra.mxu0 %v9292
        %v10123 = vpop.f32.mrf.mxu0
        %v10124 = vadd.f32 %v9955, %v10123
        %v10125 = vpop.f32.mrf.mxu0
        %v10126 = vadd.f32 %v9957, %v10125
        %10127 = vmatmul.bf16.gmra.mxu0 %v9294
        %v10128 = vpop.f32.mrf.mxu0
        %v10129 = vadd.f32 %v9960, %v10128
        %v10130 = vpop.f32.mrf.mxu0
        %v10131 = vadd.f32 %v9962, %v10130
        %10132 = vmatmul.bf16.gmra.mxu0 %v9296
        %v10133 = vpop.f32.mrf.mxu0
        %v10134 = vadd.f32 %v9965, %v10133
        %v10135 = vpop.f32.mrf.mxu0
        %v10136 = vadd.f32 %v9967, %v10135
        %10137 = vmatmul.bf16.gmra.mxu0 %v9298
        %v10138 = vpop.f32.mrf.mxu0
        %v10139 = vadd.f32 %v9970, %v10138
        %v10140 = vpop.f32.mrf.mxu0
        %v10141 = vadd.f32 %v9972, %v10140
        %10142 = vmatmul.bf16.gmra.mxu0 %v9300
        %v10143 = vpop.f32.mrf.mxu0
        %v10144 = vadd.f32 %v9975, %v10143
        %v10145 = vpop.f32.mrf.mxu0
        %v10146 = vadd.f32 %v9977, %v10145
        %10147 = vmatmul.bf16.gmra.mxu0 %v9302
        %v10148 = vpop.f32.mrf.mxu0
        %v10149 = vadd.f32 %v9980, %v10148
        %v10150 = vpop.f32.mrf.mxu0
        %v10151 = vadd.f32 %v9982, %v10150
        %10152 = vmatmul.bf16.gmra.mxu0 %v9304
        %v10153 = vpop.f32.mrf.mxu0
        %v10154 = vadd.f32 %v9985, %v10153
        %v10155 = vpop.f32.mrf.mxu0
        %v10156 = vadd.f32 %v9987, %v10155
        %10157 = vmatmul.bf16.gmra.mxu0 %v9306
        %v10158 = vpop.f32.mrf.mxu0
        %v10159 = vadd.f32 %v9990, %v10158
        %v10160 = vpop.f32.mrf.mxu0
        %v10161 = vadd.f32 %v9992, %v10160
        %10162 = vmatmul.bf16.gmra.mxu0 %v9308
        %v10163 = vpop.f32.mrf.mxu0
        %v10164 = vadd.f32 %v9995, %v10163
        %v10165 = vpop.f32.mrf.mxu0
        %v10166 = vadd.f32 %v9997, %v10165
        %10167 = vmatmul.bf16.gmra.mxu0 %v9310
        %v10168 = vpop.f32.mrf.mxu0
        %v10169 = vadd.f32 %v10000, %v10168
        %v10170 = vpop.f32.mrf.mxu0
        %v10171 = vadd.f32 %v10002, %v10170
        %10172 = vmatmul.bf16.gmra.mxu0 %v9312
        %v10173 = vpop.f32.mrf.mxu0
        %v10174 = vadd.f32 %v10005, %v10173
        %v10175 = vpop.f32.mrf.mxu0
        %v10176 = vadd.f32 %v10007, %v10175
        %10177 = vmatmul.bf16.gmra.mxu0 %v9314
        %v10178 = vpop.f32.mrf.mxu0
        %v10179 = vadd.f32 %v10010, %v10178
        %v10180 = vpop.f32.mrf.mxu0
        %v10181 = vadd.f32 %v10012, %v10180
        %10182 = vmatmul.bf16.gmra.mxu0 %v9316
        %v10183 = vpop.f32.mrf.mxu0
        %v10184 = vadd.f32 %v10015, %v10183
        %v10185 = vpop.f32.mrf.mxu0
        %v10186 = vadd.f32 %v10017, %v10185
        %10187 = vdwg.mxu0
        %v10188 = vmax.f32 %v9691, 0.0
        %v10189 = vmax.f32 %v10029, 0.0
        %v10190 = vmax.f32 %v9693, 0.0
        %v10191 = vmax.f32 %v10031, 0.0
        %v10192 = vmax.f32 %v9696, 0.0
        %v10193 = vmax.f32 %v10034, 0.0
        %v10194 = vmax.f32 %v9698, 0.0
        %v10195 = vmax.f32 %v10036, 0.0
        %v10196 = vmax.f32 %v9701, 0.0
        %v10197 = vmax.f32 %v10039, 0.0
        %v10198 = vmax.f32 %v9703, 0.0
        %v10199 = vmax.f32 %v10041, 0.0
        %v10200 = vmax.f32 %v9706, 0.0
        %v10201 = vmax.f32 %v10044, 0.0
        %v10202 = vmax.f32 %v9708, 0.0
        %v10203 = vmax.f32 %v10046, 0.0
        %v10204 = vmax.f32 %v9711, 0.0
        %v10205 = vmax.f32 %v10049, 0.0
        %v10206 = vmax.f32 %v9713, 0.0
        %v10207 = vmax.f32 %v10051, 0.0
        %v10208 = vmax.f32 %v9716, 0.0
        %v10209 = vmax.f32 %v10054, 0.0
        %v10210 = vmax.f32 %v9718, 0.0
        %v10211 = vmax.f32 %v10056, 0.0
        %v10212 = vmax.f32 %v9721, 0.0
        %v10213 = vmax.f32 %v10059, 0.0
        %v10214 = vmax.f32 %v9723, 0.0
        %v10215 = vmax.f32 %v10061, 0.0
        %v10216 = vmax.f32 %v9726, 0.0
        %v10217 = vmax.f32 %v10064, 0.0
        %v10218 = vmax.f32 %v9728, 0.0
        %v10219 = vmax.f32 %v10066, 0.0
        %v10220 = vmax.f32 %v9731, 0.0
        %v10221 = vmax.f32 %v10069, 0.0
        %v10222 = vmax.f32 %v9733, 0.0
        %v10223 = vmax.f32 %v10071, 0.0
        %v10224 = vmax.f32 %v9736, 0.0
        %v10225 = vmax.f32 %v10074, 0.0
        %v10226 = vmax.f32 %v9738, 0.0
        %v10227 = vmax.f32 %v10076, 0.0
        %v10228 = vmax.f32 %v9741, 0.0
        %v10229 = vmax.f32 %v10079, 0.0
        %v10230 = vmax.f32 %v9743, 0.0
        %v10231 = vmax.f32 %v10081, 0.0
        %v10232 = vmax.f32 %v9746, 0.0
        %v10233 = vmax.f32 %v10084, 0.0
        %v10234 = vmax.f32 %v9748, 0.0
        %v10235 = vmax.f32 %v10086, 0.0
        %v10236 = vmax.f32 %v9751, 0.0
        %v10237 = vmax.f32 %v10089, 0.0
        %v10238 = vmax.f32 %v9753, 0.0
        %v10239 = vmax.f32 %v10091, 0.0
        %v10240 = vmax.f32 %v9756, 0.0
        %v10241 = vmax.f32 %v10094, 0.0
        %v10242 = vmax.f32 %v9758, 0.0
        %v10243 = vmax.f32 %v10096, 0.0
        %v10244 = vmax.f32 %v9761, 0.0
        %v10245 = vmax.f32 %v10099, 0.0
        %v10246 = vmax.f32 %v9763, 0.0
        %v10247 = vmax.f32 %v10101, 0.0
        %v10248 = vmax.f32 %v9766, 0.0
        %v10249 = vmax.f32 %v10104, 0.0
        %v10250 = vmax.f32 %v9768, 0.0
        %v10251 = vmax.f32 %v10106, 0.0
        %v10252 = vmax.f32 %v9771, 0.0
        %v10253 = vmax.f32 %v10109, 0.0
        %v10254 = vmax.f32 %v9773, 0.0
        %v10255 = vmax.f32 %v10111, 0.0
        %v10256 = vmax.f32 %v9776, 0.0
        %v10257 = vmax.f32 %v10114, 0.0
        %v10258 = vmax.f32 %v9778, 0.0
        %v10259 = vmax.f32 %v10116, 0.0
        %v10260 = vmax.f32 %v9781, 0.0
        %v10261 = vmax.f32 %v10119, 0.0
        %v10262 = vmax.f32 %v9783, 0.0
        %v10263 = vmax.f32 %v10121, 0.0
        %v10264 = vmax.f32 %v9786, 0.0
        %v10265 = vmax.f32 %v10124, 0.0
        %v10266 = vmax.f32 %v9788, 0.0
        %v10267 = vmax.f32 %v10126, 0.0
        %v10268 = vmax.f32 %v9791, 0.0
        %v10269 = vmax.f32 %v10129, 0.0
        %v10270 = vmax.f32 %v9793, 0.0
        %v10271 = vmax.f32 %v10131, 0.0
        %v10272 = vmax.f32 %v9796, 0.0
        %v10273 = vmax.f32 %v10134, 0.0
        %v10274 = vmax.f32 %v9798, 0.0
        %v10275 = vmax.f32 %v10136, 0.0
        %v10276 = vmax.f32 %v9801, 0.0
        %v10277 = vmax.f32 %v10139, 0.0
        %v10278 = vmax.f32 %v9803, 0.0
        %v10279 = vmax.f32 %v10141, 0.0
        %v10280 = vmax.f32 %v9806, 0.0
        %v10281 = vmax.f32 %v10144, 0.0
        %v10282 = vmax.f32 %v9808, 0.0
        %v10283 = vmax.f32 %v10146, 0.0
        %v10284 = vmax.f32 %v9811, 0.0
        %v10285 = vmax.f32 %v10149, 0.0
        %v10286 = vmax.f32 %v9813, 0.0
        %v10287 = vmax.f32 %v10151, 0.0
        %v10288 = vmax.f32 %v9816, 0.0
        %v10289 = vmax.f32 %v10154, 0.0
        %v10290 = vmax.f32 %v9818, 0.0
        %v10291 = vmax.f32 %v10156, 0.0
        %v10292 = vmax.f32 %v9821, 0.0
        %v10293 = vmax.f32 %v10159, 0.0
        %v10294 = vmax.f32 %v9823, 0.0
        %v10295 = vmax.f32 %v10161, 0.0
        %v10296 = vmax.f32 %v9826, 0.0
        %v10297 = vmax.f32 %v10164, 0.0
        %v10298 = vmax.f32 %v9828, 0.0
        %v10299 = vmax.f32 %v10166, 0.0
        %v10300 = vmax.f32 %v9831, 0.0
        %v10301 = vmax.f32 %v10169, 0.0
        %v10302 = vmax.f32 %v9833, 0.0
        %v10303 = vmax.f32 %v10171, 0.0
        %v10304 = vmax.f32 %v9836, 0.0
        %v10305 = vmax.f32 %v10174, 0.0
        %v10306 = vmax.f32 %v9838, 0.0
        %v10307 = vmax.f32 %v10176, 0.0
        %v10308 = vmax.f32 %v9841, 0.0
        %v10309 = vmax.f32 %v10179, 0.0
        %v10310 = vmax.f32 %v9843, 0.0
        %v10311 = vmax.f32 %v10181, 0.0
        %v10312 = vmax.f32 %v9846, 0.0
        %v10313 = vmax.f32 %v10184, 0.0
        %v10314 = vmax.f32 %v9848, 0.0
        %v10315 = vmax.f32 %v10186, 0.0
        %v10316 = vpack.c.bf16 %v10190, %v10188
        %v10317 = vpack.c.bf16 %v10191, %v10189
        %v10318 = vpack.c.bf16 %v10194, %v10192
        %v10319 = vpack.c.bf16 %v10195, %v10193
        %v10320 = vpack.c.bf16 %v10198, %v10196
        %v10321 = vpack.c.bf16 %v10199, %v10197
        %v10322 = vpack.c.bf16 %v10202, %v10200
        %v10323 = vpack.c.bf16 %v10203, %v10201
        %v10324 = vpack.c.bf16 %v10206, %v10204
        %v10325 = vpack.c.bf16 %v10207, %v10205
        %v10326 = vpack.c.bf16 %v10210, %v10208
        %v10327 = vpack.c.bf16 %v10211, %v10209
        %v10328 = vpack.c.bf16 %v10214, %v10212
        %v10329 = vpack.c.bf16 %v10215, %v10213
        %v10330 = vpack.c.bf16 %v10218, %v10216
        %v10331 = vpack.c.bf16 %v10219, %v10217
        %v10332 = vpack.c.bf16 %v10222, %v10220
        %v10333 = vpack.c.bf16 %v10223, %v10221
        %v10334 = vpack.c.bf16 %v10226, %v10224
        %v10335 = vpack.c.bf16 %v10227, %v10225
        %v10336 = vpack.c.bf16 %v10230, %v10228
        %v10337 = vpack.c.bf16 %v10231, %v10229
        %v10338 = vpack.c.bf16 %v10234, %v10232
        %v10339 = vpack.c.bf16 %v10235, %v10233
        %v10340 = vpack.c.bf16 %v10238, %v10236
        %v10341 = vpack.c.bf16 %v10239, %v10237
        %v10342 = vpack.c.bf16 %v10242, %v10240
        %v10343 = vpack.c.bf16 %v10243, %v10241
        %v10344 = vpack.c.bf16 %v10246, %v10244
        %v10345 = vpack.c.bf16 %v10247, %v10245
        %v10346 = vpack.c.bf16 %v10250, %v10248
        %v10347 = vpack.c.bf16 %v10251, %v10249
        %v10348 = vpack.c.bf16 %v10254, %v10252
        %v10349 = vpack.c.bf16 %v10255, %v10253
        %v10350 = vpack.c.bf16 %v10258, %v10256
        %v10351 = vpack.c.bf16 %v10259, %v10257
        %v10352 = vpack.c.bf16 %v10262, %v10260
        %v10353 = vpack.c.bf16 %v10263, %v10261
        %v10354 = vpack.c.bf16 %v10266, %v10264
        %v10355 = vpack.c.bf16 %v10267, %v10265
        %v10356 = vpack.c.bf16 %v10270, %v10268
        %v10357 = vpack.c.bf16 %v10271, %v10269
        %v10358 = vpack.c.bf16 %v10274, %v10272
        %v10359 = vpack.c.bf16 %v10275, %v10273
        %v10360 = vpack.c.bf16 %v10278, %v10276
        %v10361 = vpack.c.bf16 %v10279, %v10277
        %v10362 = vpack.c.bf16 %v10282, %v10280
        %v10363 = vpack.c.bf16 %v10283, %v10281
        %v10364 = vpack.c.bf16 %v10286, %v10284
        %v10365 = vpack.c.bf16 %v10287, %v10285
        %v10366 = vpack.c.bf16 %v10290, %v10288
        %v10367 = vpack.c.bf16 %v10291, %v10289
        %v10368 = vpack.c.bf16 %v10294, %v10292
        %v10369 = vpack.c.bf16 %v10295, %v10293
        %v10370 = vpack.c.bf16 %v10298, %v10296
        %v10371 = vpack.c.bf16 %v10299, %v10297
        %v10372 = vpack.c.bf16 %v10302, %v10300
        %v10373 = vpack.c.bf16 %v10303, %v10301
        %v10374 = vpack.c.bf16 %v10306, %v10304
        %v10375 = vpack.c.bf16 %v10307, %v10305
        %v10376 = vpack.c.bf16 %v10310, %v10308
        %v10377 = vpack.c.bf16 %v10311, %v10309
        %v10378 = vpack.c.bf16 %v10314, %v10312
        %v10379 = vpack.c.bf16 %v10315, %v10313
        %v10380 = vld [vmem:[%s4] sm:$0xf]
        %v10381 = vld [vmem:[%s4 + $0x4] sm:$0xf]
        %v10382 = vld [vmem:[%s4 + $0x8] sm:$0xf]
        %v10383 = vld [vmem:[%s4 + $0xc] sm:$0xf]
        %v10384 = vld [vmem:[%s4 + $0x10] sm:$0xf]
        %v10385 = vld [vmem:[%s4 + $0x14] sm:$0xf]
        %v10386 = vld [vmem:[%s4 + $0x18] sm:$0xf]
        %v10387 = vld [vmem:[%s4 + $0x1c] sm:$0xf]
        %v10388 = vld [vmem:[%s4 + $0x20] sm:$0xf]
        %v10389 = vld [vmem:[%s4 + $0x24] sm:$0xf]
        %v10390 = vld [vmem:[%s4 + $0x28] sm:$0xf]
        %v10391 = vld [vmem:[%s4 + $0x2c] sm:$0xf]
        %v10392 = vld [vmem:[%s4 + $0x30] sm:$0xf]
        %v10393 = vld [vmem:[%s4 + $0x34] sm:$0xf]
        %v10394 = vld [vmem:[%s4 + $0x38] sm:$0xf]
        %v10395 = vld [vmem:[%s4 + $0x3c] sm:$0xf]
        %v10396 = vld [vmem:[%s4 + $0x40] sm:$0xf]
        %v10397 = vld [vmem:[%s4 + $0x44] sm:$0xf]
        %v10398 = vld [vmem:[%s4 + $0x48] sm:$0xf]
        %v10399 = vld [vmem:[%s4 + $0x4c] sm:$0xf]
        %v10400 = vld [vmem:[%s4 + $0x50] sm:$0xf]
        %v10401 = vld [vmem:[%s4 + $0x54] sm:$0xf]
        %v10402 = vld [vmem:[%s4 + $0x58] sm:$0xf]
        %v10403 = vld [vmem:[%s4 + $0x5c] sm:$0xf]
        %v10404 = vld [vmem:[%s4 + $0x60] sm:$0xf]
        %v10405 = vld [vmem:[%s4 + $0x64] sm:$0xf]
        %v10406 = vld [vmem:[%s4 + $0x68] sm:$0xf]
        %v10407 = vld [vmem:[%s4 + $0x6c] sm:$0xf]
        %v10408 = vld [vmem:[%s4 + $0x70] sm:$0xf]
        %v10409 = vld [vmem:[%s4 + $0x74] sm:$0xf]
        %v10410 = vld [vmem:[%s4 + $0x78] sm:$0xf]
        %v10411 = vld [vmem:[%s4 + $0x7c] sm:$0xf]
        %v10412 = vld [vmem:[%s5] sm:$0x1]
        %v10414 = vperm.slane %v10412, 0
        %v10448 = vunpack.c.l.b16 %v10380
        %v10449 = vunpack.c.l.b16 %v10381
        %v10450 = vunpack.c.l.b16 %v10382
        %v10451 = vunpack.c.l.b16 %v10383
        %v10452 = vunpack.c.l.b16 %v10384
        %v10453 = vunpack.c.l.b16 %v10385
        %v10454 = vunpack.c.l.b16 %v10386
        %v10455 = vunpack.c.l.b16 %v10387
        %v10456 = vunpack.c.l.b16 %v10388
        %v10457 = vunpack.c.l.b16 %v10389
        %v10458 = vunpack.c.l.b16 %v10390
        %v10459 = vunpack.c.l.b16 %v10391
        %v10460 = vunpack.c.l.b16 %v10392
        %v10461 = vunpack.c.l.b16 %v10393
        %v10462 = vunpack.c.l.b16 %v10394
        %v10463 = vunpack.c.l.b16 %v10395
        %v10464 = vunpack.c.l.b16 %v10396
        %v10465 = vunpack.c.l.b16 %v10397
        %v10466 = vunpack.c.l.b16 %v10398
        %v10467 = vunpack.c.l.b16 %v10399
        %v10468 = vunpack.c.l.b16 %v10400
        %v10469 = vunpack.c.l.b16 %v10401
        %v10470 = vunpack.c.l.b16 %v10402
        %v10471 = vunpack.c.l.b16 %v10403
        %v10472 = vunpack.c.l.b16 %v10404
        %v10473 = vunpack.c.l.b16 %v10405
        %v10474 = vunpack.c.l.b16 %v10406
        %v10475 = vunpack.c.l.b16 %v10407
        %v10476 = vunpack.c.l.b16 %v10408
        %v10477 = vunpack.c.l.b16 %v10409
        %v10478 = vunpack.c.l.b16 %v10410
        %v10479 = vunpack.c.l.b16 %v10411
        %v10480 = vpack.c.b16 %v10449, %v10448
        %v10481 = vpack.c.b16 %v10451, %v10450
        %v10482 = vpack.c.b16 %v10453, %v10452
        %v10483 = vpack.c.b16 %v10455, %v10454
        %v10484 = vpack.c.b16 %v10457, %v10456
        %v10485 = vpack.c.b16 %v10459, %v10458
        %v10486 = vpack.c.b16 %v10461, %v10460
        %v10487 = vpack.c.b16 %v10463, %v10462
        %v10488 = vpack.c.b16 %v10465, %v10464
        %v10489 = vpack.c.b16 %v10467, %v10466
        %v10490 = vpack.c.b16 %v10469, %v10468
        %v10491 = vpack.c.b16 %v10471, %v10470
        %v10492 = vpack.c.b16 %v10473, %v10472
        %v10493 = vpack.c.b16 %v10475, %v10474
        %v10494 = vpack.c.b16 %v10477, %v10476
        %v10495 = vpack.c.b16 %v10479, %v10478
        %10512 = vmatpush.bf16.msra.mxu0 %v10487
        %10513 = vmatpush.bf16.msra.mxu0 %v10486
        %10514 = vmatpush.bf16.msra.mxu0 %v10485
        %10515 = vmatpush.bf16.msra.mxu0 %v10484
        %10516 = vmatpush.bf16.msra.mxu0 %v10483
        %10517 = vmatpush.bf16.msra.mxu0 %v10482
        %10518 = vmatpush.bf16.msra.mxu0 %v10481
        %10519 = vmatpush.bf16.msra.mxu0 %v10480
        %10520 = vmatmul.bf16.gmra.mxu0 %v10316
        %v10521 = vpop.f32.mrf.mxu0
        %v10522 = vadd.f32 %v10414, %v10521
        %v10523 = vpop.f32.mrf.mxu0
        %v10524 = vadd.f32 %v10414, %v10523
        %10525 = vmatmul.bf16.gmra.mxu0 %v10318
        %v10526 = vpop.f32.mrf.mxu0
        %v10527 = vadd.f32 %v10414, %v10526
        %v10528 = vpop.f32.mrf.mxu0
        %v10529 = vadd.f32 %v10414, %v10528
        %10530 = vmatmul.bf16.gmra.mxu0 %v10320
        %v10531 = vpop.f32.mrf.mxu0
        %v10532 = vadd.f32 %v10414, %v10531
        %v10533 = vpop.f32.mrf.mxu0
        %v10534 = vadd.f32 %v10414, %v10533
        %10535 = vmatmul.bf16.gmra.mxu0 %v10322
        %v10536 = vpop.f32.mrf.mxu0
        %v10537 = vadd.f32 %v10414, %v10536
        %v10538 = vpop.f32.mrf.mxu0
        %v10539 = vadd.f32 %v10414, %v10538
        %10540 = vmatmul.bf16.gmra.mxu0 %v10324
        %v10541 = vpop.f32.mrf.mxu0
        %v10542 = vadd.f32 %v10414, %v10541
        %v10543 = vpop.f32.mrf.mxu0
        %v10544 = vadd.f32 %v10414, %v10543
        %10545 = vmatmul.bf16.gmra.mxu0 %v10326
        %v10546 = vpop.f32.mrf.mxu0
        %v10547 = vadd.f32 %v10414, %v10546
        %v10548 = vpop.f32.mrf.mxu0
        %v10549 = vadd.f32 %v10414, %v10548
        %10550 = vmatmul.bf16.gmra.mxu0 %v10328
        %v10551 = vpop.f32.mrf.mxu0
        %v10552 = vadd.f32 %v10414, %v10551
        %v10553 = vpop.f32.mrf.mxu0
        %v10554 = vadd.f32 %v10414, %v10553
        %10555 = vmatmul.bf16.gmra.mxu0 %v10330
        %v10556 = vpop.f32.mrf.mxu0
        %v10557 = vadd.f32 %v10414, %v10556
        %v10558 = vpop.f32.mrf.mxu0
        %v10559 = vadd.f32 %v10414, %v10558
        %10560 = vmatmul.bf16.gmra.mxu0 %v10332
        %v10561 = vpop.f32.mrf.mxu0
        %v10562 = vadd.f32 %v10414, %v10561
        %v10563 = vpop.f32.mrf.mxu0
        %v10564 = vadd.f32 %v10414, %v10563
        %10565 = vmatmul.bf16.gmra.mxu0 %v10334
        %v10566 = vpop.f32.mrf.mxu0
        %v10567 = vadd.f32 %v10414, %v10566
        %v10568 = vpop.f32.mrf.mxu0
        %v10569 = vadd.f32 %v10414, %v10568
        %10570 = vmatmul.bf16.gmra.mxu0 %v10336
        %v10571 = vpop.f32.mrf.mxu0
        %v10572 = vadd.f32 %v10414, %v10571
        %v10573 = vpop.f32.mrf.mxu0
        %v10574 = vadd.f32 %v10414, %v10573
        %10575 = vmatmul.bf16.gmra.mxu0 %v10338
        %v10576 = vpop.f32.mrf.mxu0
        %v10577 = vadd.f32 %v10414, %v10576
        %v10578 = vpop.f32.mrf.mxu0
        %v10579 = vadd.f32 %v10414, %v10578
        %10580 = vmatmul.bf16.gmra.mxu0 %v10340
        %v10581 = vpop.f32.mrf.mxu0
        %v10582 = vadd.f32 %v10414, %v10581
        %v10583 = vpop.f32.mrf.mxu0
        %v10584 = vadd.f32 %v10414, %v10583
        %10585 = vmatmul.bf16.gmra.mxu0 %v10342
        %v10586 = vpop.f32.mrf.mxu0
        %v10587 = vadd.f32 %v10414, %v10586
        %v10588 = vpop.f32.mrf.mxu0
        %v10589 = vadd.f32 %v10414, %v10588
        %10590 = vmatmul.bf16.gmra.mxu0 %v10344
        %v10591 = vpop.f32.mrf.mxu0
        %v10592 = vadd.f32 %v10414, %v10591
        %v10593 = vpop.f32.mrf.mxu0
        %v10594 = vadd.f32 %v10414, %v10593
        %10595 = vmatmul.bf16.gmra.mxu0 %v10346
        %v10596 = vpop.f32.mrf.mxu0
        %v10597 = vadd.f32 %v10414, %v10596
        %v10598 = vpop.f32.mrf.mxu0
        %v10599 = vadd.f32 %v10414, %v10598
        %10600 = vmatmul.bf16.gmra.mxu0 %v10348
        %v10601 = vpop.f32.mrf.mxu0
        %v10602 = vadd.f32 %v10414, %v10601
        %v10603 = vpop.f32.mrf.mxu0
        %v10604 = vadd.f32 %v10414, %v10603
        %10605 = vmatmul.bf16.gmra.mxu0 %v10350
        %v10606 = vpop.f32.mrf.mxu0
        %v10607 = vadd.f32 %v10414, %v10606
        %v10608 = vpop.f32.mrf.mxu0
        %v10609 = vadd.f32 %v10414, %v10608
        %10610 = vmatmul.bf16.gmra.mxu0 %v10352
        %v10611 = vpop.f32.mrf.mxu0
        %v10612 = vadd.f32 %v10414, %v10611
        %v10613 = vpop.f32.mrf.mxu0
        %v10614 = vadd.f32 %v10414, %v10613
        %10615 = vmatmul.bf16.gmra.mxu0 %v10354
        %v10616 = vpop.f32.mrf.mxu0
        %v10617 = vadd.f32 %v10414, %v10616
        %v10618 = vpop.f32.mrf.mxu0
        %v10619 = vadd.f32 %v10414, %v10618
        %10620 = vmatmul.bf16.gmra.mxu0 %v10356
        %v10621 = vpop.f32.mrf.mxu0
        %v10622 = vadd.f32 %v10414, %v10621
        %v10623 = vpop.f32.mrf.mxu0
        %v10624 = vadd.f32 %v10414, %v10623
        %10625 = vmatmul.bf16.gmra.mxu0 %v10358
        %v10626 = vpop.f32.mrf.mxu0
        %v10627 = vadd.f32 %v10414, %v10626
        %v10628 = vpop.f32.mrf.mxu0
        %v10629 = vadd.f32 %v10414, %v10628
        %10630 = vmatmul.bf16.gmra.mxu0 %v10360
        %v10631 = vpop.f32.mrf.mxu0
        %v10632 = vadd.f32 %v10414, %v10631
        %v10633 = vpop.f32.mrf.mxu0
        %v10634 = vadd.f32 %v10414, %v10633
        %10635 = vmatmul.bf16.gmra.mxu0 %v10362
        %v10636 = vpop.f32.mrf.mxu0
        %v10637 = vadd.f32 %v10414, %v10636
        %v10638 = vpop.f32.mrf.mxu0
        %v10639 = vadd.f32 %v10414, %v10638
        %10640 = vmatmul.bf16.gmra.mxu0 %v10364
        %v10641 = vpop.f32.mrf.mxu0
        %v10642 = vadd.f32 %v10414, %v10641
        %v10643 = vpop.f32.mrf.mxu0
        %v10644 = vadd.f32 %v10414, %v10643
        %10645 = vmatmul.bf16.gmra.mxu0 %v10366
        %v10646 = vpop.f32.mrf.mxu0
        %v10647 = vadd.f32 %v10414, %v10646
        %v10648 = vpop.f32.mrf.mxu0
        %v10649 = vadd.f32 %v10414, %v10648
        %10650 = vmatmul.bf16.gmra.mxu0 %v10368
        %v10651 = vpop.f32.mrf.mxu0
        %v10652 = vadd.f32 %v10414, %v10651
        %v10653 = vpop.f32.mrf.mxu0
        %v10654 = vadd.f32 %v10414, %v10653
        %10655 = vmatmul.bf16.gmra.mxu0 %v10370
        %v10656 = vpop.f32.mrf.mxu0
        %v10657 = vadd.f32 %v10414, %v10656
        %v10658 = vpop.f32.mrf.mxu0
        %v10659 = vadd.f32 %v10414, %v10658
        %10660 = vmatmul.bf16.gmra.mxu0 %v10372
        %v10661 = vpop.f32.mrf.mxu0
        %v10662 = vadd.f32 %v10414, %v10661
        %v10663 = vpop.f32.mrf.mxu0
        %v10664 = vadd.f32 %v10414, %v10663
        %10665 = vmatmul.bf16.gmra.mxu0 %v10374
        %v10666 = vpop.f32.mrf.mxu0
        %v10667 = vadd.f32 %v10414, %v10666
        %v10668 = vpop.f32.mrf.mxu0
        %v10669 = vadd.f32 %v10414, %v10668
        %10670 = vmatmul.bf16.gmra.mxu0 %v10376
        %v10671 = vpop.f32.mrf.mxu0
        %v10672 = vadd.f32 %v10414, %v10671
        %v10673 = vpop.f32.mrf.mxu0
        %v10674 = vadd.f32 %v10414, %v10673
        %10675 = vmatmul.bf16.gmra.mxu0 %v10378
        %v10676 = vpop.f32.mrf.mxu0
        %v10677 = vadd.f32 %v10414, %v10676
        %v10678 = vpop.f32.mrf.mxu0
        %v10679 = vadd.f32 %v10414, %v10678
        %10680 = vdwg.mxu0
        %10681 = vmatpush.bf16.msra.mxu0 %v10495
        %10682 = vmatpush.bf16.msra.mxu0 %v10494
        %10683 = vmatpush.bf16.msra.mxu0 %v10493
        %10684 = vmatpush.bf16.msra.mxu0 %v10492
        %10685 = vmatpush.bf16.msra.mxu0 %v10491
        %10686 = vmatpush.bf16.msra.mxu0 %v10490
        %10687 = vmatpush.bf16.msra.mxu0 %v10489
        %10688 = vmatpush.bf16.msra.mxu0 %v10488
        %10689 = vmatmul.bf16.gmra.mxu0 %v10317
        %v10690 = vpop.f32.mrf.mxu0
        %v10691 = vadd.f32 %v10522, %v10690
        %v10692 = vpop.f32.mrf.mxu0
        %v10693 = vadd.f32 %v10524, %v10692
        %10694 = vmatmul.bf16.gmra.mxu0 %v10319
        %v10695 = vpop.f32.mrf.mxu0
        %v10696 = vadd.f32 %v10527, %v10695
        %v10697 = vpop.f32.mrf.mxu0
        %v10698 = vadd.f32 %v10529, %v10697
        %10699 = vmatmul.bf16.gmra.mxu0 %v10321
        %v10700 = vpop.f32.mrf.mxu0
        %v10701 = vadd.f32 %v10532, %v10700
        %v10702 = vpop.f32.mrf.mxu0
        %v10703 = vadd.f32 %v10534, %v10702
        %10704 = vmatmul.bf16.gmra.mxu0 %v10323
        %v10705 = vpop.f32.mrf.mxu0
        %v10706 = vadd.f32 %v10537, %v10705
        %v10707 = vpop.f32.mrf.mxu0
        %v10708 = vadd.f32 %v10539, %v10707
        %10709 = vmatmul.bf16.gmra.mxu0 %v10325
        %v10710 = vpop.f32.mrf.mxu0
        %v10711 = vadd.f32 %v10542, %v10710
        %v10712 = vpop.f32.mrf.mxu0
        %v10713 = vadd.f32 %v10544, %v10712
        %10714 = vmatmul.bf16.gmra.mxu0 %v10327
        %v10715 = vpop.f32.mrf.mxu0
        %v10716 = vadd.f32 %v10547, %v10715
        %v10717 = vpop.f32.mrf.mxu0
        %v10718 = vadd.f32 %v10549, %v10717
        %10719 = vmatmul.bf16.gmra.mxu0 %v10329
        %v10720 = vpop.f32.mrf.mxu0
        %v10721 = vadd.f32 %v10552, %v10720
        %v10722 = vpop.f32.mrf.mxu0
        %v10723 = vadd.f32 %v10554, %v10722
        %10724 = vmatmul.bf16.gmra.mxu0 %v10331
        %v10725 = vpop.f32.mrf.mxu0
        %v10726 = vadd.f32 %v10557, %v10725
        %v10727 = vpop.f32.mrf.mxu0
        %v10728 = vadd.f32 %v10559, %v10727
        %10729 = vmatmul.bf16.gmra.mxu0 %v10333
        %v10730 = vpop.f32.mrf.mxu0
        %v10731 = vadd.f32 %v10562, %v10730
        %v10732 = vpop.f32.mrf.mxu0
        %v10733 = vadd.f32 %v10564, %v10732
        %10734 = vmatmul.bf16.gmra.mxu0 %v10335
        %v10735 = vpop.f32.mrf.mxu0
        %v10736 = vadd.f32 %v10567, %v10735
        %v10737 = vpop.f32.mrf.mxu0
        %v10738 = vadd.f32 %v10569, %v10737
        %10739 = vmatmul.bf16.gmra.mxu0 %v10337
        %v10740 = vpop.f32.mrf.mxu0
        %v10741 = vadd.f32 %v10572, %v10740
        %v10742 = vpop.f32.mrf.mxu0
        %v10743 = vadd.f32 %v10574, %v10742
        %10744 = vmatmul.bf16.gmra.mxu0 %v10339
        %v10745 = vpop.f32.mrf.mxu0
        %v10746 = vadd.f32 %v10577, %v10745
        %v10747 = vpop.f32.mrf.mxu0
        %v10748 = vadd.f32 %v10579, %v10747
        %10749 = vmatmul.bf16.gmra.mxu0 %v10341
        %v10750 = vpop.f32.mrf.mxu0
        %v10751 = vadd.f32 %v10582, %v10750
        %v10752 = vpop.f32.mrf.mxu0
        %v10753 = vadd.f32 %v10584, %v10752
        %10754 = vmatmul.bf16.gmra.mxu0 %v10343
        %v10755 = vpop.f32.mrf.mxu0
        %v10756 = vadd.f32 %v10587, %v10755
        %v10757 = vpop.f32.mrf.mxu0
        %v10758 = vadd.f32 %v10589, %v10757
        %10759 = vmatmul.bf16.gmra.mxu0 %v10345
        %v10760 = vpop.f32.mrf.mxu0
        %v10761 = vadd.f32 %v10592, %v10760
        %v10762 = vpop.f32.mrf.mxu0
        %v10763 = vadd.f32 %v10594, %v10762
        %10764 = vmatmul.bf16.gmra.mxu0 %v10347
        %v10765 = vpop.f32.mrf.mxu0
        %v10766 = vadd.f32 %v10597, %v10765
        %v10767 = vpop.f32.mrf.mxu0
        %v10768 = vadd.f32 %v10599, %v10767
        %10769 = vmatmul.bf16.gmra.mxu0 %v10349
        %v10770 = vpop.f32.mrf.mxu0
        %v10771 = vadd.f32 %v10602, %v10770
        %v10772 = vpop.f32.mrf.mxu0
        %v10773 = vadd.f32 %v10604, %v10772
        %10774 = vmatmul.bf16.gmra.mxu0 %v10351
        %v10775 = vpop.f32.mrf.mxu0
        %v10776 = vadd.f32 %v10607, %v10775
        %v10777 = vpop.f32.mrf.mxu0
        %v10778 = vadd.f32 %v10609, %v10777
        %10779 = vmatmul.bf16.gmra.mxu0 %v10353
        %v10780 = vpop.f32.mrf.mxu0
        %v10781 = vadd.f32 %v10612, %v10780
        %v10782 = vpop.f32.mrf.mxu0
        %v10783 = vadd.f32 %v10614, %v10782
        %10784 = vmatmul.bf16.gmra.mxu0 %v10355
        %v10785 = vpop.f32.mrf.mxu0
        %v10786 = vadd.f32 %v10617, %v10785
        %v10787 = vpop.f32.mrf.mxu0
        %v10788 = vadd.f32 %v10619, %v10787
        %10789 = vmatmul.bf16.gmra.mxu0 %v10357
        %v10790 = vpop.f32.mrf.mxu0
        %v10791 = vadd.f32 %v10622, %v10790
        %v10792 = vpop.f32.mrf.mxu0
        %v10793 = vadd.f32 %v10624, %v10792
        %10794 = vmatmul.bf16.gmra.mxu0 %v10359
        %v10795 = vpop.f32.mrf.mxu0
        %v10796 = vadd.f32 %v10627, %v10795
        %v10797 = vpop.f32.mrf.mxu0
        %v10798 = vadd.f32 %v10629, %v10797
        %10799 = vmatmul.bf16.gmra.mxu0 %v10361
        %v10800 = vpop.f32.mrf.mxu0
        %v10801 = vadd.f32 %v10632, %v10800
        %v10802 = vpop.f32.mrf.mxu0
        %v10803 = vadd.f32 %v10634, %v10802
        %10804 = vmatmul.bf16.gmra.mxu0 %v10363
        %v10805 = vpop.f32.mrf.mxu0
        %v10806 = vadd.f32 %v10637, %v10805
        %v10807 = vpop.f32.mrf.mxu0
        %v10808 = vadd.f32 %v10639, %v10807
        %10809 = vmatmul.bf16.gmra.mxu0 %v10365
        %v10810 = vpop.f32.mrf.mxu0
        %v10811 = vadd.f32 %v10642, %v10810
        %v10812 = vpop.f32.mrf.mxu0
        %v10813 = vadd.f32 %v10644, %v10812
        %10814 = vmatmul.bf16.gmra.mxu0 %v10367
        %v10815 = vpop.f32.mrf.mxu0
        %v10816 = vadd.f32 %v10647, %v10815
        %v10817 = vpop.f32.mrf.mxu0
        %v10818 = vadd.f32 %v10649, %v10817
        %10819 = vmatmul.bf16.gmra.mxu0 %v10369
        %v10820 = vpop.f32.mrf.mxu0
        %v10821 = vadd.f32 %v10652, %v10820
        %v10822 = vpop.f32.mrf.mxu0
        %v10823 = vadd.f32 %v10654, %v10822
        %10824 = vmatmul.bf16.gmra.mxu0 %v10371
        %v10825 = vpop.f32.mrf.mxu0
        %v10826 = vadd.f32 %v10657, %v10825
        %v10827 = vpop.f32.mrf.mxu0
        %v10828 = vadd.f32 %v10659, %v10827
        %10829 = vmatmul.bf16.gmra.mxu0 %v10373
        %v10830 = vpop.f32.mrf.mxu0
        %v10831 = vadd.f32 %v10662, %v10830
        %v10832 = vpop.f32.mrf.mxu0
        %v10833 = vadd.f32 %v10664, %v10832
        %10834 = vmatmul.bf16.gmra.mxu0 %v10375
        %v10835 = vpop.f32.mrf.mxu0
        %v10836 = vadd.f32 %v10667, %v10835
        %v10837 = vpop.f32.mrf.mxu0
        %v10838 = vadd.f32 %v10669, %v10837
        %10839 = vmatmul.bf16.gmra.mxu0 %v10377
        %v10840 = vpop.f32.mrf.mxu0
        %v10841 = vadd.f32 %v10672, %v10840
        %v10842 = vpop.f32.mrf.mxu0
        %v10843 = vadd.f32 %v10674, %v10842
        %10844 = vmatmul.bf16.gmra.mxu0 %v10379
        %v10845 = vpop.f32.mrf.mxu0
        %v10846 = vadd.f32 %v10677, %v10845
        %v10847 = vpop.f32.mrf.mxu0
        %v10848 = vadd.f32 %v10679, %v10847
        %10849 = vdwg.mxu0
        %vm10850 = vcmask 31744
        %10851 = vst.msk [vmem:[%s270] sm:$0xff] %vm10850, %v10691
        %10852 = vst.msk [vmem:[%s270 + $0x8] sm:$0xff] %vm10850, %v10693
        %10853 = vst.msk [vmem:[%s270 + $0x10] sm:$0xff] %vm10850, %v10696
        %10854 = vst.msk [vmem:[%s270 + $0x18] sm:$0xff] %vm10850, %v10698
        %10855 = vst.msk [vmem:[%s270 + $0x20] sm:$0xff] %vm10850, %v10701
        %10856 = vst.msk [vmem:[%s270 + $0x28] sm:$0xff] %vm10850, %v10703
        %10857 = vst.msk [vmem:[%s270 + $0x30] sm:$0xff] %vm10850, %v10706
        %10858 = vst.msk [vmem:[%s270 + $0x38] sm:$0xff] %vm10850, %v10708
        %10859 = vst.msk [vmem:[%s270 + $0x40] sm:$0xff] %vm10850, %v10711
        %10860 = vst.msk [vmem:[%s270 + $0x48] sm:$0xff] %vm10850, %v10713
        %10861 = vst.msk [vmem:[%s270 + $0x50] sm:$0xff] %vm10850, %v10716
        %10862 = vst.msk [vmem:[%s270 + $0x58] sm:$0xff] %vm10850, %v10718
        %10863 = vst.msk [vmem:[%s270 + $0x60] sm:$0xff] %vm10850, %v10721
        %10864 = vst.msk [vmem:[%s270 + $0x68] sm:$0xff] %vm10850, %v10723
        %10865 = vst.msk [vmem:[%s270 + $0x70] sm:$0xff] %vm10850, %v10726
        %10866 = vst.msk [vmem:[%s270 + $0x78] sm:$0xff] %vm10850, %v10728
        %10867 = vst.msk [vmem:[%s270 + $0x80] sm:$0xff] %vm10850, %v10731
        %10868 = vst.msk [vmem:[%s270 + $0x88] sm:$0xff] %vm10850, %v10733
        %10869 = vst.msk [vmem:[%s270 + $0x90] sm:$0xff] %vm10850, %v10736
        %10870 = vst.msk [vmem:[%s270 + $0x98] sm:$0xff] %vm10850, %v10738
        %10871 = vst.msk [vmem:[%s270 + $0xa0] sm:$0xff] %vm10850, %v10741
        %10872 = vst.msk [vmem:[%s270 + $0xa8] sm:$0xff] %vm10850, %v10743
        %10873 = vst.msk [vmem:[%s270 + $0xb0] sm:$0xff] %vm10850, %v10746
        %10874 = vst.msk [vmem:[%s270 + $0xb8] sm:$0xff] %vm10850, %v10748
        %10875 = vst.msk [vmem:[%s270 + $0xc0] sm:$0xff] %vm10850, %v10751
        %10876 = vst.msk [vmem:[%s270 + $0xc8] sm:$0xff] %vm10850, %v10753
        %10877 = vst.msk [vmem:[%s270 + $0xd0] sm:$0xff] %vm10850, %v10756
        %10878 = vst.msk [vmem:[%s270 + $0xd8] sm:$0xff] %vm10850, %v10758
        %10879 = vst.msk [vmem:[%s270 + $0xe0] sm:$0xff] %vm10850, %v10761
        %10880 = vst.msk [vmem:[%s270 + $0xe8] sm:$0xff] %vm10850, %v10763
        %10881 = vst.msk [vmem:[%s270 + $0xf0] sm:$0xff] %vm10850, %v10766
        %10882 = vst.msk [vmem:[%s270 + $0xf8] sm:$0xff] %vm10850, %v10768
        %10883 = vst.msk [vmem:[%s270 + $0x100] sm:$0xff] %vm10850, %v10771
        %10884 = vst.msk [vmem:[%s270 + $0x108] sm:$0xff] %vm10850, %v10773
        %10885 = vst.msk [vmem:[%s270 + $0x110] sm:$0xff] %vm10850, %v10776
        %10886 = vst.msk [vmem:[%s270 + $0x118] sm:$0xff] %vm10850, %v10778
        %10887 = vst.msk [vmem:[%s270 + $0x120] sm:$0xff] %vm10850, %v10781
        %10888 = vst.msk [vmem:[%s270 + $0x128] sm:$0xff] %vm10850, %v10783
        %10889 = vst.msk [vmem:[%s270 + $0x130] sm:$0xff] %vm10850, %v10786
        %10890 = vst.msk [vmem:[%s270 + $0x138] sm:$0xff] %vm10850, %v10788
        %10891 = vst.msk [vmem:[%s270 + $0x140] sm:$0xff] %vm10850, %v10791
        %10892 = vst.msk [vmem:[%s270 + $0x148] sm:$0xff] %vm10850, %v10793
        %10893 = vst.msk [vmem:[%s270 + $0x150] sm:$0xff] %vm10850, %v10796
        %10894 = vst.msk [vmem:[%s270 + $0x158] sm:$0xff] %vm10850, %v10798
        %10895 = vst.msk [vmem:[%s270 + $0x160] sm:$0xff] %vm10850, %v10801
        %10896 = vst.msk [vmem:[%s270 + $0x168] sm:$0xff] %vm10850, %v10803
        %10897 = vst.msk [vmem:[%s270 + $0x170] sm:$0xff] %vm10850, %v10806
        %10898 = vst.msk [vmem:[%s270 + $0x178] sm:$0xff] %vm10850, %v10808
        %10899 = vst.msk [vmem:[%s270 + $0x180] sm:$0xff] %vm10850, %v10811
        %10900 = vst.msk [vmem:[%s270 + $0x188] sm:$0xff] %vm10850, %v10813
        %10901 = vst.msk [vmem:[%s270 + $0x190] sm:$0xff] %vm10850, %v10816
        %10902 = vst.msk [vmem:[%s270 + $0x198] sm:$0xff] %vm10850, %v10818
        %10903 = vst.msk [vmem:[%s270 + $0x1a0] sm:$0xff] %vm10850, %v10821
        %10904 = vst.msk [vmem:[%s270 + $0x1a8] sm:$0xff] %vm10850, %v10823
        %10905 = vst.msk [vmem:[%s270 + $0x1b0] sm:$0xff] %vm10850, %v10826
        %10906 = vst.msk [vmem:[%s270 + $0x1b8] sm:$0xff] %vm10850, %v10828
        %10907 = vst.msk [vmem:[%s270 + $0x1c0] sm:$0xff] %vm10850, %v10831
        %10908 = vst.msk [vmem:[%s270 + $0x1c8] sm:$0xff] %vm10850, %v10833
        %10909 = vst.msk [vmem:[%s270 + $0x1d0] sm:$0xff] %vm10850, %v10836
        %10910 = vst.msk [vmem:[%s270 + $0x1d8] sm:$0xff] %vm10850, %v10838
        %10911 = vst.msk [vmem:[%s270 + $0x1e0] sm:$0xff] %vm10850, %v10841
        %10912 = vst.msk [vmem:[%s270 + $0x1e8] sm:$0xff] %vm10850, %v10843
        %10913 = vst.msk [vmem:[%s270 + $0x1f0] sm:$0xff] %vm10850, %v10846
        %10914 = vst.msk [vmem:[%s270 + $0x1f8] sm:$0xff] %vm10850, %v10848
        %s10915 = smul.u32 64, %s18
        %p10916 = scmp.lt.s32.totalorder %s10915, 127
        %s10917 = scalar_select %p10916, %s10915, 127
        %s10918 = smul.addr %s10917, 8
        %s10919 = scalar_lea.vmem %s6, %s10918
        // Predicated region
        $region49: #{tpu_custom_call.1} parent=43 // pred_check
          %p10920 = pneg %p167
        $region50: #{tpu_custom_call.1} parent=43 // pred_check_branch
          %10922 = sbr.rel (%p10920) target = $region52
        $region51: #{tpu_custom_call.1} parent=43 // pred_region
          %s10923 = smul.u32 64, %s18
        $region52: #{tpu_custom_call.1} parent=43 // pred_fallthru
          _
      $region44: #{tpu_custom_call.1} parent=5 // pred_fallthru
        _
      %p10924 = scmp.le.s32.totalorder 2, %s13
      // Predicated region
      $region53: #{tpu_custom_call.1} parent=5 // pred_check
        %p10925 = pneg %p10924
      $region54: #{tpu_custom_call.1} parent=5 // pred_check_branch
        %10927 = sbr.rel (%p10925) target = $region56
      $region55: #{tpu_custom_call.1} parent=5 // pred_region
        %s10928 = ssub.s32 %s13, 2
        // Predicated region
        $region57: #{tpu_custom_call.1} parent=55 // pred_check
          %p10929 = pneg %p173
        $region58: #{tpu_custom_call.1} parent=55 // pred_check_branch
          %10931 = sbr.rel (%p10929) target = $region60
        $region59: #{tpu_custom_call.1} parent=55 // pred_region
          %s10932 = smul.u32 64, %s19
          %p10933 = scmp.lt.s32.totalorder %s10932, 127
          %s10934 = scalar_select %p10933, %s10932, 127
          %s10935 = smul.addr %s10934, 8
          %s10936 = scalar_lea.vmem %s6, %s10935
        $region60: #{tpu_custom_call.1} parent=55 // pred_fallthru
          _
      $region56: #{tpu_custom_call.1} parent=5 // pred_fallthru
        _
    $region6: #{tpu_custom_call.1} parent=1 // loop_footer
      %s17 = sadd.s32 1, %s13
    $region7: #{tpu_custom_call.1} parent=1 // loop_footer_branch
      %12 = sbr.rel target = $region3
    $region8: #{tpu_custom_call.1} parent=1 // loop_exit
      _
    %10937 = vsyncpa [#allocation3], 1
    %s10938 = scalar_lea.sflag [#allocation3], 1
    %10939 = vsyncpa %s10938, 1

</llo_original>
